<compile_context>
chip_gen: v5e
topology: v5e:2x2
jax: 0.10.0
libtpu: 0.0.40
codegen_flags: <defaults>
</compile_context>

<pallas_src>
import functools

import jax
import jax.numpy as jnp
import numpy as np
from jax.experimental import pallas as pl
from jax.experimental.pallas import tpu as pltpu


# -----------------------------------------------------------------------------
# Pallas kernel: one batch element per grid step; all branches + fc1 fused.
# -----------------------------------------------------------------------------
def _aspp_kernel(bias_ref, x_ref, w0_ref, b0_ref, w3_ref, b3_ref,
                 wf0_ref, wf3_ref, out_ref, xpad_ref, *, H, W, P, rates):
    Cin = x_ref.shape[3]
    Cout = wf0_ref.shape[1]
    Wp = W + 2 * P
    M = H * Wp                      # flat matmul M dim (padded width included)
    LBUF = xpad_ref.shape[0]

    # ---- build the zero-padded image in a flat (row*Wp + col, Cin) VMEM buffer.
    # Border zeroing is a pure store pass; interior rows overwrite it.  The extra
    # tail row keeps every tap window in-bounds.  (Padding exists only in VMEM.)
    xpad_ref[...] = jnp.zeros((LBUF, Cin), jnp.bfloat16)
    for y in range(H):
        xpad_ref[pl.ds((P + y) * Wp + P, W), :] = x_ref[0, y]

    def tap(dy, dx):
        # Contiguous (M, Cin) window.  For *every* tap, flat row m = y*Wp + x
        # corresponds to output pixel (y, x); columns x >= W are padding rows
        # that get dropped at the end, so all taps accumulate with no reshuffle.
        return xpad_ref[pl.ds((P + dy) * Wp + (P + dx), M), :]

    # ---- branch c0: 1x1 conv (BN scale folded) + bias + ReLU, then its fc1
    # slice.  The fc1 BN bias and the whole image-pool branch are pre-folded
    # into the per-image bias_ref, added with the first fc1 dot.
    h0 = jnp.maximum(
        jnp.dot(tap(0, 0), w0_ref[...], preferred_element_type=jnp.float32)
        + b0_ref[...], 0.0)
    yacc = jnp.dot(h0.astype(jnp.bfloat16), wf0_ref[...],
                   preferred_element_type=jnp.float32) + bias_ref[0]

    # ---- branches c1..cR: 3x3 dilated conv = 9 aligned-tap matmuls summed as
    # values (no VMEM accumulator round-trips), then bias + ReLU + fc1 slice.
    for r_idx, r in enumerate(rates):
        acc = None
        for ky in range(3):
            for kx in range(3):
                d = jnp.dot(tap((ky - 1) * r, (kx - 1) * r),
                            w3_ref[r_idx * 9 + ky * 3 + kx],
                            preferred_element_type=jnp.float32)
                acc = d if acc is None else acc + d
        hr = jnp.maximum(acc + b3_ref[r_idx], 0.0)
        yacc = yacc + jnp.dot(hr.astype(jnp.bfloat16), wf3_ref[r_idx],
                              preferred_element_type=jnp.float32)

    # ---- final fc1 ReLU; drop padded columns and store straight to the output.
    out_ref[0] = jnp.maximum(yacc, 0.0).reshape(H, Wp, Cout)[:, :W, :]


# -----------------------------------------------------------------------------
# Parameter folding: BN scales into weights, fc1 weight split per branch, bf16.
# -----------------------------------------------------------------------------
def _fold_params(params, rates):
    R = len(rates)
    Cin = params['w0'].shape[0]
    Cm = params['w0'].shape[1]
    s0, b0 = params['sb0'][0], params['sb0'][1]
    s3, b3 = params['sb3'][:, 0], params['sb3'][:, 1]          # (R, Cm)
    sp, bp = params['sbp'][0], params['sbp'][1]
    sf, bf = params['sbf'][0], params['sbf'][1]

    wf_s = params['wf'] * sf[None, :]                          # fc1 BN scale folded
    w3 = params['w3'] * s3[:, None, None, None, :]             # (R,3,3,Cin,Cm)
    return dict(
        w0=(params['w0'] * s0[None, :]).astype(jnp.bfloat16),
        b0=b0.reshape(1, Cm).astype(jnp.float32),
        w3=w3.reshape(R * 9, Cin, Cm).astype(jnp.bfloat16),    # tap-major layout
        b3=b3.reshape(R, 1, Cm).astype(jnp.float32),
        wp=(params['wp'] * sp[None, :]).astype(jnp.float32),   # pool pre-pass (tiny)
        bp=bp.astype(jnp.float32),
        wf0=wf_s[0:Cm].astype(jnp.bfloat16),
        wf3=wf_s[Cm:(R + 1) * Cm].reshape(R, Cm, -1).astype(jnp.bfloat16),
        wfp=wf_s[(R + 1) * Cm:(R + 2) * Cm].astype(jnp.float32),
        bf=bf.astype(jnp.float32),
    )


def _vmem_limit_bytes():
    # v5e/v6e: 128 MiB physical VMEM -> ~110 MiB; v7x: 64 MiB -> ~56 MiB.
    try:
        cap = int(pltpu.get_tpu_info().vmem_capacity_bytes)
    except Exception:
        cap = 48 * 1024 * 1024
    return int(min(cap - cap // 8, 110 * 1024 * 1024))


# -----------------------------------------------------------------------------
# Wrapper: image-pool pre-pass folded to a bias, grid over batch, pallas_call.
# -----------------------------------------------------------------------------
@functools.partial(jax.jit, static_argnames=("rates",))
def aspp_apply_nhwc(x_nhwc, params, rates):
    N, H, W, Cin = x_nhwc.shape
    P = max(rates)
    Wp = W + 2 * P
    fp = _fold_params(params, rates)
    Cout = fp['wf0'].shape[1]

    # --- image-pool branch pre-pass (tiny), folded through fc1 into a bias ---
    x32 = x_nhwc.astype(jnp.float32)
    gap = jnp.mean(x32, axis=(1, 2))                               # (N, Cin)
    hp = jnp.maximum(gap @ fp['wp'] + fp['bp'][None, :], 0.0)      # (N, Cm)
    bias_total = (hp @ fp['wfp'] + fp['bf'][None, :])              # (N, Cout)
    bias_total = bias_total.reshape(N, 1, Cout).astype(jnp.float32)

    x_bf16 = x_nhwc.astype(jnp.bfloat16)

    LBUF = (H + 2 * P + 1) * Wp                                    # +1 tail row

    def _full(arr):
        nd = arr.ndim
        return pl.BlockSpec(arr.shape, lambda n, _nd=nd: (0,) * _nd)

    kernel = functools.partial(_aspp_kernel, H=H, W=W, P=P, rates=tuple(rates))

    return pl.pallas_call(
        kernel,
        out_shape=jax.ShapeDtypeStruct((N, H, W, Cout), jnp.float32),
        grid_spec=pltpu.PrefetchScalarGridSpec(
            num_scalar_prefetch=0,
            grid=(N,),
            in_specs=[
                pl.BlockSpec((1, 1, Cout), lambda n: (n, 0, 0)),       # folded bias
                pl.BlockSpec((1, H, W, Cin), lambda n: (n, 0, 0, 0)),  # input image
                _full(fp['w0']), _full(fp['b0']),
                _full(fp['w3']), _full(fp['b3']),
                _full(fp['wf0']), _full(fp['wf3']),
            ],
            out_specs=pl.BlockSpec((1, H, W, Cout), lambda n: (n, 0, 0, 0)),
            scratch_shapes=[
                pltpu.VMEM((LBUF, Cin), jnp.bfloat16),   # flat zero-padded image
            ],
        ),
        compiler_params=pltpu.CompilerParams(
            dimension_semantics=("parallel",),
            vmem_limit_bytes=_vmem_limit_bytes(),
        ),
    )(bias_total, x_bf16, fp['w0'], fp['b0'], fp['w3'], fp['b3'],
      fp['wf0'], fp['wf3'])


# -----------------------------------------------------------------------------
# Deterministic parameter construction (synthetic; BN given as running stats).
# -----------------------------------------------------------------------------
def init_params(key, in_ch, mid_ch, out_ch, rates):
    R = len(rates)
    ks = jax.random.split(key, 12 + R)

    def bn(k, ch):
        k1, k2, k3, k4 = jax.random.split(k, 4)
        gamma = 1.0 + 0.1 * jax.random.normal(k1, (ch,))
        beta = 0.1 * jax.random.normal(k2, (ch,))
        mean = 0.1 * jax.random.normal(k3, (ch,))
        var = 0.5 + jax.random.uniform(k4, (ch,))
        scale = gamma / jnp.sqrt(var + 1e-5)
        bias = beta - mean * scale
        return jnp.stack([scale, bias]).astype(jnp.float32)   # (2, ch)

    w0 = 0.3 * jax.random.normal(ks[0], (in_ch, mid_ch))               # 1x1 conv (IO)
    sb0 = bn(ks[1], mid_ch)
    w3 = 0.3 * jax.random.normal(ks[2], (R, 3, 3, in_ch, mid_ch))      # 3x3 convs (HWIO)
    sb3 = jnp.stack([bn(ks[3 + i], mid_ch) for i in range(R)])          # (R, 2, mid)
    wp = 0.3 * jax.random.normal(ks[3 + R], (in_ch, mid_ch))           # imagepool conv
    sbp = bn(ks[4 + R], mid_ch)
    concat_ch = mid_ch * (R + 2)
    wf = 0.3 * jax.random.normal(ks[5 + R], (concat_ch, out_ch))       # fc1 conv
    sbf = bn(ks[6 + R], out_ch)

    f32 = lambda a: a.astype(jnp.float32)
    return dict(w0=f32(w0), sb0=sb0, w3=f32(w3), sb3=sb3,
                wp=f32(wp), sbp=sbp, wf=f32(wf), sbf=sbf)


# -----------------------------------------------------------------------------
# Pure-JAX f32 reference (independent implementation, for verification).
# -----------------------------------------------------------------------------
def aspp_reference_nhwc(x, params, rates):
    def bnrelu(y, sb):
        return jnp.maximum(y * sb[0] + sb[1], 0.0)

    branches = [bnrelu(jnp.einsum('nhwc,cd->nhwd', x, params['w0']), params['sb0'])]
    for i, r in enumerate(rates):
        y = jax.lax.conv_general_dilated(
            x, params['w3'][i], window_strides=(1, 1),
            padding=[(r, r), (r, r)], rhs_dilation=(r, r),
            dimension_numbers=('NHWC', 'HWIO', 'NHWC'))
        branches.append(bnrelu(y, params['sb3'][i]))
    gap = jnp.mean(x, axis=(1, 2), keepdims=True)
    yp = bnrelu(jnp.einsum('nhwc,cd->nhwd', gap, params['wp']), params['sbp'])
    branches.append(jnp.broadcast_to(yp, x.shape[:3] + (params['wp'].shape[-1],)))
    cat = jnp.concatenate(branches, axis=-1)
    return bnrelu(jnp.einsum('nhwc,cd->nhwd', cat, params['wf']), params['sbf'])


# -----------------------------------------------------------------------------
# Module-level wrapper mirroring ASPP.forward's dict / frame semantics.
# -----------------------------------------------------------------------------
class ASPPPallas:
    def __init__(self, in_ch, mid_ch, out_ch, rates, only_current_frame=False,
                 key=None):
        self.rates = tuple(rates)
        self.only_current_frame = only_current_frame
        self.params = init_params(key, in_ch, mid_ch, out_ch, self.rates)

    def _apply_nchw(self, x_nchw):
        x_nhwc = jnp.transpose(x_nchw, (0, 2, 3, 1)).astype(jnp.float32)
        y = aspp_apply_nhwc(x_nhwc, self.params, self.rates)
        return jnp.transpose(y, (0, 3, 1, 2))          # back to NCHW

    def __call__(self, x):
        for frame_id in x.keys():
            if (not self.only_current_frame and not isinstance(frame_id, str)) or \
               (self.only_current_frame and frame_id == 0):
                for idx in range(5):
                    if idx in [4]:
                        x[frame_id][idx] = self._apply_nchw(x[frame_id][idx])
        return x


if __name__ == "__main__":
    key = jax.random.PRNGKey(0)
    k_param, k_x = jax.random.split(key)

    N, in_ch, mid_ch, out_ch, H, W = 2, 4, 4, 8, 16, 16
    rates = (1, 2, 3)

    model = ASPPPallas(in_ch, mid_ch, out_ch, rates,
                       only_current_frame=False, key=k_param)

    # PyTorch-style NCHW input at slot 4 of frame 0; other slots are untouched.
    x4 = jax.random.normal(k_x, (N, in_ch, H, W), jnp.float32)
    frames = {
        0: [jnp.zeros((1, 1), jnp.float32) for _ in range(4)] + [x4],
        'aux': [jnp.zeros((1, 1), jnp.float32) for _ in range(5)],  # string key: skipped
    }

    out_frames = model(frames)
    out = jax.block_until_ready(out_frames[0][4])
    assert out.shape == (N, out_ch, H, W)
    assert out_frames['aux'][4].shape == (1, 1)   # string frame untouched

    # Verify against an independent pure-JAX f32 reference.  Tolerance is
    # loosened because the kernel runs bf16 activations/weights (fp32 accum).
    x_nhwc = jnp.transpose(x4, (0, 2, 3, 1))
    ref = jnp.transpose(aspp_reference_nhwc(x_nhwc, model.params, rates),
                        (0, 3, 1, 2))
    np.testing.assert_allclose(np.asarray(out), np.asarray(ref),
                               rtol=1e-1, atol=1e-1)

    print("KERNEL_OK")
</pallas_src>

<mosaic_0001>
module attributes {stable_mosaic.version = 11 : i64} {
  func.func @_aspp_kernel(%arg0: i32, %arg1: memref<1x1x8xf32, #tpu.memory_space<vmem>>, %arg2: memref<1x16x16x4xbf16, #tpu.memory_space<vmem>>, %arg3: memref<4x4xbf16, #tpu.memory_space<vmem>>, %arg4: memref<1x4xf32, #tpu.memory_space<vmem>>, %arg5: memref<27x4x4xbf16, #tpu.memory_space<vmem>>, %arg6: memref<3x1x4xf32, #tpu.memory_space<vmem>>, %arg7: memref<4x8xbf16, #tpu.memory_space<vmem>>, %arg8: memref<3x4x8xbf16, #tpu.memory_space<vmem>>, %arg9: memref<1x16x16x8xf32, #tpu.memory_space<vmem>>, %arg10: memref<506x4xbf16, #tpu.memory_space<vmem>>) attributes {dimension_semantics = [#tpu.dimension_semantics<parallel>], iteration_bounds = array<i64: 2>, scalar_prefetch = 0 : i64, scratch_operands = 1 : i64, tpu.core_type = #tpu.core_type<tc>, window_params = [{transform_indices = @transform_0, window_bounds = array<i64: 1, 1, 8>}, {transform_indices = @transform_1, window_bounds = array<i64: 1, 16, 16, 4>}, {pipeline_mode = #tpu.pipeline_mode<synchronous>, transform_indices = @transform_2, window_bounds = array<i64: 4, 4>}, {pipeline_mode = #tpu.pipeline_mode<synchronous>, transform_indices = @transform_3, window_bounds = array<i64: 1, 4>}, {pipeline_mode = #tpu.pipeline_mode<synchronous>, transform_indices = @transform_4, window_bounds = array<i64: 27, 4, 4>}, {pipeline_mode = #tpu.pipeline_mode<synchronous>, transform_indices = @transform_5, window_bounds = array<i64: 3, 1, 4>}, {pipeline_mode = #tpu.pipeline_mode<synchronous>, transform_indices = @transform_6, window_bounds = array<i64: 4, 8>}, {pipeline_mode = #tpu.pipeline_mode<synchronous>, transform_indices = @transform_7, window_bounds = array<i64: 3, 4, 8>}, {transform_indices = @transform_8, window_bounds = array<i64: 1, 16, 16, 8>}]} {
    %cst = arith.constant 0.000000e+00 : bf16
    %0 = vector.broadcast %cst : bf16 to vector<506x4xbf16>
    %c0 = arith.constant 0 : index
    %c0_0 = arith.constant 0 : index
    %1 = vector.load %arg10[%c0, %c0_0] : memref<506x4xbf16, #tpu.memory_space<vmem>>, vector<506x4xbf16>
    tpu.vector_store %arg10[%c0, %c0_0], %0 {strides = array<i32>} : memref<506x4xbf16, #tpu.memory_space<vmem>>, vector<506x4xbf16>,
    %c0_1 = arith.constant 0 : index
    %c0_2 = arith.constant 0 : index
    %c0_3 = arith.constant 0 : index
    %c0_4 = arith.constant 0 : index
    %2 = vector.load %arg2[%c0_1, %c0_2, %c0_3, %c0_4] : memref<1x16x16x4xbf16, #tpu.memory_space<vmem>>, vector<1x1x16x4xbf16>
    %3 = vector.shape_cast %2 : vector<1x1x16x4xbf16> to vector<16x4xbf16>
    %c69 = arith.constant 69 : index
    %c0_5 = arith.constant 0 : index
    %4 = vector.load %arg10[%c69, %c0_5] : memref<506x4xbf16, #tpu.memory_space<vmem>>, vector<16x4xbf16>
    tpu.vector_store %arg10[%c69, %c0_5], %3 {strides = array<i32>} : memref<506x4xbf16, #tpu.memory_space<vmem>>, vector<16x4xbf16>,
    %c0_6 = arith.constant 0 : index
    %c1 = arith.constant 1 : index
    %c0_7 = arith.constant 0 : index
    %c0_8 = arith.constant 0 : index
    %5 = vector.load %arg2[%c0_6, %c1, %c0_7, %c0_8] : memref<1x16x16x4xbf16, #tpu.memory_space<vmem>>, vector<1x1x16x4xbf16>
    %6 = vector.shape_cast %5 : vector<1x1x16x4xbf16> to vector<16x4xbf16>
    %c91 = arith.constant 91 : index
    %c0_9 = arith.constant 0 : index
    %7 = vector.load %arg10[%c91, %c0_9] : memref<506x4xbf16, #tpu.memory_space<vmem>>, vector<16x4xbf16>
    tpu.vector_store %arg10[%c91, %c0_9], %6 {strides = array<i32>} : memref<506x4xbf16, #tpu.memory_space<vmem>>, vector<16x4xbf16>,
    %c0_10 = arith.constant 0 : index
    %c2 = arith.constant 2 : index
    %c0_11 = arith.constant 0 : index
    %c0_12 = arith.constant 0 : index
    %8 = vector.load %arg2[%c0_10, %c2, %c0_11, %c0_12] : memref<1x16x16x4xbf16, #tpu.memory_space<vmem>>, vector<1x1x16x4xbf16>
    %9 = vector.shape_cast %8 : vector<1x1x16x4xbf16> to vector<16x4xbf16>
    %c113 = arith.constant 113 : index
    %c0_13 = arith.constant 0 : index
    %10 = vector.load %arg10[%c113, %c0_13] : memref<506x4xbf16, #tpu.memory_space<vmem>>, vector<16x4xbf16>
    tpu.vector_store %arg10[%c113, %c0_13], %9 {strides = array<i32>} : memref<506x4xbf16, #tpu.memory_space<vmem>>, vector<16x4xbf16>,
    %c0_14 = arith.constant 0 : index
    %c3 = arith.constant 3 : index
    %c0_15 = arith.constant 0 : index
    %c0_16 = arith.constant 0 : index
    %11 = vector.load %arg2[%c0_14, %c3, %c0_15, %c0_16] : memref<1x16x16x4xbf16, #tpu.memory_space<vmem>>, vector<1x1x16x4xbf16>
    %12 = vector.shape_cast %11 : vector<1x1x16x4xbf16> to vector<16x4xbf16>
    %c135 = arith.constant 135 : index
    %c0_17 = arith.constant 0 : index
    %13 = vector.load %arg10[%c135, %c0_17] : memref<506x4xbf16, #tpu.memory_space<vmem>>, vector<16x4xbf16>
    tpu.vector_store %arg10[%c135, %c0_17], %12 {strides = array<i32>} : memref<506x4xbf16, #tpu.memory_space<vmem>>, vector<16x4xbf16>,
    %c0_18 = arith.constant 0 : index
    %c4 = arith.constant 4 : index
    %c0_19 = arith.constant 0 : index
    %c0_20 = arith.constant 0 : index
    %14 = vector.load %arg2[%c0_18, %c4, %c0_19, %c0_20] : memref<1x16x16x4xbf16, #tpu.memory_space<vmem>>, vector<1x1x16x4xbf16>
    %15 = vector.shape_cast %14 : vector<1x1x16x4xbf16> to vector<16x4xbf16>
    %c157 = arith.constant 157 : index
    %c0_21 = arith.constant 0 : index
    %16 = vector.load %arg10[%c157, %c0_21] : memref<506x4xbf16, #tpu.memory_space<vmem>>, vector<16x4xbf16>
    tpu.vector_store %arg10[%c157, %c0_21], %15 {strides = array<i32>} : memref<506x4xbf16, #tpu.memory_space<vmem>>, vector<16x4xbf16>,
    %c0_22 = arith.constant 0 : index
    %c5 = arith.constant 5 : index
    %c0_23 = arith.constant 0 : index
    %c0_24 = arith.constant 0 : index
    %17 = vector.load %arg2[%c0_22, %c5, %c0_23, %c0_24] : memref<1x16x16x4xbf16, #tpu.memory_space<vmem>>, vector<1x1x16x4xbf16>
    %18 = vector.shape_cast %17 : vector<1x1x16x4xbf16> to vector<16x4xbf16>
    %c179 = arith.constant 179 : index
    %c0_25 = arith.constant 0 : index
    %19 = vector.load %arg10[%c179, %c0_25] : memref<506x4xbf16, #tpu.memory_space<vmem>>, vector<16x4xbf16>
    tpu.vector_store %arg10[%c179, %c0_25], %18 {strides = array<i32>} : memref<506x4xbf16, #tpu.memory_space<vmem>>, vector<16x4xbf16>,
    %c0_26 = arith.constant 0 : index
    %c6 = arith.constant 6 : index
    %c0_27 = arith.constant 0 : index
    %c0_28 = arith.constant 0 : index
    %20 = vector.load %arg2[%c0_26, %c6, %c0_27, %c0_28] : memref<1x16x16x4xbf16, #tpu.memory_space<vmem>>, vector<1x1x16x4xbf16>
    %21 = vector.shape_cast %20 : vector<1x1x16x4xbf16> to vector<16x4xbf16>
    %c201 = arith.constant 201 : index
    %c0_29 = arith.constant 0 : index
    %22 = vector.load %arg10[%c201, %c0_29] : memref<506x4xbf16, #tpu.memory_space<vmem>>, vector<16x4xbf16>
    tpu.vector_store %arg10[%c201, %c0_29], %21 {strides = array<i32>} : memref<506x4xbf16, #tpu.memory_space<vmem>>, vector<16x4xbf16>,
    %c0_30 = arith.constant 0 : index
    %c7 = arith.constant 7 : index
    %c0_31 = arith.constant 0 : index
    %c0_32 = arith.constant 0 : index
    %23 = vector.load %arg2[%c0_30, %c7, %c0_31, %c0_32] : memref<1x16x16x4xbf16, #tpu.memory_space<vmem>>, vector<1x1x16x4xbf16>
    %24 = vector.shape_cast %23 : vector<1x1x16x4xbf16> to vector<16x4xbf16>
    %c223 = arith.constant 223 : index
    %c0_33 = arith.constant 0 : index
    %25 = vector.load %arg10[%c223, %c0_33] : memref<506x4xbf16, #tpu.memory_space<vmem>>, vector<16x4xbf16>
    tpu.vector_store %arg10[%c223, %c0_33], %24 {strides = array<i32>} : memref<506x4xbf16, #tpu.memory_space<vmem>>, vector<16x4xbf16>,
    %c0_34 = arith.constant 0 : index
    %c8 = arith.constant 8 : index
    %c0_35 = arith.constant 0 : index
    %c0_36 = arith.constant 0 : index
    %26 = vector.load %arg2[%c0_34, %c8, %c0_35, %c0_36] : memref<1x16x16x4xbf16, #tpu.memory_space<vmem>>, vector<1x1x16x4xbf16>
    %27 = vector.shape_cast %26 : vector<1x1x16x4xbf16> to vector<16x4xbf16>
    %c245 = arith.constant 245 : index
    %c0_37 = arith.constant 0 : index
    %28 = vector.load %arg10[%c245, %c0_37] : memref<506x4xbf16, #tpu.memory_space<vmem>>, vector<16x4xbf16>
    tpu.vector_store %arg10[%c245, %c0_37], %27 {strides = array<i32>} : memref<506x4xbf16, #tpu.memory_space<vmem>>, vector<16x4xbf16>,
    %c0_38 = arith.constant 0 : index
    %c9 = arith.constant 9 : index
    %c0_39 = arith.constant 0 : index
    %c0_40 = arith.constant 0 : index
    %29 = vector.load %arg2[%c0_38, %c9, %c0_39, %c0_40] : memref<1x16x16x4xbf16, #tpu.memory_space<vmem>>, vector<1x1x16x4xbf16>
    %30 = vector.shape_cast %29 : vector<1x1x16x4xbf16> to vector<16x4xbf16>
    %c267 = arith.constant 267 : index
    %c0_41 = arith.constant 0 : index
    %31 = vector.load %arg10[%c267, %c0_41] : memref<506x4xbf16, #tpu.memory_space<vmem>>, vector<16x4xbf16>
    tpu.vector_store %arg10[%c267, %c0_41], %30 {strides = array<i32>} : memref<506x4xbf16, #tpu.memory_space<vmem>>, vector<16x4xbf16>,
    %c0_42 = arith.constant 0 : index
    %c10 = arith.constant 10 : index
    %c0_43 = arith.constant 0 : index
    %c0_44 = arith.constant 0 : index
    %32 = vector.load %arg2[%c0_42, %c10, %c0_43, %c0_44] : memref<1x16x16x4xbf16, #tpu.memory_space<vmem>>, vector<1x1x16x4xbf16>
    %33 = vector.shape_cast %32 : vector<1x1x16x4xbf16> to vector<16x4xbf16>
    %c289 = arith.constant 289 : index
    %c0_45 = arith.constant 0 : index
    %34 = vector.load %arg10[%c289, %c0_45] : memref<506x4xbf16, #tpu.memory_space<vmem>>, vector<16x4xbf16>
    tpu.vector_store %arg10[%c289, %c0_45], %33 {strides = array<i32>} : memref<506x4xbf16, #tpu.memory_space<vmem>>, vector<16x4xbf16>,
    %c0_46 = arith.constant 0 : index
    %c11 = arith.constant 11 : index
    %c0_47 = arith.constant 0 : index
    %c0_48 = arith.constant 0 : index
    %35 = vector.load %arg2[%c0_46, %c11, %c0_47, %c0_48] : memref<1x16x16x4xbf16, #tpu.memory_space<vmem>>, vector<1x1x16x4xbf16>
    %36 = vector.shape_cast %35 : vector<1x1x16x4xbf16> to vector<16x4xbf16>
    %c311 = arith.constant 311 : index
    %c0_49 = arith.constant 0 : index
    %37 = vector.load %arg10[%c311, %c0_49] : memref<506x4xbf16, #tpu.memory_space<vmem>>, vector<16x4xbf16>
    tpu.vector_store %arg10[%c311, %c0_49], %36 {strides = array<i32>} : memref<506x4xbf16, #tpu.memory_space<vmem>>, vector<16x4xbf16>,
    %c0_50 = arith.constant 0 : index
    %c12 = arith.constant 12 : index
    %c0_51 = arith.constant 0 : index
    %c0_52 = arith.constant 0 : index
    %38 = vector.load %arg2[%c0_50, %c12, %c0_51, %c0_52] : memref<1x16x16x4xbf16, #tpu.memory_space<vmem>>, vector<1x1x16x4xbf16>
    %39 = vector.shape_cast %38 : vector<1x1x16x4xbf16> to vector<16x4xbf16>
    %c333 = arith.constant 333 : index
    %c0_53 = arith.constant 0 : index
    %40 = vector.load %arg10[%c333, %c0_53] : memref<506x4xbf16, #tpu.memory_space<vmem>>, vector<16x4xbf16>
    tpu.vector_store %arg10[%c333, %c0_53], %39 {strides = array<i32>} : memref<506x4xbf16, #tpu.memory_space<vmem>>, vector<16x4xbf16>,
    %c0_54 = arith.constant 0 : index
    %c13 = arith.constant 13 : index
    %c0_55 = arith.constant 0 : index
    %c0_56 = arith.constant 0 : index
    %41 = vector.load %arg2[%c0_54, %c13, %c0_55, %c0_56] : memref<1x16x16x4xbf16, #tpu.memory_space<vmem>>, vector<1x1x16x4xbf16>
    %42 = vector.shape_cast %41 : vector<1x1x16x4xbf16> to vector<16x4xbf16>
    %c355 = arith.constant 355 : index
    %c0_57 = arith.constant 0 : index
    %43 = vector.load %arg10[%c355, %c0_57] : memref<506x4xbf16, #tpu.memory_space<vmem>>, vector<16x4xbf16>
    tpu.vector_store %arg10[%c355, %c0_57], %42 {strides = array<i32>} : memref<506x4xbf16, #tpu.memory_space<vmem>>, vector<16x4xbf16>,
    %c0_58 = arith.constant 0 : index
    %c14 = arith.constant 14 : index
    %c0_59 = arith.constant 0 : index
    %c0_60 = arith.constant 0 : index
    %44 = vector.load %arg2[%c0_58, %c14, %c0_59, %c0_60] : memref<1x16x16x4xbf16, #tpu.memory_space<vmem>>, vector<1x1x16x4xbf16>
    %45 = vector.shape_cast %44 : vector<1x1x16x4xbf16> to vector<16x4xbf16>
    %c377 = arith.constant 377 : index
    %c0_61 = arith.constant 0 : index
    %46 = vector.load %arg10[%c377, %c0_61] : memref<506x4xbf16, #tpu.memory_space<vmem>>, vector<16x4xbf16>
    tpu.vector_store %arg10[%c377, %c0_61], %45 {strides = array<i32>} : memref<506x4xbf16, #tpu.memory_space<vmem>>, vector<16x4xbf16>,
    %c0_62 = arith.constant 0 : index
    %c15 = arith.constant 15 : index
    %c0_63 = arith.constant 0 : index
    %c0_64 = arith.constant 0 : index
    %47 = vector.load %arg2[%c0_62, %c15, %c0_63, %c0_64] : memref<1x16x16x4xbf16, #tpu.memory_space<vmem>>, vector<1x1x16x4xbf16>
    %48 = vector.shape_cast %47 : vector<1x1x16x4xbf16> to vector<16x4xbf16>
    %c399 = arith.constant 399 : index
    %c0_65 = arith.constant 0 : index
    %49 = vector.load %arg10[%c399, %c0_65] : memref<506x4xbf16, #tpu.memory_space<vmem>>, vector<16x4xbf16>
    tpu.vector_store %arg10[%c399, %c0_65], %48 {strides = array<i32>} : memref<506x4xbf16, #tpu.memory_space<vmem>>, vector<16x4xbf16>,
    %c69_66 = arith.constant 69 : index
    %c0_67 = arith.constant 0 : index
    %50 = vector.load %arg10[%c69_66, %c0_67] : memref<506x4xbf16, #tpu.memory_space<vmem>>, vector<352x4xbf16>
    %c0_68 = arith.constant 0 : index
    %c0_69 = arith.constant 0 : index
    %51 = vector.load %arg3[%c0_68, %c0_69] : memref<4x4xbf16, #tpu.memory_space<vmem>>, vector<4x4xbf16>
    %cst_70 = arith.constant dense<0.000000e+00> : vector<352x4xf32>
    %52 = tpu.matmul %50, %51, %cst_70 {dimension_numbers = #tpu.dot_dimension_numbers<[1], [0], [0], [1], [0, 0, 1, 1], [], []>} : vector<352x4xbf16>, vector<4x4xbf16>, vector<352x4xf32> -> vector<352x4xf32>
    %c0_71 = arith.constant 0 : index
    %c0_72 = arith.constant 0 : index
    %53 = vector.load %arg4[%c0_71, %c0_72] : memref<1x4xf32, #tpu.memory_space<vmem>>, vector<1x4xf32>
    %54 = vector.broadcast %53 : vector<1x4xf32> to vector<352x4xf32>
    %55 = arith.addf %52, %54 : vector<352x4xf32>
    %cst_73 = arith.constant 0.000000e+00 : f32
    %56 = vector.broadcast %cst_73 : f32 to vector<352x4xf32>
    %57 = arith.maximumf %55, %56 : vector<352x4xf32>
    %58 = arith.truncf %57 : vector<352x4xf32> to vector<352x4xbf16>
    %c0_74 = arith.constant 0 : index
    %c0_75 = arith.constant 0 : index
    %59 = vector.load %arg7[%c0_74, %c0_75] : memref<4x8xbf16, #tpu.memory_space<vmem>>, vector<4x8xbf16>
    %cst_76 = arith.constant dense<0.000000e+00> : vector<352x8xf32>
    %60 = tpu.matmul %58, %59, %cst_76 {dimension_numbers = #tpu.dot_dimension_numbers<[1], [0], [0], [1], [0, 0, 1, 1], [], []>} : vector<352x4xbf16>, vector<4x8xbf16>, vector<352x8xf32> -> vector<352x8xf32>
    %c0_77 = arith.constant 0 : index
    %c0_78 = arith.constant 0 : index
    %c0_79 = arith.constant 0 : index
    %61 = vector.load %arg1[%c0_77, %c0_78, %c0_79] : memref<1x1x8xf32, #tpu.memory_space<vmem>>, vector<1x1x8xf32>
    %62 = vector.shape_cast %61 : vector<1x1x8xf32> to vector<1x8xf32>
    %63 = vector.broadcast %62 : vector<1x8xf32> to vector<352x8xf32>
    %64 = arith.addf %60, %63 : vector<352x8xf32>
    %c46 = arith.constant 46 : index
    %c0_80 = arith.constant 0 : index
    %65 = vector.load %arg10[%c46, %c0_80] : memref<506x4xbf16, #tpu.memory_space<vmem>>, vector<352x4xbf16>
    %c0_81 = arith.constant 0 : index
    %c0_82 = arith.constant 0 : index
    %c0_83 = arith.constant 0 : index
    %66 = vector.load %arg5[%c0_81, %c0_82, %c0_83] : memref<27x4x4xbf16, #tpu.memory_space<vmem>>, vector<1x4x4xbf16>
    %67 = vector.shape_cast %66 : vector<1x4x4xbf16> to vector<4x4xbf16>
    %cst_84 = arith.constant dense<0.000000e+00> : vector<352x4xf32>
    %68 = tpu.matmul %65, %67, %cst_84 {dimension_numbers = #tpu.dot_dimension_numbers<[1], [0], [0], [1], [0, 0, 1, 1], [], []>} : vector<352x4xbf16>, vector<4x4xbf16>, vector<352x4xf32> -> vector<352x4xf32>
    %c47 = arith.constant 47 : index
    %c0_85 = arith.constant 0 : index
    %69 = vector.load %arg10[%c47, %c0_85] : memref<506x4xbf16, #tpu.memory_space<vmem>>, vector<352x4xbf16>
    %c1_86 = arith.constant 1 : index
    %c0_87 = arith.constant 0 : index
    %c0_88 = arith.constant 0 : index
    %70 = vector.load %arg5[%c1_86, %c0_87, %c0_88] : memref<27x4x4xbf16, #tpu.memory_space<vmem>>, vector<1x4x4xbf16>
    %71 = vector.shape_cast %70 : vector<1x4x4xbf16> to vector<4x4xbf16>
    %cst_89 = arith.constant dense<0.000000e+00> : vector<352x4xf32>
    %72 = tpu.matmul %69, %71, %cst_89 {dimension_numbers = #tpu.dot_dimension_numbers<[1], [0], [0], [1], [0, 0, 1, 1], [], []>} : vector<352x4xbf16>, vector<4x4xbf16>, vector<352x4xf32> -> vector<352x4xf32>
    %73 = arith.addf %68, %72 : vector<352x4xf32>
    %c48 = arith.constant 48 : index
    %c0_90 = arith.constant 0 : index
    %74 = vector.load %arg10[%c48, %c0_90] : memref<506x4xbf16, #tpu.memory_space<vmem>>, vector<352x4xbf16>
    %c2_91 = arith.constant 2 : index
    %c0_92 = arith.constant 0 : index
    %c0_93 = arith.constant 0 : index
    %75 = vector.load %arg5[%c2_91, %c0_92, %c0_93] : memref<27x4x4xbf16, #tpu.memory_space<vmem>>, vector<1x4x4xbf16>
    %76 = vector.shape_cast %75 : vector<1x4x4xbf16> to vector<4x4xbf16>
    %cst_94 = arith.constant dense<0.000000e+00> : vector<352x4xf32>
    %77 = tpu.matmul %74, %76, %cst_94 {dimension_numbers = #tpu.dot_dimension_numbers<[1], [0], [0], [1], [0, 0, 1, 1], [], []>} : vector<352x4xbf16>, vector<4x4xbf16>, vector<352x4xf32> -> vector<352x4xf32>
    %78 = arith.addf %73, %77 : vector<352x4xf32>
    %c68 = arith.constant 68 : index
    %c0_95 = arith.constant 0 : index
    %79 = vector.load %arg10[%c68, %c0_95] : memref<506x4xbf16, #tpu.memory_space<vmem>>, vector<352x4xbf16>
    %c3_96 = arith.constant 3 : index
    %c0_97 = arith.constant 0 : index
    %c0_98 = arith.constant 0 : index
    %80 = vector.load %arg5[%c3_96, %c0_97, %c0_98] : memref<27x4x4xbf16, #tpu.memory_space<vmem>>, vector<1x4x4xbf16>
    %81 = vector.shape_cast %80 : vector<1x4x4xbf16> to vector<4x4xbf16>
    %cst_99 = arith.constant dense<0.000000e+00> : vector<352x4xf32>
    %82 = tpu.matmul %79, %81, %cst_99 {dimension_numbers = #tpu.dot_dimension_numbers<[1], [0], [0], [1], [0, 0, 1, 1], [], []>} : vector<352x4xbf16>, vector<4x4xbf16>, vector<352x4xf32> -> vector<352x4xf32>
    %83 = arith.addf %78, %82 : vector<352x4xf32>
    %c69_100 = arith.constant 69 : index
    %c0_101 = arith.constant 0 : index
    %84 = vector.load %arg10[%c69_100, %c0_101] : memref<506x4xbf16, #tpu.memory_space<vmem>>, vector<352x4xbf16>
    %c4_102 = arith.constant 4 : index
    %c0_103 = arith.constant 0 : index
    %c0_104 = arith.constant 0 : index
    %85 = vector.load %arg5[%c4_102, %c0_103, %c0_104] : memref<27x4x4xbf16, #tpu.memory_space<vmem>>, vector<1x4x4xbf16>
    %86 = vector.shape_cast %85 : vector<1x4x4xbf16> to vector<4x4xbf16>
    %cst_105 = arith.constant dense<0.000000e+00> : vector<352x4xf32>
    %87 = tpu.matmul %84, %86, %cst_105 {dimension_numbers = #tpu.dot_dimension_numbers<[1], [0], [0], [1], [0, 0, 1, 1], [], []>} : vector<352x4xbf16>, vector<4x4xbf16>, vector<352x4xf32> -> vector<352x4xf32>
    %88 = arith.addf %83, %87 : vector<352x4xf32>
    %c70 = arith.constant 70 : index
    %c0_106 = arith.constant 0 : index
    %89 = vector.load %arg10[%c70, %c0_106] : memref<506x4xbf16, #tpu.memory_space<vmem>>, vector<352x4xbf16>
    %c5_107 = arith.constant 5 : index
    %c0_108 = arith.constant 0 : index
    %c0_109 = arith.constant 0 : index
    %90 = vector.load %arg5[%c5_107, %c0_108, %c0_109] : memref<27x4x4xbf16, #tpu.memory_space<vmem>>, vector<1x4x4xbf16>
    %91 = vector.shape_cast %90 : vector<1x4x4xbf16> to vector<4x4xbf16>
    %cst_110 = arith.constant dense<0.000000e+00> : vector<352x4xf32>
    %92 = tpu.matmul %89, %91, %cst_110 {dimension_numbers = #tpu.dot_dimension_numbers<[1], [0], [0], [1], [0, 0, 1, 1], [], []>} : vector<352x4xbf16>, vector<4x4xbf16>, vector<352x4xf32> -> vector<352x4xf32>
    %93 = arith.addf %88, %92 : vector<352x4xf32>
    %c90 = arith.constant 90 : index
    %c0_111 = arith.constant 0 : index
    %94 = vector.load %arg10[%c90, %c0_111] : memref<506x4xbf16, #tpu.memory_space<vmem>>, vector<352x4xbf16>
    %c6_112 = arith.constant 6 : index
    %c0_113 = arith.constant 0 : index
    %c0_114 = arith.constant 0 : index
    %95 = vector.load %arg5[%c6_112, %c0_113, %c0_114] : memref<27x4x4xbf16, #tpu.memory_space<vmem>>, vector<1x4x4xbf16>
    %96 = vector.shape_cast %95 : vector<1x4x4xbf16> to vector<4x4xbf16>
    %cst_115 = arith.constant dense<0.000000e+00> : vector<352x4xf32>
    %97 = tpu.matmul %94, %96, %cst_115 {dimension_numbers = #tpu.dot_dimension_numbers<[1], [0], [0], [1], [0, 0, 1, 1], [], []>} : vector<352x4xbf16>, vector<4x4xbf16>, vector<352x4xf32> -> vector<352x4xf32>
    %98 = arith.addf %93, %97 : vector<352x4xf32>
    %c91_116 = arith.constant 91 : index
    %c0_117 = arith.constant 0 : index
    %99 = vector.load %arg10[%c91_116, %c0_117] : memref<506x4xbf16, #tpu.memory_space<vmem>>, vector<352x4xbf16>
    %c7_118 = arith.constant 7 : index
    %c0_119 = arith.constant 0 : index
    %c0_120 = arith.constant 0 : index
    %100 = vector.load %arg5[%c7_118, %c0_119, %c0_120] : memref<27x4x4xbf16, #tpu.memory_space<vmem>>, vector<1x4x4xbf16>
    %101 = vector.shape_cast %100 : vector<1x4x4xbf16> to vector<4x4xbf16>
    %cst_121 = arith.constant dense<0.000000e+00> : vector<352x4xf32>
    %102 = tpu.matmul %99, %101, %cst_121 {dimension_numbers = #tpu.dot_dimension_numbers<[1], [0], [0], [1], [0, 0, 1, 1], [], []>} : vector<352x4xbf16>, vector<4x4xbf16>, vector<352x4xf32> -> vector<352x4xf32>
    %103 = arith.addf %98, %102 : vector<352x4xf32>
    %c92 = arith.constant 92 : index
    %c0_122 = arith.constant 0 : index
    %104 = vector.load %arg10[%c92, %c0_122] : memref<506x4xbf16, #tpu.memory_space<vmem>>, vector<352x4xbf16>
    %c8_123 = arith.constant 8 : index
    %c0_124 = arith.constant 0 : index
    %c0_125 = arith.constant 0 : index
    %105 = vector.load %arg5[%c8_123, %c0_124, %c0_125] : memref<27x4x4xbf16, #tpu.memory_space<vmem>>, vector<1x4x4xbf16>
    %106 = vector.shape_cast %105 : vector<1x4x4xbf16> to vector<4x4xbf16>
    %cst_126 = arith.constant dense<0.000000e+00> : vector<352x4xf32>
    %107 = tpu.matmul %104, %106, %cst_126 {dimension_numbers = #tpu.dot_dimension_numbers<[1], [0], [0], [1], [0, 0, 1, 1], [], []>} : vector<352x4xbf16>, vector<4x4xbf16>, vector<352x4xf32> -> vector<352x4xf32>
    %108 = arith.addf %103, %107 : vector<352x4xf32>
    %c0_127 = arith.constant 0 : index
    %c0_128 = arith.constant 0 : index
    %c0_129 = arith.constant 0 : index
    %109 = vector.load %arg6[%c0_127, %c0_128, %c0_129] : memref<3x1x4xf32, #tpu.memory_space<vmem>>, vector<1x1x4xf32>
    %110 = vector.shape_cast %109 : vector<1x1x4xf32> to vector<1x4xf32>
    %111 = vector.broadcast %110 : vector<1x4xf32> to vector<352x4xf32>
    %112 = arith.addf %108, %111 : vector<352x4xf32>
    %cst_130 = arith.constant 0.000000e+00 : f32
    %113 = vector.broadcast %cst_130 : f32 to vector<352x4xf32>
    %114 = arith.maximumf %112, %113 : vector<352x4xf32>
    %115 = arith.truncf %114 : vector<352x4xf32> to vector<352x4xbf16>
    %c0_131 = arith.constant 0 : index
    %c0_132 = arith.constant 0 : index
    %c0_133 = arith.constant 0 : index
    %116 = vector.load %arg8[%c0_131, %c0_132, %c0_133] : memref<3x4x8xbf16, #tpu.memory_space<vmem>>, vector<1x4x8xbf16>
    %117 = vector.shape_cast %116 : vector<1x4x8xbf16> to vector<4x8xbf16>
    %cst_134 = arith.constant dense<0.000000e+00> : vector<352x8xf32>
    %118 = tpu.matmul %115, %117, %cst_134 {dimension_numbers = #tpu.dot_dimension_numbers<[1], [0], [0], [1], [0, 0, 1, 1], [], []>} : vector<352x4xbf16>, vector<4x8xbf16>, vector<352x8xf32> -> vector<352x8xf32>
    %119 = arith.addf %64, %118 : vector<352x8xf32>
    %c23 = arith.constant 23 : index
    %c0_135 = arith.constant 0 : index
    %120 = vector.load %arg10[%c23, %c0_135] : memref<506x4xbf16, #tpu.memory_space<vmem>>, vector<352x4xbf16>
    %c9_136 = arith.constant 9 : index
    %c0_137 = arith.constant 0 : index
    %c0_138 = arith.constant 0 : index
    %121 = vector.load %arg5[%c9_136, %c0_137, %c0_138] : memref<27x4x4xbf16, #tpu.memory_space<vmem>>, vector<1x4x4xbf16>
    %122 = vector.shape_cast %121 : vector<1x4x4xbf16> to vector<4x4xbf16>
    %cst_139 = arith.constant dense<0.000000e+00> : vector<352x4xf32>
    %123 = tpu.matmul %120, %122, %cst_139 {dimension_numbers = #tpu.dot_dimension_numbers<[1], [0], [0], [1], [0, 0, 1, 1], [], []>} : vector<352x4xbf16>, vector<4x4xbf16>, vector<352x4xf32> -> vector<352x4xf32>
    %c25 = arith.constant 25 : index
    %c0_140 = arith.constant 0 : index
    %124 = vector.load %arg10[%c25, %c0_140] : memref<506x4xbf16, #tpu.memory_space<vmem>>, vector<352x4xbf16>
    %c10_141 = arith.constant 10 : index
    %c0_142 = arith.constant 0 : index
    %c0_143 = arith.constant 0 : index
    %125 = vector.load %arg5[%c10_141, %c0_142, %c0_143] : memref<27x4x4xbf16, #tpu.memory_space<vmem>>, vector<1x4x4xbf16>
    %126 = vector.shape_cast %125 : vector<1x4x4xbf16> to vector<4x4xbf16>
    %cst_144 = arith.constant dense<0.000000e+00> : vector<352x4xf32>
    %127 = tpu.matmul %124, %126, %cst_144 {dimension_numbers = #tpu.dot_dimension_numbers<[1], [0], [0], [1], [0, 0, 1, 1], [], []>} : vector<352x4xbf16>, vector<4x4xbf16>, vector<352x4xf32> -> vector<352x4xf32>
    %128 = arith.addf %123, %127 : vector<352x4xf32>
    %c27 = arith.constant 27 : index
    %c0_145 = arith.constant 0 : index
    %129 = vector.load %arg10[%c27, %c0_145] : memref<506x4xbf16, #tpu.memory_space<vmem>>, vector<352x4xbf16>
    %c11_146 = arith.constant 11 : index
    %c0_147 = arith.constant 0 : index
    %c0_148 = arith.constant 0 : index
    %130 = vector.load %arg5[%c11_146, %c0_147, %c0_148] : memref<27x4x4xbf16, #tpu.memory_space<vmem>>, vector<1x4x4xbf16>
    %131 = vector.shape_cast %130 : vector<1x4x4xbf16> to vector<4x4xbf16>
    %cst_149 = arith.constant dense<0.000000e+00> : vector<352x4xf32>
    %132 = tpu.matmul %129, %131, %cst_149 {dimension_numbers = #tpu.dot_dimension_numbers<[1], [0], [0], [1], [0, 0, 1, 1], [], []>} : vector<352x4xbf16>, vector<4x4xbf16>, vector<352x4xf32> -> vector<352x4xf32>
    %133 = arith.addf %128, %132 : vector<352x4xf32>
    %c67 = arith.constant 67 : index
    %c0_150 = arith.constant 0 : index
    %134 = vector.load %arg10[%c67, %c0_150] : memref<506x4xbf16, #tpu.memory_space<vmem>>, vector<352x4xbf16>
    %c12_151 = arith.constant 12 : index
    %c0_152 = arith.constant 0 : index
    %c0_153 = arith.constant 0 : index
    %135 = vector.load %arg5[%c12_151, %c0_152, %c0_153] : memref<27x4x4xbf16, #tpu.memory_space<vmem>>, vector<1x4x4xbf16>
    %136 = vector.shape_cast %135 : vector<1x4x4xbf16> to vector<4x4xbf16>
    %cst_154 = arith.constant dense<0.000000e+00> : vector<352x4xf32>
    %137 = tpu.matmul %134, %136, %cst_154 {dimension_numbers = #tpu.dot_dimension_numbers<[1], [0], [0], [1], [0, 0, 1, 1], [], []>} : vector<352x4xbf16>, vector<4x4xbf16>, vector<352x4xf32> -> vector<352x4xf32>
    %138 = arith.addf %133, %137 : vector<352x4xf32>
    %c69_155 = arith.constant 69 : index
    %c0_156 = arith.constant 0 : index
    %139 = vector.load %arg10[%c69_155, %c0_156] : memref<506x4xbf16, #tpu.memory_space<vmem>>, vector<352x4xbf16>
    %c13_157 = arith.constant 13 : index
    %c0_158 = arith.constant 0 : index
    %c0_159 = arith.constant 0 : index
    %140 = vector.load %arg5[%c13_157, %c0_158, %c0_159] : memref<27x4x4xbf16, #tpu.memory_space<vmem>>, vector<1x4x4xbf16>
    %141 = vector.shape_cast %140 : vector<1x4x4xbf16> to vector<4x4xbf16>
    %cst_160 = arith.constant dense<0.000000e+00> : vector<352x4xf32>
    %142 = tpu.matmul %139, %141, %cst_160 {dimension_numbers = #tpu.dot_dimension_numbers<[1], [0], [0], [1], [0, 0, 1, 1], [], []>} : vector<352x4xbf16>, vector<4x4xbf16>, vector<352x4xf32> -> vector<352x4xf32>
    %143 = arith.addf %138, %142 : vector<352x4xf32>
    %c71 = arith.constant 71 : index
    %c0_161 = arith.constant 0 : index
    %144 = vector.load %arg10[%c71, %c0_161] : memref<506x4xbf16, #tpu.memory_space<vmem>>, vector<352x4xbf16>
    %c14_162 = arith.constant 14 : index
    %c0_163 = arith.constant 0 : index
    %c0_164 = arith.constant 0 : index
    %145 = vector.load %arg5[%c14_162, %c0_163, %c0_164] : memref<27x4x4xbf16, #tpu.memory_space<vmem>>, vector<1x4x4xbf16>
    %146 = vector.shape_cast %145 : vector<1x4x4xbf16> to vector<4x4xbf16>
    %cst_165 = arith.constant dense<0.000000e+00> : vector<352x4xf32>
    %147 = tpu.matmul %144, %146, %cst_165 {dimension_numbers = #tpu.dot_dimension_numbers<[1], [0], [0], [1], [0, 0, 1, 1], [], []>} : vector<352x4xbf16>, vector<4x4xbf16>, vector<352x4xf32> -> vector<352x4xf32>
    %148 = arith.addf %143, %147 : vector<352x4xf32>
    %c111 = arith.constant 111 : index
    %c0_166 = arith.constant 0 : index
    %149 = vector.load %arg10[%c111, %c0_166] : memref<506x4xbf16, #tpu.memory_space<vmem>>, vector<352x4xbf16>
    %c15_167 = arith.constant 15 : index
    %c0_168 = arith.constant 0 : index
    %c0_169 = arith.constant 0 : index
    %150 = vector.load %arg5[%c15_167, %c0_168, %c0_169] : memref<27x4x4xbf16, #tpu.memory_space<vmem>>, vector<1x4x4xbf16>
    %151 = vector.shape_cast %150 : vector<1x4x4xbf16> to vector<4x4xbf16>
    %cst_170 = arith.constant dense<0.000000e+00> : vector<352x4xf32>
    %152 = tpu.matmul %149, %151, %cst_170 {dimension_numbers = #tpu.dot_dimension_numbers<[1], [0], [0], [1], [0, 0, 1, 1], [], []>} : vector<352x4xbf16>, vector<4x4xbf16>, vector<352x4xf32> -> vector<352x4xf32>
    %153 = arith.addf %148, %152 : vector<352x4xf32>
    %c113_171 = arith.constant 113 : index
    %c0_172 = arith.constant 0 : index
    %154 = vector.load %arg10[%c113_171, %c0_172] : memref<506x4xbf16, #tpu.memory_space<vmem>>, vector<352x4xbf16>
    %c16 = arith.constant 16 : index
    %c0_173 = arith.constant 0 : index
    %c0_174 = arith.constant 0 : index
    %155 = vector.load %arg5[%c16, %c0_173, %c0_174] : memref<27x4x4xbf16, #tpu.memory_space<vmem>>, vector<1x4x4xbf16>
    %156 = vector.shape_cast %155 : vector<1x4x4xbf16> to vector<4x4xbf16>
    %cst_175 = arith.constant dense<0.000000e+00> : vector<352x4xf32>
    %157 = tpu.matmul %154, %156, %cst_175 {dimension_numbers = #tpu.dot_dimension_numbers<[1], [0], [0], [1], [0, 0, 1, 1], [], []>} : vector<352x4xbf16>, vector<4x4xbf16>, vector<352x4xf32> -> vector<352x4xf32>
    %158 = arith.addf %153, %157 : vector<352x4xf32>
    %c115 = arith.constant 115 : index
    %c0_176 = arith.constant 0 : index
    %159 = vector.load %arg10[%c115, %c0_176] : memref<506x4xbf16, #tpu.memory_space<vmem>>, vector<352x4xbf16>
    %c17 = arith.constant 17 : index
    %c0_177 = arith.constant 0 : index
    %c0_178 = arith.constant 0 : index
    %160 = vector.load %arg5[%c17, %c0_177, %c0_178] : memref<27x4x4xbf16, #tpu.memory_space<vmem>>, vector<1x4x4xbf16>
    %161 = vector.shape_cast %160 : vector<1x4x4xbf16> to vector<4x4xbf16>
    %cst_179 = arith.constant dense<0.000000e+00> : vector<352x4xf32>
    %162 = tpu.matmul %159, %161, %cst_179 {dimension_numbers = #tpu.dot_dimension_numbers<[1], [0], [0], [1], [0, 0, 1, 1], [], []>} : vector<352x4xbf16>, vector<4x4xbf16>, vector<352x4xf32> -> vector<352x4xf32>
    %163 = arith.addf %158, %162 : vector<352x4xf32>
    %c1_180 = arith.constant 1 : index
    %c0_181 = arith.constant 0 : index
    %c0_182 = arith.constant 0 : index
    %164 = vector.load %arg6[%c1_180, %c0_181, %c0_182] : memref<3x1x4xf32, #tpu.memory_space<vmem>>, vector<1x1x4xf32>
    %165 = vector.shape_cast %164 : vector<1x1x4xf32> to vector<1x4xf32>
    %166 = vector.broadcast %165 : vector<1x4xf32> to vector<352x4xf32>
    %167 = arith.addf %163, %166 : vector<352x4xf32>
    %cst_183 = arith.constant 0.000000e+00 : f32
    %168 = vector.broadcast %cst_183 : f32 to vector<352x4xf32>
    %169 = arith.maximumf %167, %168 : vector<352x4xf32>
    %170 = arith.truncf %169 : vector<352x4xf32> to vector<352x4xbf16>
    %c1_184 = arith.constant 1 : index
    %c0_185 = arith.constant 0 : index
    %c0_186 = arith.constant 0 : index
    %171 = vector.load %arg8[%c1_184, %c0_185, %c0_186] : memref<3x4x8xbf16, #tpu.memory_space<vmem>>, vector<1x4x8xbf16>
    %172 = vector.shape_cast %171 : vector<1x4x8xbf16> to vector<4x8xbf16>
    %cst_187 = arith.constant dense<0.000000e+00> : vector<352x8xf32>
    %173 = tpu.matmul %170, %172, %cst_187 {dimension_numbers = #tpu.dot_dimension_numbers<[1], [0], [0], [1], [0, 0, 1, 1], [], []>} : vector<352x4xbf16>, vector<4x8xbf16>, vector<352x8xf32> -> vector<352x8xf32>
    %174 = arith.addf %119, %173 : vector<352x8xf32>
    %c0_188 = arith.constant 0 : index
    %c0_189 = arith.constant 0 : index
    %175 = vector.load %arg10[%c0_188, %c0_189] : memref<506x4xbf16, #tpu.memory_space<vmem>>, vector<352x4xbf16>
    %c18 = arith.constant 18 : index
    %c0_190 = arith.constant 0 : index
    %c0_191 = arith.constant 0 : index
    %176 = vector.load %arg5[%c18, %c0_190, %c0_191] : memref<27x4x4xbf16, #tpu.memory_space<vmem>>, vector<1x4x4xbf16>
    %177 = vector.shape_cast %176 : vector<1x4x4xbf16> to vector<4x4xbf16>
    %cst_192 = arith.constant dense<0.000000e+00> : vector<352x4xf32>
    %178 = tpu.matmul %175, %177, %cst_192 {dimension_numbers = #tpu.dot_dimension_numbers<[1], [0], [0], [1], [0, 0, 1, 1], [], []>} : vector<352x4xbf16>, vector<4x4xbf16>, vector<352x4xf32> -> vector<352x4xf32>
    %c3_193 = arith.constant 3 : index
    %c0_194 = arith.constant 0 : index
    %179 = vector.load %arg10[%c3_193, %c0_194] : memref<506x4xbf16, #tpu.memory_space<vmem>>, vector<352x4xbf16>
    %c19 = arith.constant 19 : index
    %c0_195 = arith.constant 0 : index
    %c0_196 = arith.constant 0 : index
    %180 = vector.load %arg5[%c19, %c0_195, %c0_196] : memref<27x4x4xbf16, #tpu.memory_space<vmem>>, vector<1x4x4xbf16>
    %181 = vector.shape_cast %180 : vector<1x4x4xbf16> to vector<4x4xbf16>
    %cst_197 = arith.constant dense<0.000000e+00> : vector<352x4xf32>
    %182 = tpu.matmul %179, %181, %cst_197 {dimension_numbers = #tpu.dot_dimension_numbers<[1], [0], [0], [1], [0, 0, 1, 1], [], []>} : vector<352x4xbf16>, vector<4x4xbf16>, vector<352x4xf32> -> vector<352x4xf32>
    %183 = arith.addf %178, %182 : vector<352x4xf32>
    %c6_198 = arith.constant 6 : index
    %c0_199 = arith.constant 0 : index
    %184 = vector.load %arg10[%c6_198, %c0_199] : memref<506x4xbf16, #tpu.memory_space<vmem>>, vector<352x4xbf16>
    %c20 = arith.constant 20 : index
    %c0_200 = arith.constant 0 : index
    %c0_201 = arith.constant 0 : index
    %185 = vector.load %arg5[%c20, %c0_200, %c0_201] : memref<27x4x4xbf16, #tpu.memory_space<vmem>>, vector<1x4x4xbf16>
    %186 = vector.shape_cast %185 : vector<1x4x4xbf16> to vector<4x4xbf16>
    %cst_202 = arith.constant dense<0.000000e+00> : vector<352x4xf32>
    %187 = tpu.matmul %184, %186, %cst_202 {dimension_numbers = #tpu.dot_dimension_numbers<[1], [0], [0], [1], [0, 0, 1, 1], [], []>} : vector<352x4xbf16>, vector<4x4xbf16>, vector<352x4xf32> -> vector<352x4xf32>
    %188 = arith.addf %183, %187 : vector<352x4xf32>
    %c66 = arith.constant 66 : index
    %c0_203 = arith.constant 0 : index
    %189 = vector.load %arg10[%c66, %c0_203] : memref<506x4xbf16, #tpu.memory_space<vmem>>, vector<352x4xbf16>
    %c21 = arith.constant 21 : index
    %c0_204 = arith.constant 0 : index
    %c0_205 = arith.constant 0 : index
    %190 = vector.load %arg5[%c21, %c0_204, %c0_205] : memref<27x4x4xbf16, #tpu.memory_space<vmem>>, vector<1x4x4xbf16>
    %191 = vector.shape_cast %190 : vector<1x4x4xbf16> to vector<4x4xbf16>
    %cst_206 = arith.constant dense<0.000000e+00> : vector<352x4xf32>
    %192 = tpu.matmul %189, %191, %cst_206 {dimension_numbers = #tpu.dot_dimension_numbers<[1], [0], [0], [1], [0, 0, 1, 1], [], []>} : vector<352x4xbf16>, vector<4x4xbf16>, vector<352x4xf32> -> vector<352x4xf32>
    %193 = arith.addf %188, %192 : vector<352x4xf32>
    %c69_207 = arith.constant 69 : index
    %c0_208 = arith.constant 0 : index
    %194 = vector.load %arg10[%c69_207, %c0_208] : memref<506x4xbf16, #tpu.memory_space<vmem>>, vector<352x4xbf16>
    %c22 = arith.constant 22 : index
    %c0_209 = arith.constant 0 : index
    %c0_210 = arith.constant 0 : index
    %195 = vector.load %arg5[%c22, %c0_209, %c0_210] : memref<27x4x4xbf16, #tpu.memory_space<vmem>>, vector<1x4x4xbf16>
    %196 = vector.shape_cast %195 : vector<1x4x4xbf16> to vector<4x4xbf16>
    %cst_211 = arith.constant dense<0.000000e+00> : vector<352x4xf32>
    %197 = tpu.matmul %194, %196, %cst_211 {dimension_numbers = #tpu.dot_dimension_numbers<[1], [0], [0], [1], [0, 0, 1, 1], [], []>} : vector<352x4xbf16>, vector<4x4xbf16>, vector<352x4xf32> -> vector<352x4xf32>
    %198 = arith.addf %193, %197 : vector<352x4xf32>
    %c72 = arith.constant 72 : index
    %c0_212 = arith.constant 0 : index
    %199 = vector.load %arg10[%c72, %c0_212] : memref<506x4xbf16, #tpu.memory_space<vmem>>, vector<352x4xbf16>
    %c23_213 = arith.constant 23 : index
    %c0_214 = arith.constant 0 : index
    %c0_215 = arith.constant 0 : index
    %200 = vector.load %arg5[%c23_213, %c0_214, %c0_215] : memref<27x4x4xbf16, #tpu.memory_space<vmem>>, vector<1x4x4xbf16>
    %201 = vector.shape_cast %200 : vector<1x4x4xbf16> to vector<4x4xbf16>
    %cst_216 = arith.constant dense<0.000000e+00> : vector<352x4xf32>
    %202 = tpu.matmul %199, %201, %cst_216 {dimension_numbers = #tpu.dot_dimension_numbers<[1], [0], [0], [1], [0, 0, 1, 1], [], []>} : vector<352x4xbf16>, vector<4x4xbf16>, vector<352x4xf32> -> vector<352x4xf32>
    %203 = arith.addf %198, %202 : vector<352x4xf32>
    %c132 = arith.constant 132 : index
    %c0_217 = arith.constant 0 : index
    %204 = vector.load %arg10[%c132, %c0_217] : memref<506x4xbf16, #tpu.memory_space<vmem>>, vector<352x4xbf16>
    %c24 = arith.constant 24 : index
    %c0_218 = arith.constant 0 : index
    %c0_219 = arith.constant 0 : index
    %205 = vector.load %arg5[%c24, %c0_218, %c0_219] : memref<27x4x4xbf16, #tpu.memory_space<vmem>>, vector<1x4x4xbf16>
    %206 = vector.shape_cast %205 : vector<1x4x4xbf16> to vector<4x4xbf16>
    %cst_220 = arith.constant dense<0.000000e+00> : vector<352x4xf32>
    %207 = tpu.matmul %204, %206, %cst_220 {dimension_numbers = #tpu.dot_dimension_numbers<[1], [0], [0], [1], [0, 0, 1, 1], [], []>} : vector<352x4xbf16>, vector<4x4xbf16>, vector<352x4xf32> -> vector<352x4xf32>
    %208 = arith.addf %203, %207 : vector<352x4xf32>
    %c135_221 = arith.constant 135 : index
    %c0_222 = arith.constant 0 : index
    %209 = vector.load %arg10[%c135_221, %c0_222] : memref<506x4xbf16, #tpu.memory_space<vmem>>, vector<352x4xbf16>
    %c25_223 = arith.constant 25 : index
    %c0_224 = arith.constant 0 : index
    %c0_225 = arith.constant 0 : index
    %210 = vector.load %arg5[%c25_223, %c0_224, %c0_225] : memref<27x4x4xbf16, #tpu.memory_space<vmem>>, vector<1x4x4xbf16>
    %211 = vector.shape_cast %210 : vector<1x4x4xbf16> to vector<4x4xbf16>
    %cst_226 = arith.constant dense<0.000000e+00> : vector<352x4xf32>
    %212 = tpu.matmul %209, %211, %cst_226 {dimension_numbers = #tpu.dot_dimension_numbers<[1], [0], [0], [1], [0, 0, 1, 1], [], []>} : vector<352x4xbf16>, vector<4x4xbf16>, vector<352x4xf32> -> vector<352x4xf32>
    %213 = arith.addf %208, %212 : vector<352x4xf32>
    %c138 = arith.constant 138 : index
    %c0_227 = arith.constant 0 : index
    %214 = vector.load %arg10[%c138, %c0_227] : memref<506x4xbf16, #tpu.memory_space<vmem>>, vector<352x4xbf16>
    %c26 = arith.constant 26 : index
    %c0_228 = arith.constant 0 : index
    %c0_229 = arith.constant 0 : index
    %215 = vector.load %arg5[%c26, %c0_228, %c0_229] : memref<27x4x4xbf16, #tpu.memory_space<vmem>>, vector<1x4x4xbf16>
    %216 = vector.shape_cast %215 : vector<1x4x4xbf16> to vector<4x4xbf16>
    %cst_230 = arith.constant dense<0.000000e+00> : vector<352x4xf32>
    %217 = tpu.matmul %214, %216, %cst_230 {dimension_numbers = #tpu.dot_dimension_numbers<[1], [0], [0], [1], [0, 0, 1, 1], [], []>} : vector<352x4xbf16>, vector<4x4xbf16>, vector<352x4xf32> -> vector<352x4xf32>
    %218 = arith.addf %213, %217 : vector<352x4xf32>
    %c2_231 = arith.constant 2 : index
    %c0_232 = arith.constant 0 : index
    %c0_233 = arith.constant 0 : index
    %219 = vector.load %arg6[%c2_231, %c0_232, %c0_233] : memref<3x1x4xf32, #tpu.memory_space<vmem>>, vector<1x1x4xf32>
    %220 = vector.shape_cast %219 : vector<1x1x4xf32> to vector<1x4xf32>
    %221 = vector.broadcast %220 : vector<1x4xf32> to vector<352x4xf32>
    %222 = arith.addf %218, %221 : vector<352x4xf32>
    %cst_234 = arith.constant 0.000000e+00 : f32
    %223 = vector.broadcast %cst_234 : f32 to vector<352x4xf32>
    %224 = arith.maximumf %222, %223 : vector<352x4xf32>
    %225 = arith.truncf %224 : vector<352x4xf32> to vector<352x4xbf16>
    %c2_235 = arith.constant 2 : index
    %c0_236 = arith.constant 0 : index
    %c0_237 = arith.constant 0 : index
    %226 = vector.load %arg8[%c2_235, %c0_236, %c0_237] : memref<3x4x8xbf16, #tpu.memory_space<vmem>>, vector<1x4x8xbf16>
    %227 = vector.shape_cast %226 : vector<1x4x8xbf16> to vector<4x8xbf16>
    %cst_238 = arith.constant dense<0.000000e+00> : vector<352x8xf32>
    %228 = tpu.matmul %225, %227, %cst_238 {dimension_numbers = #tpu.dot_dimension_numbers<[1], [0], [0], [1], [0, 0, 1, 1], [], []>} : vector<352x4xbf16>, vector<4x8xbf16>, vector<352x8xf32> -> vector<352x8xf32>
    %229 = arith.addf %174, %228 : vector<352x8xf32>
    %cst_239 = arith.constant 0.000000e+00 : f32
    %230 = vector.broadcast %cst_239 : f32 to vector<352x8xf32>
    %231 = arith.maximumf %229, %230 : vector<352x8xf32>
    %232 = vector.shape_cast %231 : vector<352x8xf32> to vector<16x22x8xf32>
    %233 = vector.extract_strided_slice %232 {offsets = [0, 0, 0], sizes = [16, 16, 8], strides = [1, 1, 1]} : vector<16x22x8xf32> to vector<16x16x8xf32>
    %c0_240 = arith.constant 0 : index
    %c0_241 = arith.constant 0 : index
    %c0_242 = arith.constant 0 : index
    %c0_243 = arith.constant 0 : index
    %234 = vector.load %arg9[%c0_240, %c0_241, %c0_242, %c0_243] : memref<1x16x16x8xf32, #tpu.memory_space<vmem>>, vector<1x16x16x8xf32>
    %235 = vector.shape_cast %234 : vector<1x16x16x8xf32> to vector<16x16x8xf32>
    %236 = vector.shape_cast %233 : vector<16x16x8xf32> to vector<1x16x16x8xf32>
    tpu.vector_store %arg9[%c0_240, %c0_241, %c0_242, %c0_243], %236 {strides = array<i32>} : memref<1x16x16x8xf32, #tpu.memory_space<vmem>>, vector<1x16x16x8xf32>,
    return
  }
  func.func @transform_0(%arg0: i32) -> (i32, i32, i32) {
    %c0_i32 = arith.constant 0 : i32
    %c0_i32_0 = arith.constant 0 : i32
    %c0_i32_1 = arith.constant 0 : i32
    return %arg0, %c0_i32, %c0_i32_0 : i32, i32, i32
  }
  func.func @transform_1(%arg0: i32) -> (i32, i32, i32, i32) {
    %c0_i32 = arith.constant 0 : i32
    %c0_i32_0 = arith.constant 0 : i32
    %c0_i32_1 = arith.constant 0 : i32
    %c0_i32_2 = arith.constant 0 : i32
    return %arg0, %c0_i32, %c0_i32_0, %c0_i32_1 : i32, i32, i32, i32
  }
  func.func @transform_2(%arg0: i32) -> (i32, i32) {
    %c0_i32 = arith.constant 0 : i32
    %c0_i32_0 = arith.constant 0 : i32
    %c0_i32_1 = arith.constant 0 : i32
    return %c0_i32, %c0_i32_0 : i32, i32
  }
  func.func @transform_3(%arg0: i32) -> (i32, i32) {
    %c0_i32 = arith.constant 0 : i32
    %c0_i32_0 = arith.constant 0 : i32
    %c0_i32_1 = arith.constant 0 : i32
    return %c0_i32, %c0_i32_0 : i32, i32
  }
  func.func @transform_4(%arg0: i32) -> (i32, i32, i32) {
    %c0_i32 = arith.constant 0 : i32
    %c0_i32_0 = arith.constant 0 : i32
    %c0_i32_1 = arith.constant 0 : i32
    %c0_i32_2 = arith.constant 0 : i32
    return %c0_i32, %c0_i32_0, %c0_i32_1 : i32, i32, i32
  }
  func.func @transform_5(%arg0: i32) -> (i32, i32, i32) {
    %c0_i32 = arith.constant 0 : i32
    %c0_i32_0 = arith.constant 0 : i32
    %c0_i32_1 = arith.constant 0 : i32
    %c0_i32_2 = arith.constant 0 : i32
    return %c0_i32, %c0_i32_0, %c0_i32_1 : i32, i32, i32
  }
  func.func @transform_6(%arg0: i32) -> (i32, i32) {
    %c0_i32 = arith.constant 0 : i32
    %c0_i32_0 = arith.constant 0 : i32
    %c0_i32_1 = arith.constant 0 : i32
    return %c0_i32, %c0_i32_0 : i32, i32
  }
  func.func @transform_7(%arg0: i32) -> (i32, i32, i32) {
    %c0_i32 = arith.constant 0 : i32
    %c0_i32_0 = arith.constant 0 : i32
    %c0_i32_1 = arith.constant 0 : i32
    %c0_i32_2 = arith.constant 0 : i32
    return %c0_i32, %c0_i32_0, %c0_i32_1 : i32, i32, i32
  }
  func.func @transform_8(%arg0: i32) -> (i32, i32, i32, i32) {
    %c0_i32 = arith.constant 0 : i32
    %c0_i32_0 = arith.constant 0 : i32
    %c0_i32_1 = arith.constant 0 : i32
    %c0_i32_2 = arith.constant 0 : i32
    return %arg0, %c0_i32, %c0_i32_0, %c0_i32_1 : i32, i32, i32, i32
  }
}

</mosaic_0001>

<llo_original>
// kernel: aspp_apply_nhwc.1
$region0: #{aspp_apply_nhwc.1}
  #allocation0 [shape = 'u32[]', space=smem, size = 0x4, offset = 0x4, fixed_abs, tag = 'smem constant byte address 0x4 - core index']
  #allocation1 [shape = 'u32[72,128]{1,0:T(1,128)}', space=vmem, size = 0x9000, scoped, tag = 'internal scratch']
  #allocation2 [shape = 'bf16[506,4]{1,0:T(8,128)(2,1)}', space=vmem, size = 0x20000, scoped, tag = 'scratch operand']
  %s0 = inlined_call_operand.vmem [shape: f32[2,1,8], index: 0, kind: input, shape index: {}]
  %s1 = inlined_call_operand.vmem [shape: bf16[2,16,16,4], index: 1, kind: input, shape index: {}]
  %s2 = inlined_call_operand.vmem [shape: bf16[4,4], index: 2, kind: input, shape index: {}]
  %s3 = inlined_call_operand.vmem [shape: f32[1,4], index: 3, kind: input, shape index: {}]
  %s4 = inlined_call_operand.vmem [shape: bf16[27,4,4], index: 4, kind: input, shape index: {}]
  %s5 = inlined_call_operand.vmem [shape: f32[3,1,4], index: 5, kind: input, shape index: {}]
  %s6 = inlined_call_operand.vmem [shape: bf16[4,8], index: 6, kind: input, shape index: {}]
  %s7 = inlined_call_operand.vmem [shape: bf16[3,4,8], index: 7, kind: input, shape index: {}]
  %s8 = inlined_call_operand.vmem [shape: f32[2,16,16,8], index: 8, kind: output, shape index: {}]
  %s9 = sld [smem:[#allocation0]]
  $region65: #{aspp_apply_nhwc.1} parent=0
    _
  %s11 = ssub.s32 1, %s9
  %s12 = scalar_select 0, %s11, %s9
  loop: start=0, step=1, limit=4
  $region2: #{aspp_apply_nhwc.1} parent=0 // loop_pre_header
    _
  $region3: #{aspp_apply_nhwc.1} parent=0 // loop_header
    %s14 = sphi 0, %s18
    %p15 = scmp.ge.s32.totalorder %s14, 4
    %s24 = sphi 0, %s26
    %s27 = sphi 0, %s24
    %s28 = sphi 0, %s27
    %s44 = sphi 0, %s28
    %s50 = sphi 0, %s52
    %s53 = sphi 0, %s50
    %s54 = sphi 0, %s53
    %s70 = sphi 0, %s54
    %s74 = sphi 0, %s74
    %s76 = sphi 0, %s74
    %s77 = sphi 0, %s76
    %s91 = sphi 0, %s77
    %s95 = sphi 0, %s95
    %s97 = sphi 0, %s95
    %s98 = sphi 0, %s97
    %s112 = sphi 0, %s98
    %s116 = sphi 0, %s116
    %s118 = sphi 0, %s116
    %s119 = sphi 0, %s118
    %s133 = sphi 0, %s119
    %s137 = sphi 0, %s137
    %s139 = sphi 0, %s137
    %s140 = sphi 0, %s139
    %s154 = sphi 0, %s140
    %s158 = sphi 0, %s158
    %s160 = sphi 0, %s158
    %s161 = sphi 0, %s160
    %s175 = sphi 0, %s161
    %s179 = sphi 0, %s179
    %s181 = sphi 0, %s179
    %s182 = sphi 0, %s181
    %s196 = sphi 0, %s182
    %s202 = sphi 0, %s204
    %s205 = sphi 0, %s202
    %s206 = sphi 0, %s205
    %s222 = sphi 0, %s206
  $region4: #{aspp_apply_nhwc.1} parent=0 // loop_header_branch
    %17 = sbr.rel (%p15) target = $region8
  $region5: #{aspp_apply_nhwc.1} parent=0 // loop_body
    %s19 = ssub.s32 %s14, 1
    %s20 = ssub.s32 %s14, 2
    %s21 = sadd.s32 %s14, 1
    %s22 = ssub.s32 %s14, %s21
    %p23 = scmp.eq.s32.totalorder %s22, 0
    %s25 = sadd.s32 %s24, 1
    %s26 = scalar_select %p23, %s24, %s25
    %p29 = pneg %p23
    %p30 = scmp.eq.s32.totalorder %s14, 1
    %p31 = por %p29, %p30
    %p32 = scmp.ne.s32.totalorder %s24, %s27
    %p33 = scmp.eq.s32.totalorder %s14, 0
    %p34 = por %p32, %p33
    %p35 = scmp.ne.s32.totalorder %s24, %s27
    %p36 = scmp.eq.s32.totalorder %s19, 1
    %p37 = por %p35, %p36
    %p38 = scmp.ne.s32.totalorder %s27, %s28
    %p39 = scmp.eq.s32.totalorder %s19, 0
    %p40 = por %p38, %p39
    %p41 = scmp.ne.s32.totalorder %s27, %s28
    %p42 = scmp.eq.s32.totalorder %s20, 1
    %p43 = por %p41, %p42
    %p45 = scmp.ne.s32.totalorder %s28, %s44
    %p46 = scmp.eq.s32.totalorder %s20, 0
    %p47 = por %p45, %p46
    %s48 = ssub.s32 %s14, %s21
    %p49 = scmp.eq.s32.totalorder %s48, 0
    %s51 = sadd.s32 %s50, 1
    %s52 = scalar_select %p49, %s50, %s51
    %p55 = pneg %p49
    %p56 = scmp.eq.s32.totalorder %s14, 1
    %p57 = por %p55, %p56
    %p58 = scmp.ne.s32.totalorder %s50, %s53
    %p59 = scmp.eq.s32.totalorder %s14, 0
    %p60 = por %p58, %p59
    %p61 = scmp.ne.s32.totalorder %s50, %s53
    %p62 = scmp.eq.s32.totalorder %s19, 1
    %p63 = por %p61, %p62
    %p64 = scmp.ne.s32.totalorder %s53, %s54
    %p65 = scmp.eq.s32.totalorder %s19, 0
    %p66 = por %p64, %p65
    %p67 = scmp.ne.s32.totalorder %s53, %s54
    %p68 = scmp.eq.s32.totalorder %s20, 1
    %p69 = por %p67, %p68
    %p71 = scmp.ne.s32.totalorder %s54, %s70
    %p72 = scmp.eq.s32.totalorder %s20, 0
    %p73 = por %p71, %p72
    %s75 = sadd.s32 %s74, 1
    %p78 = scmp.eq.s32.totalorder %s14, 1
    %p79 = scmp.ne.s32.totalorder %s74, %s76
    %p80 = scmp.eq.s32.totalorder %s14, 0
    %p81 = por %p79, %p80
    %p82 = scmp.ne.s32.totalorder %s74, %s76
    %p83 = scmp.eq.s32.totalorder %s19, 1
    %p84 = por %p82, %p83
    %p85 = scmp.ne.s32.totalorder %s76, %s77
    %p86 = scmp.eq.s32.totalorder %s19, 0
    %p87 = por %p85, %p86
    %p88 = scmp.ne.s32.totalorder %s76, %s77
    %p89 = scmp.eq.s32.totalorder %s20, 1
    %p90 = por %p88, %p89
    %p92 = scmp.ne.s32.totalorder %s77, %s91
    %p93 = scmp.eq.s32.totalorder %s20, 0
    %p94 = por %p92, %p93
    %s96 = sadd.s32 %s95, 1
    %p99 = scmp.eq.s32.totalorder %s14, 1
    %p100 = scmp.ne.s32.totalorder %s95, %s97
    %p101 = scmp.eq.s32.totalorder %s14, 0
    %p102 = por %p100, %p101
    %p103 = scmp.ne.s32.totalorder %s95, %s97
    %p104 = scmp.eq.s32.totalorder %s19, 1
    %p105 = por %p103, %p104
    %p106 = scmp.ne.s32.totalorder %s97, %s98
    %p107 = scmp.eq.s32.totalorder %s19, 0
    %p108 = por %p106, %p107
    %p109 = scmp.ne.s32.totalorder %s97, %s98
    %p110 = scmp.eq.s32.totalorder %s20, 1
    %p111 = por %p109, %p110
    %p113 = scmp.ne.s32.totalorder %s98, %s112
    %p114 = scmp.eq.s32.totalorder %s20, 0
    %p115 = por %p113, %p114
    %s117 = sadd.s32 %s116, 1
    %p120 = scmp.eq.s32.totalorder %s14, 1
    %p121 = scmp.ne.s32.totalorder %s116, %s118
    %p122 = scmp.eq.s32.totalorder %s14, 0
    %p123 = por %p121, %p122
    %p124 = scmp.ne.s32.totalorder %s116, %s118
    %p125 = scmp.eq.s32.totalorder %s19, 1
    %p126 = por %p124, %p125
    %p127 = scmp.ne.s32.totalorder %s118, %s119
    %p128 = scmp.eq.s32.totalorder %s19, 0
    %p129 = por %p127, %p128
    %p130 = scmp.ne.s32.totalorder %s118, %s119
    %p131 = scmp.eq.s32.totalorder %s20, 1
    %p132 = por %p130, %p131
    %p134 = scmp.ne.s32.totalorder %s119, %s133
    %p135 = scmp.eq.s32.totalorder %s20, 0
    %p136 = por %p134, %p135
    %s138 = sadd.s32 %s137, 1
    %p141 = scmp.eq.s32.totalorder %s14, 1
    %p142 = scmp.ne.s32.totalorder %s137, %s139
    %p143 = scmp.eq.s32.totalorder %s14, 0
    %p144 = por %p142, %p143
    %p145 = scmp.ne.s32.totalorder %s137, %s139
    %p146 = scmp.eq.s32.totalorder %s19, 1
    %p147 = por %p145, %p146
    %p148 = scmp.ne.s32.totalorder %s139, %s140
    %p149 = scmp.eq.s32.totalorder %s19, 0
    %p150 = por %p148, %p149
    %p151 = scmp.ne.s32.totalorder %s139, %s140
    %p152 = scmp.eq.s32.totalorder %s20, 1
    %p153 = por %p151, %p152
    %p155 = scmp.ne.s32.totalorder %s140, %s154
    %p156 = scmp.eq.s32.totalorder %s20, 0
    %p157 = por %p155, %p156
    %s159 = sadd.s32 %s158, 1
    %p162 = scmp.eq.s32.totalorder %s14, 1
    %p163 = scmp.ne.s32.totalorder %s158, %s160
    %p164 = scmp.eq.s32.totalorder %s14, 0
    %p165 = por %p163, %p164
    %p166 = scmp.ne.s32.totalorder %s158, %s160
    %p167 = scmp.eq.s32.totalorder %s19, 1
    %p168 = por %p166, %p167
    %p169 = scmp.ne.s32.totalorder %s160, %s161
    %p170 = scmp.eq.s32.totalorder %s19, 0
    %p171 = por %p169, %p170
    %p172 = scmp.ne.s32.totalorder %s160, %s161
    %p173 = scmp.eq.s32.totalorder %s20, 1
    %p174 = por %p172, %p173
    %p176 = scmp.ne.s32.totalorder %s161, %s175
    %p177 = scmp.eq.s32.totalorder %s20, 0
    %p178 = por %p176, %p177
    %s180 = sadd.s32 %s179, 1
    %p183 = scmp.eq.s32.totalorder %s14, 1
    %p184 = scmp.ne.s32.totalorder %s179, %s181
    %p185 = scmp.eq.s32.totalorder %s14, 0
    %p186 = por %p184, %p185
    %p187 = scmp.ne.s32.totalorder %s179, %s181
    %p188 = scmp.eq.s32.totalorder %s19, 1
    %p189 = por %p187, %p188
    %p190 = scmp.ne.s32.totalorder %s181, %s182
    %p191 = scmp.eq.s32.totalorder %s19, 0
    %p192 = por %p190, %p191
    %p193 = scmp.ne.s32.totalorder %s181, %s182
    %p194 = scmp.eq.s32.totalorder %s20, 1
    %p195 = por %p193, %p194
    %p197 = scmp.ne.s32.totalorder %s182, %s196
    %p198 = scmp.eq.s32.totalorder %s20, 0
    %p199 = por %p197, %p198
    %s200 = ssub.s32 %s14, %s21
    %p201 = scmp.eq.s32.totalorder %s200, 0
    %s203 = sadd.s32 %s202, 1
    %s204 = scalar_select %p201, %s202, %s203
    %p207 = pneg %p201
    %p208 = scmp.eq.s32.totalorder %s14, 1
    %p209 = por %p207, %p208
    %p210 = scmp.ne.s32.totalorder %s202, %s205
    %p211 = scmp.eq.s32.totalorder %s14, 0
    %p212 = por %p210, %p211
    %p213 = scmp.ne.s32.totalorder %s202, %s205
    %p214 = scmp.eq.s32.totalorder %s19, 1
    %p215 = por %p213, %p214
    %p216 = scmp.ne.s32.totalorder %s205, %s206
    %p217 = scmp.eq.s32.totalorder %s19, 0
    %p218 = por %p216, %p217
    %p219 = scmp.ne.s32.totalorder %s205, %s206
    %p220 = scmp.eq.s32.totalorder %s20, 1
    %p221 = por %p219, %p220
    %p223 = scmp.ne.s32.totalorder %s206, %s222
    %p224 = scmp.eq.s32.totalorder %s20, 0
    %p225 = por %p223, %p224
    %p226 = scmp.le.s32.totalorder 1, %s14
    %p227 = scmp.lt.s32.totalorder %s14, 3
    %p228 = pnand %p226, %p227
    %p229 = pneg %p228
    // Predicated region
    $region9: #{aspp_apply_nhwc.1} parent=5 // pred_check
      _
    $region10: #{aspp_apply_nhwc.1} parent=5 // pred_check_branch
      %231 = sbr.rel (%p228) target = $region12
    $region11: #{aspp_apply_nhwc.1} parent=5 // pred_region
      %s232 = ssub.s32 %s14, 1
      // Predicated region
      $region13: #{aspp_apply_nhwc.1} parent=11 // pred_check
        %p233 = pneg %p87
      $region14: #{aspp_apply_nhwc.1} parent=11 // pred_check_branch
        %235 = sbr.rel (%p233) target = $region16
      $region15: #{aspp_apply_nhwc.1} parent=11 // pred_region
        _
      $region16: #{aspp_apply_nhwc.1} parent=11 // pred_fallthru
        _
      // Predicated region
      $region17: #{aspp_apply_nhwc.1} parent=11 // pred_check
        %p236 = pneg %p108
      $region18: #{aspp_apply_nhwc.1} parent=11 // pred_check_branch
        %238 = sbr.rel (%p236) target = $region20
      $region19: #{aspp_apply_nhwc.1} parent=11 // pred_region
        _
      $region20: #{aspp_apply_nhwc.1} parent=11 // pred_fallthru
        _
      // Predicated region
      $region21: #{aspp_apply_nhwc.1} parent=11 // pred_check
        %p239 = pneg %p129
      $region22: #{aspp_apply_nhwc.1} parent=11 // pred_check_branch
        %241 = sbr.rel (%p239) target = $region24
      $region23: #{aspp_apply_nhwc.1} parent=11 // pred_region
        _
      $region24: #{aspp_apply_nhwc.1} parent=11 // pred_fallthru
        _
      // Predicated region
      $region25: #{aspp_apply_nhwc.1} parent=11 // pred_check
        %p242 = pneg %p150
      $region26: #{aspp_apply_nhwc.1} parent=11 // pred_check_branch
        %244 = sbr.rel (%p242) target = $region28
      $region27: #{aspp_apply_nhwc.1} parent=11 // pred_region
        _
      $region28: #{aspp_apply_nhwc.1} parent=11 // pred_fallthru
        _
      // Predicated region
      $region29: #{aspp_apply_nhwc.1} parent=11 // pred_check
        %p245 = pneg %p171
      $region30: #{aspp_apply_nhwc.1} parent=11 // pred_check_branch
        %247 = sbr.rel (%p245) target = $region32
      $region31: #{aspp_apply_nhwc.1} parent=11 // pred_region
        _
      $region32: #{aspp_apply_nhwc.1} parent=11 // pred_fallthru
        _
      // Predicated region
      $region33: #{aspp_apply_nhwc.1} parent=11 // pred_check
        %p248 = pneg %p192
      $region34: #{aspp_apply_nhwc.1} parent=11 // pred_check_branch
        %250 = sbr.rel (%p248) target = $region36
      $region35: #{aspp_apply_nhwc.1} parent=11 // pred_region
        _
      $region36: #{aspp_apply_nhwc.1} parent=11 // pred_fallthru
        _
    $region12: #{aspp_apply_nhwc.1} parent=5 // pred_fallthru
      _
    %p251 = scmp.lt.s32.totalorder %s14, 2
    // Predicated region
    $region37: #{aspp_apply_nhwc.1} parent=5 // pred_check
      %p252 = pneg %p251
    $region38: #{aspp_apply_nhwc.1} parent=5 // pred_check_branch
      %254 = sbr.rel (%p252) target = $region40
    $region39: #{aspp_apply_nhwc.1} parent=5 // pred_region
      // Predicated region
      $region41: #{aspp_apply_nhwc.1} parent=39 // pred_check
        %p255 = pneg %p34
      $region42: #{aspp_apply_nhwc.1} parent=39 // pred_check_branch
        %257 = sbr.rel (%p255) target = $region44
      $region43: #{aspp_apply_nhwc.1} parent=39 // pred_region
        %p258 = scmp.lt.s32.totalorder %s14, 1
        %s259 = scalar_select %p258, %s14, 1
        %s260 = scalar_lea.vmem %s0, %s259
      $region44: #{aspp_apply_nhwc.1} parent=39 // pred_fallthru
        _
      // Predicated region
      $region45: #{aspp_apply_nhwc.1} parent=39 // pred_check
        %p261 = pneg %p60
      $region46: #{aspp_apply_nhwc.1} parent=39 // pred_check_branch
        %263 = sbr.rel (%p261) target = $region48
      $region47: #{aspp_apply_nhwc.1} parent=39 // pred_region
        %p264 = scmp.lt.s32.totalorder %s14, 1
        %s265 = scalar_select %p264, %s14, 1
        %s266 = smul.addr %s265, 32
        %s267 = smul.addr %s266, 4
        %s268 = scalar_lea.vmem %s1, %s267
      $region48: #{aspp_apply_nhwc.1} parent=39 // pred_fallthru
        _
    $region40: #{aspp_apply_nhwc.1} parent=5 // pred_fallthru
      _
    %p269 = scmp.le.s32.totalorder 1, %s14
    %p270 = scmp.lt.s32.totalorder %s14, 3
    %p271 = pnand %p269, %p270
    %p272 = pneg %p271
    // Predicated region
    $region49: #{aspp_apply_nhwc.1} parent=5 // pred_check
      _
    $region50: #{aspp_apply_nhwc.1} parent=5 // pred_check_branch
      %274 = sbr.rel (%p271) target = $region52
    $region51: #{aspp_apply_nhwc.1} parent=5 // pred_region
      %s275 = ssub.s32 %s14, 1
      %p276 = scmp.lt.s32.totalorder %s19, 1
      %s277 = scalar_select %p276, %s19, 1
      %s278 = scalar_lea.vmem %s0, %s277
      %p279 = pneg %p40
      %p280 = pneg %p37
      %p281 = scmp.lt.s32.totalorder %s19, 1
      %s282 = scalar_select %p281, %s19, 1
      %s283 = smul.addr %s282, 32
      %s284 = smul.addr %s283, 4
      %s285 = scalar_lea.vmem %s1, %s284
      %p286 = pneg %p66
      %p287 = pneg %p63
      %p288 = pneg %p87
      %p289 = pneg %p84
      %p290 = pneg %p108
      %p291 = pneg %p105
      %p292 = pneg %p129
      %p293 = pneg %p126
      %p294 = pneg %p150
      %p295 = pneg %p147
      %p296 = pneg %p171
      %p297 = pneg %p168
      %p298 = pneg %p192
      %p299 = pneg %p189
      %p300 = pneg %p218
      %p301 = pneg %p215
      %p302 = scmp.lt.s32.totalorder %s19, 1
      %s303 = scalar_select %p302, %s19, 1
      %s304 = smul.addr %s303, 32
      %s305 = smul.addr %s304, 8
      %s306 = scalar_lea.vmem %s8, %s305
      %p307 = scmp.lt.s32.totalorder %s19, 1
      %s308 = scalar_select %p307, %s19, 1
      %s309 = scalar_lea.vmem %s0, %s308
      %p310 = scmp.lt.s32.totalorder %s19, 1
      %s311 = scalar_select %p310, %s19, 1
      %s312 = smul.addr %s311, 32
      %s313 = smul.addr %s312, 4
      %s314 = scalar_lea.vmem %s1, %s313
      %p315 = scmp.lt.s32.totalorder %s19, 1
      %s316 = scalar_select %p315, %s19, 1
      %s317 = smul.addr %s316, 32
      %s318 = smul.addr %s317, 8
      %s319 = scalar_lea.vmem %s8, %s318
      %vm321 = vcmask 27648
      %322 = vst.msk [vmem:[#allocation2] sm:$0xf] %vm321, 0
      %323 = vst.msk [vmem:[#allocation2 + $0x4] sm:$0xf] %vm321, 0
      %324 = vst.msk [vmem:[#allocation2 + $0x8] sm:$0xf] %vm321, 0
      %325 = vst.msk [vmem:[#allocation2 + $0xc] sm:$0xf] %vm321, 0
      %326 = vst.msk [vmem:[#allocation2 + $0x10] sm:$0xf] %vm321, 0
      %327 = vst.msk [vmem:[#allocation2 + $0x14] sm:$0xf] %vm321, 0
      %328 = vst.msk [vmem:[#allocation2 + $0x18] sm:$0xf] %vm321, 0
      %329 = vst.msk [vmem:[#allocation2 + $0x1c] sm:$0xf] %vm321, 0
      %330 = vst.msk [vmem:[#allocation2 + $0x20] sm:$0xf] %vm321, 0
      %331 = vst.msk [vmem:[#allocation2 + $0x24] sm:$0xf] %vm321, 0
      %332 = vst.msk [vmem:[#allocation2 + $0x28] sm:$0xf] %vm321, 0
      %333 = vst.msk [vmem:[#allocation2 + $0x2c] sm:$0xf] %vm321, 0
      %334 = vst.msk [vmem:[#allocation2 + $0x30] sm:$0xf] %vm321, 0
      %335 = vst.msk [vmem:[#allocation2 + $0x34] sm:$0xf] %vm321, 0
      %336 = vst.msk [vmem:[#allocation2 + $0x38] sm:$0xf] %vm321, 0
      %337 = vst.msk [vmem:[#allocation2 + $0x3c] sm:$0xf] %vm321, 0
      %338 = vst.msk [vmem:[#allocation2 + $0x40] sm:$0xf] %vm321, 0
      %339 = vst.msk [vmem:[#allocation2 + $0x44] sm:$0xf] %vm321, 0
      %340 = vst.msk [vmem:[#allocation2 + $0x48] sm:$0xf] %vm321, 0
      %341 = vst.msk [vmem:[#allocation2 + $0x4c] sm:$0xf] %vm321, 0
      %342 = vst.msk [vmem:[#allocation2 + $0x50] sm:$0xf] %vm321, 0
      %343 = vst.msk [vmem:[#allocation2 + $0x54] sm:$0xf] %vm321, 0
      %344 = vst.msk [vmem:[#allocation2 + $0x58] sm:$0xf] %vm321, 0
      %345 = vst.msk [vmem:[#allocation2 + $0x5c] sm:$0xf] %vm321, 0
      %346 = vst.msk [vmem:[#allocation2 + $0x60] sm:$0xf] %vm321, 0
      %347 = vst.msk [vmem:[#allocation2 + $0x64] sm:$0xf] %vm321, 0
      %348 = vst.msk [vmem:[#allocation2 + $0x68] sm:$0xf] %vm321, 0
      %349 = vst.msk [vmem:[#allocation2 + $0x6c] sm:$0xf] %vm321, 0
      %350 = vst.msk [vmem:[#allocation2 + $0x70] sm:$0xf] %vm321, 0
      %351 = vst.msk [vmem:[#allocation2 + $0x74] sm:$0xf] %vm321, 0
      %352 = vst.msk [vmem:[#allocation2 + $0x78] sm:$0xf] %vm321, 0
      %353 = vst.msk [vmem:[#allocation2 + $0x7c] sm:$0xf] %vm321, 0
      %354 = vst.msk [vmem:[#allocation2 + $0x80] sm:$0xf] %vm321, 0
      %355 = vst.msk [vmem:[#allocation2 + $0x84] sm:$0xf] %vm321, 0
      %356 = vst.msk [vmem:[#allocation2 + $0x88] sm:$0xf] %vm321, 0
      %357 = vst.msk [vmem:[#allocation2 + $0x8c] sm:$0xf] %vm321, 0
      %358 = vst.msk [vmem:[#allocation2 + $0x90] sm:$0xf] %vm321, 0
      %359 = vst.msk [vmem:[#allocation2 + $0x94] sm:$0xf] %vm321, 0
      %360 = vst.msk [vmem:[#allocation2 + $0x98] sm:$0xf] %vm321, 0
      %361 = vst.msk [vmem:[#allocation2 + $0x9c] sm:$0xf] %vm321, 0
      %362 = vst.msk [vmem:[#allocation2 + $0xa0] sm:$0xf] %vm321, 0
      %363 = vst.msk [vmem:[#allocation2 + $0xa4] sm:$0xf] %vm321, 0
      %364 = vst.msk [vmem:[#allocation2 + $0xa8] sm:$0xf] %vm321, 0
      %365 = vst.msk [vmem:[#allocation2 + $0xac] sm:$0xf] %vm321, 0
      %366 = vst.msk [vmem:[#allocation2 + $0xb0] sm:$0xf] %vm321, 0
      %367 = vst.msk [vmem:[#allocation2 + $0xb4] sm:$0xf] %vm321, 0
      %368 = vst.msk [vmem:[#allocation2 + $0xb8] sm:$0xf] %vm321, 0
      %369 = vst.msk [vmem:[#allocation2 + $0xbc] sm:$0xf] %vm321, 0
      %370 = vst.msk [vmem:[#allocation2 + $0xc0] sm:$0xf] %vm321, 0
      %371 = vst.msk [vmem:[#allocation2 + $0xc4] sm:$0xf] %vm321, 0
      %372 = vst.msk [vmem:[#allocation2 + $0xc8] sm:$0xf] %vm321, 0
      %373 = vst.msk [vmem:[#allocation2 + $0xcc] sm:$0xf] %vm321, 0
      %374 = vst.msk [vmem:[#allocation2 + $0xd0] sm:$0xf] %vm321, 0
      %375 = vst.msk [vmem:[#allocation2 + $0xd4] sm:$0xf] %vm321, 0
      %376 = vst.msk [vmem:[#allocation2 + $0xd8] sm:$0xf] %vm321, 0
      %377 = vst.msk [vmem:[#allocation2 + $0xdc] sm:$0xf] %vm321, 0
      %378 = vst.msk [vmem:[#allocation2 + $0xe0] sm:$0xf] %vm321, 0
      %379 = vst.msk [vmem:[#allocation2 + $0xe4] sm:$0xf] %vm321, 0
      %380 = vst.msk [vmem:[#allocation2 + $0xe8] sm:$0xf] %vm321, 0
      %381 = vst.msk [vmem:[#allocation2 + $0xec] sm:$0xf] %vm321, 0
      %382 = vst.msk [vmem:[#allocation2 + $0xf0] sm:$0xf] %vm321, 0
      %383 = vst.msk [vmem:[#allocation2 + $0xf4] sm:$0xf] %vm321, 0
      %384 = vst.msk [vmem:[#allocation2 + $0xf8] sm:$0xf] %vm321, 0
      %vm385 = vcmask 24576
      %386 = vst.msk [vmem:[#allocation2 + $0xfc] sm:$0x1] %vm385, 0
      %v387 = vld [vmem:[%s314] sm:$0xf]
      %v388 = vld [vmem:[%s314 + $0x4] sm:$0xf]
      %vm389 = vsmask.f32 2304
      %vm390 = vsmask.f32 6416
      %vm391 = vmor %vm389, %vm390
      %v393 = vshrl.u32 %v387, 16
      %v395 = vrot.slane %v393, 5
      %v396 = vshll.u32 %v387, 16
      %v398 = vrot.slane %v396, 6
      %v399 = vor.u32 %v395, %v398
      %v400 = vrot.slane %v399, 4
      %v402 = vshrl.u32 %v388, 16
      %v404 = vrot.slane %v402, 5
      %v405 = vshll.u32 %v388, 16
      %v407 = vrot.slane %v405, 6
      %v408 = vor.u32 %v404, %v407
      %v409 = vsel %vm391, %v400, %v408
      %v410 = vrot.slane %v408, 4
      %vm414 = vcmask 27650
      %vm415 = vsmask.f32 7946
      %vm416 = vmand %vm414, %vm415
      %v417 = vld [vmem:[#allocation2 + $0x20] sm:$0xc]
      %v418 = vsel %vm416, %v399, %v417
      %419 = vst [vmem:[#allocation2 + $0x20] sm:$0xc] %v418
      %420 = vst.msk [vmem:[#allocation2 + $0x24] sm:$0xf] %vm321, %v409
      %vm421 = vcmask 26624
      %vm422 = vmand %vm421, %vm389
      %v423 = vld [vmem:[#allocation2 + $0x28] sm:$0x7]
      %v424 = vsel %vm422, %v410, %v423
      %425 = vst [vmem:[#allocation2 + $0x28] sm:$0x7] %v424
      %s426 = scalar_lea.vmem %s314, 8
      %v427 = vld [vmem:[%s426] sm:$0xf]
      %v428 = vld [vmem:[%s426 + $0x4] sm:$0xf]
      %vm429 = vsmask.f32 1280
      %vm430 = vsmask.f32 5392
      %vm431 = vmor %vm429, %vm430
      %v433 = vshrl.u32 %v427, 16
      %v435 = vrot.slane %v433, 6
      %v436 = vshll.u32 %v427, 16
      %v438 = vrot.slane %v436, 7
      %v439 = vor.u32 %v435, %v438
      %v440 = vrot.slane %v439, 4
      %v442 = vshrl.u32 %v428, 16
      %v444 = vrot.slane %v442, 6
      %v445 = vshll.u32 %v428, 16
      %v447 = vrot.slane %v445, 7
      %v448 = vor.u32 %v444, %v447
      %v449 = vsel %vm431, %v440, %v448
      %v450 = vrot.slane %v448, 4
      %vm454 = vcmask 27649
      %vm455 = vsmask.f32 7942
      %vm456 = vmand %vm454, %vm455
      %v457 = vld [vmem:[#allocation2 + $0x2c] sm:$0xe]
      %v458 = vsel %vm456, %v439, %v457
      %459 = vst [vmem:[#allocation2 + $0x2c] sm:$0xe] %v458
      %460 = vst.msk [vmem:[#allocation2 + $0x30] sm:$0xf] %vm321, %v449
      %vm461 = vcmask 25600
      %vm462 = vmand %vm461, %vm429
      %v463 = vld [vmem:[#allocation2 + $0x34] sm:$0x3]
      %v464 = vsel %vm462, %v450, %v463
      %465 = vst [vmem:[#allocation2 + $0x34] sm:$0x3] %v464
      %s466 = scalar_lea.vmem %s314, 16
      %v467 = vld [vmem:[%s466] sm:$0xf]
      %v468 = vld [vmem:[%s466 + $0x4] sm:$0xf]
      %vm469 = vsmask.f32 256
      %vm470 = vsmask.f32 4368
      %vm471 = vmor %vm469, %vm470
      %v473 = vshrl.u32 %v467, 16
      %v475 = vrot.slane %v473, 7
      %v476 = vshll.u32 %v467, 16
      %v478 = vor.u32 %v475, %v476
      %v479 = vrot.slane %v475, 4
      %v481 = vshrl.u32 %v468, 16
      %v483 = vrot.slane %v481, 7
      %v484 = vshll.u32 %v468, 16
      %v486 = vor.u32 %v483, %v484
      %v487 = vsel %vm471, %v479, %v486
      %v488 = vrot.slane %v483, 4
      %vm492 = vcmask 27648
      %vm493 = vsmask.f32 7938
      %vm494 = vmand %vm492, %vm493
      %v495 = vld [vmem:[#allocation2 + $0x38] sm:$0xf]
      %v496 = vsel %vm494, %v478, %v495
      %497 = vst [vmem:[#allocation2 + $0x38] sm:$0xf] %v496
      %498 = vst.msk [vmem:[#allocation2 + $0x3c] sm:$0xf] %vm321, %v487
      %vm499 = vcmask 24576
      %vm500 = vmand %vm499, %vm469
      %v501 = vld [vmem:[#allocation2 + $0x40] sm:$0x1]
      %v502 = vsel %vm500, %v488, %v501
      %503 = vst [vmem:[#allocation2 + $0x40] sm:$0x1] %v502
      %s504 = scalar_lea.vmem %s314, 24
      %v505 = vld [vmem:[%s504] sm:$0xf]
      %v506 = vld [vmem:[%s504 + $0x4] sm:$0xf]
      %vm507 = vsmask.f32 3328
      %vm508 = vsmask.f32 7440
      %vm509 = vmor %vm507, %vm508
      %v511 = vshll.u32 %v505, 16
      %v513 = vrot.slane %v511, 5
      %v514 = vshrl.u32 %v505, 16
      %v516 = vrot.slane %v514, 4
      %v517 = vor.u32 %v516, %v513
      %v518 = vrot.slane %v517, 4
      %v520 = vshll.u32 %v506, 16
      %v522 = vrot.slane %v520, 5
      %v523 = vsel %vm509, %v518, %v522
      %v524 = vshrl.u32 %v506, 16
      %v526 = vrot.slane %v524, 4
      %v527 = vor.u32 %v526, %v522
      %v528 = vrot.slane %v527, 4
      %vm532 = vcmask 27651
      %vm533 = vsmask.f32 7950
      %vm534 = vmand %vm532, %vm533
      %v535 = vld [vmem:[#allocation2 + $0x40] sm:$0x8]
      %v536 = vsel %vm534, %v513, %v535
      %537 = vst [vmem:[#allocation2 + $0x40] sm:$0x8] %v536
      %538 = vst.msk [vmem:[#allocation2 + $0x44] sm:$0xf] %vm321, %v523
      %vm539 = vmand %vm492, %vm507
      %v540 = vld [vmem:[#allocation2 + $0x48] sm:$0xf]
      %v541 = vsel %vm539, %v528, %v540
      %542 = vst [vmem:[#allocation2 + $0x48] sm:$0xf] %v541
      %s543 = scalar_lea.vmem %s314, 32
      %v544 = vld [vmem:[%s543] sm:$0xf]
      %v545 = vld [vmem:[%s543 + $0x4] sm:$0xf]
      %v547 = vshrl.u32 %v544, 16
      %v549 = vrot.slane %v547, 5
      %v550 = vshll.u32 %v544, 16
      %v552 = vrot.slane %v550, 6
      %v553 = vor.u32 %v549, %v552
      %v554 = vrot.slane %v553, 4
      %v556 = vshrl.u32 %v545, 16
      %v558 = vrot.slane %v556, 5
      %v559 = vshll.u32 %v545, 16
      %v561 = vrot.slane %v559, 6
      %v562 = vor.u32 %v558, %v561
      %v563 = vsel %vm391, %v554, %v562
      %v564 = vrot.slane %v562, 4
      %v568 = vld [vmem:[#allocation2 + $0x4c] sm:$0xc]
      %v569 = vsel %vm416, %v553, %v568
      %570 = vst [vmem:[#allocation2 + $0x4c] sm:$0xc] %v569
      %571 = vst.msk [vmem:[#allocation2 + $0x50] sm:$0xf] %vm321, %v563
      %v572 = vld [vmem:[#allocation2 + $0x54] sm:$0x7]
      %v573 = vsel %vm422, %v564, %v572
      %574 = vst [vmem:[#allocation2 + $0x54] sm:$0x7] %v573
      %s575 = scalar_lea.vmem %s314, 40
      %v576 = vld [vmem:[%s575] sm:$0xf]
      %v577 = vld [vmem:[%s575 + $0x4] sm:$0xf]
      %v579 = vshrl.u32 %v576, 16
      %v581 = vrot.slane %v579, 6
      %v582 = vshll.u32 %v576, 16
      %v584 = vrot.slane %v582, 7
      %v585 = vor.u32 %v581, %v584
      %v586 = vrot.slane %v585, 4
      %v588 = vshrl.u32 %v577, 16
      %v590 = vrot.slane %v588, 6
      %v591 = vshll.u32 %v577, 16
      %v593 = vrot.slane %v591, 7
      %v594 = vor.u32 %v590, %v593
      %v595 = vsel %vm431, %v586, %v594
      %v596 = vrot.slane %v594, 4
      %v600 = vld [vmem:[#allocation2 + $0x58] sm:$0xe]
      %v601 = vsel %vm456, %v585, %v600
      %602 = vst [vmem:[#allocation2 + $0x58] sm:$0xe] %v601
      %603 = vst.msk [vmem:[#allocation2 + $0x5c] sm:$0xf] %vm321, %v595
      %v604 = vld [vmem:[#allocation2 + $0x60] sm:$0x3]
      %v605 = vsel %vm462, %v596, %v604
      %606 = vst [vmem:[#allocation2 + $0x60] sm:$0x3] %v605
      %s607 = scalar_lea.vmem %s314, 48
      %v608 = vld [vmem:[%s607] sm:$0xf]
      %v609 = vld [vmem:[%s607 + $0x4] sm:$0xf]
      %v611 = vshrl.u32 %v608, 16
      %v613 = vrot.slane %v611, 7
      %v614 = vshll.u32 %v608, 16
      %v616 = vor.u32 %v613, %v614
      %v617 = vrot.slane %v613, 4
      %v619 = vshrl.u32 %v609, 16
      %v621 = vrot.slane %v619, 7
      %v622 = vshll.u32 %v609, 16
      %v624 = vor.u32 %v621, %v622
      %v625 = vsel %vm471, %v617, %v624
      %v626 = vrot.slane %v621, 4
      %v630 = vld [vmem:[#allocation2 + $0x64] sm:$0xf]
      %v631 = vsel %vm494, %v616, %v630
      %632 = vst [vmem:[#allocation2 + $0x64] sm:$0xf] %v631
      %633 = vst.msk [vmem:[#allocation2 + $0x68] sm:$0xf] %vm321, %v625
      %v634 = vld [vmem:[#allocation2 + $0x6c] sm:$0x1]
      %v635 = vsel %vm500, %v626, %v634
      %636 = vst [vmem:[#allocation2 + $0x6c] sm:$0x1] %v635
      %s637 = scalar_lea.vmem %s314, 56
      %v638 = vld [vmem:[%s637] sm:$0xf]
      %v639 = vld [vmem:[%s637 + $0x4] sm:$0xf]
      %v641 = vshll.u32 %v638, 16
      %v643 = vrot.slane %v641, 5
      %v644 = vshrl.u32 %v638, 16
      %v646 = vrot.slane %v644, 4
      %v647 = vor.u32 %v646, %v643
      %v648 = vrot.slane %v647, 4
      %v650 = vshll.u32 %v639, 16
      %v652 = vrot.slane %v650, 5
      %v653 = vsel %vm509, %v648, %v652
      %v654 = vshrl.u32 %v639, 16
      %v656 = vrot.slane %v654, 4
      %v657 = vor.u32 %v656, %v652
      %v658 = vrot.slane %v657, 4
      %v662 = vld [vmem:[#allocation2 + $0x6c] sm:$0x8]
      %v663 = vsel %vm534, %v643, %v662
      %664 = vst [vmem:[#allocation2 + $0x6c] sm:$0x8] %v663
      %665 = vst.msk [vmem:[#allocation2 + $0x70] sm:$0xf] %vm321, %v653
      %v666 = vld [vmem:[#allocation2 + $0x74] sm:$0xf]
      %v667 = vsel %vm539, %v658, %v666
      %668 = vst [vmem:[#allocation2 + $0x74] sm:$0xf] %v667
      %s669 = scalar_lea.vmem %s314, 64
      %v670 = vld [vmem:[%s669] sm:$0xf]
      %v671 = vld [vmem:[%s669 + $0x4] sm:$0xf]
      %v673 = vshrl.u32 %v670, 16
      %v675 = vrot.slane %v673, 5
      %v676 = vshll.u32 %v670, 16
      %v678 = vrot.slane %v676, 6
      %v679 = vor.u32 %v675, %v678
      %v680 = vrot.slane %v679, 4
      %v682 = vshrl.u32 %v671, 16
      %v684 = vrot.slane %v682, 5
      %v685 = vshll.u32 %v671, 16
      %v687 = vrot.slane %v685, 6
      %v688 = vor.u32 %v684, %v687
      %v689 = vsel %vm391, %v680, %v688
      %v690 = vrot.slane %v688, 4
      %v694 = vld [vmem:[#allocation2 + $0x78] sm:$0xc]
      %v695 = vsel %vm416, %v679, %v694
      %696 = vst [vmem:[#allocation2 + $0x78] sm:$0xc] %v695
      %697 = vst.msk [vmem:[#allocation2 + $0x7c] sm:$0xf] %vm321, %v689
      %v698 = vld [vmem:[#allocation2 + $0x80] sm:$0x7]
      %v699 = vsel %vm422, %v690, %v698
      %700 = vst [vmem:[#allocation2 + $0x80] sm:$0x7] %v699
      %s701 = scalar_lea.vmem %s314, 72
      %v702 = vld [vmem:[%s701] sm:$0xf]
      %v703 = vld [vmem:[%s701 + $0x4] sm:$0xf]
      %v705 = vshrl.u32 %v702, 16
      %v707 = vrot.slane %v705, 6
      %v708 = vshll.u32 %v702, 16
      %v710 = vrot.slane %v708, 7
      %v711 = vor.u32 %v707, %v710
      %v712 = vrot.slane %v711, 4
      %v714 = vshrl.u32 %v703, 16
      %v716 = vrot.slane %v714, 6
      %v717 = vshll.u32 %v703, 16
      %v719 = vrot.slane %v717, 7
      %v720 = vor.u32 %v716, %v719
      %v721 = vsel %vm431, %v712, %v720
      %v722 = vrot.slane %v720, 4
      %v726 = vld [vmem:[#allocation2 + $0x84] sm:$0xe]
      %v727 = vsel %vm456, %v711, %v726
      %728 = vst [vmem:[#allocation2 + $0x84] sm:$0xe] %v727
      %729 = vst.msk [vmem:[#allocation2 + $0x88] sm:$0xf] %vm321, %v721
      %v730 = vld [vmem:[#allocation2 + $0x8c] sm:$0x3]
      %v731 = vsel %vm462, %v722, %v730
      %732 = vst [vmem:[#allocation2 + $0x8c] sm:$0x3] %v731
      %s733 = scalar_lea.vmem %s314, 80
      %v734 = vld [vmem:[%s733] sm:$0xf]
      %v735 = vld [vmem:[%s733 + $0x4] sm:$0xf]
      %v737 = vshrl.u32 %v734, 16
      %v739 = vrot.slane %v737, 7
      %v740 = vshll.u32 %v734, 16
      %v742 = vor.u32 %v739, %v740
      %v743 = vrot.slane %v739, 4
      %v745 = vshrl.u32 %v735, 16
      %v747 = vrot.slane %v745, 7
      %v748 = vshll.u32 %v735, 16
      %v750 = vor.u32 %v747, %v748
      %v751 = vsel %vm471, %v743, %v750
      %v752 = vrot.slane %v747, 4
      %v756 = vld [vmem:[#allocation2 + $0x90] sm:$0xf]
      %v757 = vsel %vm494, %v742, %v756
      %758 = vst [vmem:[#allocation2 + $0x90] sm:$0xf] %v757
      %759 = vst.msk [vmem:[#allocation2 + $0x94] sm:$0xf] %vm321, %v751
      %v760 = vld [vmem:[#allocation2 + $0x98] sm:$0x1]
      %v761 = vsel %vm500, %v752, %v760
      %762 = vst [vmem:[#allocation2 + $0x98] sm:$0x1] %v761
      %s763 = scalar_lea.vmem %s314, 88
      %v764 = vld [vmem:[%s763] sm:$0xf]
      %v765 = vld [vmem:[%s763 + $0x4] sm:$0xf]
      %v767 = vshll.u32 %v764, 16
      %v769 = vrot.slane %v767, 5
      %v770 = vshrl.u32 %v764, 16
      %v772 = vrot.slane %v770, 4
      %v773 = vor.u32 %v772, %v769
      %v774 = vrot.slane %v773, 4
      %v776 = vshll.u32 %v765, 16
      %v778 = vrot.slane %v776, 5
      %v779 = vsel %vm509, %v774, %v778
      %v780 = vshrl.u32 %v765, 16
      %v782 = vrot.slane %v780, 4
      %v783 = vor.u32 %v782, %v778
      %v784 = vrot.slane %v783, 4
      %v788 = vld [vmem:[#allocation2 + $0x98] sm:$0x8]
      %v789 = vsel %vm534, %v769, %v788
      %790 = vst [vmem:[#allocation2 + $0x98] sm:$0x8] %v789
      %791 = vst.msk [vmem:[#allocation2 + $0x9c] sm:$0xf] %vm321, %v779
      %v792 = vld [vmem:[#allocation2 + $0xa0] sm:$0xf]
      %v793 = vsel %vm539, %v784, %v792
      %794 = vst [vmem:[#allocation2 + $0xa0] sm:$0xf] %v793
      %s795 = scalar_lea.vmem %s314, 96
      %v796 = vld [vmem:[%s795] sm:$0xf]
      %v797 = vld [vmem:[%s795 + $0x4] sm:$0xf]
      %v799 = vshrl.u32 %v796, 16
      %v801 = vrot.slane %v799, 5
      %v802 = vshll.u32 %v796, 16
      %v804 = vrot.slane %v802, 6
      %v805 = vor.u32 %v801, %v804
      %v806 = vrot.slane %v805, 4
      %v808 = vshrl.u32 %v797, 16
      %v810 = vrot.slane %v808, 5
      %v811 = vshll.u32 %v797, 16
      %v813 = vrot.slane %v811, 6
      %v814 = vor.u32 %v810, %v813
      %v815 = vsel %vm391, %v806, %v814
      %v816 = vrot.slane %v814, 4
      %v820 = vld [vmem:[#allocation2 + $0xa4] sm:$0xc]
      %v821 = vsel %vm416, %v805, %v820
      %822 = vst [vmem:[#allocation2 + $0xa4] sm:$0xc] %v821
      %823 = vst.msk [vmem:[#allocation2 + $0xa8] sm:$0xf] %vm321, %v815
      %v824 = vld [vmem:[#allocation2 + $0xac] sm:$0x7]
      %v825 = vsel %vm422, %v816, %v824
      %826 = vst [vmem:[#allocation2 + $0xac] sm:$0x7] %v825
      %s827 = scalar_lea.vmem %s314, 104
      %v828 = vld [vmem:[%s827] sm:$0xf]
      %v829 = vld [vmem:[%s827 + $0x4] sm:$0xf]
      %v831 = vshrl.u32 %v828, 16
      %v833 = vrot.slane %v831, 6
      %v834 = vshll.u32 %v828, 16
      %v836 = vrot.slane %v834, 7
      %v837 = vor.u32 %v833, %v836
      %v838 = vrot.slane %v837, 4
      %v840 = vshrl.u32 %v829, 16
      %v842 = vrot.slane %v840, 6
      %v843 = vshll.u32 %v829, 16
      %v845 = vrot.slane %v843, 7
      %v846 = vor.u32 %v842, %v845
      %v847 = vsel %vm431, %v838, %v846
      %v848 = vrot.slane %v846, 4
      %v852 = vld [vmem:[#allocation2 + $0xb0] sm:$0xe]
      %v853 = vsel %vm456, %v837, %v852
      %854 = vst [vmem:[#allocation2 + $0xb0] sm:$0xe] %v853
      %855 = vst.msk [vmem:[#allocation2 + $0xb4] sm:$0xf] %vm321, %v847
      %v856 = vld [vmem:[#allocation2 + $0xb8] sm:$0x3]
      %v857 = vsel %vm462, %v848, %v856
      %858 = vst [vmem:[#allocation2 + $0xb8] sm:$0x3] %v857
      %s859 = scalar_lea.vmem %s314, 112
      %v860 = vld [vmem:[%s859] sm:$0xf]
      %v861 = vld [vmem:[%s859 + $0x4] sm:$0xf]
      %v863 = vshrl.u32 %v860, 16
      %v865 = vrot.slane %v863, 7
      %v866 = vshll.u32 %v860, 16
      %v868 = vor.u32 %v865, %v866
      %v869 = vrot.slane %v865, 4
      %v871 = vshrl.u32 %v861, 16
      %v873 = vrot.slane %v871, 7
      %v874 = vshll.u32 %v861, 16
      %v876 = vor.u32 %v873, %v874
      %v877 = vsel %vm471, %v869, %v876
      %v878 = vrot.slane %v873, 4
      %v882 = vld [vmem:[#allocation2 + $0xbc] sm:$0xf]
      %v883 = vsel %vm494, %v868, %v882
      %884 = vst [vmem:[#allocation2 + $0xbc] sm:$0xf] %v883
      %885 = vst.msk [vmem:[#allocation2 + $0xc0] sm:$0xf] %vm321, %v877
      %v886 = vld [vmem:[#allocation2 + $0xc4] sm:$0x1]
      %v887 = vsel %vm500, %v878, %v886
      %888 = vst [vmem:[#allocation2 + $0xc4] sm:$0x1] %v887
      %s889 = scalar_lea.vmem %s314, 120
      %v890 = vld [vmem:[%s889] sm:$0xf]
      %v891 = vld [vmem:[%s889 + $0x4] sm:$0xf]
      %v893 = vshll.u32 %v890, 16
      %v895 = vrot.slane %v893, 5
      %v896 = vshrl.u32 %v890, 16
      %v898 = vrot.slane %v896, 4
      %v899 = vor.u32 %v898, %v895
      %v900 = vrot.slane %v899, 4
      %v902 = vshll.u32 %v891, 16
      %v904 = vrot.slane %v902, 5
      %v905 = vsel %vm509, %v900, %v904
      %v906 = vshrl.u32 %v891, 16
      %v908 = vrot.slane %v906, 4
      %v909 = vor.u32 %v908, %v904
      %v910 = vrot.slane %v909, 4
      %v914 = vld [vmem:[#allocation2 + $0xc4] sm:$0x8]
      %v915 = vsel %vm534, %v895, %v914
      %916 = vst [vmem:[#allocation2 + $0xc4] sm:$0x8] %v915
      %917 = vst.msk [vmem:[#allocation2 + $0xc8] sm:$0xf] %vm321, %v905
      %v918 = vld [vmem:[#allocation2 + $0xcc] sm:$0xf]
      %v919 = vsel %vm539, %v910, %v918
      %920 = vst [vmem:[#allocation2 + $0xcc] sm:$0xf] %v919
      %v921 = vld [vmem:[#allocation2 + $0x20] sm:$0xc]
      %v922 = vld [vmem:[#allocation2 + $0x24] sm:$0xf]
      %v923 = vld [vmem:[#allocation2 + $0x28] sm:$0xf]
      %v924 = vld [vmem:[#allocation2 + $0x2c] sm:$0xf]
      %v925 = vld [vmem:[#allocation2 + $0x30] sm:$0xf]
      %v926 = vld [vmem:[#allocation2 + $0x34] sm:$0xf]
      %v927 = vld [vmem:[#allocation2 + $0x38] sm:$0xf]
      %v928 = vld [vmem:[#allocation2 + $0x3c] sm:$0xf]
      %v929 = vld [vmem:[#allocation2 + $0x40] sm:$0xf]
      %v930 = vld [vmem:[#allocation2 + $0x44] sm:$0xf]
      %v931 = vld [vmem:[#allocation2 + $0x48] sm:$0xf]
      %v932 = vld [vmem:[#allocation2 + $0x4c] sm:$0xf]
      %v933 = vld [vmem:[#allocation2 + $0x50] sm:$0xf]
      %v934 = vld [vmem:[#allocation2 + $0x54] sm:$0xf]
      %v935 = vld [vmem:[#allocation2 + $0x58] sm:$0xf]
      %v936 = vld [vmem:[#allocation2 + $0x5c] sm:$0xf]
      %v937 = vld [vmem:[#allocation2 + $0x60] sm:$0xf]
      %v938 = vld [vmem:[#allocation2 + $0x64] sm:$0xf]
      %v939 = vld [vmem:[#allocation2 + $0x68] sm:$0xf]
      %v940 = vld [vmem:[#allocation2 + $0x6c] sm:$0xf]
      %v941 = vld [vmem:[#allocation2 + $0x70] sm:$0xf]
      %v942 = vld [vmem:[#allocation2 + $0x74] sm:$0xf]
      %v943 = vld [vmem:[#allocation2 + $0x78] sm:$0xf]
      %v944 = vld [vmem:[#allocation2 + $0x7c] sm:$0xf]
      %v945 = vld [vmem:[#allocation2 + $0x80] sm:$0xf]
      %v946 = vld [vmem:[#allocation2 + $0x84] sm:$0xf]
      %v947 = vld [vmem:[#allocation2 + $0x88] sm:$0xf]
      %v948 = vld [vmem:[#allocation2 + $0x8c] sm:$0xf]
      %v949 = vld [vmem:[#allocation2 + $0x90] sm:$0xf]
      %v950 = vld [vmem:[#allocation2 + $0x94] sm:$0xf]
      %v951 = vld [vmem:[#allocation2 + $0x98] sm:$0xf]
      %v952 = vld [vmem:[#allocation2 + $0x9c] sm:$0xf]
      %v953 = vld [vmem:[#allocation2 + $0xa0] sm:$0xf]
      %v954 = vld [vmem:[#allocation2 + $0xa4] sm:$0xf]
      %v955 = vld [vmem:[#allocation2 + $0xa8] sm:$0xf]
      %v956 = vld [vmem:[#allocation2 + $0xac] sm:$0xf]
      %v957 = vld [vmem:[#allocation2 + $0xb0] sm:$0xf]
      %v958 = vld [vmem:[#allocation2 + $0xb4] sm:$0xf]
      %v959 = vld [vmem:[#allocation2 + $0xb8] sm:$0xf]
      %v960 = vld [vmem:[#allocation2 + $0xbc] sm:$0xf]
      %v961 = vld [vmem:[#allocation2 + $0xc0] sm:$0xf]
      %v962 = vld [vmem:[#allocation2 + $0xc4] sm:$0xf]
      %v963 = vld [vmem:[#allocation2 + $0xc8] sm:$0xf]
      %v964 = vld [vmem:[#allocation2 + $0xcc] sm:$0xf]
      %v965 = vld [vmem:[#allocation2 + $0xd0] sm:$0x7]
      %v966 = vld [vmem:[%s2] sm:$0x3]
      %v967 = vld [vmem:[%s3] sm:$0x1]
      %v969 = vperm.slane %v967, 0
      %v1016 = vunpack.c.l.b16 %v921
      %v1017 = vunpack.c.l.b16 %v922
      %v1018 = vunpack.c.l.b16 %v923
      %v1019 = vunpack.c.l.b16 %v924
      %v1020 = vunpack.c.l.b16 %v925
      %v1021 = vunpack.c.l.b16 %v926
      %v1022 = vunpack.c.l.b16 %v927
      %v1023 = vunpack.c.l.b16 %v928
      %v1024 = vunpack.c.l.b16 %v929
      %v1025 = vunpack.c.l.b16 %v930
      %v1026 = vunpack.c.l.b16 %v931
      %v1027 = vunpack.c.l.b16 %v932
      %v1028 = vunpack.c.l.b16 %v933
      %v1029 = vunpack.c.l.b16 %v934
      %v1030 = vunpack.c.l.b16 %v935
      %v1031 = vunpack.c.l.b16 %v936
      %v1032 = vunpack.c.l.b16 %v937
      %v1033 = vunpack.c.l.b16 %v938
      %v1034 = vunpack.c.l.b16 %v939
      %v1035 = vunpack.c.l.b16 %v940
      %v1036 = vunpack.c.l.b16 %v941
      %v1037 = vunpack.c.l.b16 %v942
      %v1038 = vunpack.c.l.b16 %v943
      %v1039 = vunpack.c.l.b16 %v944
      %v1040 = vunpack.c.l.b16 %v945
      %v1041 = vunpack.c.l.b16 %v946
      %v1042 = vunpack.c.l.b16 %v947
      %v1043 = vunpack.c.l.b16 %v948
      %v1044 = vunpack.c.l.b16 %v949
      %v1045 = vunpack.c.l.b16 %v950
      %v1046 = vunpack.c.l.b16 %v951
      %v1047 = vunpack.c.l.b16 %v952
      %v1048 = vunpack.c.l.b16 %v953
      %v1049 = vunpack.c.l.b16 %v954
      %v1050 = vunpack.c.l.b16 %v955
      %v1051 = vunpack.c.l.b16 %v956
      %v1052 = vunpack.c.l.b16 %v957
      %v1053 = vunpack.c.l.b16 %v958
      %v1054 = vunpack.c.l.b16 %v959
      %v1055 = vunpack.c.l.b16 %v960
      %v1056 = vunpack.c.l.b16 %v961
      %v1057 = vunpack.c.l.b16 %v962
      %v1058 = vunpack.c.l.b16 %v963
      %v1059 = vunpack.c.l.b16 %v964
      %v1060 = vunpack.c.l.b16 %v965
      %v1061 = vpack.c.b16 %v1017, %v1016
      %v1062 = vpack.c.b16 %v1019, %v1018
      %v1063 = vpack.c.b16 %v1021, %v1020
      %v1064 = vpack.c.b16 %v1023, %v1022
      %v1065 = vpack.c.b16 %v1025, %v1024
      %v1066 = vpack.c.b16 %v1027, %v1026
      %v1067 = vpack.c.b16 %v1029, %v1028
      %v1068 = vpack.c.b16 %v1031, %v1030
      %v1069 = vpack.c.b16 %v1033, %v1032
      %v1070 = vpack.c.b16 %v1035, %v1034
      %v1071 = vpack.c.b16 %v1037, %v1036
      %v1072 = vpack.c.b16 %v1039, %v1038
      %v1073 = vpack.c.b16 %v1041, %v1040
      %v1074 = vpack.c.b16 %v1043, %v1042
      %v1075 = vpack.c.b16 %v1045, %v1044
      %v1076 = vpack.c.b16 %v1047, %v1046
      %v1077 = vpack.c.b16 %v1049, %v1048
      %v1078 = vpack.c.b16 %v1051, %v1050
      %v1079 = vpack.c.b16 %v1053, %v1052
      %v1080 = vpack.c.b16 %v1055, %v1054
      %v1081 = vpack.c.b16 %v1057, %v1056
      %v1082 = vpack.c.b16 %v1059, %v1058
      %v1083 = vpack.c.b16 %v1060, %v1060
      %vm1084 = vsmask.f32 5376
      %v1086 = vshrl.u32 %v1061, 16
      %v1088 = vrot.slane %v1086, 2
      %v1089 = vshll.u32 %v1061, 16
      %v1091 = vrot.slane %v1089, 3
      %v1092 = vor.u32 %v1088, %v1091
      %v1094 = vshrl.u32 %v1062, 16
      %v1096 = vrot.slane %v1094, 2
      %v1097 = vshll.u32 %v1062, 16
      %v1099 = vrot.slane %v1097, 3
      %v1100 = vor.u32 %v1096, %v1099
      %v1101 = vsel %vm1084, %v1092, %v1100
      %v1103 = vshrl.u32 %v1063, 16
      %v1105 = vrot.slane %v1103, 2
      %v1106 = vshll.u32 %v1063, 16
      %v1108 = vrot.slane %v1106, 3
      %v1109 = vor.u32 %v1105, %v1108
      %v1110 = vsel %vm1084, %v1100, %v1109
      %v1112 = vshrl.u32 %v1064, 16
      %v1114 = vrot.slane %v1112, 2
      %v1115 = vshll.u32 %v1064, 16
      %v1117 = vrot.slane %v1115, 3
      %v1118 = vor.u32 %v1114, %v1117
      %v1119 = vsel %vm1084, %v1109, %v1118
      %v1121 = vshrl.u32 %v1065, 16
      %v1123 = vrot.slane %v1121, 2
      %v1124 = vshll.u32 %v1065, 16
      %v1126 = vrot.slane %v1124, 3
      %v1127 = vor.u32 %v1123, %v1126
      %v1128 = vsel %vm1084, %v1118, %v1127
      %v1130 = vshrl.u32 %v1066, 16
      %v1132 = vrot.slane %v1130, 2
      %v1133 = vshll.u32 %v1066, 16
      %v1135 = vrot.slane %v1133, 3
      %v1136 = vor.u32 %v1132, %v1135
      %v1137 = vsel %vm1084, %v1127, %v1136
      %v1139 = vshrl.u32 %v1067, 16
      %v1141 = vrot.slane %v1139, 2
      %v1142 = vshll.u32 %v1067, 16
      %v1144 = vrot.slane %v1142, 3
      %v1145 = vor.u32 %v1141, %v1144
      %v1146 = vsel %vm1084, %v1136, %v1145
      %v1148 = vshrl.u32 %v1068, 16
      %v1150 = vrot.slane %v1148, 2
      %v1151 = vshll.u32 %v1068, 16
      %v1153 = vrot.slane %v1151, 3
      %v1154 = vor.u32 %v1150, %v1153
      %v1155 = vsel %vm1084, %v1145, %v1154
      %v1157 = vshrl.u32 %v1069, 16
      %v1159 = vrot.slane %v1157, 2
      %v1160 = vshll.u32 %v1069, 16
      %v1162 = vrot.slane %v1160, 3
      %v1163 = vor.u32 %v1159, %v1162
      %v1164 = vsel %vm1084, %v1154, %v1163
      %v1166 = vshrl.u32 %v1070, 16
      %v1168 = vrot.slane %v1166, 2
      %v1169 = vshll.u32 %v1070, 16
      %v1171 = vrot.slane %v1169, 3
      %v1172 = vor.u32 %v1168, %v1171
      %v1173 = vsel %vm1084, %v1163, %v1172
      %v1175 = vshrl.u32 %v1071, 16
      %v1177 = vrot.slane %v1175, 2
      %v1178 = vshll.u32 %v1071, 16
      %v1180 = vrot.slane %v1178, 3
      %v1181 = vor.u32 %v1177, %v1180
      %v1182 = vsel %vm1084, %v1172, %v1181
      %v1184 = vshrl.u32 %v1072, 16
      %v1186 = vrot.slane %v1184, 2
      %v1187 = vshll.u32 %v1072, 16
      %v1189 = vrot.slane %v1187, 3
      %v1190 = vor.u32 %v1186, %v1189
      %v1191 = vsel %vm1084, %v1181, %v1190
      %v1193 = vshrl.u32 %v1073, 16
      %v1195 = vrot.slane %v1193, 2
      %v1196 = vshll.u32 %v1073, 16
      %v1198 = vrot.slane %v1196, 3
      %v1199 = vor.u32 %v1195, %v1198
      %v1200 = vsel %vm1084, %v1190, %v1199
      %v1202 = vshrl.u32 %v1074, 16
      %v1204 = vrot.slane %v1202, 2
      %v1205 = vshll.u32 %v1074, 16
      %v1207 = vrot.slane %v1205, 3
      %v1208 = vor.u32 %v1204, %v1207
      %v1209 = vsel %vm1084, %v1199, %v1208
      %v1211 = vshrl.u32 %v1075, 16
      %v1213 = vrot.slane %v1211, 2
      %v1214 = vshll.u32 %v1075, 16
      %v1216 = vrot.slane %v1214, 3
      %v1217 = vor.u32 %v1213, %v1216
      %v1218 = vsel %vm1084, %v1208, %v1217
      %v1220 = vshrl.u32 %v1076, 16
      %v1222 = vrot.slane %v1220, 2
      %v1223 = vshll.u32 %v1076, 16
      %v1225 = vrot.slane %v1223, 3
      %v1226 = vor.u32 %v1222, %v1225
      %v1227 = vsel %vm1084, %v1217, %v1226
      %v1229 = vshrl.u32 %v1077, 16
      %v1231 = vrot.slane %v1229, 2
      %v1232 = vshll.u32 %v1077, 16
      %v1234 = vrot.slane %v1232, 3
      %v1235 = vor.u32 %v1231, %v1234
      %v1236 = vsel %vm1084, %v1226, %v1235
      %v1238 = vshrl.u32 %v1078, 16
      %v1240 = vrot.slane %v1238, 2
      %v1241 = vshll.u32 %v1078, 16
      %v1243 = vrot.slane %v1241, 3
      %v1244 = vor.u32 %v1240, %v1243
      %v1245 = vsel %vm1084, %v1235, %v1244
      %v1247 = vshrl.u32 %v1079, 16
      %v1249 = vrot.slane %v1247, 2
      %v1250 = vshll.u32 %v1079, 16
      %v1252 = vrot.slane %v1250, 3
      %v1253 = vor.u32 %v1249, %v1252
      %v1254 = vsel %vm1084, %v1244, %v1253
      %v1256 = vshrl.u32 %v1080, 16
      %v1258 = vrot.slane %v1256, 2
      %v1259 = vshll.u32 %v1080, 16
      %v1261 = vrot.slane %v1259, 3
      %v1262 = vor.u32 %v1258, %v1261
      %v1263 = vsel %vm1084, %v1253, %v1262
      %v1265 = vshrl.u32 %v1081, 16
      %v1267 = vrot.slane %v1265, 2
      %v1268 = vshll.u32 %v1081, 16
      %v1270 = vrot.slane %v1268, 3
      %v1271 = vor.u32 %v1267, %v1270
      %v1272 = vsel %vm1084, %v1262, %v1271
      %v1274 = vshrl.u32 %v1082, 16
      %v1276 = vrot.slane %v1274, 2
      %v1277 = vshll.u32 %v1082, 16
      %v1279 = vrot.slane %v1277, 3
      %v1280 = vor.u32 %v1276, %v1279
      %v1281 = vsel %vm1084, %v1271, %v1280
      %v1283 = vshrl.u32 %v1083, 16
      %v1285 = vrot.slane %v1283, 2
      %v1286 = vshll.u32 %v1083, 16
      %v1288 = vrot.slane %v1286, 3
      %v1289 = vor.u32 %v1285, %v1288
      %v1290 = vsel %vm1084, %v1280, %v1289
      %vm1291 = vcmask 31744
      %v1293 = vsel %vm1291, %v1101, 0
      %v1296 = vsel %vm1291, %v1110, 0
      %v1299 = vsel %vm1291, %v1119, 0
      %v1302 = vsel %vm1291, %v1128, 0
      %v1305 = vsel %vm1291, %v1137, 0
      %v1308 = vsel %vm1291, %v1146, 0
      %v1311 = vsel %vm1291, %v1155, 0
      %v1314 = vsel %vm1291, %v1164, 0
      %v1317 = vsel %vm1291, %v1173, 0
      %v1320 = vsel %vm1291, %v1182, 0
      %v1323 = vsel %vm1291, %v1191, 0
      %v1326 = vsel %vm1291, %v1200, 0
      %v1329 = vsel %vm1291, %v1209, 0
      %v1332 = vsel %vm1291, %v1218, 0
      %v1335 = vsel %vm1291, %v1227, 0
      %v1338 = vsel %vm1291, %v1236, 0
      %v1341 = vsel %vm1291, %v1245, 0
      %v1344 = vsel %vm1291, %v1254, 0
      %v1347 = vsel %vm1291, %v1263, 0
      %v1350 = vsel %vm1291, %v1272, 0
      %v1353 = vsel %vm1291, %v1281, 0
      %v1356 = vsel %vm1291, %v1290, 0
      %vm1358 = vcmask 1041408
      %v1360 = vsel %vm1358, %v966, 0
      %1362 = vmatpush.bf16.msra.mxu0 0
      %1363 = vmatpush.bf16.msra.mxu0 0
      %1364 = vmatpush.bf16.msra.mxu0 0
      %1365 = vmatpush.bf16.msra.mxu0 0
      %1366 = vmatpush.bf16.msra.mxu0 0
      %1367 = vmatpush.bf16.msra.mxu0 0
      %1368 = vmatpush.bf16.msra.mxu0 0
      %1369 = vmatpush.bf16.msra.mxu0 %v1360
      %1370 = vmatmul.bf16.gmra.mxu0 %v1293
      %v1371 = vpop.f32.mrf.mxu0
      %v1372 = vadd.f32 %v969, %v1371
      %v1373 = vpop.f32.mrf.mxu0
      %v1374 = vadd.f32 %v969, %v1373
      %1375 = vmatmul.bf16.gmra.mxu0 %v1296
      %v1376 = vpop.f32.mrf.mxu0
      %v1377 = vadd.f32 %v969, %v1376
      %v1378 = vpop.f32.mrf.mxu0
      %v1379 = vadd.f32 %v969, %v1378
      %1380 = vmatmul.bf16.gmra.mxu0 %v1299
      %v1381 = vpop.f32.mrf.mxu0
      %v1382 = vadd.f32 %v969, %v1381
      %v1383 = vpop.f32.mrf.mxu0
      %v1384 = vadd.f32 %v969, %v1383
      %1385 = vmatmul.bf16.gmra.mxu0 %v1302
      %v1386 = vpop.f32.mrf.mxu0
      %v1387 = vadd.f32 %v969, %v1386
      %v1388 = vpop.f32.mrf.mxu0
      %v1389 = vadd.f32 %v969, %v1388
      %1390 = vmatmul.bf16.gmra.mxu0 %v1305
      %v1391 = vpop.f32.mrf.mxu0
      %v1392 = vadd.f32 %v969, %v1391
      %v1393 = vpop.f32.mrf.mxu0
      %v1394 = vadd.f32 %v969, %v1393
      %1395 = vmatmul.bf16.gmra.mxu0 %v1308
      %v1396 = vpop.f32.mrf.mxu0
      %v1397 = vadd.f32 %v969, %v1396
      %v1398 = vpop.f32.mrf.mxu0
      %v1399 = vadd.f32 %v969, %v1398
      %1400 = vmatmul.bf16.gmra.mxu0 %v1311
      %v1401 = vpop.f32.mrf.mxu0
      %v1402 = vadd.f32 %v969, %v1401
      %v1403 = vpop.f32.mrf.mxu0
      %v1404 = vadd.f32 %v969, %v1403
      %1405 = vmatmul.bf16.gmra.mxu0 %v1314
      %v1406 = vpop.f32.mrf.mxu0
      %v1407 = vadd.f32 %v969, %v1406
      %v1408 = vpop.f32.mrf.mxu0
      %v1409 = vadd.f32 %v969, %v1408
      %1410 = vmatmul.bf16.gmra.mxu0 %v1317
      %v1411 = vpop.f32.mrf.mxu0
      %v1412 = vadd.f32 %v969, %v1411
      %v1413 = vpop.f32.mrf.mxu0
      %v1414 = vadd.f32 %v969, %v1413
      %1415 = vmatmul.bf16.gmra.mxu0 %v1320
      %v1416 = vpop.f32.mrf.mxu0
      %v1417 = vadd.f32 %v969, %v1416
      %v1418 = vpop.f32.mrf.mxu0
      %v1419 = vadd.f32 %v969, %v1418
      %1420 = vmatmul.bf16.gmra.mxu0 %v1323
      %v1421 = vpop.f32.mrf.mxu0
      %v1422 = vadd.f32 %v969, %v1421
      %v1423 = vpop.f32.mrf.mxu0
      %v1424 = vadd.f32 %v969, %v1423
      %1425 = vmatmul.bf16.gmra.mxu0 %v1326
      %v1426 = vpop.f32.mrf.mxu0
      %v1427 = vadd.f32 %v969, %v1426
      %v1428 = vpop.f32.mrf.mxu0
      %v1429 = vadd.f32 %v969, %v1428
      %1430 = vmatmul.bf16.gmra.mxu0 %v1329
      %v1431 = vpop.f32.mrf.mxu0
      %v1432 = vadd.f32 %v969, %v1431
      %v1433 = vpop.f32.mrf.mxu0
      %v1434 = vadd.f32 %v969, %v1433
      %1435 = vmatmul.bf16.gmra.mxu0 %v1332
      %v1436 = vpop.f32.mrf.mxu0
      %v1437 = vadd.f32 %v969, %v1436
      %v1438 = vpop.f32.mrf.mxu0
      %v1439 = vadd.f32 %v969, %v1438
      %1440 = vmatmul.bf16.gmra.mxu0 %v1335
      %v1441 = vpop.f32.mrf.mxu0
      %v1442 = vadd.f32 %v969, %v1441
      %v1443 = vpop.f32.mrf.mxu0
      %v1444 = vadd.f32 %v969, %v1443
      %1445 = vmatmul.bf16.gmra.mxu0 %v1338
      %v1446 = vpop.f32.mrf.mxu0
      %v1447 = vadd.f32 %v969, %v1446
      %v1448 = vpop.f32.mrf.mxu0
      %v1449 = vadd.f32 %v969, %v1448
      %1450 = vmatmul.bf16.gmra.mxu0 %v1341
      %v1451 = vpop.f32.mrf.mxu0
      %v1452 = vadd.f32 %v969, %v1451
      %v1453 = vpop.f32.mrf.mxu0
      %v1454 = vadd.f32 %v969, %v1453
      %1455 = vmatmul.bf16.gmra.mxu0 %v1344
      %v1456 = vpop.f32.mrf.mxu0
      %v1457 = vadd.f32 %v969, %v1456
      %v1458 = vpop.f32.mrf.mxu0
      %v1459 = vadd.f32 %v969, %v1458
      %1460 = vmatmul.bf16.gmra.mxu0 %v1347
      %v1461 = vpop.f32.mrf.mxu0
      %v1462 = vadd.f32 %v969, %v1461
      %v1463 = vpop.f32.mrf.mxu0
      %v1464 = vadd.f32 %v969, %v1463
      %1465 = vmatmul.bf16.gmra.mxu0 %v1350
      %v1466 = vpop.f32.mrf.mxu0
      %v1467 = vadd.f32 %v969, %v1466
      %v1468 = vpop.f32.mrf.mxu0
      %v1469 = vadd.f32 %v969, %v1468
      %1470 = vmatmul.bf16.gmra.mxu0 %v1353
      %v1471 = vpop.f32.mrf.mxu0
      %v1472 = vadd.f32 %v969, %v1471
      %v1473 = vpop.f32.mrf.mxu0
      %v1474 = vadd.f32 %v969, %v1473
      %1475 = vmatmul.bf16.gmra.mxu0 %v1356
      %v1476 = vpop.f32.mrf.mxu0
      %v1477 = vadd.f32 %v969, %v1476
      %v1478 = vpop.f32.mrf.mxu0
      %v1479 = vadd.f32 %v969, %v1478
      %1480 = vdwg.mxu0
      %v1481 = vmax.f32 %v1372, 0.0
      %v1482 = vmax.f32 %v1374, 0.0
      %v1483 = vmax.f32 %v1377, 0.0
      %v1484 = vmax.f32 %v1379, 0.0
      %v1485 = vmax.f32 %v1382, 0.0
      %v1486 = vmax.f32 %v1384, 0.0
      %v1487 = vmax.f32 %v1387, 0.0
      %v1488 = vmax.f32 %v1389, 0.0
      %v1489 = vmax.f32 %v1392, 0.0
      %v1490 = vmax.f32 %v1394, 0.0
      %v1491 = vmax.f32 %v1397, 0.0
      %v1492 = vmax.f32 %v1399, 0.0
      %v1493 = vmax.f32 %v1402, 0.0
      %v1494 = vmax.f32 %v1404, 0.0
      %v1495 = vmax.f32 %v1407, 0.0
      %v1496 = vmax.f32 %v1409, 0.0
      %v1497 = vmax.f32 %v1412, 0.0
      %v1498 = vmax.f32 %v1414, 0.0
      %v1499 = vmax.f32 %v1417, 0.0
      %v1500 = vmax.f32 %v1419, 0.0
      %v1501 = vmax.f32 %v1422, 0.0
      %v1502 = vmax.f32 %v1424, 0.0
      %v1503 = vmax.f32 %v1427, 0.0
      %v1504 = vmax.f32 %v1429, 0.0
      %v1505 = vmax.f32 %v1432, 0.0
      %v1506 = vmax.f32 %v1434, 0.0
      %v1507 = vmax.f32 %v1437, 0.0
      %v1508 = vmax.f32 %v1439, 0.0
      %v1509 = vmax.f32 %v1442, 0.0
      %v1510 = vmax.f32 %v1444, 0.0
      %v1511 = vmax.f32 %v1447, 0.0
      %v1512 = vmax.f32 %v1449, 0.0
      %v1513 = vmax.f32 %v1452, 0.0
      %v1514 = vmax.f32 %v1454, 0.0
      %v1515 = vmax.f32 %v1457, 0.0
      %v1516 = vmax.f32 %v1459, 0.0
      %v1517 = vmax.f32 %v1462, 0.0
      %v1518 = vmax.f32 %v1464, 0.0
      %v1519 = vmax.f32 %v1467, 0.0
      %v1520 = vmax.f32 %v1469, 0.0
      %v1521 = vmax.f32 %v1472, 0.0
      %v1522 = vmax.f32 %v1474, 0.0
      %v1523 = vmax.f32 %v1477, 0.0
      %v1524 = vmax.f32 %v1479, 0.0
      %v1525 = vpack.c.bf16 %v1482, %v1481
      %v1526 = vpack.c.bf16 %v1484, %v1483
      %v1527 = vpack.c.bf16 %v1486, %v1485
      %v1528 = vpack.c.bf16 %v1488, %v1487
      %v1529 = vpack.c.bf16 %v1490, %v1489
      %v1530 = vpack.c.bf16 %v1492, %v1491
      %v1531 = vpack.c.bf16 %v1494, %v1493
      %v1532 = vpack.c.bf16 %v1496, %v1495
      %v1533 = vpack.c.bf16 %v1498, %v1497
      %v1534 = vpack.c.bf16 %v1500, %v1499
      %v1535 = vpack.c.bf16 %v1502, %v1501
      %v1536 = vpack.c.bf16 %v1504, %v1503
      %v1537 = vpack.c.bf16 %v1506, %v1505
      %v1538 = vpack.c.bf16 %v1508, %v1507
      %v1539 = vpack.c.bf16 %v1510, %v1509
      %v1540 = vpack.c.bf16 %v1512, %v1511
      %v1541 = vpack.c.bf16 %v1514, %v1513
      %v1542 = vpack.c.bf16 %v1516, %v1515
      %v1543 = vpack.c.bf16 %v1518, %v1517
      %v1544 = vpack.c.bf16 %v1520, %v1519
      %v1545 = vpack.c.bf16 %v1522, %v1521
      %v1546 = vpack.c.bf16 %v1524, %v1523
      %v1547 = vld [vmem:[%s6] sm:$0x3]
      %v1548 = vld [vmem:[%s309] sm:$0x1]
      %v1550 = vperm.slane %v1548, 0
      %v1553 = vsel %vm1291, %v1525, 0
      %v1556 = vsel %vm1291, %v1526, 0
      %v1559 = vsel %vm1291, %v1527, 0
      %v1562 = vsel %vm1291, %v1528, 0
      %v1565 = vsel %vm1291, %v1529, 0
      %v1568 = vsel %vm1291, %v1530, 0
      %v1571 = vsel %vm1291, %v1531, 0
      %v1574 = vsel %vm1291, %v1532, 0
      %v1577 = vsel %vm1291, %v1533, 0
      %v1580 = vsel %vm1291, %v1534, 0
      %v1583 = vsel %vm1291, %v1535, 0
      %v1586 = vsel %vm1291, %v1536, 0
      %v1589 = vsel %vm1291, %v1537, 0
      %v1592 = vsel %vm1291, %v1538, 0
      %v1595 = vsel %vm1291, %v1539, 0
      %v1598 = vsel %vm1291, %v1540, 0
      %v1601 = vsel %vm1291, %v1541, 0
      %v1604 = vsel %vm1291, %v1542, 0
      %v1607 = vsel %vm1291, %v1543, 0
      %v1610 = vsel %vm1291, %v1544, 0
      %v1613 = vsel %vm1291, %v1545, 0
      %v1616 = vsel %vm1291, %v1546, 0
      %v1619 = vsel %vm1358, %v1547, 0
      %1621 = vmatpush.bf16.msra.mxu0 0
      %1622 = vmatpush.bf16.msra.mxu0 0
      %1623 = vmatpush.bf16.msra.mxu0 0
      %1624 = vmatpush.bf16.msra.mxu0 0
      %1625 = vmatpush.bf16.msra.mxu0 0
      %1626 = vmatpush.bf16.msra.mxu0 0
      %1627 = vmatpush.bf16.msra.mxu0 0
      %1628 = vmatpush.bf16.msra.mxu0 %v1619
      %1629 = vmatmul.bf16.gmra.mxu0 %v1553
      %v1630 = vpop.f32.mrf.mxu0
      %v1631 = vadd.f32 %v1550, %v1630
      %v1632 = vpop.f32.mrf.mxu0
      %v1633 = vadd.f32 %v1550, %v1632
      %1634 = vmatmul.bf16.gmra.mxu0 %v1556
      %v1635 = vpop.f32.mrf.mxu0
      %v1636 = vadd.f32 %v1550, %v1635
      %v1637 = vpop.f32.mrf.mxu0
      %v1638 = vadd.f32 %v1550, %v1637
      %1639 = vmatmul.bf16.gmra.mxu0 %v1559
      %v1640 = vpop.f32.mrf.mxu0
      %v1641 = vadd.f32 %v1550, %v1640
      %v1642 = vpop.f32.mrf.mxu0
      %v1643 = vadd.f32 %v1550, %v1642
      %1644 = vmatmul.bf16.gmra.mxu0 %v1562
      %v1645 = vpop.f32.mrf.mxu0
      %v1646 = vadd.f32 %v1550, %v1645
      %v1647 = vpop.f32.mrf.mxu0
      %v1648 = vadd.f32 %v1550, %v1647
      %1649 = vmatmul.bf16.gmra.mxu0 %v1565
      %v1650 = vpop.f32.mrf.mxu0
      %v1651 = vadd.f32 %v1550, %v1650
      %v1652 = vpop.f32.mrf.mxu0
      %v1653 = vadd.f32 %v1550, %v1652
      %1654 = vmatmul.bf16.gmra.mxu0 %v1568
      %v1655 = vpop.f32.mrf.mxu0
      %v1656 = vadd.f32 %v1550, %v1655
      %v1657 = vpop.f32.mrf.mxu0
      %v1658 = vadd.f32 %v1550, %v1657
      %1659 = vmatmul.bf16.gmra.mxu0 %v1571
      %v1660 = vpop.f32.mrf.mxu0
      %v1661 = vadd.f32 %v1550, %v1660
      %v1662 = vpop.f32.mrf.mxu0
      %v1663 = vadd.f32 %v1550, %v1662
      %1664 = vmatmul.bf16.gmra.mxu0 %v1574
      %v1665 = vpop.f32.mrf.mxu0
      %v1666 = vadd.f32 %v1550, %v1665
      %v1667 = vpop.f32.mrf.mxu0
      %v1668 = vadd.f32 %v1550, %v1667
      %1669 = vmatmul.bf16.gmra.mxu0 %v1577
      %v1670 = vpop.f32.mrf.mxu0
      %v1671 = vadd.f32 %v1550, %v1670
      %v1672 = vpop.f32.mrf.mxu0
      %v1673 = vadd.f32 %v1550, %v1672
      %1674 = vmatmul.bf16.gmra.mxu0 %v1580
      %v1675 = vpop.f32.mrf.mxu0
      %v1676 = vadd.f32 %v1550, %v1675
      %v1677 = vpop.f32.mrf.mxu0
      %v1678 = vadd.f32 %v1550, %v1677
      %1679 = vmatmul.bf16.gmra.mxu0 %v1583
      %v1680 = vpop.f32.mrf.mxu0
      %v1681 = vadd.f32 %v1550, %v1680
      %v1682 = vpop.f32.mrf.mxu0
      %v1683 = vadd.f32 %v1550, %v1682
      %1684 = vmatmul.bf16.gmra.mxu0 %v1586
      %v1685 = vpop.f32.mrf.mxu0
      %v1686 = vadd.f32 %v1550, %v1685
      %v1687 = vpop.f32.mrf.mxu0
      %v1688 = vadd.f32 %v1550, %v1687
      %1689 = vmatmul.bf16.gmra.mxu0 %v1589
      %v1690 = vpop.f32.mrf.mxu0
      %v1691 = vadd.f32 %v1550, %v1690
      %v1692 = vpop.f32.mrf.mxu0
      %v1693 = vadd.f32 %v1550, %v1692
      %1694 = vmatmul.bf16.gmra.mxu0 %v1592
      %v1695 = vpop.f32.mrf.mxu0
      %v1696 = vadd.f32 %v1550, %v1695
      %v1697 = vpop.f32.mrf.mxu0
      %v1698 = vadd.f32 %v1550, %v1697
      %1699 = vmatmul.bf16.gmra.mxu0 %v1595
      %v1700 = vpop.f32.mrf.mxu0
      %v1701 = vadd.f32 %v1550, %v1700
      %v1702 = vpop.f32.mrf.mxu0
      %v1703 = vadd.f32 %v1550, %v1702
      %1704 = vmatmul.bf16.gmra.mxu0 %v1598
      %v1705 = vpop.f32.mrf.mxu0
      %v1706 = vadd.f32 %v1550, %v1705
      %v1707 = vpop.f32.mrf.mxu0
      %v1708 = vadd.f32 %v1550, %v1707
      %1709 = vmatmul.bf16.gmra.mxu0 %v1601
      %v1710 = vpop.f32.mrf.mxu0
      %v1711 = vadd.f32 %v1550, %v1710
      %v1712 = vpop.f32.mrf.mxu0
      %v1713 = vadd.f32 %v1550, %v1712
      %1714 = vmatmul.bf16.gmra.mxu0 %v1604
      %v1715 = vpop.f32.mrf.mxu0
      %v1716 = vadd.f32 %v1550, %v1715
      %v1717 = vpop.f32.mrf.mxu0
      %v1718 = vadd.f32 %v1550, %v1717
      %1719 = vmatmul.bf16.gmra.mxu0 %v1607
      %v1720 = vpop.f32.mrf.mxu0
      %v1721 = vadd.f32 %v1550, %v1720
      %v1722 = vpop.f32.mrf.mxu0
      %v1723 = vadd.f32 %v1550, %v1722
      %1724 = vmatmul.bf16.gmra.mxu0 %v1610
      %v1725 = vpop.f32.mrf.mxu0
      %v1726 = vadd.f32 %v1550, %v1725
      %v1727 = vpop.f32.mrf.mxu0
      %v1728 = vadd.f32 %v1550, %v1727
      %1729 = vmatmul.bf16.gmra.mxu0 %v1613
      %v1730 = vpop.f32.mrf.mxu0
      %v1731 = vadd.f32 %v1550, %v1730
      %v1732 = vpop.f32.mrf.mxu0
      %v1733 = vadd.f32 %v1550, %v1732
      %1734 = vmatmul.bf16.gmra.mxu0 %v1616
      %v1735 = vpop.f32.mrf.mxu0
      %v1736 = vadd.f32 %v1550, %v1735
      %v1737 = vpop.f32.mrf.mxu0
      %v1738 = vadd.f32 %v1550, %v1737
      %1739 = vdwg.mxu0
      %v1740 = vld [vmem:[#allocation2 + $0x14] sm:$0x8]
      %v1741 = vld [vmem:[#allocation2 + $0x18] sm:$0xf]
      %v1742 = vld [vmem:[#allocation2 + $0x1c] sm:$0xf]
      %v1743 = vld [vmem:[#allocation2 + $0x20] sm:$0xf]
      %v1744 = vld [vmem:[#allocation2 + $0x24] sm:$0xf]
      %v1745 = vld [vmem:[#allocation2 + $0x28] sm:$0xf]
      %v1746 = vld [vmem:[#allocation2 + $0x2c] sm:$0xf]
      %v1747 = vld [vmem:[#allocation2 + $0x30] sm:$0xf]
      %v1748 = vld [vmem:[#allocation2 + $0x34] sm:$0xf]
      %v1749 = vld [vmem:[#allocation2 + $0x38] sm:$0xf]
      %v1750 = vld [vmem:[#allocation2 + $0x3c] sm:$0xf]
      %v1751 = vld [vmem:[#allocation2 + $0x40] sm:$0xf]
      %v1752 = vld [vmem:[#allocation2 + $0x44] sm:$0xf]
      %v1753 = vld [vmem:[#allocation2 + $0x48] sm:$0xf]
      %v1754 = vld [vmem:[#allocation2 + $0x4c] sm:$0xf]
      %v1755 = vld [vmem:[#allocation2 + $0x50] sm:$0xf]
      %v1756 = vld [vmem:[#allocation2 + $0x54] sm:$0xf]
      %v1757 = vld [vmem:[#allocation2 + $0x58] sm:$0xf]
      %v1758 = vld [vmem:[#allocation2 + $0x5c] sm:$0xf]
      %v1759 = vld [vmem:[#allocation2 + $0x60] sm:$0xf]
      %v1760 = vld [vmem:[#allocation2 + $0x64] sm:$0xf]
      %v1761 = vld [vmem:[#allocation2 + $0x68] sm:$0xf]
      %v1762 = vld [vmem:[#allocation2 + $0x6c] sm:$0xf]
      %v1763 = vld [vmem:[#allocation2 + $0x70] sm:$0xf]
      %v1764 = vld [vmem:[#allocation2 + $0x74] sm:$0xf]
      %v1765 = vld [vmem:[#allocation2 + $0x78] sm:$0xf]
      %v1766 = vld [vmem:[#allocation2 + $0x7c] sm:$0xf]
      %v1767 = vld [vmem:[#allocation2 + $0x80] sm:$0xf]
      %v1768 = vld [vmem:[#allocation2 + $0x84] sm:$0xf]
      %v1769 = vld [vmem:[#allocation2 + $0x88] sm:$0xf]
      %v1770 = vld [vmem:[#allocation2 + $0x8c] sm:$0xf]
      %v1771 = vld [vmem:[#allocation2 + $0x90] sm:$0xf]
      %v1772 = vld [vmem:[#allocation2 + $0x94] sm:$0xf]
      %v1773 = vld [vmem:[#allocation2 + $0x98] sm:$0xf]
      %v1774 = vld [vmem:[#allocation2 + $0x9c] sm:$0xf]
      %v1775 = vld [vmem:[#allocation2 + $0xa0] sm:$0xf]
      %v1776 = vld [vmem:[#allocation2 + $0xa4] sm:$0xf]
      %v1777 = vld [vmem:[#allocation2 + $0xa8] sm:$0xf]
      %v1778 = vld [vmem:[#allocation2 + $0xac] sm:$0xf]
      %v1779 = vld [vmem:[#allocation2 + $0xb0] sm:$0xf]
      %v1780 = vld [vmem:[#allocation2 + $0xb4] sm:$0xf]
      %v1781 = vld [vmem:[#allocation2 + $0xb8] sm:$0xf]
      %v1782 = vld [vmem:[#allocation2 + $0xbc] sm:$0xf]
      %v1783 = vld [vmem:[#allocation2 + $0xc0] sm:$0xf]
      %v1784 = vld [vmem:[#allocation2 + $0xc4] sm:$0x7]
      %v1785 = vld [vmem:[%s4] sm:$0x3]
      %v1786 = vld [vmem:[#allocation2 + $0xc4] sm:$0xf]
      %s1787 = scalar_lea.vmem %s4, 2
      %v1788 = vld [vmem:[%s1787] sm:$0x3]
      %v1834 = vunpack.c.l.b16 %v1740
      %v1835 = vunpack.c.l.b16 %v1741
      %v1836 = vunpack.c.l.b16 %v1742
      %v1837 = vunpack.c.l.b16 %v1743
      %v1838 = vunpack.c.l.b16 %v1744
      %v1839 = vunpack.c.l.b16 %v1745
      %v1840 = vunpack.c.l.b16 %v1746
      %v1841 = vunpack.c.l.b16 %v1747
      %v1842 = vunpack.c.l.b16 %v1748
      %v1843 = vunpack.c.l.b16 %v1749
      %v1844 = vunpack.c.l.b16 %v1750
      %v1845 = vunpack.c.l.b16 %v1751
      %v1846 = vunpack.c.l.b16 %v1752
      %v1847 = vunpack.c.l.b16 %v1753
      %v1848 = vunpack.c.l.b16 %v1754
      %v1849 = vunpack.c.l.b16 %v1755
      %v1850 = vunpack.c.l.b16 %v1756
      %v1851 = vunpack.c.l.b16 %v1757
      %v1852 = vunpack.c.l.b16 %v1758
      %v1853 = vunpack.c.l.b16 %v1759
      %v1854 = vunpack.c.l.b16 %v1760
      %v1855 = vunpack.c.l.b16 %v1761
      %v1856 = vunpack.c.l.b16 %v1762
      %v1857 = vunpack.c.l.b16 %v1763
      %v1858 = vunpack.c.l.b16 %v1764
      %v1859 = vunpack.c.l.b16 %v1765
      %v1860 = vunpack.c.l.b16 %v1766
      %v1861 = vunpack.c.l.b16 %v1767
      %v1862 = vunpack.c.l.b16 %v1768
      %v1863 = vunpack.c.l.b16 %v1769
      %v1864 = vunpack.c.l.b16 %v1770
      %v1865 = vunpack.c.l.b16 %v1771
      %v1866 = vunpack.c.l.b16 %v1772
      %v1867 = vunpack.c.l.b16 %v1773
      %v1868 = vunpack.c.l.b16 %v1774
      %v1869 = vunpack.c.l.b16 %v1775
      %v1870 = vunpack.c.l.b16 %v1776
      %v1871 = vunpack.c.l.b16 %v1777
      %v1872 = vunpack.c.l.b16 %v1778
      %v1873 = vunpack.c.l.b16 %v1779
      %v1874 = vunpack.c.l.b16 %v1780
      %v1875 = vunpack.c.l.b16 %v1781
      %v1876 = vunpack.c.l.b16 %v1782
      %v1877 = vunpack.c.l.b16 %v1783
      %v1878 = vunpack.c.l.b16 %v1786
      %v1879 = vpack.c.b16 %v1835, %v1834
      %v1880 = vpack.c.b16 %v1837, %v1836
      %v1881 = vpack.c.b16 %v1839, %v1838
      %v1882 = vpack.c.b16 %v1841, %v1840
      %v1883 = vpack.c.b16 %v1843, %v1842
      %v1884 = vpack.c.b16 %v1845, %v1844
      %v1885 = vpack.c.b16 %v1847, %v1846
      %v1886 = vpack.c.b16 %v1849, %v1848
      %v1887 = vpack.c.b16 %v1851, %v1850
      %v1888 = vpack.c.b16 %v1853, %v1852
      %v1889 = vpack.c.b16 %v1855, %v1854
      %v1890 = vpack.c.b16 %v1857, %v1856
      %v1891 = vpack.c.b16 %v1859, %v1858
      %v1892 = vpack.c.b16 %v1861, %v1860
      %v1893 = vpack.c.b16 %v1863, %v1862
      %v1894 = vpack.c.b16 %v1865, %v1864
      %v1895 = vpack.c.b16 %v1867, %v1866
      %v1896 = vpack.c.b16 %v1869, %v1868
      %v1897 = vpack.c.b16 %v1871, %v1870
      %v1898 = vpack.c.b16 %v1873, %v1872
      %v1899 = vpack.c.b16 %v1875, %v1874
      %v1900 = vpack.c.b16 %v1877, %v1876
      %v1901 = vpack.c.b16 %v1878, %v1878
      %vm1902 = vsmask.f32 4352
      %v1904 = vshrl.u32 %v1879, 16
      %v1906 = vrot.slane %v1904, 3
      %v1907 = vshll.u32 %v1879, 16
      %v1909 = vrot.slane %v1907, 4
      %v1910 = vor.u32 %v1906, %v1909
      %v1912 = vshrl.u32 %v1880, 16
      %v1914 = vrot.slane %v1912, 3
      %v1915 = vshll.u32 %v1880, 16
      %v1917 = vrot.slane %v1915, 4
      %v1918 = vor.u32 %v1914, %v1917
      %v1919 = vsel %vm1902, %v1910, %v1918
      %v1921 = vshrl.u32 %v1881, 16
      %v1923 = vrot.slane %v1921, 3
      %v1924 = vshll.u32 %v1881, 16
      %v1926 = vrot.slane %v1924, 4
      %v1927 = vor.u32 %v1923, %v1926
      %v1928 = vsel %vm1902, %v1918, %v1927
      %v1930 = vshrl.u32 %v1882, 16
      %v1932 = vrot.slane %v1930, 3
      %v1933 = vshll.u32 %v1882, 16
      %v1935 = vrot.slane %v1933, 4
      %v1936 = vor.u32 %v1932, %v1935
      %v1937 = vsel %vm1902, %v1927, %v1936
      %v1939 = vshrl.u32 %v1883, 16
      %v1941 = vrot.slane %v1939, 3
      %v1942 = vshll.u32 %v1883, 16
      %v1944 = vrot.slane %v1942, 4
      %v1945 = vor.u32 %v1941, %v1944
      %v1946 = vsel %vm1902, %v1936, %v1945
      %v1948 = vshrl.u32 %v1884, 16
      %v1950 = vrot.slane %v1948, 3
      %v1951 = vshll.u32 %v1884, 16
      %v1953 = vrot.slane %v1951, 4
      %v1954 = vor.u32 %v1950, %v1953
      %v1955 = vsel %vm1902, %v1945, %v1954
      %v1957 = vshrl.u32 %v1885, 16
      %v1959 = vrot.slane %v1957, 3
      %v1960 = vshll.u32 %v1885, 16
      %v1962 = vrot.slane %v1960, 4
      %v1963 = vor.u32 %v1959, %v1962
      %v1964 = vsel %vm1902, %v1954, %v1963
      %v1966 = vshrl.u32 %v1886, 16
      %v1968 = vrot.slane %v1966, 3
      %v1969 = vshll.u32 %v1886, 16
      %v1971 = vrot.slane %v1969, 4
      %v1972 = vor.u32 %v1968, %v1971
      %v1973 = vsel %vm1902, %v1963, %v1972
      %v1975 = vshrl.u32 %v1887, 16
      %v1977 = vrot.slane %v1975, 3
      %v1978 = vshll.u32 %v1887, 16
      %v1980 = vrot.slane %v1978, 4
      %v1981 = vor.u32 %v1977, %v1980
      %v1982 = vsel %vm1902, %v1972, %v1981
      %v1984 = vshrl.u32 %v1888, 16
      %v1986 = vrot.slane %v1984, 3
      %v1987 = vshll.u32 %v1888, 16
      %v1989 = vrot.slane %v1987, 4
      %v1990 = vor.u32 %v1986, %v1989
      %v1991 = vsel %vm1902, %v1981, %v1990
      %v1993 = vshrl.u32 %v1889, 16
      %v1995 = vrot.slane %v1993, 3
      %v1996 = vshll.u32 %v1889, 16
      %v1998 = vrot.slane %v1996, 4
      %v1999 = vor.u32 %v1995, %v1998
      %v2000 = vsel %vm1902, %v1990, %v1999
      %v2002 = vshrl.u32 %v1890, 16
      %v2004 = vrot.slane %v2002, 3
      %v2005 = vshll.u32 %v1890, 16
      %v2007 = vrot.slane %v2005, 4
      %v2008 = vor.u32 %v2004, %v2007
      %v2009 = vsel %vm1902, %v1999, %v2008
      %v2011 = vshrl.u32 %v1891, 16
      %v2013 = vrot.slane %v2011, 3
      %v2014 = vshll.u32 %v1891, 16
      %v2016 = vrot.slane %v2014, 4
      %v2017 = vor.u32 %v2013, %v2016
      %v2018 = vsel %vm1902, %v2008, %v2017
      %v2020 = vshrl.u32 %v1892, 16
      %v2022 = vrot.slane %v2020, 3
      %v2023 = vshll.u32 %v1892, 16
      %v2025 = vrot.slane %v2023, 4
      %v2026 = vor.u32 %v2022, %v2025
      %v2027 = vsel %vm1902, %v2017, %v2026
      %v2029 = vshrl.u32 %v1893, 16
      %v2031 = vrot.slane %v2029, 3
      %v2032 = vshll.u32 %v1893, 16
      %v2034 = vrot.slane %v2032, 4
      %v2035 = vor.u32 %v2031, %v2034
      %v2036 = vsel %vm1902, %v2026, %v2035
      %v2038 = vshrl.u32 %v1894, 16
      %v2040 = vrot.slane %v2038, 3
      %v2041 = vshll.u32 %v1894, 16
      %v2043 = vrot.slane %v2041, 4
      %v2044 = vor.u32 %v2040, %v2043
      %v2045 = vsel %vm1902, %v2035, %v2044
      %v2047 = vshrl.u32 %v1895, 16
      %v2049 = vrot.slane %v2047, 3
      %v2050 = vshll.u32 %v1895, 16
      %v2052 = vrot.slane %v2050, 4
      %v2053 = vor.u32 %v2049, %v2052
      %v2054 = vsel %vm1902, %v2044, %v2053
      %v2056 = vshrl.u32 %v1896, 16
      %v2058 = vrot.slane %v2056, 3
      %v2059 = vshll.u32 %v1896, 16
      %v2061 = vrot.slane %v2059, 4
      %v2062 = vor.u32 %v2058, %v2061
      %v2063 = vsel %vm1902, %v2053, %v2062
      %v2065 = vshrl.u32 %v1897, 16
      %v2067 = vrot.slane %v2065, 3
      %v2068 = vshll.u32 %v1897, 16
      %v2070 = vrot.slane %v2068, 4
      %v2071 = vor.u32 %v2067, %v2070
      %v2072 = vsel %vm1902, %v2062, %v2071
      %v2074 = vshrl.u32 %v1898, 16
      %v2076 = vrot.slane %v2074, 3
      %v2077 = vshll.u32 %v1898, 16
      %v2079 = vrot.slane %v2077, 4
      %v2080 = vor.u32 %v2076, %v2079
      %v2081 = vsel %vm1902, %v2071, %v2080
      %v2083 = vshrl.u32 %v1899, 16
      %v2085 = vrot.slane %v2083, 3
      %v2086 = vshll.u32 %v1899, 16
      %v2088 = vrot.slane %v2086, 4
      %v2089 = vor.u32 %v2085, %v2088
      %v2090 = vsel %vm1902, %v2080, %v2089
      %v2092 = vshrl.u32 %v1900, 16
      %v2094 = vrot.slane %v2092, 3
      %v2095 = vshll.u32 %v1900, 16
      %v2097 = vrot.slane %v2095, 4
      %v2098 = vor.u32 %v2094, %v2097
      %v2099 = vsel %vm1902, %v2089, %v2098
      %v2101 = vshrl.u32 %v1901, 16
      %v2103 = vrot.slane %v2101, 3
      %v2104 = vshll.u32 %v1901, 16
      %v2106 = vrot.slane %v2104, 4
      %v2107 = vor.u32 %v2103, %v2106
      %v2108 = vsel %vm1902, %v2098, %v2107
      %v2110 = vsel %vm1291, %v1919, 0
      %v2113 = vsel %vm1291, %v1928, 0
      %v2116 = vsel %vm1291, %v1937, 0
      %v2119 = vsel %vm1291, %v1946, 0
      %v2122 = vsel %vm1291, %v1955, 0
      %v2125 = vsel %vm1291, %v1964, 0
      %v2128 = vsel %vm1291, %v1973, 0
      %v2131 = vsel %vm1291, %v1982, 0
      %v2134 = vsel %vm1291, %v1991, 0
      %v2137 = vsel %vm1291, %v2000, 0
      %v2140 = vsel %vm1291, %v2009, 0
      %v2143 = vsel %vm1291, %v2018, 0
      %v2146 = vsel %vm1291, %v2027, 0
      %v2149 = vsel %vm1291, %v2036, 0
      %v2152 = vsel %vm1291, %v2045, 0
      %v2155 = vsel %vm1291, %v2054, 0
      %v2158 = vsel %vm1291, %v2063, 0
      %v2161 = vsel %vm1291, %v2072, 0
      %v2164 = vsel %vm1291, %v2081, 0
      %v2167 = vsel %vm1291, %v2090, 0
      %v2170 = vsel %vm1291, %v2099, 0
      %v2173 = vsel %vm1291, %v2108, 0
      %v2176 = vsel %vm1358, %v1788, 0
      %2178 = vmatpush.bf16.msra.mxu0 0
      %2179 = vmatpush.bf16.msra.mxu0 0
      %2180 = vmatpush.bf16.msra.mxu0 0
      %2181 = vmatpush.bf16.msra.mxu0 0
      %2182 = vmatpush.bf16.msra.mxu0 0
      %2183 = vmatpush.bf16.msra.mxu0 0
      %2184 = vmatpush.bf16.msra.mxu0 0
      %2185 = vmatpush.bf16.msra.mxu0 %v2176
      %2186 = vmatmul.bf16.gmra.mxu0 %v2110
      %v2187 = vpop.f32.mrf.mxu0
      %v2188 = vadd.f32 0.0, %v2187
      %v2189 = vpop.f32.mrf.mxu0
      %v2190 = vadd.f32 0.0, %v2189
      %2191 = vmatmul.bf16.gmra.mxu0 %v2113
      %v2192 = vpop.f32.mrf.mxu0
      %v2193 = vadd.f32 0.0, %v2192
      %v2194 = vpop.f32.mrf.mxu0
      %v2195 = vadd.f32 0.0, %v2194
      %2196 = vmatmul.bf16.gmra.mxu0 %v2116
      %v2197 = vpop.f32.mrf.mxu0
      %v2198 = vadd.f32 0.0, %v2197
      %v2199 = vpop.f32.mrf.mxu0
      %v2200 = vadd.f32 0.0, %v2199
      %2201 = vmatmul.bf16.gmra.mxu0 %v2119
      %v2202 = vpop.f32.mrf.mxu0
      %v2203 = vadd.f32 0.0, %v2202
      %v2204 = vpop.f32.mrf.mxu0
      %v2205 = vadd.f32 0.0, %v2204
      %2206 = vmatmul.bf16.gmra.mxu0 %v2122
      %v2207 = vpop.f32.mrf.mxu0
      %v2208 = vadd.f32 0.0, %v2207
      %v2209 = vpop.f32.mrf.mxu0
      %v2210 = vadd.f32 0.0, %v2209
      %2211 = vmatmul.bf16.gmra.mxu0 %v2125
      %v2212 = vpop.f32.mrf.mxu0
      %v2213 = vadd.f32 0.0, %v2212
      %v2214 = vpop.f32.mrf.mxu0
      %v2215 = vadd.f32 0.0, %v2214
      %2216 = vmatmul.bf16.gmra.mxu0 %v2128
      %v2217 = vpop.f32.mrf.mxu0
      %v2218 = vadd.f32 0.0, %v2217
      %v2219 = vpop.f32.mrf.mxu0
      %v2220 = vadd.f32 0.0, %v2219
      %2221 = vmatmul.bf16.gmra.mxu0 %v2131
      %v2222 = vpop.f32.mrf.mxu0
      %v2223 = vadd.f32 0.0, %v2222
      %v2224 = vpop.f32.mrf.mxu0
      %v2225 = vadd.f32 0.0, %v2224
      %2226 = vmatmul.bf16.gmra.mxu0 %v2134
      %v2227 = vpop.f32.mrf.mxu0
      %v2228 = vadd.f32 0.0, %v2227
      %v2229 = vpop.f32.mrf.mxu0
      %v2230 = vadd.f32 0.0, %v2229
      %2231 = vmatmul.bf16.gmra.mxu0 %v2137
      %v2232 = vpop.f32.mrf.mxu0
      %v2233 = vadd.f32 0.0, %v2232
      %v2234 = vpop.f32.mrf.mxu0
      %v2235 = vadd.f32 0.0, %v2234
      %2236 = vmatmul.bf16.gmra.mxu0 %v2140
      %v2237 = vpop.f32.mrf.mxu0
      %v2238 = vadd.f32 0.0, %v2237
      %v2239 = vpop.f32.mrf.mxu0
      %v2240 = vadd.f32 0.0, %v2239
      %2241 = vmatmul.bf16.gmra.mxu0 %v2143
      %v2242 = vpop.f32.mrf.mxu0
      %v2243 = vadd.f32 0.0, %v2242
      %v2244 = vpop.f32.mrf.mxu0
      %v2245 = vadd.f32 0.0, %v2244
      %2246 = vmatmul.bf16.gmra.mxu0 %v2146
      %v2247 = vpop.f32.mrf.mxu0
      %v2248 = vadd.f32 0.0, %v2247
      %v2249 = vpop.f32.mrf.mxu0
      %v2250 = vadd.f32 0.0, %v2249
      %2251 = vmatmul.bf16.gmra.mxu0 %v2149
      %v2252 = vpop.f32.mrf.mxu0
      %v2253 = vadd.f32 0.0, %v2252
      %v2254 = vpop.f32.mrf.mxu0
      %v2255 = vadd.f32 0.0, %v2254
      %2256 = vmatmul.bf16.gmra.mxu0 %v2152
      %v2257 = vpop.f32.mrf.mxu0
      %v2258 = vadd.f32 0.0, %v2257
      %v2259 = vpop.f32.mrf.mxu0
      %v2260 = vadd.f32 0.0, %v2259
      %2261 = vmatmul.bf16.gmra.mxu0 %v2155
      %v2262 = vpop.f32.mrf.mxu0
      %v2263 = vadd.f32 0.0, %v2262
      %v2264 = vpop.f32.mrf.mxu0
      %v2265 = vadd.f32 0.0, %v2264
      %2266 = vmatmul.bf16.gmra.mxu0 %v2158
      %v2267 = vpop.f32.mrf.mxu0
      %v2268 = vadd.f32 0.0, %v2267
      %v2269 = vpop.f32.mrf.mxu0
      %v2270 = vadd.f32 0.0, %v2269
      %2271 = vmatmul.bf16.gmra.mxu0 %v2161
      %v2272 = vpop.f32.mrf.mxu0
      %v2273 = vadd.f32 0.0, %v2272
      %v2274 = vpop.f32.mrf.mxu0
      %v2275 = vadd.f32 0.0, %v2274
      %2276 = vmatmul.bf16.gmra.mxu0 %v2164
      %v2277 = vpop.f32.mrf.mxu0
      %v2278 = vadd.f32 0.0, %v2277
      %v2279 = vpop.f32.mrf.mxu0
      %v2280 = vadd.f32 0.0, %v2279
      %2281 = vmatmul.bf16.gmra.mxu0 %v2167
      %v2282 = vpop.f32.mrf.mxu0
      %v2283 = vadd.f32 0.0, %v2282
      %v2284 = vpop.f32.mrf.mxu0
      %v2285 = vadd.f32 0.0, %v2284
      %2286 = vmatmul.bf16.gmra.mxu0 %v2170
      %v2287 = vpop.f32.mrf.mxu0
      %v2288 = vadd.f32 0.0, %v2287
      %v2289 = vpop.f32.mrf.mxu0
      %v2290 = vadd.f32 0.0, %v2289
      %2291 = vmatmul.bf16.gmra.mxu0 %v2173
      %v2292 = vpop.f32.mrf.mxu0
      %v2293 = vadd.f32 0.0, %v2292
      %v2294 = vpop.f32.mrf.mxu0
      %v2295 = vadd.f32 0.0, %v2294
      %2296 = vdwg.mxu0
      %v2298 = vunpack.c.l.b16 %v1784
      %v2299 = vpack.c.b16 %v2298, %v2298
      %vm2300 = vcmask 1044480
      %v2301 = vrot.slane %v1879, 3
      %v2302 = vrot.slane %v1880, 3
      %v2303 = vsel %vm2300, %v2301, %v2302
      %v2304 = vrot.slane %v1881, 3
      %v2305 = vsel %vm2300, %v2302, %v2304
      %v2306 = vrot.slane %v1882, 3
      %v2307 = vsel %vm2300, %v2304, %v2306
      %v2308 = vrot.slane %v1883, 3
      %v2309 = vsel %vm2300, %v2306, %v2308
      %v2310 = vrot.slane %v1884, 3
      %v2311 = vsel %vm2300, %v2308, %v2310
      %v2312 = vrot.slane %v1885, 3
      %v2313 = vsel %vm2300, %v2310, %v2312
      %v2314 = vrot.slane %v1886, 3
      %v2315 = vsel %vm2300, %v2312, %v2314
      %v2316 = vrot.slane %v1887, 3
      %v2317 = vsel %vm2300, %v2314, %v2316
      %v2318 = vrot.slane %v1888, 3
      %v2319 = vsel %vm2300, %v2316, %v2318
      %v2320 = vrot.slane %v1889, 3
      %v2321 = vsel %vm2300, %v2318, %v2320
      %v2322 = vrot.slane %v1890, 3
      %v2323 = vsel %vm2300, %v2320, %v2322
      %v2324 = vrot.slane %v1891, 3
      %v2325 = vsel %vm2300, %v2322, %v2324
      %v2326 = vrot.slane %v1892, 3
      %v2327 = vsel %vm2300, %v2324, %v2326
      %v2328 = vrot.slane %v1893, 3
      %v2329 = vsel %vm2300, %v2326, %v2328
      %v2330 = vrot.slane %v1894, 3
      %v2331 = vsel %vm2300, %v2328, %v2330
      %v2332 = vrot.slane %v1895, 3
      %v2333 = vsel %vm2300, %v2330, %v2332
      %v2334 = vrot.slane %v1896, 3
      %v2335 = vsel %vm2300, %v2332, %v2334
      %v2336 = vrot.slane %v1897, 3
      %v2337 = vsel %vm2300, %v2334, %v2336
      %v2338 = vrot.slane %v1898, 3
      %v2339 = vsel %vm2300, %v2336, %v2338
      %v2340 = vrot.slane %v1899, 3
      %v2341 = vsel %vm2300, %v2338, %v2340
      %v2342 = vrot.slane %v1900, 3
      %v2343 = vsel %vm2300, %v2340, %v2342
      %v2344 = vrot.slane %v2299, 3
      %v2345 = vsel %vm2300, %v2342, %v2344
      %v2347 = vsel %vm1291, %v2303, 0
      %v2350 = vsel %vm1291, %v2305, 0
      %v2353 = vsel %vm1291, %v2307, 0
      %v2356 = vsel %vm1291, %v2309, 0
      %v2359 = vsel %vm1291, %v2311, 0
      %v2362 = vsel %vm1291, %v2313, 0
      %v2365 = vsel %vm1291, %v2315, 0
      %v2368 = vsel %vm1291, %v2317, 0
      %v2371 = vsel %vm1291, %v2319, 0
      %v2374 = vsel %vm1291, %v2321, 0
      %v2377 = vsel %vm1291, %v2323, 0
      %v2380 = vsel %vm1291, %v2325, 0
      %v2383 = vsel %vm1291, %v2327, 0
      %v2386 = vsel %vm1291, %v2329, 0
      %v2389 = vsel %vm1291, %v2331, 0
      %v2392 = vsel %vm1291, %v2333, 0
      %v2395 = vsel %vm1291, %v2335, 0
      %v2398 = vsel %vm1291, %v2337, 0
      %v2401 = vsel %vm1291, %v2339, 0
      %v2404 = vsel %vm1291, %v2341, 0
      %v2407 = vsel %vm1291, %v2343, 0
      %v2410 = vsel %vm1291, %v2345, 0
      %v2413 = vsel %vm1358, %v1785, 0
      %2415 = vmatpush.bf16.msra.mxu0 0
      %2416 = vmatpush.bf16.msra.mxu0 0
      %2417 = vmatpush.bf16.msra.mxu0 0
      %2418 = vmatpush.bf16.msra.mxu0 0
      %2419 = vmatpush.bf16.msra.mxu0 0
      %2420 = vmatpush.bf16.msra.mxu0 0
      %2421 = vmatpush.bf16.msra.mxu0 0
      %2422 = vmatpush.bf16.msra.mxu0 %v2413
      %2423 = vmatmul.bf16.gmra.mxu0 %v2347
      %v2424 = vpop.f32.mrf.mxu0
      %v2425 = vadd.f32 %v2188, %v2424
      %v2426 = vpop.f32.mrf.mxu0
      %v2427 = vadd.f32 %v2190, %v2426
      %2428 = vmatmul.bf16.gmra.mxu0 %v2350
      %v2429 = vpop.f32.mrf.mxu0
      %v2430 = vadd.f32 %v2193, %v2429
      %v2431 = vpop.f32.mrf.mxu0
      %v2432 = vadd.f32 %v2195, %v2431
      %2433 = vmatmul.bf16.gmra.mxu0 %v2353
      %v2434 = vpop.f32.mrf.mxu0
      %v2435 = vadd.f32 %v2198, %v2434
      %v2436 = vpop.f32.mrf.mxu0
      %v2437 = vadd.f32 %v2200, %v2436
      %2438 = vmatmul.bf16.gmra.mxu0 %v2356
      %v2439 = vpop.f32.mrf.mxu0
      %v2440 = vadd.f32 %v2203, %v2439
      %v2441 = vpop.f32.mrf.mxu0
      %v2442 = vadd.f32 %v2205, %v2441
      %2443 = vmatmul.bf16.gmra.mxu0 %v2359
      %v2444 = vpop.f32.mrf.mxu0
      %v2445 = vadd.f32 %v2208, %v2444
      %v2446 = vpop.f32.mrf.mxu0
      %v2447 = vadd.f32 %v2210, %v2446
      %2448 = vmatmul.bf16.gmra.mxu0 %v2362
      %v2449 = vpop.f32.mrf.mxu0
      %v2450 = vadd.f32 %v2213, %v2449
      %v2451 = vpop.f32.mrf.mxu0
      %v2452 = vadd.f32 %v2215, %v2451
      %2453 = vmatmul.bf16.gmra.mxu0 %v2365
      %v2454 = vpop.f32.mrf.mxu0
      %v2455 = vadd.f32 %v2218, %v2454
      %v2456 = vpop.f32.mrf.mxu0
      %v2457 = vadd.f32 %v2220, %v2456
      %2458 = vmatmul.bf16.gmra.mxu0 %v2368
      %v2459 = vpop.f32.mrf.mxu0
      %v2460 = vadd.f32 %v2223, %v2459
      %v2461 = vpop.f32.mrf.mxu0
      %v2462 = vadd.f32 %v2225, %v2461
      %2463 = vmatmul.bf16.gmra.mxu0 %v2371
      %v2464 = vpop.f32.mrf.mxu0
      %v2465 = vadd.f32 %v2228, %v2464
      %v2466 = vpop.f32.mrf.mxu0
      %v2467 = vadd.f32 %v2230, %v2466
      %2468 = vmatmul.bf16.gmra.mxu0 %v2374
      %v2469 = vpop.f32.mrf.mxu0
      %v2470 = vadd.f32 %v2233, %v2469
      %v2471 = vpop.f32.mrf.mxu0
      %v2472 = vadd.f32 %v2235, %v2471
      %2473 = vmatmul.bf16.gmra.mxu0 %v2377
      %v2474 = vpop.f32.mrf.mxu0
      %v2475 = vadd.f32 %v2238, %v2474
      %v2476 = vpop.f32.mrf.mxu0
      %v2477 = vadd.f32 %v2240, %v2476
      %2478 = vmatmul.bf16.gmra.mxu0 %v2380
      %v2479 = vpop.f32.mrf.mxu0
      %v2480 = vadd.f32 %v2243, %v2479
      %v2481 = vpop.f32.mrf.mxu0
      %v2482 = vadd.f32 %v2245, %v2481
      %2483 = vmatmul.bf16.gmra.mxu0 %v2383
      %v2484 = vpop.f32.mrf.mxu0
      %v2485 = vadd.f32 %v2248, %v2484
      %v2486 = vpop.f32.mrf.mxu0
      %v2487 = vadd.f32 %v2250, %v2486
      %2488 = vmatmul.bf16.gmra.mxu0 %v2386
      %v2489 = vpop.f32.mrf.mxu0
      %v2490 = vadd.f32 %v2253, %v2489
      %v2491 = vpop.f32.mrf.mxu0
      %v2492 = vadd.f32 %v2255, %v2491
      %2493 = vmatmul.bf16.gmra.mxu0 %v2389
      %v2494 = vpop.f32.mrf.mxu0
      %v2495 = vadd.f32 %v2258, %v2494
      %v2496 = vpop.f32.mrf.mxu0
      %v2497 = vadd.f32 %v2260, %v2496
      %2498 = vmatmul.bf16.gmra.mxu0 %v2392
      %v2499 = vpop.f32.mrf.mxu0
      %v2500 = vadd.f32 %v2263, %v2499
      %v2501 = vpop.f32.mrf.mxu0
      %v2502 = vadd.f32 %v2265, %v2501
      %2503 = vmatmul.bf16.gmra.mxu0 %v2395
      %v2504 = vpop.f32.mrf.mxu0
      %v2505 = vadd.f32 %v2268, %v2504
      %v2506 = vpop.f32.mrf.mxu0
      %v2507 = vadd.f32 %v2270, %v2506
      %2508 = vmatmul.bf16.gmra.mxu0 %v2398
      %v2509 = vpop.f32.mrf.mxu0
      %v2510 = vadd.f32 %v2273, %v2509
      %v2511 = vpop.f32.mrf.mxu0
      %v2512 = vadd.f32 %v2275, %v2511
      %2513 = vmatmul.bf16.gmra.mxu0 %v2401
      %v2514 = vpop.f32.mrf.mxu0
      %v2515 = vadd.f32 %v2278, %v2514
      %v2516 = vpop.f32.mrf.mxu0
      %v2517 = vadd.f32 %v2280, %v2516
      %2518 = vmatmul.bf16.gmra.mxu0 %v2404
      %v2519 = vpop.f32.mrf.mxu0
      %v2520 = vadd.f32 %v2283, %v2519
      %v2521 = vpop.f32.mrf.mxu0
      %v2522 = vadd.f32 %v2285, %v2521
      %2523 = vmatmul.bf16.gmra.mxu0 %v2407
      %v2524 = vpop.f32.mrf.mxu0
      %v2525 = vadd.f32 %v2288, %v2524
      %v2526 = vpop.f32.mrf.mxu0
      %v2527 = vadd.f32 %v2290, %v2526
      %2528 = vmatmul.bf16.gmra.mxu0 %v2410
      %v2529 = vpop.f32.mrf.mxu0
      %v2530 = vadd.f32 %v2293, %v2529
      %v2531 = vpop.f32.mrf.mxu0
      %v2532 = vadd.f32 %v2295, %v2531
      %2533 = vdwg.mxu0
      %s2534 = scalar_lea.vmem %s4, 4
      %v2535 = vld [vmem:[%s2534] sm:$0x3]
      %v2536 = vpack.c.b16 %v1836, %v1835
      %v2537 = vpack.c.b16 %v1838, %v1837
      %v2538 = vpack.c.b16 %v1840, %v1839
      %v2539 = vpack.c.b16 %v1842, %v1841
      %v2540 = vpack.c.b16 %v1844, %v1843
      %v2541 = vpack.c.b16 %v1846, %v1845
      %v2542 = vpack.c.b16 %v1848, %v1847
      %v2543 = vpack.c.b16 %v1850, %v1849
      %v2544 = vpack.c.b16 %v1852, %v1851
      %v2545 = vpack.c.b16 %v1854, %v1853
      %v2546 = vpack.c.b16 %v1856, %v1855
      %v2547 = vpack.c.b16 %v1858, %v1857
      %v2548 = vpack.c.b16 %v1860, %v1859
      %v2549 = vpack.c.b16 %v1862, %v1861
      %v2550 = vpack.c.b16 %v1864, %v1863
      %v2551 = vpack.c.b16 %v1866, %v1865
      %v2552 = vpack.c.b16 %v1868, %v1867
      %v2553 = vpack.c.b16 %v1870, %v1869
      %v2554 = vpack.c.b16 %v1872, %v1871
      %v2555 = vpack.c.b16 %v1874, %v1873
      %v2556 = vpack.c.b16 %v1876, %v1875
      %v2557 = vpack.c.b16 %v1878, %v1877
      %v2559 = vsel %vm1291, %v2536, 0
      %v2562 = vsel %vm1291, %v2537, 0
      %v2565 = vsel %vm1291, %v2538, 0
      %v2568 = vsel %vm1291, %v2539, 0
      %v2571 = vsel %vm1291, %v2540, 0
      %v2574 = vsel %vm1291, %v2541, 0
      %v2577 = vsel %vm1291, %v2542, 0
      %v2580 = vsel %vm1291, %v2543, 0
      %v2583 = vsel %vm1291, %v2544, 0
      %v2586 = vsel %vm1291, %v2545, 0
      %v2589 = vsel %vm1291, %v2546, 0
      %v2592 = vsel %vm1291, %v2547, 0
      %v2595 = vsel %vm1291, %v2548, 0
      %v2598 = vsel %vm1291, %v2549, 0
      %v2601 = vsel %vm1291, %v2550, 0
      %v2604 = vsel %vm1291, %v2551, 0
      %v2607 = vsel %vm1291, %v2552, 0
      %v2610 = vsel %vm1291, %v2553, 0
      %v2613 = vsel %vm1291, %v2554, 0
      %v2616 = vsel %vm1291, %v2555, 0
      %v2619 = vsel %vm1291, %v2556, 0
      %v2622 = vsel %vm1291, %v2557, 0
      %v2625 = vsel %vm1358, %v2535, 0
      %2627 = vmatpush.bf16.msra.mxu0 0
      %2628 = vmatpush.bf16.msra.mxu0 0
      %2629 = vmatpush.bf16.msra.mxu0 0
      %2630 = vmatpush.bf16.msra.mxu0 0
      %2631 = vmatpush.bf16.msra.mxu0 0
      %2632 = vmatpush.bf16.msra.mxu0 0
      %2633 = vmatpush.bf16.msra.mxu0 0
      %2634 = vmatpush.bf16.msra.mxu0 %v2625
      %2635 = vmatmul.bf16.gmra.mxu0 %v2559
      %v2636 = vpop.f32.mrf.mxu0
      %v2637 = vadd.f32 0.0, %v2636
      %v2638 = vpop.f32.mrf.mxu0
      %v2639 = vadd.f32 0.0, %v2638
      %2640 = vmatmul.bf16.gmra.mxu0 %v2562
      %v2641 = vpop.f32.mrf.mxu0
      %v2642 = vadd.f32 0.0, %v2641
      %v2643 = vpop.f32.mrf.mxu0
      %v2644 = vadd.f32 0.0, %v2643
      %2645 = vmatmul.bf16.gmra.mxu0 %v2565
      %v2646 = vpop.f32.mrf.mxu0
      %v2647 = vadd.f32 0.0, %v2646
      %v2648 = vpop.f32.mrf.mxu0
      %v2649 = vadd.f32 0.0, %v2648
      %2650 = vmatmul.bf16.gmra.mxu0 %v2568
      %v2651 = vpop.f32.mrf.mxu0
      %v2652 = vadd.f32 0.0, %v2651
      %v2653 = vpop.f32.mrf.mxu0
      %v2654 = vadd.f32 0.0, %v2653
      %2655 = vmatmul.bf16.gmra.mxu0 %v2571
      %v2656 = vpop.f32.mrf.mxu0
      %v2657 = vadd.f32 0.0, %v2656
      %v2658 = vpop.f32.mrf.mxu0
      %v2659 = vadd.f32 0.0, %v2658
      %2660 = vmatmul.bf16.gmra.mxu0 %v2574
      %v2661 = vpop.f32.mrf.mxu0
      %v2662 = vadd.f32 0.0, %v2661
      %v2663 = vpop.f32.mrf.mxu0
      %v2664 = vadd.f32 0.0, %v2663
      %2665 = vmatmul.bf16.gmra.mxu0 %v2577
      %v2666 = vpop.f32.mrf.mxu0
      %v2667 = vadd.f32 0.0, %v2666
      %v2668 = vpop.f32.mrf.mxu0
      %v2669 = vadd.f32 0.0, %v2668
      %2670 = vmatmul.bf16.gmra.mxu0 %v2580
      %v2671 = vpop.f32.mrf.mxu0
      %v2672 = vadd.f32 0.0, %v2671
      %v2673 = vpop.f32.mrf.mxu0
      %v2674 = vadd.f32 0.0, %v2673
      %2675 = vmatmul.bf16.gmra.mxu0 %v2583
      %v2676 = vpop.f32.mrf.mxu0
      %v2677 = vadd.f32 0.0, %v2676
      %v2678 = vpop.f32.mrf.mxu0
      %v2679 = vadd.f32 0.0, %v2678
      %2680 = vmatmul.bf16.gmra.mxu0 %v2586
      %v2681 = vpop.f32.mrf.mxu0
      %v2682 = vadd.f32 0.0, %v2681
      %v2683 = vpop.f32.mrf.mxu0
      %v2684 = vadd.f32 0.0, %v2683
      %2685 = vmatmul.bf16.gmra.mxu0 %v2589
      %v2686 = vpop.f32.mrf.mxu0
      %v2687 = vadd.f32 0.0, %v2686
      %v2688 = vpop.f32.mrf.mxu0
      %v2689 = vadd.f32 0.0, %v2688
      %2690 = vmatmul.bf16.gmra.mxu0 %v2592
      %v2691 = vpop.f32.mrf.mxu0
      %v2692 = vadd.f32 0.0, %v2691
      %v2693 = vpop.f32.mrf.mxu0
      %v2694 = vadd.f32 0.0, %v2693
      %2695 = vmatmul.bf16.gmra.mxu0 %v2595
      %v2696 = vpop.f32.mrf.mxu0
      %v2697 = vadd.f32 0.0, %v2696
      %v2698 = vpop.f32.mrf.mxu0
      %v2699 = vadd.f32 0.0, %v2698
      %2700 = vmatmul.bf16.gmra.mxu0 %v2598
      %v2701 = vpop.f32.mrf.mxu0
      %v2702 = vadd.f32 0.0, %v2701
      %v2703 = vpop.f32.mrf.mxu0
      %v2704 = vadd.f32 0.0, %v2703
      %2705 = vmatmul.bf16.gmra.mxu0 %v2601
      %v2706 = vpop.f32.mrf.mxu0
      %v2707 = vadd.f32 0.0, %v2706
      %v2708 = vpop.f32.mrf.mxu0
      %v2709 = vadd.f32 0.0, %v2708
      %2710 = vmatmul.bf16.gmra.mxu0 %v2604
      %v2711 = vpop.f32.mrf.mxu0
      %v2712 = vadd.f32 0.0, %v2711
      %v2713 = vpop.f32.mrf.mxu0
      %v2714 = vadd.f32 0.0, %v2713
      %2715 = vmatmul.bf16.gmra.mxu0 %v2607
      %v2716 = vpop.f32.mrf.mxu0
      %v2717 = vadd.f32 0.0, %v2716
      %v2718 = vpop.f32.mrf.mxu0
      %v2719 = vadd.f32 0.0, %v2718
      %2720 = vmatmul.bf16.gmra.mxu0 %v2610
      %v2721 = vpop.f32.mrf.mxu0
      %v2722 = vadd.f32 0.0, %v2721
      %v2723 = vpop.f32.mrf.mxu0
      %v2724 = vadd.f32 0.0, %v2723
      %2725 = vmatmul.bf16.gmra.mxu0 %v2613
      %v2726 = vpop.f32.mrf.mxu0
      %v2727 = vadd.f32 0.0, %v2726
      %v2728 = vpop.f32.mrf.mxu0
      %v2729 = vadd.f32 0.0, %v2728
      %2730 = vmatmul.bf16.gmra.mxu0 %v2616
      %v2731 = vpop.f32.mrf.mxu0
      %v2732 = vadd.f32 0.0, %v2731
      %v2733 = vpop.f32.mrf.mxu0
      %v2734 = vadd.f32 0.0, %v2733
      %2735 = vmatmul.bf16.gmra.mxu0 %v2619
      %v2736 = vpop.f32.mrf.mxu0
      %v2737 = vadd.f32 0.0, %v2736
      %v2738 = vpop.f32.mrf.mxu0
      %v2739 = vadd.f32 0.0, %v2738
      %2740 = vmatmul.bf16.gmra.mxu0 %v2622
      %v2741 = vpop.f32.mrf.mxu0
      %v2742 = vadd.f32 0.0, %v2741
      %v2743 = vpop.f32.mrf.mxu0
      %v2744 = vadd.f32 0.0, %v2743
      %2745 = vdwg.mxu0
      %v2746 = vadd.f32 %v2425, %v2637
      %v2747 = vadd.f32 %v2427, %v2639
      %v2748 = vadd.f32 %v2430, %v2642
      %v2749 = vadd.f32 %v2432, %v2644
      %v2750 = vadd.f32 %v2435, %v2647
      %v2751 = vadd.f32 %v2437, %v2649
      %v2752 = vadd.f32 %v2440, %v2652
      %v2753 = vadd.f32 %v2442, %v2654
      %v2754 = vadd.f32 %v2445, %v2657
      %v2755 = vadd.f32 %v2447, %v2659
      %v2756 = vadd.f32 %v2450, %v2662
      %v2757 = vadd.f32 %v2452, %v2664
      %v2758 = vadd.f32 %v2455, %v2667
      %v2759 = vadd.f32 %v2457, %v2669
      %v2760 = vadd.f32 %v2460, %v2672
      %v2761 = vadd.f32 %v2462, %v2674
      %v2762 = vadd.f32 %v2465, %v2677
      %v2763 = vadd.f32 %v2467, %v2679
      %v2764 = vadd.f32 %v2470, %v2682
      %v2765 = vadd.f32 %v2472, %v2684
      %v2766 = vadd.f32 %v2475, %v2687
      %v2767 = vadd.f32 %v2477, %v2689
      %v2768 = vadd.f32 %v2480, %v2692
      %v2769 = vadd.f32 %v2482, %v2694
      %v2770 = vadd.f32 %v2485, %v2697
      %v2771 = vadd.f32 %v2487, %v2699
      %v2772 = vadd.f32 %v2490, %v2702
      %v2773 = vadd.f32 %v2492, %v2704
      %v2774 = vadd.f32 %v2495, %v2707
      %v2775 = vadd.f32 %v2497, %v2709
      %v2776 = vadd.f32 %v2500, %v2712
      %v2777 = vadd.f32 %v2502, %v2714
      %v2778 = vadd.f32 %v2505, %v2717
      %v2779 = vadd.f32 %v2507, %v2719
      %v2780 = vadd.f32 %v2510, %v2722
      %v2781 = vadd.f32 %v2512, %v2724
      %v2782 = vadd.f32 %v2515, %v2727
      %v2783 = vadd.f32 %v2517, %v2729
      %v2784 = vadd.f32 %v2520, %v2732
      %v2785 = vadd.f32 %v2522, %v2734
      %v2786 = vadd.f32 %v2525, %v2737
      %v2787 = vadd.f32 %v2527, %v2739
      %v2788 = vadd.f32 %v2530, %v2742
      %v2789 = vadd.f32 %v2532, %v2744
      %v2790 = vld [vmem:[#allocation2 + $0xd0] sm:$0x3]
      %s2791 = scalar_lea.vmem %s4, 6
      %v2792 = vld [vmem:[%s2791] sm:$0x3]
      %v2794 = vunpack.c.l.b16 %v2790
      %v2795 = vpack.c.b16 %v2794, %v2794
      %vm2796 = vcmask 1045504
      %v2797 = vrot.slane %v1061, 2
      %v2798 = vrot.slane %v1062, 2
      %v2799 = vsel %vm2796, %v2797, %v2798
      %v2800 = vrot.slane %v1063, 2
      %v2801 = vsel %vm2796, %v2798, %v2800
      %v2802 = vrot.slane %v1064, 2
      %v2803 = vsel %vm2796, %v2800, %v2802
      %v2804 = vrot.slane %v1065, 2
      %v2805 = vsel %vm2796, %v2802, %v2804
      %v2806 = vrot.slane %v1066, 2
      %v2807 = vsel %vm2796, %v2804, %v2806
      %v2808 = vrot.slane %v1067, 2
      %v2809 = vsel %vm2796, %v2806, %v2808
      %v2810 = vrot.slane %v1068, 2
      %v2811 = vsel %vm2796, %v2808, %v2810
      %v2812 = vrot.slane %v1069, 2
      %v2813 = vsel %vm2796, %v2810, %v2812
      %v2814 = vrot.slane %v1070, 2
      %v2815 = vsel %vm2796, %v2812, %v2814
      %v2816 = vrot.slane %v1071, 2
      %v2817 = vsel %vm2796, %v2814, %v2816
      %v2818 = vrot.slane %v1072, 2
      %v2819 = vsel %vm2796, %v2816, %v2818
      %v2820 = vrot.slane %v1073, 2
      %v2821 = vsel %vm2796, %v2818, %v2820
      %v2822 = vrot.slane %v1074, 2
      %v2823 = vsel %vm2796, %v2820, %v2822
      %v2824 = vrot.slane %v1075, 2
      %v2825 = vsel %vm2796, %v2822, %v2824
      %v2826 = vrot.slane %v1076, 2
      %v2827 = vsel %vm2796, %v2824, %v2826
      %v2828 = vrot.slane %v1077, 2
      %v2829 = vsel %vm2796, %v2826, %v2828
      %v2830 = vrot.slane %v1078, 2
      %v2831 = vsel %vm2796, %v2828, %v2830
      %v2832 = vrot.slane %v1079, 2
      %v2833 = vsel %vm2796, %v2830, %v2832
      %v2834 = vrot.slane %v1080, 2
      %v2835 = vsel %vm2796, %v2832, %v2834
      %v2836 = vrot.slane %v1081, 2
      %v2837 = vsel %vm2796, %v2834, %v2836
      %v2838 = vrot.slane %v1082, 2
      %v2839 = vsel %vm2796, %v2836, %v2838
      %v2840 = vrot.slane %v2795, 2
      %v2841 = vsel %vm2796, %v2838, %v2840
      %v2843 = vsel %vm1291, %v2799, 0
      %v2846 = vsel %vm1291, %v2801, 0
      %v2849 = vsel %vm1291, %v2803, 0
      %v2852 = vsel %vm1291, %v2805, 0
      %v2855 = vsel %vm1291, %v2807, 0
      %v2858 = vsel %vm1291, %v2809, 0
      %v2861 = vsel %vm1291, %v2811, 0
      %v2864 = vsel %vm1291, %v2813, 0
      %v2867 = vsel %vm1291, %v2815, 0
      %v2870 = vsel %vm1291, %v2817, 0
      %v2873 = vsel %vm1291, %v2819, 0
      %v2876 = vsel %vm1291, %v2821, 0
      %v2879 = vsel %vm1291, %v2823, 0
      %v2882 = vsel %vm1291, %v2825, 0
      %v2885 = vsel %vm1291, %v2827, 0
      %v2888 = vsel %vm1291, %v2829, 0
      %v2891 = vsel %vm1291, %v2831, 0
      %v2894 = vsel %vm1291, %v2833, 0
      %v2897 = vsel %vm1291, %v2835, 0
      %v2900 = vsel %vm1291, %v2837, 0
      %v2903 = vsel %vm1291, %v2839, 0
      %v2906 = vsel %vm1291, %v2841, 0
      %v2909 = vsel %vm1358, %v2792, 0
      %2911 = vmatpush.bf16.msra.mxu0 0
      %2912 = vmatpush.bf16.msra.mxu0 0
      %2913 = vmatpush.bf16.msra.mxu0 0
      %2914 = vmatpush.bf16.msra.mxu0 0
      %2915 = vmatpush.bf16.msra.mxu0 0
      %2916 = vmatpush.bf16.msra.mxu0 0
      %2917 = vmatpush.bf16.msra.mxu0 0
      %2918 = vmatpush.bf16.msra.mxu0 %v2909
      %2919 = vmatmul.bf16.gmra.mxu0 %v2843
      %v2920 = vpop.f32.mrf.mxu0
      %v2921 = vadd.f32 0.0, %v2920
      %v2922 = vpop.f32.mrf.mxu0
      %v2923 = vadd.f32 0.0, %v2922
      %2924 = vmatmul.bf16.gmra.mxu0 %v2846
      %v2925 = vpop.f32.mrf.mxu0
      %v2926 = vadd.f32 0.0, %v2925
      %v2927 = vpop.f32.mrf.mxu0
      %v2928 = vadd.f32 0.0, %v2927
      %2929 = vmatmul.bf16.gmra.mxu0 %v2849
      %v2930 = vpop.f32.mrf.mxu0
      %v2931 = vadd.f32 0.0, %v2930
      %v2932 = vpop.f32.mrf.mxu0
      %v2933 = vadd.f32 0.0, %v2932
      %2934 = vmatmul.bf16.gmra.mxu0 %v2852
      %v2935 = vpop.f32.mrf.mxu0
      %v2936 = vadd.f32 0.0, %v2935
      %v2937 = vpop.f32.mrf.mxu0
      %v2938 = vadd.f32 0.0, %v2937
      %2939 = vmatmul.bf16.gmra.mxu0 %v2855
      %v2940 = vpop.f32.mrf.mxu0
      %v2941 = vadd.f32 0.0, %v2940
      %v2942 = vpop.f32.mrf.mxu0
      %v2943 = vadd.f32 0.0, %v2942
      %2944 = vmatmul.bf16.gmra.mxu0 %v2858
      %v2945 = vpop.f32.mrf.mxu0
      %v2946 = vadd.f32 0.0, %v2945
      %v2947 = vpop.f32.mrf.mxu0
      %v2948 = vadd.f32 0.0, %v2947
      %2949 = vmatmul.bf16.gmra.mxu0 %v2861
      %v2950 = vpop.f32.mrf.mxu0
      %v2951 = vadd.f32 0.0, %v2950
      %v2952 = vpop.f32.mrf.mxu0
      %v2953 = vadd.f32 0.0, %v2952
      %2954 = vmatmul.bf16.gmra.mxu0 %v2864
      %v2955 = vpop.f32.mrf.mxu0
      %v2956 = vadd.f32 0.0, %v2955
      %v2957 = vpop.f32.mrf.mxu0
      %v2958 = vadd.f32 0.0, %v2957
      %2959 = vmatmul.bf16.gmra.mxu0 %v2867
      %v2960 = vpop.f32.mrf.mxu0
      %v2961 = vadd.f32 0.0, %v2960
      %v2962 = vpop.f32.mrf.mxu0
      %v2963 = vadd.f32 0.0, %v2962
      %2964 = vmatmul.bf16.gmra.mxu0 %v2870
      %v2965 = vpop.f32.mrf.mxu0
      %v2966 = vadd.f32 0.0, %v2965
      %v2967 = vpop.f32.mrf.mxu0
      %v2968 = vadd.f32 0.0, %v2967
      %2969 = vmatmul.bf16.gmra.mxu0 %v2873
      %v2970 = vpop.f32.mrf.mxu0
      %v2971 = vadd.f32 0.0, %v2970
      %v2972 = vpop.f32.mrf.mxu0
      %v2973 = vadd.f32 0.0, %v2972
      %2974 = vmatmul.bf16.gmra.mxu0 %v2876
      %v2975 = vpop.f32.mrf.mxu0
      %v2976 = vadd.f32 0.0, %v2975
      %v2977 = vpop.f32.mrf.mxu0
      %v2978 = vadd.f32 0.0, %v2977
      %2979 = vmatmul.bf16.gmra.mxu0 %v2879
      %v2980 = vpop.f32.mrf.mxu0
      %v2981 = vadd.f32 0.0, %v2980
      %v2982 = vpop.f32.mrf.mxu0
      %v2983 = vadd.f32 0.0, %v2982
      %2984 = vmatmul.bf16.gmra.mxu0 %v2882
      %v2985 = vpop.f32.mrf.mxu0
      %v2986 = vadd.f32 0.0, %v2985
      %v2987 = vpop.f32.mrf.mxu0
      %v2988 = vadd.f32 0.0, %v2987
      %2989 = vmatmul.bf16.gmra.mxu0 %v2885
      %v2990 = vpop.f32.mrf.mxu0
      %v2991 = vadd.f32 0.0, %v2990
      %v2992 = vpop.f32.mrf.mxu0
      %v2993 = vadd.f32 0.0, %v2992
      %2994 = vmatmul.bf16.gmra.mxu0 %v2888
      %v2995 = vpop.f32.mrf.mxu0
      %v2996 = vadd.f32 0.0, %v2995
      %v2997 = vpop.f32.mrf.mxu0
      %v2998 = vadd.f32 0.0, %v2997
      %2999 = vmatmul.bf16.gmra.mxu0 %v2891
      %v3000 = vpop.f32.mrf.mxu0
      %v3001 = vadd.f32 0.0, %v3000
      %v3002 = vpop.f32.mrf.mxu0
      %v3003 = vadd.f32 0.0, %v3002
      %3004 = vmatmul.bf16.gmra.mxu0 %v2894
      %v3005 = vpop.f32.mrf.mxu0
      %v3006 = vadd.f32 0.0, %v3005
      %v3007 = vpop.f32.mrf.mxu0
      %v3008 = vadd.f32 0.0, %v3007
      %3009 = vmatmul.bf16.gmra.mxu0 %v2897
      %v3010 = vpop.f32.mrf.mxu0
      %v3011 = vadd.f32 0.0, %v3010
      %v3012 = vpop.f32.mrf.mxu0
      %v3013 = vadd.f32 0.0, %v3012
      %3014 = vmatmul.bf16.gmra.mxu0 %v2900
      %v3015 = vpop.f32.mrf.mxu0
      %v3016 = vadd.f32 0.0, %v3015
      %v3017 = vpop.f32.mrf.mxu0
      %v3018 = vadd.f32 0.0, %v3017
      %3019 = vmatmul.bf16.gmra.mxu0 %v2903
      %v3020 = vpop.f32.mrf.mxu0
      %v3021 = vadd.f32 0.0, %v3020
      %v3022 = vpop.f32.mrf.mxu0
      %v3023 = vadd.f32 0.0, %v3022
      %3024 = vmatmul.bf16.gmra.mxu0 %v2906
      %v3025 = vpop.f32.mrf.mxu0
      %v3026 = vadd.f32 0.0, %v3025
      %v3027 = vpop.f32.mrf.mxu0
      %v3028 = vadd.f32 0.0, %v3027
      %3029 = vdwg.mxu0
      %v3030 = vadd.f32 %v2746, %v2921
      %v3031 = vadd.f32 %v2747, %v2923
      %v3032 = vadd.f32 %v2748, %v2926
      %v3033 = vadd.f32 %v2749, %v2928
      %v3034 = vadd.f32 %v2750, %v2931
      %v3035 = vadd.f32 %v2751, %v2933
      %v3036 = vadd.f32 %v2752, %v2936
      %v3037 = vadd.f32 %v2753, %v2938
      %v3038 = vadd.f32 %v2754, %v2941
      %v3039 = vadd.f32 %v2755, %v2943
      %v3040 = vadd.f32 %v2756, %v2946
      %v3041 = vadd.f32 %v2757, %v2948
      %v3042 = vadd.f32 %v2758, %v2951
      %v3043 = vadd.f32 %v2759, %v2953
      %v3044 = vadd.f32 %v2760, %v2956
      %v3045 = vadd.f32 %v2761, %v2958
      %v3046 = vadd.f32 %v2762, %v2961
      %v3047 = vadd.f32 %v2763, %v2963
      %v3048 = vadd.f32 %v2764, %v2966
      %v3049 = vadd.f32 %v2765, %v2968
      %v3050 = vadd.f32 %v2766, %v2971
      %v3051 = vadd.f32 %v2767, %v2973
      %v3052 = vadd.f32 %v2768, %v2976
      %v3053 = vadd.f32 %v2769, %v2978
      %v3054 = vadd.f32 %v2770, %v2981
      %v3055 = vadd.f32 %v2771, %v2983
      %v3056 = vadd.f32 %v2772, %v2986
      %v3057 = vadd.f32 %v2773, %v2988
      %v3058 = vadd.f32 %v2774, %v2991
      %v3059 = vadd.f32 %v2775, %v2993
      %v3060 = vadd.f32 %v2776, %v2996
      %v3061 = vadd.f32 %v2777, %v2998
      %v3062 = vadd.f32 %v2778, %v3001
      %v3063 = vadd.f32 %v2779, %v3003
      %v3064 = vadd.f32 %v2780, %v3006
      %v3065 = vadd.f32 %v2781, %v3008
      %v3066 = vadd.f32 %v2782, %v3011
      %v3067 = vadd.f32 %v2783, %v3013
      %v3068 = vadd.f32 %v2784, %v3016
      %v3069 = vadd.f32 %v2785, %v3018
      %v3070 = vadd.f32 %v2786, %v3021
      %v3071 = vadd.f32 %v2787, %v3023
      %v3072 = vadd.f32 %v2788, %v3026
      %v3073 = vadd.f32 %v2789, %v3028
      %s3074 = scalar_lea.vmem %s4, 8
      %v3075 = vld [vmem:[%s3074] sm:$0x3]
      %v3077 = vsel %vm1358, %v3075, 0
      %3079 = vmatpush.bf16.msra.mxu0 0
      %3080 = vmatpush.bf16.msra.mxu0 0
      %3081 = vmatpush.bf16.msra.mxu0 0
      %3082 = vmatpush.bf16.msra.mxu0 0
      %3083 = vmatpush.bf16.msra.mxu0 0
      %3084 = vmatpush.bf16.msra.mxu0 0
      %3085 = vmatpush.bf16.msra.mxu0 0
      %3086 = vmatpush.bf16.msra.mxu0 %v3077
      %3087 = vmatmul.bf16.gmra.mxu0 %v1293
      %v3088 = vpop.f32.mrf.mxu0
      %v3089 = vadd.f32 0.0, %v3088
      %v3090 = vpop.f32.mrf.mxu0
      %v3091 = vadd.f32 0.0, %v3090
      %3092 = vmatmul.bf16.gmra.mxu0 %v1296
      %v3093 = vpop.f32.mrf.mxu0
      %v3094 = vadd.f32 0.0, %v3093
      %v3095 = vpop.f32.mrf.mxu0
      %v3096 = vadd.f32 0.0, %v3095
      %3097 = vmatmul.bf16.gmra.mxu0 %v1299
      %v3098 = vpop.f32.mrf.mxu0
      %v3099 = vadd.f32 0.0, %v3098
      %v3100 = vpop.f32.mrf.mxu0
      %v3101 = vadd.f32 0.0, %v3100
      %3102 = vmatmul.bf16.gmra.mxu0 %v1302
      %v3103 = vpop.f32.mrf.mxu0
      %v3104 = vadd.f32 0.0, %v3103
      %v3105 = vpop.f32.mrf.mxu0
      %v3106 = vadd.f32 0.0, %v3105
      %3107 = vmatmul.bf16.gmra.mxu0 %v1305
      %v3108 = vpop.f32.mrf.mxu0
      %v3109 = vadd.f32 0.0, %v3108
      %v3110 = vpop.f32.mrf.mxu0
      %v3111 = vadd.f32 0.0, %v3110
      %3112 = vmatmul.bf16.gmra.mxu0 %v1308
      %v3113 = vpop.f32.mrf.mxu0
      %v3114 = vadd.f32 0.0, %v3113
      %v3115 = vpop.f32.mrf.mxu0
      %v3116 = vadd.f32 0.0, %v3115
      %3117 = vmatmul.bf16.gmra.mxu0 %v1311
      %v3118 = vpop.f32.mrf.mxu0
      %v3119 = vadd.f32 0.0, %v3118
      %v3120 = vpop.f32.mrf.mxu0
      %v3121 = vadd.f32 0.0, %v3120
      %3122 = vmatmul.bf16.gmra.mxu0 %v1314
      %v3123 = vpop.f32.mrf.mxu0
      %v3124 = vadd.f32 0.0, %v3123
      %v3125 = vpop.f32.mrf.mxu0
      %v3126 = vadd.f32 0.0, %v3125
      %3127 = vmatmul.bf16.gmra.mxu0 %v1317
      %v3128 = vpop.f32.mrf.mxu0
      %v3129 = vadd.f32 0.0, %v3128
      %v3130 = vpop.f32.mrf.mxu0
      %v3131 = vadd.f32 0.0, %v3130
      %3132 = vmatmul.bf16.gmra.mxu0 %v1320
      %v3133 = vpop.f32.mrf.mxu0
      %v3134 = vadd.f32 0.0, %v3133
      %v3135 = vpop.f32.mrf.mxu0
      %v3136 = vadd.f32 0.0, %v3135
      %3137 = vmatmul.bf16.gmra.mxu0 %v1323
      %v3138 = vpop.f32.mrf.mxu0
      %v3139 = vadd.f32 0.0, %v3138
      %v3140 = vpop.f32.mrf.mxu0
      %v3141 = vadd.f32 0.0, %v3140
      %3142 = vmatmul.bf16.gmra.mxu0 %v1326
      %v3143 = vpop.f32.mrf.mxu0
      %v3144 = vadd.f32 0.0, %v3143
      %v3145 = vpop.f32.mrf.mxu0
      %v3146 = vadd.f32 0.0, %v3145
      %3147 = vmatmul.bf16.gmra.mxu0 %v1329
      %v3148 = vpop.f32.mrf.mxu0
      %v3149 = vadd.f32 0.0, %v3148
      %v3150 = vpop.f32.mrf.mxu0
      %v3151 = vadd.f32 0.0, %v3150
      %3152 = vmatmul.bf16.gmra.mxu0 %v1332
      %v3153 = vpop.f32.mrf.mxu0
      %v3154 = vadd.f32 0.0, %v3153
      %v3155 = vpop.f32.mrf.mxu0
      %v3156 = vadd.f32 0.0, %v3155
      %3157 = vmatmul.bf16.gmra.mxu0 %v1335
      %v3158 = vpop.f32.mrf.mxu0
      %v3159 = vadd.f32 0.0, %v3158
      %v3160 = vpop.f32.mrf.mxu0
      %v3161 = vadd.f32 0.0, %v3160
      %3162 = vmatmul.bf16.gmra.mxu0 %v1338
      %v3163 = vpop.f32.mrf.mxu0
      %v3164 = vadd.f32 0.0, %v3163
      %v3165 = vpop.f32.mrf.mxu0
      %v3166 = vadd.f32 0.0, %v3165
      %3167 = vmatmul.bf16.gmra.mxu0 %v1341
      %v3168 = vpop.f32.mrf.mxu0
      %v3169 = vadd.f32 0.0, %v3168
      %v3170 = vpop.f32.mrf.mxu0
      %v3171 = vadd.f32 0.0, %v3170
      %3172 = vmatmul.bf16.gmra.mxu0 %v1344
      %v3173 = vpop.f32.mrf.mxu0
      %v3174 = vadd.f32 0.0, %v3173
      %v3175 = vpop.f32.mrf.mxu0
      %v3176 = vadd.f32 0.0, %v3175
      %3177 = vmatmul.bf16.gmra.mxu0 %v1347
      %v3178 = vpop.f32.mrf.mxu0
      %v3179 = vadd.f32 0.0, %v3178
      %v3180 = vpop.f32.mrf.mxu0
      %v3181 = vadd.f32 0.0, %v3180
      %3182 = vmatmul.bf16.gmra.mxu0 %v1350
      %v3183 = vpop.f32.mrf.mxu0
      %v3184 = vadd.f32 0.0, %v3183
      %v3185 = vpop.f32.mrf.mxu0
      %v3186 = vadd.f32 0.0, %v3185
      %3187 = vmatmul.bf16.gmra.mxu0 %v1353
      %v3188 = vpop.f32.mrf.mxu0
      %v3189 = vadd.f32 0.0, %v3188
      %v3190 = vpop.f32.mrf.mxu0
      %v3191 = vadd.f32 0.0, %v3190
      %3192 = vmatmul.bf16.gmra.mxu0 %v1356
      %v3193 = vpop.f32.mrf.mxu0
      %v3194 = vadd.f32 0.0, %v3193
      %v3195 = vpop.f32.mrf.mxu0
      %v3196 = vadd.f32 0.0, %v3195
      %3197 = vdwg.mxu0
      %v3198 = vadd.f32 %v3030, %v3089
      %v3199 = vadd.f32 %v3031, %v3091
      %v3200 = vadd.f32 %v3032, %v3094
      %v3201 = vadd.f32 %v3033, %v3096
      %v3202 = vadd.f32 %v3034, %v3099
      %v3203 = vadd.f32 %v3035, %v3101
      %v3204 = vadd.f32 %v3036, %v3104
      %v3205 = vadd.f32 %v3037, %v3106
      %v3206 = vadd.f32 %v3038, %v3109
      %v3207 = vadd.f32 %v3039, %v3111
      %v3208 = vadd.f32 %v3040, %v3114
      %v3209 = vadd.f32 %v3041, %v3116
      %v3210 = vadd.f32 %v3042, %v3119
      %v3211 = vadd.f32 %v3043, %v3121
      %v3212 = vadd.f32 %v3044, %v3124
      %v3213 = vadd.f32 %v3045, %v3126
      %v3214 = vadd.f32 %v3046, %v3129
      %v3215 = vadd.f32 %v3047, %v3131
      %v3216 = vadd.f32 %v3048, %v3134
      %v3217 = vadd.f32 %v3049, %v3136
      %v3218 = vadd.f32 %v3050, %v3139
      %v3219 = vadd.f32 %v3051, %v3141
      %v3220 = vadd.f32 %v3052, %v3144
      %v3221 = vadd.f32 %v3053, %v3146
      %v3222 = vadd.f32 %v3054, %v3149
      %v3223 = vadd.f32 %v3055, %v3151
      %v3224 = vadd.f32 %v3056, %v3154
      %v3225 = vadd.f32 %v3057, %v3156
      %v3226 = vadd.f32 %v3058, %v3159
      %v3227 = vadd.f32 %v3059, %v3161
      %v3228 = vadd.f32 %v3060, %v3164
      %v3229 = vadd.f32 %v3061, %v3166
      %v3230 = vadd.f32 %v3062, %v3169
      %v3231 = vadd.f32 %v3063, %v3171
      %v3232 = vadd.f32 %v3064, %v3174
      %v3233 = vadd.f32 %v3065, %v3176
      %v3234 = vadd.f32 %v3066, %v3179
      %v3235 = vadd.f32 %v3067, %v3181
      %v3236 = vadd.f32 %v3068, %v3184
      %v3237 = vadd.f32 %v3069, %v3186
      %v3238 = vadd.f32 %v3070, %v3189
      %v3239 = vadd.f32 %v3071, %v3191
      %v3240 = vadd.f32 %v3072, %v3194
      %v3241 = vadd.f32 %v3073, %v3196
      %v3242 = vld [vmem:[#allocation2 + $0x20] sm:$0x8]
      %s3243 = scalar_lea.vmem %s4, 10
      %v3244 = vld [vmem:[%s3243] sm:$0x3]
      %v3246 = vunpack.c.l.b16 %v3242
      %v3247 = vpack.c.b16 %v1017, %v3246
      %v3248 = vrot.slane %v3247, 3
      %v3249 = vrot.slane %v1062, 3
      %v3250 = vsel %vm2300, %v3248, %v3249
      %v3251 = vrot.slane %v1063, 3
      %v3252 = vsel %vm2300, %v3249, %v3251
      %v3253 = vrot.slane %v1064, 3
      %v3254 = vsel %vm2300, %v3251, %v3253
      %v3255 = vrot.slane %v1065, 3
      %v3256 = vsel %vm2300, %v3253, %v3255
      %v3257 = vrot.slane %v1066, 3
      %v3258 = vsel %vm2300, %v3255, %v3257
      %v3259 = vrot.slane %v1067, 3
      %v3260 = vsel %vm2300, %v3257, %v3259
      %v3261 = vrot.slane %v1068, 3
      %v3262 = vsel %vm2300, %v3259, %v3261
      %v3263 = vrot.slane %v1069, 3
      %v3264 = vsel %vm2300, %v3261, %v3263
      %v3265 = vrot.slane %v1070, 3
      %v3266 = vsel %vm2300, %v3263, %v3265
      %v3267 = vrot.slane %v1071, 3
      %v3268 = vsel %vm2300, %v3265, %v3267
      %v3269 = vrot.slane %v1072, 3
      %v3270 = vsel %vm2300, %v3267, %v3269
      %v3271 = vrot.slane %v1073, 3
      %v3272 = vsel %vm2300, %v3269, %v3271
      %v3273 = vrot.slane %v1074, 3
      %v3274 = vsel %vm2300, %v3271, %v3273
      %v3275 = vrot.slane %v1075, 3
      %v3276 = vsel %vm2300, %v3273, %v3275
      %v3277 = vrot.slane %v1076, 3
      %v3278 = vsel %vm2300, %v3275, %v3277
      %v3279 = vrot.slane %v1077, 3
      %v3280 = vsel %vm2300, %v3277, %v3279
      %v3281 = vrot.slane %v1078, 3
      %v3282 = vsel %vm2300, %v3279, %v3281
      %v3283 = vrot.slane %v1079, 3
      %v3284 = vsel %vm2300, %v3281, %v3283
      %v3285 = vrot.slane %v1080, 3
      %v3286 = vsel %vm2300, %v3283, %v3285
      %v3287 = vrot.slane %v1081, 3
      %v3288 = vsel %vm2300, %v3285, %v3287
      %v3289 = vrot.slane %v1082, 3
      %v3290 = vsel %vm2300, %v3287, %v3289
      %v3291 = vrot.slane %v1083, 3
      %v3292 = vsel %vm2300, %v3289, %v3291
      %v3294 = vsel %vm1291, %v3250, 0
      %v3297 = vsel %vm1291, %v3252, 0
      %v3300 = vsel %vm1291, %v3254, 0
      %v3303 = vsel %vm1291, %v3256, 0
      %v3306 = vsel %vm1291, %v3258, 0
      %v3309 = vsel %vm1291, %v3260, 0
      %v3312 = vsel %vm1291, %v3262, 0
      %v3315 = vsel %vm1291, %v3264, 0
      %v3318 = vsel %vm1291, %v3266, 0
      %v3321 = vsel %vm1291, %v3268, 0
      %v3324 = vsel %vm1291, %v3270, 0
      %v3327 = vsel %vm1291, %v3272, 0
      %v3330 = vsel %vm1291, %v3274, 0
      %v3333 = vsel %vm1291, %v3276, 0
      %v3336 = vsel %vm1291, %v3278, 0
      %v3339 = vsel %vm1291, %v3280, 0
      %v3342 = vsel %vm1291, %v3282, 0
      %v3345 = vsel %vm1291, %v3284, 0
      %v3348 = vsel %vm1291, %v3286, 0
      %v3351 = vsel %vm1291, %v3288, 0
      %v3354 = vsel %vm1291, %v3290, 0
      %v3357 = vsel %vm1291, %v3292, 0
      %v3360 = vsel %vm1358, %v3244, 0
      %3362 = vmatpush.bf16.msra.mxu0 0
      %3363 = vmatpush.bf16.msra.mxu0 0
      %3364 = vmatpush.bf16.msra.mxu0 0
      %3365 = vmatpush.bf16.msra.mxu0 0
      %3366 = vmatpush.bf16.msra.mxu0 0
      %3367 = vmatpush.bf16.msra.mxu0 0
      %3368 = vmatpush.bf16.msra.mxu0 0
      %3369 = vmatpush.bf16.msra.mxu0 %v3360
      %3370 = vmatmul.bf16.gmra.mxu0 %v3294
      %v3371 = vpop.f32.mrf.mxu0
      %v3372 = vadd.f32 0.0, %v3371
      %v3373 = vpop.f32.mrf.mxu0
      %v3374 = vadd.f32 0.0, %v3373
      %3375 = vmatmul.bf16.gmra.mxu0 %v3297
      %v3376 = vpop.f32.mrf.mxu0
      %v3377 = vadd.f32 0.0, %v3376
      %v3378 = vpop.f32.mrf.mxu0
      %v3379 = vadd.f32 0.0, %v3378
      %3380 = vmatmul.bf16.gmra.mxu0 %v3300
      %v3381 = vpop.f32.mrf.mxu0
      %v3382 = vadd.f32 0.0, %v3381
      %v3383 = vpop.f32.mrf.mxu0
      %v3384 = vadd.f32 0.0, %v3383
      %3385 = vmatmul.bf16.gmra.mxu0 %v3303
      %v3386 = vpop.f32.mrf.mxu0
      %v3387 = vadd.f32 0.0, %v3386
      %v3388 = vpop.f32.mrf.mxu0
      %v3389 = vadd.f32 0.0, %v3388
      %3390 = vmatmul.bf16.gmra.mxu0 %v3306
      %v3391 = vpop.f32.mrf.mxu0
      %v3392 = vadd.f32 0.0, %v3391
      %v3393 = vpop.f32.mrf.mxu0
      %v3394 = vadd.f32 0.0, %v3393
      %3395 = vmatmul.bf16.gmra.mxu0 %v3309
      %v3396 = vpop.f32.mrf.mxu0
      %v3397 = vadd.f32 0.0, %v3396
      %v3398 = vpop.f32.mrf.mxu0
      %v3399 = vadd.f32 0.0, %v3398
      %3400 = vmatmul.bf16.gmra.mxu0 %v3312
      %v3401 = vpop.f32.mrf.mxu0
      %v3402 = vadd.f32 0.0, %v3401
      %v3403 = vpop.f32.mrf.mxu0
      %v3404 = vadd.f32 0.0, %v3403
      %3405 = vmatmul.bf16.gmra.mxu0 %v3315
      %v3406 = vpop.f32.mrf.mxu0
      %v3407 = vadd.f32 0.0, %v3406
      %v3408 = vpop.f32.mrf.mxu0
      %v3409 = vadd.f32 0.0, %v3408
      %3410 = vmatmul.bf16.gmra.mxu0 %v3318
      %v3411 = vpop.f32.mrf.mxu0
      %v3412 = vadd.f32 0.0, %v3411
      %v3413 = vpop.f32.mrf.mxu0
      %v3414 = vadd.f32 0.0, %v3413
      %3415 = vmatmul.bf16.gmra.mxu0 %v3321
      %v3416 = vpop.f32.mrf.mxu0
      %v3417 = vadd.f32 0.0, %v3416
      %v3418 = vpop.f32.mrf.mxu0
      %v3419 = vadd.f32 0.0, %v3418
      %3420 = vmatmul.bf16.gmra.mxu0 %v3324
      %v3421 = vpop.f32.mrf.mxu0
      %v3422 = vadd.f32 0.0, %v3421
      %v3423 = vpop.f32.mrf.mxu0
      %v3424 = vadd.f32 0.0, %v3423
      %3425 = vmatmul.bf16.gmra.mxu0 %v3327
      %v3426 = vpop.f32.mrf.mxu0
      %v3427 = vadd.f32 0.0, %v3426
      %v3428 = vpop.f32.mrf.mxu0
      %v3429 = vadd.f32 0.0, %v3428
      %3430 = vmatmul.bf16.gmra.mxu0 %v3330
      %v3431 = vpop.f32.mrf.mxu0
      %v3432 = vadd.f32 0.0, %v3431
      %v3433 = vpop.f32.mrf.mxu0
      %v3434 = vadd.f32 0.0, %v3433
      %3435 = vmatmul.bf16.gmra.mxu0 %v3333
      %v3436 = vpop.f32.mrf.mxu0
      %v3437 = vadd.f32 0.0, %v3436
      %v3438 = vpop.f32.mrf.mxu0
      %v3439 = vadd.f32 0.0, %v3438
      %3440 = vmatmul.bf16.gmra.mxu0 %v3336
      %v3441 = vpop.f32.mrf.mxu0
      %v3442 = vadd.f32 0.0, %v3441
      %v3443 = vpop.f32.mrf.mxu0
      %v3444 = vadd.f32 0.0, %v3443
      %3445 = vmatmul.bf16.gmra.mxu0 %v3339
      %v3446 = vpop.f32.mrf.mxu0
      %v3447 = vadd.f32 0.0, %v3446
      %v3448 = vpop.f32.mrf.mxu0
      %v3449 = vadd.f32 0.0, %v3448
      %3450 = vmatmul.bf16.gmra.mxu0 %v3342
      %v3451 = vpop.f32.mrf.mxu0
      %v3452 = vadd.f32 0.0, %v3451
      %v3453 = vpop.f32.mrf.mxu0
      %v3454 = vadd.f32 0.0, %v3453
      %3455 = vmatmul.bf16.gmra.mxu0 %v3345
      %v3456 = vpop.f32.mrf.mxu0
      %v3457 = vadd.f32 0.0, %v3456
      %v3458 = vpop.f32.mrf.mxu0
      %v3459 = vadd.f32 0.0, %v3458
      %3460 = vmatmul.bf16.gmra.mxu0 %v3348
      %v3461 = vpop.f32.mrf.mxu0
      %v3462 = vadd.f32 0.0, %v3461
      %v3463 = vpop.f32.mrf.mxu0
      %v3464 = vadd.f32 0.0, %v3463
      %3465 = vmatmul.bf16.gmra.mxu0 %v3351
      %v3466 = vpop.f32.mrf.mxu0
      %v3467 = vadd.f32 0.0, %v3466
      %v3468 = vpop.f32.mrf.mxu0
      %v3469 = vadd.f32 0.0, %v3468
      %3470 = vmatmul.bf16.gmra.mxu0 %v3354
      %v3471 = vpop.f32.mrf.mxu0
      %v3472 = vadd.f32 0.0, %v3471
      %v3473 = vpop.f32.mrf.mxu0
      %v3474 = vadd.f32 0.0, %v3473
      %3475 = vmatmul.bf16.gmra.mxu0 %v3357
      %v3476 = vpop.f32.mrf.mxu0
      %v3477 = vadd.f32 0.0, %v3476
      %v3478 = vpop.f32.mrf.mxu0
      %v3479 = vadd.f32 0.0, %v3478
      %3480 = vdwg.mxu0
      %v3481 = vadd.f32 %v3198, %v3372
      %v3482 = vadd.f32 %v3199, %v3374
      %v3483 = vadd.f32 %v3200, %v3377
      %v3484 = vadd.f32 %v3201, %v3379
      %v3485 = vadd.f32 %v3202, %v3382
      %v3486 = vadd.f32 %v3203, %v3384
      %v3487 = vadd.f32 %v3204, %v3387
      %v3488 = vadd.f32 %v3205, %v3389
      %v3489 = vadd.f32 %v3206, %v3392
      %v3490 = vadd.f32 %v3207, %v3394
      %v3491 = vadd.f32 %v3208, %v3397
      %v3492 = vadd.f32 %v3209, %v3399
      %v3493 = vadd.f32 %v3210, %v3402
      %v3494 = vadd.f32 %v3211, %v3404
      %v3495 = vadd.f32 %v3212, %v3407
      %v3496 = vadd.f32 %v3213, %v3409
      %v3497 = vadd.f32 %v3214, %v3412
      %v3498 = vadd.f32 %v3215, %v3414
      %v3499 = vadd.f32 %v3216, %v3417
      %v3500 = vadd.f32 %v3217, %v3419
      %v3501 = vadd.f32 %v3218, %v3422
      %v3502 = vadd.f32 %v3219, %v3424
      %v3503 = vadd.f32 %v3220, %v3427
      %v3504 = vadd.f32 %v3221, %v3429
      %v3505 = vadd.f32 %v3222, %v3432
      %v3506 = vadd.f32 %v3223, %v3434
      %v3507 = vadd.f32 %v3224, %v3437
      %v3508 = vadd.f32 %v3225, %v3439
      %v3509 = vadd.f32 %v3226, %v3442
      %v3510 = vadd.f32 %v3227, %v3444
      %v3511 = vadd.f32 %v3228, %v3447
      %v3512 = vadd.f32 %v3229, %v3449
      %v3513 = vadd.f32 %v3230, %v3452
      %v3514 = vadd.f32 %v3231, %v3454
      %v3515 = vadd.f32 %v3232, %v3457
      %v3516 = vadd.f32 %v3233, %v3459
      %v3517 = vadd.f32 %v3234, %v3462
      %v3518 = vadd.f32 %v3235, %v3464
      %v3519 = vadd.f32 %v3236, %v3467
      %v3520 = vadd.f32 %v3237, %v3469
      %v3521 = vadd.f32 %v3238, %v3472
      %v3522 = vadd.f32 %v3239, %v3474
      %v3523 = vadd.f32 %v3240, %v3477
      %v3524 = vadd.f32 %v3241, %v3479
      %v3525 = vld [vmem:[#allocation2 + $0x2c] sm:$0xe]
      %v3526 = vld [vmem:[#allocation2 + $0x30] sm:$0xf]
      %v3527 = vld [vmem:[#allocation2 + $0x34] sm:$0xf]
      %v3528 = vld [vmem:[#allocation2 + $0x38] sm:$0xf]
      %v3529 = vld [vmem:[#allocation2 + $0x3c] sm:$0xf]
      %v3530 = vld [vmem:[#allocation2 + $0x40] sm:$0xf]
      %v3531 = vld [vmem:[#allocation2 + $0x44] sm:$0xf]
      %v3532 = vld [vmem:[#allocation2 + $0x48] sm:$0xf]
      %v3533 = vld [vmem:[#allocation2 + $0x4c] sm:$0xf]
      %v3534 = vld [vmem:[#allocation2 + $0x50] sm:$0xf]
      %v3535 = vld [vmem:[#allocation2 + $0x54] sm:$0xf]
      %v3536 = vld [vmem:[#allocation2 + $0x58] sm:$0xf]
      %v3537 = vld [vmem:[#allocation2 + $0x5c] sm:$0xf]
      %v3538 = vld [vmem:[#allocation2 + $0x60] sm:$0xf]
      %v3539 = vld [vmem:[#allocation2 + $0x64] sm:$0xf]
      %v3540 = vld [vmem:[#allocation2 + $0x68] sm:$0xf]
      %v3541 = vld [vmem:[#allocation2 + $0x6c] sm:$0xf]
      %v3542 = vld [vmem:[#allocation2 + $0x70] sm:$0xf]
      %v3543 = vld [vmem:[#allocation2 + $0x74] sm:$0xf]
      %v3544 = vld [vmem:[#allocation2 + $0x78] sm:$0xf]
      %v3545 = vld [vmem:[#allocation2 + $0x7c] sm:$0xf]
      %v3546 = vld [vmem:[#allocation2 + $0x80] sm:$0xf]
      %v3547 = vld [vmem:[#allocation2 + $0x84] sm:$0xf]
      %v3548 = vld [vmem:[#allocation2 + $0x88] sm:$0xf]
      %v3549 = vld [vmem:[#allocation2 + $0x8c] sm:$0xf]
      %v3550 = vld [vmem:[#allocation2 + $0x90] sm:$0xf]
      %v3551 = vld [vmem:[#allocation2 + $0x94] sm:$0xf]
      %v3552 = vld [vmem:[#allocation2 + $0x98] sm:$0xf]
      %v3553 = vld [vmem:[#allocation2 + $0x9c] sm:$0xf]
      %v3554 = vld [vmem:[#allocation2 + $0xa0] sm:$0xf]
      %v3555 = vld [vmem:[#allocation2 + $0xa4] sm:$0xf]
      %v3556 = vld [vmem:[#allocation2 + $0xa8] sm:$0xf]
      %v3557 = vld [vmem:[#allocation2 + $0xac] sm:$0xf]
      %v3558 = vld [vmem:[#allocation2 + $0xb0] sm:$0xf]
      %v3559 = vld [vmem:[#allocation2 + $0xb4] sm:$0xf]
      %v3560 = vld [vmem:[#allocation2 + $0xb8] sm:$0xf]
      %v3561 = vld [vmem:[#allocation2 + $0xbc] sm:$0xf]
      %v3562 = vld [vmem:[#allocation2 + $0xc0] sm:$0xf]
      %v3563 = vld [vmem:[#allocation2 + $0xc4] sm:$0xf]
      %v3564 = vld [vmem:[#allocation2 + $0xc8] sm:$0xf]
      %v3565 = vld [vmem:[#allocation2 + $0xcc] sm:$0xf]
      %v3566 = vld [vmem:[#allocation2 + $0xd0] sm:$0xf]
      %v3567 = vld [vmem:[#allocation2 + $0xd4] sm:$0xf]
      %v3568 = vld [vmem:[#allocation2 + $0xd8] sm:$0xf]
      %v3569 = vld [vmem:[#allocation2 + $0xdc] sm:$0x1]
      %s3570 = scalar_lea.vmem %s4, 12
      %v3571 = vld [vmem:[%s3570] sm:$0x3]
      %v3617 = vunpack.c.l.b16 %v3525
      %v3618 = vunpack.c.l.b16 %v3526
      %v3619 = vunpack.c.l.b16 %v3527
      %v3620 = vunpack.c.l.b16 %v3528
      %v3621 = vunpack.c.l.b16 %v3529
      %v3622 = vunpack.c.l.b16 %v3530
      %v3623 = vunpack.c.l.b16 %v3531
      %v3624 = vunpack.c.l.b16 %v3532
      %v3625 = vunpack.c.l.b16 %v3533
      %v3626 = vunpack.c.l.b16 %v3534
      %v3627 = vunpack.c.l.b16 %v3535
      %v3628 = vunpack.c.l.b16 %v3536
      %v3629 = vunpack.c.l.b16 %v3537
      %v3630 = vunpack.c.l.b16 %v3538
      %v3631 = vunpack.c.l.b16 %v3539
      %v3632 = vunpack.c.l.b16 %v3540
      %v3633 = vunpack.c.l.b16 %v3541
      %v3634 = vunpack.c.l.b16 %v3542
      %v3635 = vunpack.c.l.b16 %v3543
      %v3636 = vunpack.c.l.b16 %v3544
      %v3637 = vunpack.c.l.b16 %v3545
      %v3638 = vunpack.c.l.b16 %v3546
      %v3639 = vunpack.c.l.b16 %v3547
      %v3640 = vunpack.c.l.b16 %v3548
      %v3641 = vunpack.c.l.b16 %v3549
      %v3642 = vunpack.c.l.b16 %v3550
      %v3643 = vunpack.c.l.b16 %v3551
      %v3644 = vunpack.c.l.b16 %v3552
      %v3645 = vunpack.c.l.b16 %v3553
      %v3646 = vunpack.c.l.b16 %v3554
      %v3647 = vunpack.c.l.b16 %v3555
      %v3648 = vunpack.c.l.b16 %v3556
      %v3649 = vunpack.c.l.b16 %v3557
      %v3650 = vunpack.c.l.b16 %v3558
      %v3651 = vunpack.c.l.b16 %v3559
      %v3652 = vunpack.c.l.b16 %v3560
      %v3653 = vunpack.c.l.b16 %v3561
      %v3654 = vunpack.c.l.b16 %v3562
      %v3655 = vunpack.c.l.b16 %v3563
      %v3656 = vunpack.c.l.b16 %v3564
      %v3657 = vunpack.c.l.b16 %v3565
      %v3658 = vunpack.c.l.b16 %v3566
      %v3659 = vunpack.c.l.b16 %v3567
      %v3660 = vunpack.c.l.b16 %v3568
      %v3661 = vunpack.c.l.b16 %v3569
      %v3662 = vpack.c.b16 %v3618, %v3617
      %v3663 = vpack.c.b16 %v3620, %v3619
      %v3664 = vpack.c.b16 %v3622, %v3621
      %v3665 = vpack.c.b16 %v3624, %v3623
      %v3666 = vpack.c.b16 %v3626, %v3625
      %v3667 = vpack.c.b16 %v3628, %v3627
      %v3668 = vpack.c.b16 %v3630, %v3629
      %v3669 = vpack.c.b16 %v3632, %v3631
      %v3670 = vpack.c.b16 %v3634, %v3633
      %v3671 = vpack.c.b16 %v3636, %v3635
      %v3672 = vpack.c.b16 %v3638, %v3637
      %v3673 = vpack.c.b16 %v3640, %v3639
      %v3674 = vpack.c.b16 %v3642, %v3641
      %v3675 = vpack.c.b16 %v3644, %v3643
      %v3676 = vpack.c.b16 %v3646, %v3645
      %v3677 = vpack.c.b16 %v3648, %v3647
      %v3678 = vpack.c.b16 %v3650, %v3649
      %v3679 = vpack.c.b16 %v3652, %v3651
      %v3680 = vpack.c.b16 %v3654, %v3653
      %v3681 = vpack.c.b16 %v3656, %v3655
      %v3682 = vpack.c.b16 %v3658, %v3657
      %v3683 = vpack.c.b16 %v3660, %v3659
      %v3684 = vpack.c.b16 %v3661, %v3661
      %vm3685 = vcmask 1046528
      %v3686 = vrot.slane %v3662, 1
      %v3687 = vrot.slane %v3663, 1
      %v3688 = vsel %vm3685, %v3686, %v3687
      %v3689 = vrot.slane %v3664, 1
      %v3690 = vsel %vm3685, %v3687, %v3689
      %v3691 = vrot.slane %v3665, 1
      %v3692 = vsel %vm3685, %v3689, %v3691
      %v3693 = vrot.slane %v3666, 1
      %v3694 = vsel %vm3685, %v3691, %v3693
      %v3695 = vrot.slane %v3667, 1
      %v3696 = vsel %vm3685, %v3693, %v3695
      %v3697 = vrot.slane %v3668, 1
      %v3698 = vsel %vm3685, %v3695, %v3697
      %v3699 = vrot.slane %v3669, 1
      %v3700 = vsel %vm3685, %v3697, %v3699
      %v3701 = vrot.slane %v3670, 1
      %v3702 = vsel %vm3685, %v3699, %v3701
      %v3703 = vrot.slane %v3671, 1
      %v3704 = vsel %vm3685, %v3701, %v3703
      %v3705 = vrot.slane %v3672, 1
      %v3706 = vsel %vm3685, %v3703, %v3705
      %v3707 = vrot.slane %v3673, 1
      %v3708 = vsel %vm3685, %v3705, %v3707
      %v3709 = vrot.slane %v3674, 1
      %v3710 = vsel %vm3685, %v3707, %v3709
      %v3711 = vrot.slane %v3675, 1
      %v3712 = vsel %vm3685, %v3709, %v3711
      %v3713 = vrot.slane %v3676, 1
      %v3714 = vsel %vm3685, %v3711, %v3713
      %v3715 = vrot.slane %v3677, 1
      %v3716 = vsel %vm3685, %v3713, %v3715
      %v3717 = vrot.slane %v3678, 1
      %v3718 = vsel %vm3685, %v3715, %v3717
      %v3719 = vrot.slane %v3679, 1
      %v3720 = vsel %vm3685, %v3717, %v3719
      %v3721 = vrot.slane %v3680, 1
      %v3722 = vsel %vm3685, %v3719, %v3721
      %v3723 = vrot.slane %v3681, 1
      %v3724 = vsel %vm3685, %v3721, %v3723
      %v3725 = vrot.slane %v3682, 1
      %v3726 = vsel %vm3685, %v3723, %v3725
      %v3727 = vrot.slane %v3683, 1
      %v3728 = vsel %vm3685, %v3725, %v3727
      %v3729 = vrot.slane %v3684, 1
      %v3730 = vsel %vm3685, %v3727, %v3729
      %v3732 = vsel %vm1291, %v3688, 0
      %v3735 = vsel %vm1291, %v3690, 0
      %v3738 = vsel %vm1291, %v3692, 0
      %v3741 = vsel %vm1291, %v3694, 0
      %v3744 = vsel %vm1291, %v3696, 0
      %v3747 = vsel %vm1291, %v3698, 0
      %v3750 = vsel %vm1291, %v3700, 0
      %v3753 = vsel %vm1291, %v3702, 0
      %v3756 = vsel %vm1291, %v3704, 0
      %v3759 = vsel %vm1291, %v3706, 0
      %v3762 = vsel %vm1291, %v3708, 0
      %v3765 = vsel %vm1291, %v3710, 0
      %v3768 = vsel %vm1291, %v3712, 0
      %v3771 = vsel %vm1291, %v3714, 0
      %v3774 = vsel %vm1291, %v3716, 0
      %v3777 = vsel %vm1291, %v3718, 0
      %v3780 = vsel %vm1291, %v3720, 0
      %v3783 = vsel %vm1291, %v3722, 0
      %v3786 = vsel %vm1291, %v3724, 0
      %v3789 = vsel %vm1291, %v3726, 0
      %v3792 = vsel %vm1291, %v3728, 0
      %v3795 = vsel %vm1291, %v3730, 0
      %v3798 = vsel %vm1358, %v3571, 0
      %3800 = vmatpush.bf16.msra.mxu0 0
      %3801 = vmatpush.bf16.msra.mxu0 0
      %3802 = vmatpush.bf16.msra.mxu0 0
      %3803 = vmatpush.bf16.msra.mxu0 0
      %3804 = vmatpush.bf16.msra.mxu0 0
      %3805 = vmatpush.bf16.msra.mxu0 0
      %3806 = vmatpush.bf16.msra.mxu0 0
      %3807 = vmatpush.bf16.msra.mxu0 %v3798
      %3808 = vmatmul.bf16.gmra.mxu0 %v3732
      %v3809 = vpop.f32.mrf.mxu0
      %v3810 = vadd.f32 0.0, %v3809
      %v3811 = vpop.f32.mrf.mxu0
      %v3812 = vadd.f32 0.0, %v3811
      %3813 = vmatmul.bf16.gmra.mxu0 %v3735
      %v3814 = vpop.f32.mrf.mxu0
      %v3815 = vadd.f32 0.0, %v3814
      %v3816 = vpop.f32.mrf.mxu0
      %v3817 = vadd.f32 0.0, %v3816
      %3818 = vmatmul.bf16.gmra.mxu0 %v3738
      %v3819 = vpop.f32.mrf.mxu0
      %v3820 = vadd.f32 0.0, %v3819
      %v3821 = vpop.f32.mrf.mxu0
      %v3822 = vadd.f32 0.0, %v3821
      %3823 = vmatmul.bf16.gmra.mxu0 %v3741
      %v3824 = vpop.f32.mrf.mxu0
      %v3825 = vadd.f32 0.0, %v3824
      %v3826 = vpop.f32.mrf.mxu0
      %v3827 = vadd.f32 0.0, %v3826
      %3828 = vmatmul.bf16.gmra.mxu0 %v3744
      %v3829 = vpop.f32.mrf.mxu0
      %v3830 = vadd.f32 0.0, %v3829
      %v3831 = vpop.f32.mrf.mxu0
      %v3832 = vadd.f32 0.0, %v3831
      %3833 = vmatmul.bf16.gmra.mxu0 %v3747
      %v3834 = vpop.f32.mrf.mxu0
      %v3835 = vadd.f32 0.0, %v3834
      %v3836 = vpop.f32.mrf.mxu0
      %v3837 = vadd.f32 0.0, %v3836
      %3838 = vmatmul.bf16.gmra.mxu0 %v3750
      %v3839 = vpop.f32.mrf.mxu0
      %v3840 = vadd.f32 0.0, %v3839
      %v3841 = vpop.f32.mrf.mxu0
      %v3842 = vadd.f32 0.0, %v3841
      %3843 = vmatmul.bf16.gmra.mxu0 %v3753
      %v3844 = vpop.f32.mrf.mxu0
      %v3845 = vadd.f32 0.0, %v3844
      %v3846 = vpop.f32.mrf.mxu0
      %v3847 = vadd.f32 0.0, %v3846
      %3848 = vmatmul.bf16.gmra.mxu0 %v3756
      %v3849 = vpop.f32.mrf.mxu0
      %v3850 = vadd.f32 0.0, %v3849
      %v3851 = vpop.f32.mrf.mxu0
      %v3852 = vadd.f32 0.0, %v3851
      %3853 = vmatmul.bf16.gmra.mxu0 %v3759
      %v3854 = vpop.f32.mrf.mxu0
      %v3855 = vadd.f32 0.0, %v3854
      %v3856 = vpop.f32.mrf.mxu0
      %v3857 = vadd.f32 0.0, %v3856
      %3858 = vmatmul.bf16.gmra.mxu0 %v3762
      %v3859 = vpop.f32.mrf.mxu0
      %v3860 = vadd.f32 0.0, %v3859
      %v3861 = vpop.f32.mrf.mxu0
      %v3862 = vadd.f32 0.0, %v3861
      %3863 = vmatmul.bf16.gmra.mxu0 %v3765
      %v3864 = vpop.f32.mrf.mxu0
      %v3865 = vadd.f32 0.0, %v3864
      %v3866 = vpop.f32.mrf.mxu0
      %v3867 = vadd.f32 0.0, %v3866
      %3868 = vmatmul.bf16.gmra.mxu0 %v3768
      %v3869 = vpop.f32.mrf.mxu0
      %v3870 = vadd.f32 0.0, %v3869
      %v3871 = vpop.f32.mrf.mxu0
      %v3872 = vadd.f32 0.0, %v3871
      %3873 = vmatmul.bf16.gmra.mxu0 %v3771
      %v3874 = vpop.f32.mrf.mxu0
      %v3875 = vadd.f32 0.0, %v3874
      %v3876 = vpop.f32.mrf.mxu0
      %v3877 = vadd.f32 0.0, %v3876
      %3878 = vmatmul.bf16.gmra.mxu0 %v3774
      %v3879 = vpop.f32.mrf.mxu0
      %v3880 = vadd.f32 0.0, %v3879
      %v3881 = vpop.f32.mrf.mxu0
      %v3882 = vadd.f32 0.0, %v3881
      %3883 = vmatmul.bf16.gmra.mxu0 %v3777
      %v3884 = vpop.f32.mrf.mxu0
      %v3885 = vadd.f32 0.0, %v3884
      %v3886 = vpop.f32.mrf.mxu0
      %v3887 = vadd.f32 0.0, %v3886
      %3888 = vmatmul.bf16.gmra.mxu0 %v3780
      %v3889 = vpop.f32.mrf.mxu0
      %v3890 = vadd.f32 0.0, %v3889
      %v3891 = vpop.f32.mrf.mxu0
      %v3892 = vadd.f32 0.0, %v3891
      %3893 = vmatmul.bf16.gmra.mxu0 %v3783
      %v3894 = vpop.f32.mrf.mxu0
      %v3895 = vadd.f32 0.0, %v3894
      %v3896 = vpop.f32.mrf.mxu0
      %v3897 = vadd.f32 0.0, %v3896
      %3898 = vmatmul.bf16.gmra.mxu0 %v3786
      %v3899 = vpop.f32.mrf.mxu0
      %v3900 = vadd.f32 0.0, %v3899
      %v3901 = vpop.f32.mrf.mxu0
      %v3902 = vadd.f32 0.0, %v3901
      %3903 = vmatmul.bf16.gmra.mxu0 %v3789
      %v3904 = vpop.f32.mrf.mxu0
      %v3905 = vadd.f32 0.0, %v3904
      %v3906 = vpop.f32.mrf.mxu0
      %v3907 = vadd.f32 0.0, %v3906
      %3908 = vmatmul.bf16.gmra.mxu0 %v3792
      %v3909 = vpop.f32.mrf.mxu0
      %v3910 = vadd.f32 0.0, %v3909
      %v3911 = vpop.f32.mrf.mxu0
      %v3912 = vadd.f32 0.0, %v3911
      %3913 = vmatmul.bf16.gmra.mxu0 %v3795
      %v3914 = vpop.f32.mrf.mxu0
      %v3915 = vadd.f32 0.0, %v3914
      %v3916 = vpop.f32.mrf.mxu0
      %v3917 = vadd.f32 0.0, %v3916
      %3918 = vdwg.mxu0
      %v3919 = vadd.f32 %v3481, %v3810
      %v3920 = vadd.f32 %v3482, %v3812
      %v3921 = vadd.f32 %v3483, %v3815
      %v3922 = vadd.f32 %v3484, %v3817
      %v3923 = vadd.f32 %v3485, %v3820
      %v3924 = vadd.f32 %v3486, %v3822
      %v3925 = vadd.f32 %v3487, %v3825
      %v3926 = vadd.f32 %v3488, %v3827
      %v3927 = vadd.f32 %v3489, %v3830
      %v3928 = vadd.f32 %v3490, %v3832
      %v3929 = vadd.f32 %v3491, %v3835
      %v3930 = vadd.f32 %v3492, %v3837
      %v3931 = vadd.f32 %v3493, %v3840
      %v3932 = vadd.f32 %v3494, %v3842
      %v3933 = vadd.f32 %v3495, %v3845
      %v3934 = vadd.f32 %v3496, %v3847
      %v3935 = vadd.f32 %v3497, %v3850
      %v3936 = vadd.f32 %v3498, %v3852
      %v3937 = vadd.f32 %v3499, %v3855
      %v3938 = vadd.f32 %v3500, %v3857
      %v3939 = vadd.f32 %v3501, %v3860
      %v3940 = vadd.f32 %v3502, %v3862
      %v3941 = vadd.f32 %v3503, %v3865
      %v3942 = vadd.f32 %v3504, %v3867
      %v3943 = vadd.f32 %v3505, %v3870
      %v3944 = vadd.f32 %v3506, %v3872
      %v3945 = vadd.f32 %v3507, %v3875
      %v3946 = vadd.f32 %v3508, %v3877
      %v3947 = vadd.f32 %v3509, %v3880
      %v3948 = vadd.f32 %v3510, %v3882
      %v3949 = vadd.f32 %v3511, %v3885
      %v3950 = vadd.f32 %v3512, %v3887
      %v3951 = vadd.f32 %v3513, %v3890
      %v3952 = vadd.f32 %v3514, %v3892
      %v3953 = vadd.f32 %v3515, %v3895
      %v3954 = vadd.f32 %v3516, %v3897
      %v3955 = vadd.f32 %v3517, %v3900
      %v3956 = vadd.f32 %v3518, %v3902
      %v3957 = vadd.f32 %v3519, %v3905
      %v3958 = vadd.f32 %v3520, %v3907
      %v3959 = vadd.f32 %v3521, %v3910
      %v3960 = vadd.f32 %v3522, %v3912
      %v3961 = vadd.f32 %v3523, %v3915
      %v3962 = vadd.f32 %v3524, %v3917
      %v3963 = vld [vmem:[#allocation2 + $0xdc] sm:$0x3]
      %s3964 = scalar_lea.vmem %s4, 14
      %v3965 = vld [vmem:[%s3964] sm:$0x3]
      %v3967 = vunpack.c.l.b16 %v3963
      %v3968 = vpack.c.b16 %v3967, %v3967
      %vm3969 = vsmask.f32 6400
      %v3971 = vshrl.u32 %v3662, 16
      %v3973 = vrot.slane %v3971, 1
      %v3974 = vshll.u32 %v3662, 16
      %v3976 = vrot.slane %v3974, 2
      %v3977 = vor.u32 %v3973, %v3976
      %v3979 = vshrl.u32 %v3663, 16
      %v3981 = vrot.slane %v3979, 1
      %v3982 = vshll.u32 %v3663, 16
      %v3984 = vrot.slane %v3982, 2
      %v3985 = vor.u32 %v3981, %v3984
      %v3986 = vsel %vm3969, %v3977, %v3985
      %v3988 = vshrl.u32 %v3664, 16
      %v3990 = vrot.slane %v3988, 1
      %v3991 = vshll.u32 %v3664, 16
      %v3993 = vrot.slane %v3991, 2
      %v3994 = vor.u32 %v3990, %v3993
      %v3995 = vsel %vm3969, %v3985, %v3994
      %v3997 = vshrl.u32 %v3665, 16
      %v3999 = vrot.slane %v3997, 1
      %v4000 = vshll.u32 %v3665, 16
      %v4002 = vrot.slane %v4000, 2
      %v4003 = vor.u32 %v3999, %v4002
      %v4004 = vsel %vm3969, %v3994, %v4003
      %v4006 = vshrl.u32 %v3666, 16
      %v4008 = vrot.slane %v4006, 1
      %v4009 = vshll.u32 %v3666, 16
      %v4011 = vrot.slane %v4009, 2
      %v4012 = vor.u32 %v4008, %v4011
      %v4013 = vsel %vm3969, %v4003, %v4012
      %v4015 = vshrl.u32 %v3667, 16
      %v4017 = vrot.slane %v4015, 1
      %v4018 = vshll.u32 %v3667, 16
      %v4020 = vrot.slane %v4018, 2
      %v4021 = vor.u32 %v4017, %v4020
      %v4022 = vsel %vm3969, %v4012, %v4021
      %v4024 = vshrl.u32 %v3668, 16
      %v4026 = vrot.slane %v4024, 1
      %v4027 = vshll.u32 %v3668, 16
      %v4029 = vrot.slane %v4027, 2
      %v4030 = vor.u32 %v4026, %v4029
      %v4031 = vsel %vm3969, %v4021, %v4030
      %v4033 = vshrl.u32 %v3669, 16
      %v4035 = vrot.slane %v4033, 1
      %v4036 = vshll.u32 %v3669, 16
      %v4038 = vrot.slane %v4036, 2
      %v4039 = vor.u32 %v4035, %v4038
      %v4040 = vsel %vm3969, %v4030, %v4039
      %v4042 = vshrl.u32 %v3670, 16
      %v4044 = vrot.slane %v4042, 1
      %v4045 = vshll.u32 %v3670, 16
      %v4047 = vrot.slane %v4045, 2
      %v4048 = vor.u32 %v4044, %v4047
      %v4049 = vsel %vm3969, %v4039, %v4048
      %v4051 = vshrl.u32 %v3671, 16
      %v4053 = vrot.slane %v4051, 1
      %v4054 = vshll.u32 %v3671, 16
      %v4056 = vrot.slane %v4054, 2
      %v4057 = vor.u32 %v4053, %v4056
      %v4058 = vsel %vm3969, %v4048, %v4057
      %v4060 = vshrl.u32 %v3672, 16
      %v4062 = vrot.slane %v4060, 1
      %v4063 = vshll.u32 %v3672, 16
      %v4065 = vrot.slane %v4063, 2
      %v4066 = vor.u32 %v4062, %v4065
      %v4067 = vsel %vm3969, %v4057, %v4066
      %v4069 = vshrl.u32 %v3673, 16
      %v4071 = vrot.slane %v4069, 1
      %v4072 = vshll.u32 %v3673, 16
      %v4074 = vrot.slane %v4072, 2
      %v4075 = vor.u32 %v4071, %v4074
      %v4076 = vsel %vm3969, %v4066, %v4075
      %v4078 = vshrl.u32 %v3674, 16
      %v4080 = vrot.slane %v4078, 1
      %v4081 = vshll.u32 %v3674, 16
      %v4083 = vrot.slane %v4081, 2
      %v4084 = vor.u32 %v4080, %v4083
      %v4085 = vsel %vm3969, %v4075, %v4084
      %v4087 = vshrl.u32 %v3675, 16
      %v4089 = vrot.slane %v4087, 1
      %v4090 = vshll.u32 %v3675, 16
      %v4092 = vrot.slane %v4090, 2
      %v4093 = vor.u32 %v4089, %v4092
      %v4094 = vsel %vm3969, %v4084, %v4093
      %v4096 = vshrl.u32 %v3676, 16
      %v4098 = vrot.slane %v4096, 1
      %v4099 = vshll.u32 %v3676, 16
      %v4101 = vrot.slane %v4099, 2
      %v4102 = vor.u32 %v4098, %v4101
      %v4103 = vsel %vm3969, %v4093, %v4102
      %v4105 = vshrl.u32 %v3677, 16
      %v4107 = vrot.slane %v4105, 1
      %v4108 = vshll.u32 %v3677, 16
      %v4110 = vrot.slane %v4108, 2
      %v4111 = vor.u32 %v4107, %v4110
      %v4112 = vsel %vm3969, %v4102, %v4111
      %v4114 = vshrl.u32 %v3678, 16
      %v4116 = vrot.slane %v4114, 1
      %v4117 = vshll.u32 %v3678, 16
      %v4119 = vrot.slane %v4117, 2
      %v4120 = vor.u32 %v4116, %v4119
      %v4121 = vsel %vm3969, %v4111, %v4120
      %v4123 = vshrl.u32 %v3679, 16
      %v4125 = vrot.slane %v4123, 1
      %v4126 = vshll.u32 %v3679, 16
      %v4128 = vrot.slane %v4126, 2
      %v4129 = vor.u32 %v4125, %v4128
      %v4130 = vsel %vm3969, %v4120, %v4129
      %v4132 = vshrl.u32 %v3680, 16
      %v4134 = vrot.slane %v4132, 1
      %v4135 = vshll.u32 %v3680, 16
      %v4137 = vrot.slane %v4135, 2
      %v4138 = vor.u32 %v4134, %v4137
      %v4139 = vsel %vm3969, %v4129, %v4138
      %v4141 = vshrl.u32 %v3681, 16
      %v4143 = vrot.slane %v4141, 1
      %v4144 = vshll.u32 %v3681, 16
      %v4146 = vrot.slane %v4144, 2
      %v4147 = vor.u32 %v4143, %v4146
      %v4148 = vsel %vm3969, %v4138, %v4147
      %v4150 = vshrl.u32 %v3682, 16
      %v4152 = vrot.slane %v4150, 1
      %v4153 = vshll.u32 %v3682, 16
      %v4155 = vrot.slane %v4153, 2
      %v4156 = vor.u32 %v4152, %v4155
      %v4157 = vsel %vm3969, %v4147, %v4156
      %v4159 = vshrl.u32 %v3683, 16
      %v4161 = vrot.slane %v4159, 1
      %v4162 = vshll.u32 %v3683, 16
      %v4164 = vrot.slane %v4162, 2
      %v4165 = vor.u32 %v4161, %v4164
      %v4166 = vsel %vm3969, %v4156, %v4165
      %v4168 = vshrl.u32 %v3968, 16
      %v4170 = vrot.slane %v4168, 1
      %v4171 = vshll.u32 %v3968, 16
      %v4173 = vrot.slane %v4171, 2
      %v4174 = vor.u32 %v4170, %v4173
      %v4175 = vsel %vm3969, %v4165, %v4174
      %v4177 = vsel %vm1291, %v3986, 0
      %v4180 = vsel %vm1291, %v3995, 0
      %v4183 = vsel %vm1291, %v4004, 0
      %v4186 = vsel %vm1291, %v4013, 0
      %v4189 = vsel %vm1291, %v4022, 0
      %v4192 = vsel %vm1291, %v4031, 0
      %v4195 = vsel %vm1291, %v4040, 0
      %v4198 = vsel %vm1291, %v4049, 0
      %v4201 = vsel %vm1291, %v4058, 0
      %v4204 = vsel %vm1291, %v4067, 0
      %v4207 = vsel %vm1291, %v4076, 0
      %v4210 = vsel %vm1291, %v4085, 0
      %v4213 = vsel %vm1291, %v4094, 0
      %v4216 = vsel %vm1291, %v4103, 0
      %v4219 = vsel %vm1291, %v4112, 0
      %v4222 = vsel %vm1291, %v4121, 0
      %v4225 = vsel %vm1291, %v4130, 0
      %v4228 = vsel %vm1291, %v4139, 0
      %v4231 = vsel %vm1291, %v4148, 0
      %v4234 = vsel %vm1291, %v4157, 0
      %v4237 = vsel %vm1291, %v4166, 0
      %v4240 = vsel %vm1291, %v4175, 0
      %v4243 = vsel %vm1358, %v3965, 0
      %4245 = vmatpush.bf16.msra.mxu0 0
      %4246 = vmatpush.bf16.msra.mxu0 0
      %4247 = vmatpush.bf16.msra.mxu0 0
      %4248 = vmatpush.bf16.msra.mxu0 0
      %4249 = vmatpush.bf16.msra.mxu0 0
      %4250 = vmatpush.bf16.msra.mxu0 0
      %4251 = vmatpush.bf16.msra.mxu0 0
      %4252 = vmatpush.bf16.msra.mxu0 %v4243
      %4253 = vmatmul.bf16.gmra.mxu0 %v4177
      %v4254 = vpop.f32.mrf.mxu0
      %v4255 = vadd.f32 0.0, %v4254
      %v4256 = vpop.f32.mrf.mxu0
      %v4257 = vadd.f32 0.0, %v4256
      %4258 = vmatmul.bf16.gmra.mxu0 %v4180
      %v4259 = vpop.f32.mrf.mxu0
      %v4260 = vadd.f32 0.0, %v4259
      %v4261 = vpop.f32.mrf.mxu0
      %v4262 = vadd.f32 0.0, %v4261
      %4263 = vmatmul.bf16.gmra.mxu0 %v4183
      %v4264 = vpop.f32.mrf.mxu0
      %v4265 = vadd.f32 0.0, %v4264
      %v4266 = vpop.f32.mrf.mxu0
      %v4267 = vadd.f32 0.0, %v4266
      %4268 = vmatmul.bf16.gmra.mxu0 %v4186
      %v4269 = vpop.f32.mrf.mxu0
      %v4270 = vadd.f32 0.0, %v4269
      %v4271 = vpop.f32.mrf.mxu0
      %v4272 = vadd.f32 0.0, %v4271
      %4273 = vmatmul.bf16.gmra.mxu0 %v4189
      %v4274 = vpop.f32.mrf.mxu0
      %v4275 = vadd.f32 0.0, %v4274
      %v4276 = vpop.f32.mrf.mxu0
      %v4277 = vadd.f32 0.0, %v4276
      %4278 = vmatmul.bf16.gmra.mxu0 %v4192
      %v4279 = vpop.f32.mrf.mxu0
      %v4280 = vadd.f32 0.0, %v4279
      %v4281 = vpop.f32.mrf.mxu0
      %v4282 = vadd.f32 0.0, %v4281
      %4283 = vmatmul.bf16.gmra.mxu0 %v4195
      %v4284 = vpop.f32.mrf.mxu0
      %v4285 = vadd.f32 0.0, %v4284
      %v4286 = vpop.f32.mrf.mxu0
      %v4287 = vadd.f32 0.0, %v4286
      %4288 = vmatmul.bf16.gmra.mxu0 %v4198
      %v4289 = vpop.f32.mrf.mxu0
      %v4290 = vadd.f32 0.0, %v4289
      %v4291 = vpop.f32.mrf.mxu0
      %v4292 = vadd.f32 0.0, %v4291
      %4293 = vmatmul.bf16.gmra.mxu0 %v4201
      %v4294 = vpop.f32.mrf.mxu0
      %v4295 = vadd.f32 0.0, %v4294
      %v4296 = vpop.f32.mrf.mxu0
      %v4297 = vadd.f32 0.0, %v4296
      %4298 = vmatmul.bf16.gmra.mxu0 %v4204
      %v4299 = vpop.f32.mrf.mxu0
      %v4300 = vadd.f32 0.0, %v4299
      %v4301 = vpop.f32.mrf.mxu0
      %v4302 = vadd.f32 0.0, %v4301
      %4303 = vmatmul.bf16.gmra.mxu0 %v4207
      %v4304 = vpop.f32.mrf.mxu0
      %v4305 = vadd.f32 0.0, %v4304
      %v4306 = vpop.f32.mrf.mxu0
      %v4307 = vadd.f32 0.0, %v4306
      %4308 = vmatmul.bf16.gmra.mxu0 %v4210
      %v4309 = vpop.f32.mrf.mxu0
      %v4310 = vadd.f32 0.0, %v4309
      %v4311 = vpop.f32.mrf.mxu0
      %v4312 = vadd.f32 0.0, %v4311
      %4313 = vmatmul.bf16.gmra.mxu0 %v4213
      %v4314 = vpop.f32.mrf.mxu0
      %v4315 = vadd.f32 0.0, %v4314
      %v4316 = vpop.f32.mrf.mxu0
      %v4317 = vadd.f32 0.0, %v4316
      %4318 = vmatmul.bf16.gmra.mxu0 %v4216
      %v4319 = vpop.f32.mrf.mxu0
      %v4320 = vadd.f32 0.0, %v4319
      %v4321 = vpop.f32.mrf.mxu0
      %v4322 = vadd.f32 0.0, %v4321
      %4323 = vmatmul.bf16.gmra.mxu0 %v4219
      %v4324 = vpop.f32.mrf.mxu0
      %v4325 = vadd.f32 0.0, %v4324
      %v4326 = vpop.f32.mrf.mxu0
      %v4327 = vadd.f32 0.0, %v4326
      %4328 = vmatmul.bf16.gmra.mxu0 %v4222
      %v4329 = vpop.f32.mrf.mxu0
      %v4330 = vadd.f32 0.0, %v4329
      %v4331 = vpop.f32.mrf.mxu0
      %v4332 = vadd.f32 0.0, %v4331
      %4333 = vmatmul.bf16.gmra.mxu0 %v4225
      %v4334 = vpop.f32.mrf.mxu0
      %v4335 = vadd.f32 0.0, %v4334
      %v4336 = vpop.f32.mrf.mxu0
      %v4337 = vadd.f32 0.0, %v4336
      %4338 = vmatmul.bf16.gmra.mxu0 %v4228
      %v4339 = vpop.f32.mrf.mxu0
      %v4340 = vadd.f32 0.0, %v4339
      %v4341 = vpop.f32.mrf.mxu0
      %v4342 = vadd.f32 0.0, %v4341
      %4343 = vmatmul.bf16.gmra.mxu0 %v4231
      %v4344 = vpop.f32.mrf.mxu0
      %v4345 = vadd.f32 0.0, %v4344
      %v4346 = vpop.f32.mrf.mxu0
      %v4347 = vadd.f32 0.0, %v4346
      %4348 = vmatmul.bf16.gmra.mxu0 %v4234
      %v4349 = vpop.f32.mrf.mxu0
      %v4350 = vadd.f32 0.0, %v4349
      %v4351 = vpop.f32.mrf.mxu0
      %v4352 = vadd.f32 0.0, %v4351
      %4353 = vmatmul.bf16.gmra.mxu0 %v4237
      %v4354 = vpop.f32.mrf.mxu0
      %v4355 = vadd.f32 0.0, %v4354
      %v4356 = vpop.f32.mrf.mxu0
      %v4357 = vadd.f32 0.0, %v4356
      %4358 = vmatmul.bf16.gmra.mxu0 %v4240
      %v4359 = vpop.f32.mrf.mxu0
      %v4360 = vadd.f32 0.0, %v4359
      %v4361 = vpop.f32.mrf.mxu0
      %v4362 = vadd.f32 0.0, %v4361
      %4363 = vdwg.mxu0
      %v4364 = vadd.f32 %v3919, %v4255
      %v4365 = vadd.f32 %v3920, %v4257
      %v4366 = vadd.f32 %v3921, %v4260
      %v4367 = vadd.f32 %v3922, %v4262
      %v4368 = vadd.f32 %v3923, %v4265
      %v4369 = vadd.f32 %v3924, %v4267
      %v4370 = vadd.f32 %v3925, %v4270
      %v4371 = vadd.f32 %v3926, %v4272
      %v4372 = vadd.f32 %v3927, %v4275
      %v4373 = vadd.f32 %v3928, %v4277
      %v4374 = vadd.f32 %v3929, %v4280
      %v4375 = vadd.f32 %v3930, %v4282
      %v4376 = vadd.f32 %v3931, %v4285
      %v4377 = vadd.f32 %v3932, %v4287
      %v4378 = vadd.f32 %v3933, %v4290
      %v4379 = vadd.f32 %v3934, %v4292
      %v4380 = vadd.f32 %v3935, %v4295
      %v4381 = vadd.f32 %v3936, %v4297
      %v4382 = vadd.f32 %v3937, %v4300
      %v4383 = vadd.f32 %v3938, %v4302
      %v4384 = vadd.f32 %v3939, %v4305
      %v4385 = vadd.f32 %v3940, %v4307
      %v4386 = vadd.f32 %v3941, %v4310
      %v4387 = vadd.f32 %v3942, %v4312
      %v4388 = vadd.f32 %v3943, %v4315
      %v4389 = vadd.f32 %v3944, %v4317
      %v4390 = vadd.f32 %v3945, %v4320
      %v4391 = vadd.f32 %v3946, %v4322
      %v4392 = vadd.f32 %v3947, %v4325
      %v4393 = vadd.f32 %v3948, %v4327
      %v4394 = vadd.f32 %v3949, %v4330
      %v4395 = vadd.f32 %v3950, %v4332
      %v4396 = vadd.f32 %v3951, %v4335
      %v4397 = vadd.f32 %v3952, %v4337
      %v4398 = vadd.f32 %v3953, %v4340
      %v4399 = vadd.f32 %v3954, %v4342
      %v4400 = vadd.f32 %v3955, %v4345
      %v4401 = vadd.f32 %v3956, %v4347
      %v4402 = vadd.f32 %v3957, %v4350
      %v4403 = vadd.f32 %v3958, %v4352
      %v4404 = vadd.f32 %v3959, %v4355
      %v4405 = vadd.f32 %v3960, %v4357
      %v4406 = vadd.f32 %v3961, %v4360
      %v4407 = vadd.f32 %v3962, %v4362
      %v4408 = vld [vmem:[#allocation2 + $0x2c] sm:$0xc]
      %s4409 = scalar_lea.vmem %s4, 16
      %v4410 = vld [vmem:[%s4409] sm:$0x3]
      %v4412 = vunpack.c.l.b16 %v4408
      %v4413 = vpack.c.b16 %v3618, %v4412
      %v4414 = vrot.slane %v4413, 2
      %v4415 = vrot.slane %v3663, 2
      %v4416 = vsel %vm2796, %v4414, %v4415
      %v4417 = vrot.slane %v3664, 2
      %v4418 = vsel %vm2796, %v4415, %v4417
      %v4419 = vrot.slane %v3665, 2
      %v4420 = vsel %vm2796, %v4417, %v4419
      %v4421 = vrot.slane %v3666, 2
      %v4422 = vsel %vm2796, %v4419, %v4421
      %v4423 = vrot.slane %v3667, 2
      %v4424 = vsel %vm2796, %v4421, %v4423
      %v4425 = vrot.slane %v3668, 2
      %v4426 = vsel %vm2796, %v4423, %v4425
      %v4427 = vrot.slane %v3669, 2
      %v4428 = vsel %vm2796, %v4425, %v4427
      %v4429 = vrot.slane %v3670, 2
      %v4430 = vsel %vm2796, %v4427, %v4429
      %v4431 = vrot.slane %v3671, 2
      %v4432 = vsel %vm2796, %v4429, %v4431
      %v4433 = vrot.slane %v3672, 2
      %v4434 = vsel %vm2796, %v4431, %v4433
      %v4435 = vrot.slane %v3673, 2
      %v4436 = vsel %vm2796, %v4433, %v4435
      %v4437 = vrot.slane %v3674, 2
      %v4438 = vsel %vm2796, %v4435, %v4437
      %v4439 = vrot.slane %v3675, 2
      %v4440 = vsel %vm2796, %v4437, %v4439
      %v4441 = vrot.slane %v3676, 2
      %v4442 = vsel %vm2796, %v4439, %v4441
      %v4443 = vrot.slane %v3677, 2
      %v4444 = vsel %vm2796, %v4441, %v4443
      %v4445 = vrot.slane %v3678, 2
      %v4446 = vsel %vm2796, %v4443, %v4445
      %v4447 = vrot.slane %v3679, 2
      %v4448 = vsel %vm2796, %v4445, %v4447
      %v4449 = vrot.slane %v3680, 2
      %v4450 = vsel %vm2796, %v4447, %v4449
      %v4451 = vrot.slane %v3681, 2
      %v4452 = vsel %vm2796, %v4449, %v4451
      %v4453 = vrot.slane %v3682, 2
      %v4454 = vsel %vm2796, %v4451, %v4453
      %v4455 = vrot.slane %v3683, 2
      %v4456 = vsel %vm2796, %v4453, %v4455
      %v4457 = vrot.slane %v3968, 2
      %v4458 = vsel %vm2796, %v4455, %v4457
      %v4460 = vsel %vm1291, %v4416, 0
      %v4463 = vsel %vm1291, %v4418, 0
      %v4466 = vsel %vm1291, %v4420, 0
      %v4469 = vsel %vm1291, %v4422, 0
      %v4472 = vsel %vm1291, %v4424, 0
      %v4475 = vsel %vm1291, %v4426, 0
      %v4478 = vsel %vm1291, %v4428, 0
      %v4481 = vsel %vm1291, %v4430, 0
      %v4484 = vsel %vm1291, %v4432, 0
      %v4487 = vsel %vm1291, %v4434, 0
      %v4490 = vsel %vm1291, %v4436, 0
      %v4493 = vsel %vm1291, %v4438, 0
      %v4496 = vsel %vm1291, %v4440, 0
      %v4499 = vsel %vm1291, %v4442, 0
      %v4502 = vsel %vm1291, %v4444, 0
      %v4505 = vsel %vm1291, %v4446, 0
      %v4508 = vsel %vm1291, %v4448, 0
      %v4511 = vsel %vm1291, %v4450, 0
      %v4514 = vsel %vm1291, %v4452, 0
      %v4517 = vsel %vm1291, %v4454, 0
      %v4520 = vsel %vm1291, %v4456, 0
      %v4523 = vsel %vm1291, %v4458, 0
      %v4526 = vsel %vm1358, %v4410, 0
      %4528 = vmatpush.bf16.msra.mxu0 0
      %4529 = vmatpush.bf16.msra.mxu0 0
      %4530 = vmatpush.bf16.msra.mxu0 0
      %4531 = vmatpush.bf16.msra.mxu0 0
      %4532 = vmatpush.bf16.msra.mxu0 0
      %4533 = vmatpush.bf16.msra.mxu0 0
      %4534 = vmatpush.bf16.msra.mxu0 0
      %4535 = vmatpush.bf16.msra.mxu0 %v4526
      %4536 = vmatmul.bf16.gmra.mxu0 %v4460
      %v4537 = vpop.f32.mrf.mxu0
      %v4538 = vadd.f32 0.0, %v4537
      %v4539 = vpop.f32.mrf.mxu0
      %v4540 = vadd.f32 0.0, %v4539
      %4541 = vmatmul.bf16.gmra.mxu0 %v4463
      %v4542 = vpop.f32.mrf.mxu0
      %v4543 = vadd.f32 0.0, %v4542
      %v4544 = vpop.f32.mrf.mxu0
      %v4545 = vadd.f32 0.0, %v4544
      %4546 = vmatmul.bf16.gmra.mxu0 %v4466
      %v4547 = vpop.f32.mrf.mxu0
      %v4548 = vadd.f32 0.0, %v4547
      %v4549 = vpop.f32.mrf.mxu0
      %v4550 = vadd.f32 0.0, %v4549
      %4551 = vmatmul.bf16.gmra.mxu0 %v4469
      %v4552 = vpop.f32.mrf.mxu0
      %v4553 = vadd.f32 0.0, %v4552
      %v4554 = vpop.f32.mrf.mxu0
      %v4555 = vadd.f32 0.0, %v4554
      %4556 = vmatmul.bf16.gmra.mxu0 %v4472
      %v4557 = vpop.f32.mrf.mxu0
      %v4558 = vadd.f32 0.0, %v4557
      %v4559 = vpop.f32.mrf.mxu0
      %v4560 = vadd.f32 0.0, %v4559
      %4561 = vmatmul.bf16.gmra.mxu0 %v4475
      %v4562 = vpop.f32.mrf.mxu0
      %v4563 = vadd.f32 0.0, %v4562
      %v4564 = vpop.f32.mrf.mxu0
      %v4565 = vadd.f32 0.0, %v4564
      %4566 = vmatmul.bf16.gmra.mxu0 %v4478
      %v4567 = vpop.f32.mrf.mxu0
      %v4568 = vadd.f32 0.0, %v4567
      %v4569 = vpop.f32.mrf.mxu0
      %v4570 = vadd.f32 0.0, %v4569
      %4571 = vmatmul.bf16.gmra.mxu0 %v4481
      %v4572 = vpop.f32.mrf.mxu0
      %v4573 = vadd.f32 0.0, %v4572
      %v4574 = vpop.f32.mrf.mxu0
      %v4575 = vadd.f32 0.0, %v4574
      %4576 = vmatmul.bf16.gmra.mxu0 %v4484
      %v4577 = vpop.f32.mrf.mxu0
      %v4578 = vadd.f32 0.0, %v4577
      %v4579 = vpop.f32.mrf.mxu0
      %v4580 = vadd.f32 0.0, %v4579
      %4581 = vmatmul.bf16.gmra.mxu0 %v4487
      %v4582 = vpop.f32.mrf.mxu0
      %v4583 = vadd.f32 0.0, %v4582
      %v4584 = vpop.f32.mrf.mxu0
      %v4585 = vadd.f32 0.0, %v4584
      %4586 = vmatmul.bf16.gmra.mxu0 %v4490
      %v4587 = vpop.f32.mrf.mxu0
      %v4588 = vadd.f32 0.0, %v4587
      %v4589 = vpop.f32.mrf.mxu0
      %v4590 = vadd.f32 0.0, %v4589
      %4591 = vmatmul.bf16.gmra.mxu0 %v4493
      %v4592 = vpop.f32.mrf.mxu0
      %v4593 = vadd.f32 0.0, %v4592
      %v4594 = vpop.f32.mrf.mxu0
      %v4595 = vadd.f32 0.0, %v4594
      %4596 = vmatmul.bf16.gmra.mxu0 %v4496
      %v4597 = vpop.f32.mrf.mxu0
      %v4598 = vadd.f32 0.0, %v4597
      %v4599 = vpop.f32.mrf.mxu0
      %v4600 = vadd.f32 0.0, %v4599
      %4601 = vmatmul.bf16.gmra.mxu0 %v4499
      %v4602 = vpop.f32.mrf.mxu0
      %v4603 = vadd.f32 0.0, %v4602
      %v4604 = vpop.f32.mrf.mxu0
      %v4605 = vadd.f32 0.0, %v4604
      %4606 = vmatmul.bf16.gmra.mxu0 %v4502
      %v4607 = vpop.f32.mrf.mxu0
      %v4608 = vadd.f32 0.0, %v4607
      %v4609 = vpop.f32.mrf.mxu0
      %v4610 = vadd.f32 0.0, %v4609
      %4611 = vmatmul.bf16.gmra.mxu0 %v4505
      %v4612 = vpop.f32.mrf.mxu0
      %v4613 = vadd.f32 0.0, %v4612
      %v4614 = vpop.f32.mrf.mxu0
      %v4615 = vadd.f32 0.0, %v4614
      %4616 = vmatmul.bf16.gmra.mxu0 %v4508
      %v4617 = vpop.f32.mrf.mxu0
      %v4618 = vadd.f32 0.0, %v4617
      %v4619 = vpop.f32.mrf.mxu0
      %v4620 = vadd.f32 0.0, %v4619
      %4621 = vmatmul.bf16.gmra.mxu0 %v4511
      %v4622 = vpop.f32.mrf.mxu0
      %v4623 = vadd.f32 0.0, %v4622
      %v4624 = vpop.f32.mrf.mxu0
      %v4625 = vadd.f32 0.0, %v4624
      %4626 = vmatmul.bf16.gmra.mxu0 %v4514
      %v4627 = vpop.f32.mrf.mxu0
      %v4628 = vadd.f32 0.0, %v4627
      %v4629 = vpop.f32.mrf.mxu0
      %v4630 = vadd.f32 0.0, %v4629
      %4631 = vmatmul.bf16.gmra.mxu0 %v4517
      %v4632 = vpop.f32.mrf.mxu0
      %v4633 = vadd.f32 0.0, %v4632
      %v4634 = vpop.f32.mrf.mxu0
      %v4635 = vadd.f32 0.0, %v4634
      %4636 = vmatmul.bf16.gmra.mxu0 %v4520
      %v4637 = vpop.f32.mrf.mxu0
      %v4638 = vadd.f32 0.0, %v4637
      %v4639 = vpop.f32.mrf.mxu0
      %v4640 = vadd.f32 0.0, %v4639
      %4641 = vmatmul.bf16.gmra.mxu0 %v4523
      %v4642 = vpop.f32.mrf.mxu0
      %v4643 = vadd.f32 0.0, %v4642
      %v4644 = vpop.f32.mrf.mxu0
      %v4645 = vadd.f32 0.0, %v4644
      %4646 = vdwg.mxu0
      %v4647 = vadd.f32 %v4364, %v4538
      %v4648 = vadd.f32 %v4365, %v4540
      %v4649 = vadd.f32 %v4366, %v4543
      %v4650 = vadd.f32 %v4367, %v4545
      %v4651 = vadd.f32 %v4368, %v4548
      %v4652 = vadd.f32 %v4369, %v4550
      %v4653 = vadd.f32 %v4370, %v4553
      %v4654 = vadd.f32 %v4371, %v4555
      %v4655 = vadd.f32 %v4372, %v4558
      %v4656 = vadd.f32 %v4373, %v4560
      %v4657 = vadd.f32 %v4374, %v4563
      %v4658 = vadd.f32 %v4375, %v4565
      %v4659 = vadd.f32 %v4376, %v4568
      %v4660 = vadd.f32 %v4377, %v4570
      %v4661 = vadd.f32 %v4378, %v4573
      %v4662 = vadd.f32 %v4379, %v4575
      %v4663 = vadd.f32 %v4380, %v4578
      %v4664 = vadd.f32 %v4381, %v4580
      %v4665 = vadd.f32 %v4382, %v4583
      %v4666 = vadd.f32 %v4383, %v4585
      %v4667 = vadd.f32 %v4384, %v4588
      %v4668 = vadd.f32 %v4385, %v4590
      %v4669 = vadd.f32 %v4386, %v4593
      %v4670 = vadd.f32 %v4387, %v4595
      %v4671 = vadd.f32 %v4388, %v4598
      %v4672 = vadd.f32 %v4389, %v4600
      %v4673 = vadd.f32 %v4390, %v4603
      %v4674 = vadd.f32 %v4391, %v4605
      %v4675 = vadd.f32 %v4392, %v4608
      %v4676 = vadd.f32 %v4393, %v4610
      %v4677 = vadd.f32 %v4394, %v4613
      %v4678 = vadd.f32 %v4395, %v4615
      %v4679 = vadd.f32 %v4396, %v4618
      %v4680 = vadd.f32 %v4397, %v4620
      %v4681 = vadd.f32 %v4398, %v4623
      %v4682 = vadd.f32 %v4399, %v4625
      %v4683 = vadd.f32 %v4400, %v4628
      %v4684 = vadd.f32 %v4401, %v4630
      %v4685 = vadd.f32 %v4402, %v4633
      %v4686 = vadd.f32 %v4403, %v4635
      %v4687 = vadd.f32 %v4404, %v4638
      %v4688 = vadd.f32 %v4405, %v4640
      %v4689 = vadd.f32 %v4406, %v4643
      %v4690 = vadd.f32 %v4407, %v4645
      %v4691 = vld [vmem:[%s5] sm:$0x1]
      %v4693 = vperm.slane %v4691, 0
      %v4695 = vadd.f32 %v4647, %v4693
      %v4696 = vadd.f32 %v4648, %v4693
      %v4697 = vadd.f32 %v4649, %v4693
      %v4698 = vadd.f32 %v4650, %v4693
      %v4699 = vadd.f32 %v4651, %v4693
      %v4700 = vadd.f32 %v4652, %v4693
      %v4701 = vadd.f32 %v4653, %v4693
      %v4702 = vadd.f32 %v4654, %v4693
      %v4703 = vadd.f32 %v4655, %v4693
      %v4704 = vadd.f32 %v4656, %v4693
      %v4705 = vadd.f32 %v4657, %v4693
      %v4706 = vadd.f32 %v4658, %v4693
      %v4707 = vadd.f32 %v4659, %v4693
      %v4708 = vadd.f32 %v4660, %v4693
      %v4709 = vadd.f32 %v4661, %v4693
      %v4710 = vadd.f32 %v4662, %v4693
      %v4711 = vadd.f32 %v4663, %v4693
      %v4712 = vadd.f32 %v4664, %v4693
      %v4713 = vadd.f32 %v4665, %v4693
      %v4714 = vadd.f32 %v4666, %v4693
      %v4715 = vadd.f32 %v4667, %v4693
      %v4716 = vadd.f32 %v4668, %v4693
      %v4717 = vadd.f32 %v4669, %v4693
      %v4718 = vadd.f32 %v4670, %v4693
      %v4719 = vadd.f32 %v4671, %v4693
      %v4720 = vadd.f32 %v4672, %v4693
      %v4721 = vadd.f32 %v4673, %v4693
      %v4722 = vadd.f32 %v4674, %v4693
      %v4723 = vadd.f32 %v4675, %v4693
      %v4724 = vadd.f32 %v4676, %v4693
      %v4725 = vadd.f32 %v4677, %v4693
      %v4726 = vadd.f32 %v4678, %v4693
      %v4727 = vadd.f32 %v4679, %v4693
      %v4728 = vadd.f32 %v4680, %v4693
      %v4729 = vadd.f32 %v4681, %v4693
      %v4730 = vadd.f32 %v4682, %v4693
      %v4731 = vadd.f32 %v4683, %v4693
      %v4732 = vadd.f32 %v4684, %v4693
      %v4733 = vadd.f32 %v4685, %v4693
      %v4734 = vadd.f32 %v4686, %v4693
      %v4735 = vadd.f32 %v4687, %v4693
      %v4736 = vadd.f32 %v4688, %v4693
      %v4737 = vadd.f32 %v4689, %v4693
      %v4738 = vadd.f32 %v4690, %v4693
      %v4739 = vmax.f32 %v4695, 0.0
      %v4740 = vmax.f32 %v4696, 0.0
      %v4741 = vmax.f32 %v4697, 0.0
      %v4742 = vmax.f32 %v4698, 0.0
      %v4743 = vmax.f32 %v4699, 0.0
      %v4744 = vmax.f32 %v4700, 0.0
      %v4745 = vmax.f32 %v4701, 0.0
      %v4746 = vmax.f32 %v4702, 0.0
      %v4747 = vmax.f32 %v4703, 0.0
      %v4748 = vmax.f32 %v4704, 0.0
      %v4749 = vmax.f32 %v4705, 0.0
      %v4750 = vmax.f32 %v4706, 0.0
      %v4751 = vmax.f32 %v4707, 0.0
      %v4752 = vmax.f32 %v4708, 0.0
      %v4753 = vmax.f32 %v4709, 0.0
      %v4754 = vmax.f32 %v4710, 0.0
      %v4755 = vmax.f32 %v4711, 0.0
      %v4756 = vmax.f32 %v4712, 0.0
      %v4757 = vmax.f32 %v4713, 0.0
      %v4758 = vmax.f32 %v4714, 0.0
      %v4759 = vmax.f32 %v4715, 0.0
      %v4760 = vmax.f32 %v4716, 0.0
      %v4761 = vmax.f32 %v4717, 0.0
      %v4762 = vmax.f32 %v4718, 0.0
      %v4763 = vmax.f32 %v4719, 0.0
      %v4764 = vmax.f32 %v4720, 0.0
      %v4765 = vmax.f32 %v4721, 0.0
      %v4766 = vmax.f32 %v4722, 0.0
      %v4767 = vmax.f32 %v4723, 0.0
      %v4768 = vmax.f32 %v4724, 0.0
      %v4769 = vmax.f32 %v4725, 0.0
      %v4770 = vmax.f32 %v4726, 0.0
      %v4771 = vmax.f32 %v4727, 0.0
      %v4772 = vmax.f32 %v4728, 0.0
      %v4773 = vmax.f32 %v4729, 0.0
      %v4774 = vmax.f32 %v4730, 0.0
      %v4775 = vmax.f32 %v4731, 0.0
      %v4776 = vmax.f32 %v4732, 0.0
      %v4777 = vmax.f32 %v4733, 0.0
      %v4778 = vmax.f32 %v4734, 0.0
      %v4779 = vmax.f32 %v4735, 0.0
      %v4780 = vmax.f32 %v4736, 0.0
      %v4781 = vmax.f32 %v4737, 0.0
      %v4782 = vmax.f32 %v4738, 0.0
      %v4783 = vpack.c.bf16 %v4740, %v4739
      %v4784 = vpack.c.bf16 %v4742, %v4741
      %v4785 = vpack.c.bf16 %v4744, %v4743
      %v4786 = vpack.c.bf16 %v4746, %v4745
      %v4787 = vpack.c.bf16 %v4748, %v4747
      %v4788 = vpack.c.bf16 %v4750, %v4749
      %v4789 = vpack.c.bf16 %v4752, %v4751
      %v4790 = vpack.c.bf16 %v4754, %v4753
      %v4791 = vpack.c.bf16 %v4756, %v4755
      %v4792 = vpack.c.bf16 %v4758, %v4757
      %v4793 = vpack.c.bf16 %v4760, %v4759
      %v4794 = vpack.c.bf16 %v4762, %v4761
      %v4795 = vpack.c.bf16 %v4764, %v4763
      %v4796 = vpack.c.bf16 %v4766, %v4765
      %v4797 = vpack.c.bf16 %v4768, %v4767
      %v4798 = vpack.c.bf16 %v4770, %v4769
      %v4799 = vpack.c.bf16 %v4772, %v4771
      %v4800 = vpack.c.bf16 %v4774, %v4773
      %v4801 = vpack.c.bf16 %v4776, %v4775
      %v4802 = vpack.c.bf16 %v4778, %v4777
      %v4803 = vpack.c.bf16 %v4780, %v4779
      %v4804 = vpack.c.bf16 %v4782, %v4781
      %v4805 = vld [vmem:[%s7] sm:$0x3]
      %v4807 = vsel %vm1291, %v4783, 0
      %v4810 = vsel %vm1291, %v4784, 0
      %v4813 = vsel %vm1291, %v4785, 0
      %v4816 = vsel %vm1291, %v4786, 0
      %v4819 = vsel %vm1291, %v4787, 0
      %v4822 = vsel %vm1291, %v4788, 0
      %v4825 = vsel %vm1291, %v4789, 0
      %v4828 = vsel %vm1291, %v4790, 0
      %v4831 = vsel %vm1291, %v4791, 0
      %v4834 = vsel %vm1291, %v4792, 0
      %v4837 = vsel %vm1291, %v4793, 0
      %v4840 = vsel %vm1291, %v4794, 0
      %v4843 = vsel %vm1291, %v4795, 0
      %v4846 = vsel %vm1291, %v4796, 0
      %v4849 = vsel %vm1291, %v4797, 0
      %v4852 = vsel %vm1291, %v4798, 0
      %v4855 = vsel %vm1291, %v4799, 0
      %v4858 = vsel %vm1291, %v4800, 0
      %v4861 = vsel %vm1291, %v4801, 0
      %v4864 = vsel %vm1291, %v4802, 0
      %v4867 = vsel %vm1291, %v4803, 0
      %v4870 = vsel %vm1291, %v4804, 0
      %v4873 = vsel %vm1358, %v4805, 0
      %4875 = vmatpush.bf16.msra.mxu0 0
      %4876 = vmatpush.bf16.msra.mxu0 0
      %4877 = vmatpush.bf16.msra.mxu0 0
      %4878 = vmatpush.bf16.msra.mxu0 0
      %4879 = vmatpush.bf16.msra.mxu0 0
      %4880 = vmatpush.bf16.msra.mxu0 0
      %4881 = vmatpush.bf16.msra.mxu0 0
      %4882 = vmatpush.bf16.msra.mxu0 %v4873
      %4883 = vmatmul.bf16.gmra.mxu0 %v4807
      %v4884 = vpop.f32.mrf.mxu0
      %v4885 = vadd.f32 0.0, %v4884
      %v4886 = vpop.f32.mrf.mxu0
      %v4887 = vadd.f32 0.0, %v4886
      %4888 = vmatmul.bf16.gmra.mxu0 %v4810
      %v4889 = vpop.f32.mrf.mxu0
      %v4890 = vadd.f32 0.0, %v4889
      %v4891 = vpop.f32.mrf.mxu0
      %v4892 = vadd.f32 0.0, %v4891
      %4893 = vmatmul.bf16.gmra.mxu0 %v4813
      %v4894 = vpop.f32.mrf.mxu0
      %v4895 = vadd.f32 0.0, %v4894
      %v4896 = vpop.f32.mrf.mxu0
      %v4897 = vadd.f32 0.0, %v4896
      %4898 = vmatmul.bf16.gmra.mxu0 %v4816
      %v4899 = vpop.f32.mrf.mxu0
      %v4900 = vadd.f32 0.0, %v4899
      %v4901 = vpop.f32.mrf.mxu0
      %v4902 = vadd.f32 0.0, %v4901
      %4903 = vmatmul.bf16.gmra.mxu0 %v4819
      %v4904 = vpop.f32.mrf.mxu0
      %v4905 = vadd.f32 0.0, %v4904
      %v4906 = vpop.f32.mrf.mxu0
      %v4907 = vadd.f32 0.0, %v4906
      %4908 = vmatmul.bf16.gmra.mxu0 %v4822
      %v4909 = vpop.f32.mrf.mxu0
      %v4910 = vadd.f32 0.0, %v4909
      %v4911 = vpop.f32.mrf.mxu0
      %v4912 = vadd.f32 0.0, %v4911
      %4913 = vmatmul.bf16.gmra.mxu0 %v4825
      %v4914 = vpop.f32.mrf.mxu0
      %v4915 = vadd.f32 0.0, %v4914
      %v4916 = vpop.f32.mrf.mxu0
      %v4917 = vadd.f32 0.0, %v4916
      %4918 = vmatmul.bf16.gmra.mxu0 %v4828
      %v4919 = vpop.f32.mrf.mxu0
      %v4920 = vadd.f32 0.0, %v4919
      %v4921 = vpop.f32.mrf.mxu0
      %v4922 = vadd.f32 0.0, %v4921
      %4923 = vmatmul.bf16.gmra.mxu0 %v4831
      %v4924 = vpop.f32.mrf.mxu0
      %v4925 = vadd.f32 0.0, %v4924
      %v4926 = vpop.f32.mrf.mxu0
      %v4927 = vadd.f32 0.0, %v4926
      %4928 = vmatmul.bf16.gmra.mxu0 %v4834
      %v4929 = vpop.f32.mrf.mxu0
      %v4930 = vadd.f32 0.0, %v4929
      %v4931 = vpop.f32.mrf.mxu0
      %v4932 = vadd.f32 0.0, %v4931
      %4933 = vmatmul.bf16.gmra.mxu0 %v4837
      %v4934 = vpop.f32.mrf.mxu0
      %v4935 = vadd.f32 0.0, %v4934
      %v4936 = vpop.f32.mrf.mxu0
      %v4937 = vadd.f32 0.0, %v4936
      %4938 = vmatmul.bf16.gmra.mxu0 %v4840
      %v4939 = vpop.f32.mrf.mxu0
      %v4940 = vadd.f32 0.0, %v4939
      %v4941 = vpop.f32.mrf.mxu0
      %v4942 = vadd.f32 0.0, %v4941
      %4943 = vmatmul.bf16.gmra.mxu0 %v4843
      %v4944 = vpop.f32.mrf.mxu0
      %v4945 = vadd.f32 0.0, %v4944
      %v4946 = vpop.f32.mrf.mxu0
      %v4947 = vadd.f32 0.0, %v4946
      %4948 = vmatmul.bf16.gmra.mxu0 %v4846
      %v4949 = vpop.f32.mrf.mxu0
      %v4950 = vadd.f32 0.0, %v4949
      %v4951 = vpop.f32.mrf.mxu0
      %v4952 = vadd.f32 0.0, %v4951
      %4953 = vmatmul.bf16.gmra.mxu0 %v4849
      %v4954 = vpop.f32.mrf.mxu0
      %v4955 = vadd.f32 0.0, %v4954
      %v4956 = vpop.f32.mrf.mxu0
      %v4957 = vadd.f32 0.0, %v4956
      %4958 = vmatmul.bf16.gmra.mxu0 %v4852
      %v4959 = vpop.f32.mrf.mxu0
      %v4960 = vadd.f32 0.0, %v4959
      %v4961 = vpop.f32.mrf.mxu0
      %v4962 = vadd.f32 0.0, %v4961
      %4963 = vmatmul.bf16.gmra.mxu0 %v4855
      %v4964 = vpop.f32.mrf.mxu0
      %v4965 = vadd.f32 0.0, %v4964
      %v4966 = vpop.f32.mrf.mxu0
      %v4967 = vadd.f32 0.0, %v4966
      %4968 = vmatmul.bf16.gmra.mxu0 %v4858
      %v4969 = vpop.f32.mrf.mxu0
      %v4970 = vadd.f32 0.0, %v4969
      %v4971 = vpop.f32.mrf.mxu0
      %v4972 = vadd.f32 0.0, %v4971
      %4973 = vmatmul.bf16.gmra.mxu0 %v4861
      %v4974 = vpop.f32.mrf.mxu0
      %v4975 = vadd.f32 0.0, %v4974
      %v4976 = vpop.f32.mrf.mxu0
      %v4977 = vadd.f32 0.0, %v4976
      %4978 = vmatmul.bf16.gmra.mxu0 %v4864
      %v4979 = vpop.f32.mrf.mxu0
      %v4980 = vadd.f32 0.0, %v4979
      %v4981 = vpop.f32.mrf.mxu0
      %v4982 = vadd.f32 0.0, %v4981
      %4983 = vmatmul.bf16.gmra.mxu0 %v4867
      %v4984 = vpop.f32.mrf.mxu0
      %v4985 = vadd.f32 0.0, %v4984
      %v4986 = vpop.f32.mrf.mxu0
      %v4987 = vadd.f32 0.0, %v4986
      %4988 = vmatmul.bf16.gmra.mxu0 %v4870
      %v4989 = vpop.f32.mrf.mxu0
      %v4990 = vadd.f32 0.0, %v4989
      %v4991 = vpop.f32.mrf.mxu0
      %v4992 = vadd.f32 0.0, %v4991
      %4993 = vdwg.mxu0
      %v4994 = vadd.f32 %v1631, %v4885
      %v4995 = vadd.f32 %v1633, %v4887
      %v4996 = vadd.f32 %v1636, %v4890
      %v4997 = vadd.f32 %v1638, %v4892
      %v4998 = vadd.f32 %v1641, %v4895
      %v4999 = vadd.f32 %v1643, %v4897
      %v5000 = vadd.f32 %v1646, %v4900
      %v5001 = vadd.f32 %v1648, %v4902
      %v5002 = vadd.f32 %v1651, %v4905
      %v5003 = vadd.f32 %v1653, %v4907
      %v5004 = vadd.f32 %v1656, %v4910
      %v5005 = vadd.f32 %v1658, %v4912
      %v5006 = vadd.f32 %v1661, %v4915
      %v5007 = vadd.f32 %v1663, %v4917
      %v5008 = vadd.f32 %v1666, %v4920
      %v5009 = vadd.f32 %v1668, %v4922
      %v5010 = vadd.f32 %v1671, %v4925
      %v5011 = vadd.f32 %v1673, %v4927
      %v5012 = vadd.f32 %v1676, %v4930
      %v5013 = vadd.f32 %v1678, %v4932
      %v5014 = vadd.f32 %v1681, %v4935
      %v5015 = vadd.f32 %v1683, %v4937
      %v5016 = vadd.f32 %v1686, %v4940
      %v5017 = vadd.f32 %v1688, %v4942
      %v5018 = vadd.f32 %v1691, %v4945
      %v5019 = vadd.f32 %v1693, %v4947
      %v5020 = vadd.f32 %v1696, %v4950
      %v5021 = vadd.f32 %v1698, %v4952
      %v5022 = vadd.f32 %v1701, %v4955
      %v5023 = vadd.f32 %v1703, %v4957
      %v5024 = vadd.f32 %v1706, %v4960
      %v5025 = vadd.f32 %v1708, %v4962
      %v5026 = vadd.f32 %v1711, %v4965
      %v5027 = vadd.f32 %v1713, %v4967
      %v5028 = vadd.f32 %v1716, %v4970
      %v5029 = vadd.f32 %v1718, %v4972
      %v5030 = vadd.f32 %v1721, %v4975
      %v5031 = vadd.f32 %v1723, %v4977
      %v5032 = vadd.f32 %v1726, %v4980
      %v5033 = vadd.f32 %v1728, %v4982
      %v5034 = vadd.f32 %v1731, %v4985
      %v5035 = vadd.f32 %v1733, %v4987
      %v5036 = vadd.f32 %v1736, %v4990
      %v5037 = vadd.f32 %v1738, %v4992
      %v5038 = vld [vmem:[#allocation2 + $0x8] sm:$0x8]
      %v5039 = vld [vmem:[#allocation2 + $0xc] sm:$0xf]
      %v5040 = vld [vmem:[#allocation2 + $0x10] sm:$0xf]
      %v5041 = vld [vmem:[#allocation2 + $0x14] sm:$0xf]
      %v5042 = vld [vmem:[#allocation2 + $0x18] sm:$0xf]
      %v5043 = vld [vmem:[#allocation2 + $0x1c] sm:$0xf]
      %v5044 = vld [vmem:[#allocation2 + $0x20] sm:$0xf]
      %v5045 = vld [vmem:[#allocation2 + $0x24] sm:$0xf]
      %v5046 = vld [vmem:[#allocation2 + $0x28] sm:$0xf]
      %v5047 = vld [vmem:[#allocation2 + $0x2c] sm:$0xf]
      %v5048 = vld [vmem:[#allocation2 + $0x30] sm:$0xf]
      %v5049 = vld [vmem:[#allocation2 + $0x34] sm:$0xf]
      %v5050 = vld [vmem:[#allocation2 + $0x38] sm:$0xf]
      %v5051 = vld [vmem:[#allocation2 + $0x3c] sm:$0xf]
      %v5052 = vld [vmem:[#allocation2 + $0x40] sm:$0xf]
      %v5053 = vld [vmem:[#allocation2 + $0x44] sm:$0xf]
      %v5054 = vld [vmem:[#allocation2 + $0x48] sm:$0xf]
      %v5055 = vld [vmem:[#allocation2 + $0x4c] sm:$0xf]
      %v5056 = vld [vmem:[#allocation2 + $0x50] sm:$0xf]
      %v5057 = vld [vmem:[#allocation2 + $0x54] sm:$0xf]
      %v5058 = vld [vmem:[#allocation2 + $0x58] sm:$0xf]
      %v5059 = vld [vmem:[#allocation2 + $0x5c] sm:$0xf]
      %v5060 = vld [vmem:[#allocation2 + $0x60] sm:$0xf]
      %v5061 = vld [vmem:[#allocation2 + $0x64] sm:$0xf]
      %v5062 = vld [vmem:[#allocation2 + $0x68] sm:$0xf]
      %v5063 = vld [vmem:[#allocation2 + $0x6c] sm:$0xf]
      %v5064 = vld [vmem:[#allocation2 + $0x70] sm:$0xf]
      %v5065 = vld [vmem:[#allocation2 + $0x74] sm:$0xf]
      %v5066 = vld [vmem:[#allocation2 + $0x78] sm:$0xf]
      %v5067 = vld [vmem:[#allocation2 + $0x7c] sm:$0xf]
      %v5068 = vld [vmem:[#allocation2 + $0x80] sm:$0xf]
      %v5069 = vld [vmem:[#allocation2 + $0x84] sm:$0xf]
      %v5070 = vld [vmem:[#allocation2 + $0x88] sm:$0xf]
      %v5071 = vld [vmem:[#allocation2 + $0x8c] sm:$0xf]
      %v5072 = vld [vmem:[#allocation2 + $0x90] sm:$0xf]
      %v5073 = vld [vmem:[#allocation2 + $0x94] sm:$0xf]
      %v5074 = vld [vmem:[#allocation2 + $0x98] sm:$0xf]
      %v5075 = vld [vmem:[#allocation2 + $0x9c] sm:$0xf]
      %v5076 = vld [vmem:[#allocation2 + $0xa0] sm:$0xf]
      %v5077 = vld [vmem:[#allocation2 + $0xa4] sm:$0xf]
      %v5078 = vld [vmem:[#allocation2 + $0xa8] sm:$0xf]
      %v5079 = vld [vmem:[#allocation2 + $0xac] sm:$0xf]
      %v5080 = vld [vmem:[#allocation2 + $0xb0] sm:$0xf]
      %v5081 = vld [vmem:[#allocation2 + $0xb4] sm:$0xf]
      %v5082 = vld [vmem:[#allocation2 + $0xb8] sm:$0xf]
      %s5083 = scalar_lea.vmem %s4, 18
      %v5084 = vld [vmem:[%s5083] sm:$0x3]
      %v5085 = vld [vmem:[#allocation2 + $0xbc] sm:$0x1]
      %s5086 = scalar_lea.vmem %s4, 20
      %v5087 = vld [vmem:[%s5086] sm:$0x3]
      %v5133 = vunpack.c.l.b16 %v5039
      %v5134 = vunpack.c.l.b16 %v5040
      %v5135 = vunpack.c.l.b16 %v5041
      %v5136 = vunpack.c.l.b16 %v5042
      %v5137 = vunpack.c.l.b16 %v5043
      %v5138 = vunpack.c.l.b16 %v5044
      %v5139 = vunpack.c.l.b16 %v5045
      %v5140 = vunpack.c.l.b16 %v5046
      %v5141 = vunpack.c.l.b16 %v5047
      %v5142 = vunpack.c.l.b16 %v5048
      %v5143 = vunpack.c.l.b16 %v5049
      %v5144 = vunpack.c.l.b16 %v5050
      %v5145 = vunpack.c.l.b16 %v5051
      %v5146 = vunpack.c.l.b16 %v5052
      %v5147 = vunpack.c.l.b16 %v5053
      %v5148 = vunpack.c.l.b16 %v5054
      %v5149 = vunpack.c.l.b16 %v5055
      %v5150 = vunpack.c.l.b16 %v5056
      %v5151 = vunpack.c.l.b16 %v5057
      %v5152 = vunpack.c.l.b16 %v5058
      %v5153 = vunpack.c.l.b16 %v5059
      %v5154 = vunpack.c.l.b16 %v5060
      %v5155 = vunpack.c.l.b16 %v5061
      %v5156 = vunpack.c.l.b16 %v5062
      %v5157 = vunpack.c.l.b16 %v5063
      %v5158 = vunpack.c.l.b16 %v5064
      %v5159 = vunpack.c.l.b16 %v5065
      %v5160 = vunpack.c.l.b16 %v5066
      %v5161 = vunpack.c.l.b16 %v5067
      %v5162 = vunpack.c.l.b16 %v5068
      %v5163 = vunpack.c.l.b16 %v5069
      %v5164 = vunpack.c.l.b16 %v5070
      %v5165 = vunpack.c.l.b16 %v5071
      %v5166 = vunpack.c.l.b16 %v5072
      %v5167 = vunpack.c.l.b16 %v5073
      %v5168 = vunpack.c.l.b16 %v5074
      %v5169 = vunpack.c.l.b16 %v5075
      %v5170 = vunpack.c.l.b16 %v5076
      %v5171 = vunpack.c.l.b16 %v5077
      %v5172 = vunpack.c.l.b16 %v5078
      %v5173 = vunpack.c.l.b16 %v5079
      %v5174 = vunpack.c.l.b16 %v5080
      %v5175 = vunpack.c.l.b16 %v5081
      %v5176 = vunpack.c.l.b16 %v5082
      %v5177 = vunpack.c.l.b16 %v5085
      %v5178 = vpack.c.b16 %v5134, %v5133
      %v5179 = vpack.c.b16 %v5136, %v5135
      %v5180 = vpack.c.b16 %v5138, %v5137
      %v5181 = vpack.c.b16 %v5140, %v5139
      %v5182 = vpack.c.b16 %v5142, %v5141
      %v5183 = vpack.c.b16 %v5144, %v5143
      %v5184 = vpack.c.b16 %v5146, %v5145
      %v5185 = vpack.c.b16 %v5148, %v5147
      %v5186 = vpack.c.b16 %v5150, %v5149
      %v5187 = vpack.c.b16 %v5152, %v5151
      %v5188 = vpack.c.b16 %v5154, %v5153
      %v5189 = vpack.c.b16 %v5156, %v5155
      %v5190 = vpack.c.b16 %v5158, %v5157
      %v5191 = vpack.c.b16 %v5160, %v5159
      %v5192 = vpack.c.b16 %v5162, %v5161
      %v5193 = vpack.c.b16 %v5164, %v5163
      %v5194 = vpack.c.b16 %v5166, %v5165
      %v5195 = vpack.c.b16 %v5168, %v5167
      %v5196 = vpack.c.b16 %v5170, %v5169
      %v5197 = vpack.c.b16 %v5172, %v5171
      %v5198 = vpack.c.b16 %v5174, %v5173
      %v5199 = vpack.c.b16 %v5176, %v5175
      %v5200 = vpack.c.b16 %v5177, %v5177
      %vm5201 = vsmask.f32 7424
      %v5203 = vshrl.u32 %v5178, 16
      %v5205 = vshll.u32 %v5178, 16
      %v5207 = vrot.slane %v5205, 1
      %v5208 = vor.u32 %v5203, %v5207
      %v5210 = vshll.u32 %v5179, 16
      %v5212 = vrot.slane %v5210, 1
      %v5213 = vsel %vm5201, %v5208, %v5212
      %v5214 = vshrl.u32 %v5179, 16
      %v5216 = vor.u32 %v5214, %v5212
      %v5218 = vshll.u32 %v5180, 16
      %v5220 = vrot.slane %v5218, 1
      %v5221 = vsel %vm5201, %v5216, %v5220
      %v5222 = vshrl.u32 %v5180, 16
      %v5224 = vor.u32 %v5222, %v5220
      %v5226 = vshll.u32 %v5181, 16
      %v5228 = vrot.slane %v5226, 1
      %v5229 = vsel %vm5201, %v5224, %v5228
      %v5230 = vshrl.u32 %v5181, 16
      %v5232 = vor.u32 %v5230, %v5228
      %v5234 = vshll.u32 %v5182, 16
      %v5236 = vrot.slane %v5234, 1
      %v5237 = vsel %vm5201, %v5232, %v5236
      %v5238 = vshrl.u32 %v5182, 16
      %v5240 = vor.u32 %v5238, %v5236
      %v5242 = vshll.u32 %v5183, 16
      %v5244 = vrot.slane %v5242, 1
      %v5245 = vsel %vm5201, %v5240, %v5244
      %v5246 = vshrl.u32 %v5183, 16
      %v5248 = vor.u32 %v5246, %v5244
      %v5250 = vshll.u32 %v5184, 16
      %v5252 = vrot.slane %v5250, 1
      %v5253 = vsel %vm5201, %v5248, %v5252
      %v5254 = vshrl.u32 %v5184, 16
      %v5256 = vor.u32 %v5254, %v5252
      %v5258 = vshll.u32 %v5185, 16
      %v5260 = vrot.slane %v5258, 1
      %v5261 = vsel %vm5201, %v5256, %v5260
      %v5262 = vshrl.u32 %v5185, 16
      %v5264 = vor.u32 %v5262, %v5260
      %v5266 = vshll.u32 %v5186, 16
      %v5268 = vrot.slane %v5266, 1
      %v5269 = vsel %vm5201, %v5264, %v5268
      %v5270 = vshrl.u32 %v5186, 16
      %v5272 = vor.u32 %v5270, %v5268
      %v5274 = vshll.u32 %v5187, 16
      %v5276 = vrot.slane %v5274, 1
      %v5277 = vsel %vm5201, %v5272, %v5276
      %v5278 = vshrl.u32 %v5187, 16
      %v5280 = vor.u32 %v5278, %v5276
      %v5282 = vshll.u32 %v5188, 16
      %v5284 = vrot.slane %v5282, 1
      %v5285 = vsel %vm5201, %v5280, %v5284
      %v5286 = vshrl.u32 %v5188, 16
      %v5288 = vor.u32 %v5286, %v5284
      %v5290 = vshll.u32 %v5189, 16
      %v5292 = vrot.slane %v5290, 1
      %v5293 = vsel %vm5201, %v5288, %v5292
      %v5294 = vshrl.u32 %v5189, 16
      %v5296 = vor.u32 %v5294, %v5292
      %v5298 = vshll.u32 %v5190, 16
      %v5300 = vrot.slane %v5298, 1
      %v5301 = vsel %vm5201, %v5296, %v5300
      %v5302 = vshrl.u32 %v5190, 16
      %v5304 = vor.u32 %v5302, %v5300
      %v5306 = vshll.u32 %v5191, 16
      %v5308 = vrot.slane %v5306, 1
      %v5309 = vsel %vm5201, %v5304, %v5308
      %v5310 = vshrl.u32 %v5191, 16
      %v5312 = vor.u32 %v5310, %v5308
      %v5314 = vshll.u32 %v5192, 16
      %v5316 = vrot.slane %v5314, 1
      %v5317 = vsel %vm5201, %v5312, %v5316
      %v5318 = vshrl.u32 %v5192, 16
      %v5320 = vor.u32 %v5318, %v5316
      %v5322 = vshll.u32 %v5193, 16
      %v5324 = vrot.slane %v5322, 1
      %v5325 = vsel %vm5201, %v5320, %v5324
      %v5326 = vshrl.u32 %v5193, 16
      %v5328 = vor.u32 %v5326, %v5324
      %v5330 = vshll.u32 %v5194, 16
      %v5332 = vrot.slane %v5330, 1
      %v5333 = vsel %vm5201, %v5328, %v5332
      %v5334 = vshrl.u32 %v5194, 16
      %v5336 = vor.u32 %v5334, %v5332
      %v5338 = vshll.u32 %v5195, 16
      %v5340 = vrot.slane %v5338, 1
      %v5341 = vsel %vm5201, %v5336, %v5340
      %v5342 = vshrl.u32 %v5195, 16
      %v5344 = vor.u32 %v5342, %v5340
      %v5346 = vshll.u32 %v5196, 16
      %v5348 = vrot.slane %v5346, 1
      %v5349 = vsel %vm5201, %v5344, %v5348
      %v5350 = vshrl.u32 %v5196, 16
      %v5352 = vor.u32 %v5350, %v5348
      %v5354 = vshll.u32 %v5197, 16
      %v5356 = vrot.slane %v5354, 1
      %v5357 = vsel %vm5201, %v5352, %v5356
      %v5358 = vshrl.u32 %v5197, 16
      %v5360 = vor.u32 %v5358, %v5356
      %v5362 = vshll.u32 %v5198, 16
      %v5364 = vrot.slane %v5362, 1
      %v5365 = vsel %vm5201, %v5360, %v5364
      %v5366 = vshrl.u32 %v5198, 16
      %v5368 = vor.u32 %v5366, %v5364
      %v5370 = vshll.u32 %v5199, 16
      %v5372 = vrot.slane %v5370, 1
      %v5373 = vsel %vm5201, %v5368, %v5372
      %v5374 = vshrl.u32 %v5199, 16
      %v5376 = vor.u32 %v5374, %v5372
      %v5378 = vshll.u32 %v5200, 16
      %v5380 = vrot.slane %v5378, 1
      %v5381 = vsel %vm5201, %v5376, %v5380
      %v5383 = vsel %vm1291, %v5213, 0
      %v5386 = vsel %vm1291, %v5221, 0
      %v5389 = vsel %vm1291, %v5229, 0
      %v5392 = vsel %vm1291, %v5237, 0
      %v5395 = vsel %vm1291, %v5245, 0
      %v5398 = vsel %vm1291, %v5253, 0
      %v5401 = vsel %vm1291, %v5261, 0
      %v5404 = vsel %vm1291, %v5269, 0
      %v5407 = vsel %vm1291, %v5277, 0
      %v5410 = vsel %vm1291, %v5285, 0
      %v5413 = vsel %vm1291, %v5293, 0
      %v5416 = vsel %vm1291, %v5301, 0
      %v5419 = vsel %vm1291, %v5309, 0
      %v5422 = vsel %vm1291, %v5317, 0
      %v5425 = vsel %vm1291, %v5325, 0
      %v5428 = vsel %vm1291, %v5333, 0
      %v5431 = vsel %vm1291, %v5341, 0
      %v5434 = vsel %vm1291, %v5349, 0
      %v5437 = vsel %vm1291, %v5357, 0
      %v5440 = vsel %vm1291, %v5365, 0
      %v5443 = vsel %vm1291, %v5373, 0
      %v5446 = vsel %vm1291, %v5381, 0
      %v5449 = vsel %vm1358, %v5087, 0
      %5451 = vmatpush.bf16.msra.mxu0 0
      %5452 = vmatpush.bf16.msra.mxu0 0
      %5453 = vmatpush.bf16.msra.mxu0 0
      %5454 = vmatpush.bf16.msra.mxu0 0
      %5455 = vmatpush.bf16.msra.mxu0 0
      %5456 = vmatpush.bf16.msra.mxu0 0
      %5457 = vmatpush.bf16.msra.mxu0 0
      %5458 = vmatpush.bf16.msra.mxu0 %v5449
      %5459 = vmatmul.bf16.gmra.mxu0 %v5383
      %v5460 = vpop.f32.mrf.mxu0
      %v5461 = vadd.f32 0.0, %v5460
      %v5462 = vpop.f32.mrf.mxu0
      %v5463 = vadd.f32 0.0, %v5462
      %5464 = vmatmul.bf16.gmra.mxu0 %v5386
      %v5465 = vpop.f32.mrf.mxu0
      %v5466 = vadd.f32 0.0, %v5465
      %v5467 = vpop.f32.mrf.mxu0
      %v5468 = vadd.f32 0.0, %v5467
      %5469 = vmatmul.bf16.gmra.mxu0 %v5389
      %v5470 = vpop.f32.mrf.mxu0
      %v5471 = vadd.f32 0.0, %v5470
      %v5472 = vpop.f32.mrf.mxu0
      %v5473 = vadd.f32 0.0, %v5472
      %5474 = vmatmul.bf16.gmra.mxu0 %v5392
      %v5475 = vpop.f32.mrf.mxu0
      %v5476 = vadd.f32 0.0, %v5475
      %v5477 = vpop.f32.mrf.mxu0
      %v5478 = vadd.f32 0.0, %v5477
      %5479 = vmatmul.bf16.gmra.mxu0 %v5395
      %v5480 = vpop.f32.mrf.mxu0
      %v5481 = vadd.f32 0.0, %v5480
      %v5482 = vpop.f32.mrf.mxu0
      %v5483 = vadd.f32 0.0, %v5482
      %5484 = vmatmul.bf16.gmra.mxu0 %v5398
      %v5485 = vpop.f32.mrf.mxu0
      %v5486 = vadd.f32 0.0, %v5485
      %v5487 = vpop.f32.mrf.mxu0
      %v5488 = vadd.f32 0.0, %v5487
      %5489 = vmatmul.bf16.gmra.mxu0 %v5401
      %v5490 = vpop.f32.mrf.mxu0
      %v5491 = vadd.f32 0.0, %v5490
      %v5492 = vpop.f32.mrf.mxu0
      %v5493 = vadd.f32 0.0, %v5492
      %5494 = vmatmul.bf16.gmra.mxu0 %v5404
      %v5495 = vpop.f32.mrf.mxu0
      %v5496 = vadd.f32 0.0, %v5495
      %v5497 = vpop.f32.mrf.mxu0
      %v5498 = vadd.f32 0.0, %v5497
      %5499 = vmatmul.bf16.gmra.mxu0 %v5407
      %v5500 = vpop.f32.mrf.mxu0
      %v5501 = vadd.f32 0.0, %v5500
      %v5502 = vpop.f32.mrf.mxu0
      %v5503 = vadd.f32 0.0, %v5502
      %5504 = vmatmul.bf16.gmra.mxu0 %v5410
      %v5505 = vpop.f32.mrf.mxu0
      %v5506 = vadd.f32 0.0, %v5505
      %v5507 = vpop.f32.mrf.mxu0
      %v5508 = vadd.f32 0.0, %v5507
      %5509 = vmatmul.bf16.gmra.mxu0 %v5413
      %v5510 = vpop.f32.mrf.mxu0
      %v5511 = vadd.f32 0.0, %v5510
      %v5512 = vpop.f32.mrf.mxu0
      %v5513 = vadd.f32 0.0, %v5512
      %5514 = vmatmul.bf16.gmra.mxu0 %v5416
      %v5515 = vpop.f32.mrf.mxu0
      %v5516 = vadd.f32 0.0, %v5515
      %v5517 = vpop.f32.mrf.mxu0
      %v5518 = vadd.f32 0.0, %v5517
      %5519 = vmatmul.bf16.gmra.mxu0 %v5419
      %v5520 = vpop.f32.mrf.mxu0
      %v5521 = vadd.f32 0.0, %v5520
      %v5522 = vpop.f32.mrf.mxu0
      %v5523 = vadd.f32 0.0, %v5522
      %5524 = vmatmul.bf16.gmra.mxu0 %v5422
      %v5525 = vpop.f32.mrf.mxu0
      %v5526 = vadd.f32 0.0, %v5525
      %v5527 = vpop.f32.mrf.mxu0
      %v5528 = vadd.f32 0.0, %v5527
      %5529 = vmatmul.bf16.gmra.mxu0 %v5425
      %v5530 = vpop.f32.mrf.mxu0
      %v5531 = vadd.f32 0.0, %v5530
      %v5532 = vpop.f32.mrf.mxu0
      %v5533 = vadd.f32 0.0, %v5532
      %5534 = vmatmul.bf16.gmra.mxu0 %v5428
      %v5535 = vpop.f32.mrf.mxu0
      %v5536 = vadd.f32 0.0, %v5535
      %v5537 = vpop.f32.mrf.mxu0
      %v5538 = vadd.f32 0.0, %v5537
      %5539 = vmatmul.bf16.gmra.mxu0 %v5431
      %v5540 = vpop.f32.mrf.mxu0
      %v5541 = vadd.f32 0.0, %v5540
      %v5542 = vpop.f32.mrf.mxu0
      %v5543 = vadd.f32 0.0, %v5542
      %5544 = vmatmul.bf16.gmra.mxu0 %v5434
      %v5545 = vpop.f32.mrf.mxu0
      %v5546 = vadd.f32 0.0, %v5545
      %v5547 = vpop.f32.mrf.mxu0
      %v5548 = vadd.f32 0.0, %v5547
      %5549 = vmatmul.bf16.gmra.mxu0 %v5437
      %v5550 = vpop.f32.mrf.mxu0
      %v5551 = vadd.f32 0.0, %v5550
      %v5552 = vpop.f32.mrf.mxu0
      %v5553 = vadd.f32 0.0, %v5552
      %5554 = vmatmul.bf16.gmra.mxu0 %v5440
      %v5555 = vpop.f32.mrf.mxu0
      %v5556 = vadd.f32 0.0, %v5555
      %v5557 = vpop.f32.mrf.mxu0
      %v5558 = vadd.f32 0.0, %v5557
      %5559 = vmatmul.bf16.gmra.mxu0 %v5443
      %v5560 = vpop.f32.mrf.mxu0
      %v5561 = vadd.f32 0.0, %v5560
      %v5562 = vpop.f32.mrf.mxu0
      %v5563 = vadd.f32 0.0, %v5562
      %5564 = vmatmul.bf16.gmra.mxu0 %v5446
      %v5565 = vpop.f32.mrf.mxu0
      %v5566 = vadd.f32 0.0, %v5565
      %v5567 = vpop.f32.mrf.mxu0
      %v5568 = vadd.f32 0.0, %v5567
      %5569 = vdwg.mxu0
      %v5571 = vunpack.c.l.b16 %v5038
      %v5572 = vpack.c.b16 %v5133, %v5571
      %v5573 = vpack.c.b16 %v5135, %v5134
      %v5574 = vpack.c.b16 %v5137, %v5136
      %v5575 = vpack.c.b16 %v5139, %v5138
      %v5576 = vpack.c.b16 %v5141, %v5140
      %v5577 = vpack.c.b16 %v5143, %v5142
      %v5578 = vpack.c.b16 %v5145, %v5144
      %v5579 = vpack.c.b16 %v5147, %v5146
      %v5580 = vpack.c.b16 %v5149, %v5148
      %v5581 = vpack.c.b16 %v5151, %v5150
      %v5582 = vpack.c.b16 %v5153, %v5152
      %v5583 = vpack.c.b16 %v5155, %v5154
      %v5584 = vpack.c.b16 %v5157, %v5156
      %v5585 = vpack.c.b16 %v5159, %v5158
      %v5586 = vpack.c.b16 %v5161, %v5160
      %v5587 = vpack.c.b16 %v5163, %v5162
      %v5588 = vpack.c.b16 %v5165, %v5164
      %v5589 = vpack.c.b16 %v5167, %v5166
      %v5590 = vpack.c.b16 %v5169, %v5168
      %v5591 = vpack.c.b16 %v5171, %v5170
      %v5592 = vpack.c.b16 %v5173, %v5172
      %v5593 = vpack.c.b16 %v5175, %v5174
      %v5594 = vpack.c.b16 %v5176, %v5176
      %v5596 = vshrl.u32 %v5572, 16
      %v5598 = vrot.slane %v5596, 3
      %v5599 = vshll.u32 %v5572, 16
      %v5601 = vrot.slane %v5599, 4
      %v5602 = vor.u32 %v5598, %v5601
      %v5604 = vshrl.u32 %v5573, 16
      %v5606 = vrot.slane %v5604, 3
      %v5607 = vshll.u32 %v5573, 16
      %v5609 = vrot.slane %v5607, 4
      %v5610 = vor.u32 %v5606, %v5609
      %v5611 = vsel %vm1902, %v5602, %v5610
      %v5613 = vshrl.u32 %v5574, 16
      %v5615 = vrot.slane %v5613, 3
      %v5616 = vshll.u32 %v5574, 16
      %v5618 = vrot.slane %v5616, 4
      %v5619 = vor.u32 %v5615, %v5618
      %v5620 = vsel %vm1902, %v5610, %v5619
      %v5622 = vshrl.u32 %v5575, 16
      %v5624 = vrot.slane %v5622, 3
      %v5625 = vshll.u32 %v5575, 16
      %v5627 = vrot.slane %v5625, 4
      %v5628 = vor.u32 %v5624, %v5627
      %v5629 = vsel %vm1902, %v5619, %v5628
      %v5631 = vshrl.u32 %v5576, 16
      %v5633 = vrot.slane %v5631, 3
      %v5634 = vshll.u32 %v5576, 16
      %v5636 = vrot.slane %v5634, 4
      %v5637 = vor.u32 %v5633, %v5636
      %v5638 = vsel %vm1902, %v5628, %v5637
      %v5640 = vshrl.u32 %v5577, 16
      %v5642 = vrot.slane %v5640, 3
      %v5643 = vshll.u32 %v5577, 16
      %v5645 = vrot.slane %v5643, 4
      %v5646 = vor.u32 %v5642, %v5645
      %v5647 = vsel %vm1902, %v5637, %v5646
      %v5649 = vshrl.u32 %v5578, 16
      %v5651 = vrot.slane %v5649, 3
      %v5652 = vshll.u32 %v5578, 16
      %v5654 = vrot.slane %v5652, 4
      %v5655 = vor.u32 %v5651, %v5654
      %v5656 = vsel %vm1902, %v5646, %v5655
      %v5658 = vshrl.u32 %v5579, 16
      %v5660 = vrot.slane %v5658, 3
      %v5661 = vshll.u32 %v5579, 16
      %v5663 = vrot.slane %v5661, 4
      %v5664 = vor.u32 %v5660, %v5663
      %v5665 = vsel %vm1902, %v5655, %v5664
      %v5667 = vshrl.u32 %v5580, 16
      %v5669 = vrot.slane %v5667, 3
      %v5670 = vshll.u32 %v5580, 16
      %v5672 = vrot.slane %v5670, 4
      %v5673 = vor.u32 %v5669, %v5672
      %v5674 = vsel %vm1902, %v5664, %v5673
      %v5676 = vshrl.u32 %v5581, 16
      %v5678 = vrot.slane %v5676, 3
      %v5679 = vshll.u32 %v5581, 16
      %v5681 = vrot.slane %v5679, 4
      %v5682 = vor.u32 %v5678, %v5681
      %v5683 = vsel %vm1902, %v5673, %v5682
      %v5685 = vshrl.u32 %v5582, 16
      %v5687 = vrot.slane %v5685, 3
      %v5688 = vshll.u32 %v5582, 16
      %v5690 = vrot.slane %v5688, 4
      %v5691 = vor.u32 %v5687, %v5690
      %v5692 = vsel %vm1902, %v5682, %v5691
      %v5694 = vshrl.u32 %v5583, 16
      %v5696 = vrot.slane %v5694, 3
      %v5697 = vshll.u32 %v5583, 16
      %v5699 = vrot.slane %v5697, 4
      %v5700 = vor.u32 %v5696, %v5699
      %v5701 = vsel %vm1902, %v5691, %v5700
      %v5703 = vshrl.u32 %v5584, 16
      %v5705 = vrot.slane %v5703, 3
      %v5706 = vshll.u32 %v5584, 16
      %v5708 = vrot.slane %v5706, 4
      %v5709 = vor.u32 %v5705, %v5708
      %v5710 = vsel %vm1902, %v5700, %v5709
      %v5712 = vshrl.u32 %v5585, 16
      %v5714 = vrot.slane %v5712, 3
      %v5715 = vshll.u32 %v5585, 16
      %v5717 = vrot.slane %v5715, 4
      %v5718 = vor.u32 %v5714, %v5717
      %v5719 = vsel %vm1902, %v5709, %v5718
      %v5721 = vshrl.u32 %v5586, 16
      %v5723 = vrot.slane %v5721, 3
      %v5724 = vshll.u32 %v5586, 16
      %v5726 = vrot.slane %v5724, 4
      %v5727 = vor.u32 %v5723, %v5726
      %v5728 = vsel %vm1902, %v5718, %v5727
      %v5730 = vshrl.u32 %v5587, 16
      %v5732 = vrot.slane %v5730, 3
      %v5733 = vshll.u32 %v5587, 16
      %v5735 = vrot.slane %v5733, 4
      %v5736 = vor.u32 %v5732, %v5735
      %v5737 = vsel %vm1902, %v5727, %v5736
      %v5739 = vshrl.u32 %v5588, 16
      %v5741 = vrot.slane %v5739, 3
      %v5742 = vshll.u32 %v5588, 16
      %v5744 = vrot.slane %v5742, 4
      %v5745 = vor.u32 %v5741, %v5744
      %v5746 = vsel %vm1902, %v5736, %v5745
      %v5748 = vshrl.u32 %v5589, 16
      %v5750 = vrot.slane %v5748, 3
      %v5751 = vshll.u32 %v5589, 16
      %v5753 = vrot.slane %v5751, 4
      %v5754 = vor.u32 %v5750, %v5753
      %v5755 = vsel %vm1902, %v5745, %v5754
      %v5757 = vshrl.u32 %v5590, 16
      %v5759 = vrot.slane %v5757, 3
      %v5760 = vshll.u32 %v5590, 16
      %v5762 = vrot.slane %v5760, 4
      %v5763 = vor.u32 %v5759, %v5762
      %v5764 = vsel %vm1902, %v5754, %v5763
      %v5766 = vshrl.u32 %v5591, 16
      %v5768 = vrot.slane %v5766, 3
      %v5769 = vshll.u32 %v5591, 16
      %v5771 = vrot.slane %v5769, 4
      %v5772 = vor.u32 %v5768, %v5771
      %v5773 = vsel %vm1902, %v5763, %v5772
      %v5775 = vshrl.u32 %v5592, 16
      %v5777 = vrot.slane %v5775, 3
      %v5778 = vshll.u32 %v5592, 16
      %v5780 = vrot.slane %v5778, 4
      %v5781 = vor.u32 %v5777, %v5780
      %v5782 = vsel %vm1902, %v5772, %v5781
      %v5784 = vshrl.u32 %v5593, 16
      %v5786 = vrot.slane %v5784, 3
      %v5787 = vshll.u32 %v5593, 16
      %v5789 = vrot.slane %v5787, 4
      %v5790 = vor.u32 %v5786, %v5789
      %v5791 = vsel %vm1902, %v5781, %v5790
      %v5793 = vshrl.u32 %v5594, 16
      %v5795 = vrot.slane %v5793, 3
      %v5796 = vshll.u32 %v5594, 16
      %v5798 = vrot.slane %v5796, 4
      %v5799 = vor.u32 %v5795, %v5798
      %v5800 = vsel %vm1902, %v5790, %v5799
      %v5802 = vsel %vm1291, %v5611, 0
      %v5805 = vsel %vm1291, %v5620, 0
      %v5808 = vsel %vm1291, %v5629, 0
      %v5811 = vsel %vm1291, %v5638, 0
      %v5814 = vsel %vm1291, %v5647, 0
      %v5817 = vsel %vm1291, %v5656, 0
      %v5820 = vsel %vm1291, %v5665, 0
      %v5823 = vsel %vm1291, %v5674, 0
      %v5826 = vsel %vm1291, %v5683, 0
      %v5829 = vsel %vm1291, %v5692, 0
      %v5832 = vsel %vm1291, %v5701, 0
      %v5835 = vsel %vm1291, %v5710, 0
      %v5838 = vsel %vm1291, %v5719, 0
      %v5841 = vsel %vm1291, %v5728, 0
      %v5844 = vsel %vm1291, %v5737, 0
      %v5847 = vsel %vm1291, %v5746, 0
      %v5850 = vsel %vm1291, %v5755, 0
      %v5853 = vsel %vm1291, %v5764, 0
      %v5856 = vsel %vm1291, %v5773, 0
      %v5859 = vsel %vm1291, %v5782, 0
      %v5862 = vsel %vm1291, %v5791, 0
      %v5865 = vsel %vm1291, %v5800, 0
      %v5868 = vsel %vm1358, %v5084, 0
      %5870 = vmatpush.bf16.msra.mxu0 0
      %5871 = vmatpush.bf16.msra.mxu0 0
      %5872 = vmatpush.bf16.msra.mxu0 0
      %5873 = vmatpush.bf16.msra.mxu0 0
      %5874 = vmatpush.bf16.msra.mxu0 0
      %5875 = vmatpush.bf16.msra.mxu0 0
      %5876 = vmatpush.bf16.msra.mxu0 0
      %5877 = vmatpush.bf16.msra.mxu0 %v5868
      %5878 = vmatmul.bf16.gmra.mxu0 %v5802
      %v5879 = vpop.f32.mrf.mxu0
      %v5880 = vadd.f32 %v5461, %v5879
      %v5881 = vpop.f32.mrf.mxu0
      %v5882 = vadd.f32 %v5463, %v5881
      %5883 = vmatmul.bf16.gmra.mxu0 %v5805
      %v5884 = vpop.f32.mrf.mxu0
      %v5885 = vadd.f32 %v5466, %v5884
      %v5886 = vpop.f32.mrf.mxu0
      %v5887 = vadd.f32 %v5468, %v5886
      %5888 = vmatmul.bf16.gmra.mxu0 %v5808
      %v5889 = vpop.f32.mrf.mxu0
      %v5890 = vadd.f32 %v5471, %v5889
      %v5891 = vpop.f32.mrf.mxu0
      %v5892 = vadd.f32 %v5473, %v5891
      %5893 = vmatmul.bf16.gmra.mxu0 %v5811
      %v5894 = vpop.f32.mrf.mxu0
      %v5895 = vadd.f32 %v5476, %v5894
      %v5896 = vpop.f32.mrf.mxu0
      %v5897 = vadd.f32 %v5478, %v5896
      %5898 = vmatmul.bf16.gmra.mxu0 %v5814
      %v5899 = vpop.f32.mrf.mxu0
      %v5900 = vadd.f32 %v5481, %v5899
      %v5901 = vpop.f32.mrf.mxu0
      %v5902 = vadd.f32 %v5483, %v5901
      %5903 = vmatmul.bf16.gmra.mxu0 %v5817
      %v5904 = vpop.f32.mrf.mxu0
      %v5905 = vadd.f32 %v5486, %v5904
      %v5906 = vpop.f32.mrf.mxu0
      %v5907 = vadd.f32 %v5488, %v5906
      %5908 = vmatmul.bf16.gmra.mxu0 %v5820
      %v5909 = vpop.f32.mrf.mxu0
      %v5910 = vadd.f32 %v5491, %v5909
      %v5911 = vpop.f32.mrf.mxu0
      %v5912 = vadd.f32 %v5493, %v5911
      %5913 = vmatmul.bf16.gmra.mxu0 %v5823
      %v5914 = vpop.f32.mrf.mxu0
      %v5915 = vadd.f32 %v5496, %v5914
      %v5916 = vpop.f32.mrf.mxu0
      %v5917 = vadd.f32 %v5498, %v5916
      %5918 = vmatmul.bf16.gmra.mxu0 %v5826
      %v5919 = vpop.f32.mrf.mxu0
      %v5920 = vadd.f32 %v5501, %v5919
      %v5921 = vpop.f32.mrf.mxu0
      %v5922 = vadd.f32 %v5503, %v5921
      %5923 = vmatmul.bf16.gmra.mxu0 %v5829
      %v5924 = vpop.f32.mrf.mxu0
      %v5925 = vadd.f32 %v5506, %v5924
      %v5926 = vpop.f32.mrf.mxu0
      %v5927 = vadd.f32 %v5508, %v5926
      %5928 = vmatmul.bf16.gmra.mxu0 %v5832
      %v5929 = vpop.f32.mrf.mxu0
      %v5930 = vadd.f32 %v5511, %v5929
      %v5931 = vpop.f32.mrf.mxu0
      %v5932 = vadd.f32 %v5513, %v5931
      %5933 = vmatmul.bf16.gmra.mxu0 %v5835
      %v5934 = vpop.f32.mrf.mxu0
      %v5935 = vadd.f32 %v5516, %v5934
      %v5936 = vpop.f32.mrf.mxu0
      %v5937 = vadd.f32 %v5518, %v5936
      %5938 = vmatmul.bf16.gmra.mxu0 %v5838
      %v5939 = vpop.f32.mrf.mxu0
      %v5940 = vadd.f32 %v5521, %v5939
      %v5941 = vpop.f32.mrf.mxu0
      %v5942 = vadd.f32 %v5523, %v5941
      %5943 = vmatmul.bf16.gmra.mxu0 %v5841
      %v5944 = vpop.f32.mrf.mxu0
      %v5945 = vadd.f32 %v5526, %v5944
      %v5946 = vpop.f32.mrf.mxu0
      %v5947 = vadd.f32 %v5528, %v5946
      %5948 = vmatmul.bf16.gmra.mxu0 %v5844
      %v5949 = vpop.f32.mrf.mxu0
      %v5950 = vadd.f32 %v5531, %v5949
      %v5951 = vpop.f32.mrf.mxu0
      %v5952 = vadd.f32 %v5533, %v5951
      %5953 = vmatmul.bf16.gmra.mxu0 %v5847
      %v5954 = vpop.f32.mrf.mxu0
      %v5955 = vadd.f32 %v5536, %v5954
      %v5956 = vpop.f32.mrf.mxu0
      %v5957 = vadd.f32 %v5538, %v5956
      %5958 = vmatmul.bf16.gmra.mxu0 %v5850
      %v5959 = vpop.f32.mrf.mxu0
      %v5960 = vadd.f32 %v5541, %v5959
      %v5961 = vpop.f32.mrf.mxu0
      %v5962 = vadd.f32 %v5543, %v5961
      %5963 = vmatmul.bf16.gmra.mxu0 %v5853
      %v5964 = vpop.f32.mrf.mxu0
      %v5965 = vadd.f32 %v5546, %v5964
      %v5966 = vpop.f32.mrf.mxu0
      %v5967 = vadd.f32 %v5548, %v5966
      %5968 = vmatmul.bf16.gmra.mxu0 %v5856
      %v5969 = vpop.f32.mrf.mxu0
      %v5970 = vadd.f32 %v5551, %v5969
      %v5971 = vpop.f32.mrf.mxu0
      %v5972 = vadd.f32 %v5553, %v5971
      %5973 = vmatmul.bf16.gmra.mxu0 %v5859
      %v5974 = vpop.f32.mrf.mxu0
      %v5975 = vadd.f32 %v5556, %v5974
      %v5976 = vpop.f32.mrf.mxu0
      %v5977 = vadd.f32 %v5558, %v5976
      %5978 = vmatmul.bf16.gmra.mxu0 %v5862
      %v5979 = vpop.f32.mrf.mxu0
      %v5980 = vadd.f32 %v5561, %v5979
      %v5981 = vpop.f32.mrf.mxu0
      %v5982 = vadd.f32 %v5563, %v5981
      %5983 = vmatmul.bf16.gmra.mxu0 %v5865
      %v5984 = vpop.f32.mrf.mxu0
      %v5985 = vadd.f32 %v5566, %v5984
      %v5986 = vpop.f32.mrf.mxu0
      %v5987 = vadd.f32 %v5568, %v5986
      %5988 = vdwg.mxu0
      %v5989 = vld [vmem:[#allocation2 + $0xc] sm:$0xe]
      %v5990 = vld [vmem:[#allocation2 + $0xbc] sm:$0x3]
      %s5991 = scalar_lea.vmem %s4, 22
      %v5992 = vld [vmem:[%s5991] sm:$0x3]
      %v5995 = vunpack.c.l.b16 %v5989
      %v5996 = vunpack.c.l.b16 %v5990
      %v5997 = vpack.c.b16 %v5134, %v5995
      %v5998 = vpack.c.b16 %v5996, %v5996
      %v6000 = vshrl.u32 %v5997, 16
      %v6002 = vrot.slane %v6000, 1
      %v6003 = vshll.u32 %v5997, 16
      %v6005 = vrot.slane %v6003, 2
      %v6006 = vor.u32 %v6002, %v6005
      %v6007 = vrot.slane %v5214, 1
      %v6008 = vrot.slane %v5210, 2
      %v6009 = vor.u32 %v6007, %v6008
      %v6010 = vsel %vm3969, %v6006, %v6009
      %v6011 = vrot.slane %v5222, 1
      %v6012 = vrot.slane %v5218, 2
      %v6013 = vor.u32 %v6011, %v6012
      %v6014 = vsel %vm3969, %v6009, %v6013
      %v6015 = vrot.slane %v5230, 1
      %v6016 = vrot.slane %v5226, 2
      %v6017 = vor.u32 %v6015, %v6016
      %v6018 = vsel %vm3969, %v6013, %v6017
      %v6019 = vrot.slane %v5238, 1
      %v6020 = vrot.slane %v5234, 2
      %v6021 = vor.u32 %v6019, %v6020
      %v6022 = vsel %vm3969, %v6017, %v6021
      %v6023 = vrot.slane %v5246, 1
      %v6024 = vrot.slane %v5242, 2
      %v6025 = vor.u32 %v6023, %v6024
      %v6026 = vsel %vm3969, %v6021, %v6025
      %v6027 = vrot.slane %v5254, 1
      %v6028 = vrot.slane %v5250, 2
      %v6029 = vor.u32 %v6027, %v6028
      %v6030 = vsel %vm3969, %v6025, %v6029
      %v6031 = vrot.slane %v5262, 1
      %v6032 = vrot.slane %v5258, 2
      %v6033 = vor.u32 %v6031, %v6032
      %v6034 = vsel %vm3969, %v6029, %v6033
      %v6035 = vrot.slane %v5270, 1
      %v6036 = vrot.slane %v5266, 2
      %v6037 = vor.u32 %v6035, %v6036
      %v6038 = vsel %vm3969, %v6033, %v6037
      %v6039 = vrot.slane %v5278, 1
      %v6040 = vrot.slane %v5274, 2
      %v6041 = vor.u32 %v6039, %v6040
      %v6042 = vsel %vm3969, %v6037, %v6041
      %v6043 = vrot.slane %v5286, 1
      %v6044 = vrot.slane %v5282, 2
      %v6045 = vor.u32 %v6043, %v6044
      %v6046 = vsel %vm3969, %v6041, %v6045
      %v6047 = vrot.slane %v5294, 1
      %v6048 = vrot.slane %v5290, 2
      %v6049 = vor.u32 %v6047, %v6048
      %v6050 = vsel %vm3969, %v6045, %v6049
      %v6051 = vrot.slane %v5302, 1
      %v6052 = vrot.slane %v5298, 2
      %v6053 = vor.u32 %v6051, %v6052
      %v6054 = vsel %vm3969, %v6049, %v6053
      %v6055 = vrot.slane %v5310, 1
      %v6056 = vrot.slane %v5306, 2
      %v6057 = vor.u32 %v6055, %v6056
      %v6058 = vsel %vm3969, %v6053, %v6057
      %v6059 = vrot.slane %v5318, 1
      %v6060 = vrot.slane %v5314, 2
      %v6061 = vor.u32 %v6059, %v6060
      %v6062 = vsel %vm3969, %v6057, %v6061
      %v6063 = vrot.slane %v5326, 1
      %v6064 = vrot.slane %v5322, 2
      %v6065 = vor.u32 %v6063, %v6064
      %v6066 = vsel %vm3969, %v6061, %v6065
      %v6067 = vrot.slane %v5334, 1
      %v6068 = vrot.slane %v5330, 2
      %v6069 = vor.u32 %v6067, %v6068
      %v6070 = vsel %vm3969, %v6065, %v6069
      %v6071 = vrot.slane %v5342, 1
      %v6072 = vrot.slane %v5338, 2
      %v6073 = vor.u32 %v6071, %v6072
      %v6074 = vsel %vm3969, %v6069, %v6073
      %v6075 = vrot.slane %v5350, 1
      %v6076 = vrot.slane %v5346, 2
      %v6077 = vor.u32 %v6075, %v6076
      %v6078 = vsel %vm3969, %v6073, %v6077
      %v6079 = vrot.slane %v5358, 1
      %v6080 = vrot.slane %v5354, 2
      %v6081 = vor.u32 %v6079, %v6080
      %v6082 = vsel %vm3969, %v6077, %v6081
      %v6083 = vrot.slane %v5366, 1
      %v6084 = vrot.slane %v5362, 2
      %v6085 = vor.u32 %v6083, %v6084
      %v6086 = vsel %vm3969, %v6081, %v6085
      %v6087 = vrot.slane %v5374, 1
      %v6088 = vrot.slane %v5370, 2
      %v6089 = vor.u32 %v6087, %v6088
      %v6090 = vsel %vm3969, %v6085, %v6089
      %v6092 = vshrl.u32 %v5998, 16
      %v6094 = vrot.slane %v6092, 1
      %v6095 = vshll.u32 %v5998, 16
      %v6097 = vrot.slane %v6095, 2
      %v6098 = vor.u32 %v6094, %v6097
      %v6099 = vsel %vm3969, %v6089, %v6098
      %v6101 = vsel %vm1291, %v6010, 0
      %v6104 = vsel %vm1291, %v6014, 0
      %v6107 = vsel %vm1291, %v6018, 0
      %v6110 = vsel %vm1291, %v6022, 0
      %v6113 = vsel %vm1291, %v6026, 0
      %v6116 = vsel %vm1291, %v6030, 0
      %v6119 = vsel %vm1291, %v6034, 0
      %v6122 = vsel %vm1291, %v6038, 0
      %v6125 = vsel %vm1291, %v6042, 0
      %v6128 = vsel %vm1291, %v6046, 0
      %v6131 = vsel %vm1291, %v6050, 0
      %v6134 = vsel %vm1291, %v6054, 0
      %v6137 = vsel %vm1291, %v6058, 0
      %v6140 = vsel %vm1291, %v6062, 0
      %v6143 = vsel %vm1291, %v6066, 0
      %v6146 = vsel %vm1291, %v6070, 0
      %v6149 = vsel %vm1291, %v6074, 0
      %v6152 = vsel %vm1291, %v6078, 0
      %v6155 = vsel %vm1291, %v6082, 0
      %v6158 = vsel %vm1291, %v6086, 0
      %v6161 = vsel %vm1291, %v6090, 0
      %v6164 = vsel %vm1291, %v6099, 0
      %v6167 = vsel %vm1358, %v5992, 0
      %6169 = vmatpush.bf16.msra.mxu0 0
      %6170 = vmatpush.bf16.msra.mxu0 0
      %6171 = vmatpush.bf16.msra.mxu0 0
      %6172 = vmatpush.bf16.msra.mxu0 0
      %6173 = vmatpush.bf16.msra.mxu0 0
      %6174 = vmatpush.bf16.msra.mxu0 0
      %6175 = vmatpush.bf16.msra.mxu0 0
      %6176 = vmatpush.bf16.msra.mxu0 %v6167
      %6177 = vmatmul.bf16.gmra.mxu0 %v6101
      %v6178 = vpop.f32.mrf.mxu0
      %v6179 = vadd.f32 0.0, %v6178
      %v6180 = vpop.f32.mrf.mxu0
      %v6181 = vadd.f32 0.0, %v6180
      %6182 = vmatmul.bf16.gmra.mxu0 %v6104
      %v6183 = vpop.f32.mrf.mxu0
      %v6184 = vadd.f32 0.0, %v6183
      %v6185 = vpop.f32.mrf.mxu0
      %v6186 = vadd.f32 0.0, %v6185
      %6187 = vmatmul.bf16.gmra.mxu0 %v6107
      %v6188 = vpop.f32.mrf.mxu0
      %v6189 = vadd.f32 0.0, %v6188
      %v6190 = vpop.f32.mrf.mxu0
      %v6191 = vadd.f32 0.0, %v6190
      %6192 = vmatmul.bf16.gmra.mxu0 %v6110
      %v6193 = vpop.f32.mrf.mxu0
      %v6194 = vadd.f32 0.0, %v6193
      %v6195 = vpop.f32.mrf.mxu0
      %v6196 = vadd.f32 0.0, %v6195
      %6197 = vmatmul.bf16.gmra.mxu0 %v6113
      %v6198 = vpop.f32.mrf.mxu0
      %v6199 = vadd.f32 0.0, %v6198
      %v6200 = vpop.f32.mrf.mxu0
      %v6201 = vadd.f32 0.0, %v6200
      %6202 = vmatmul.bf16.gmra.mxu0 %v6116
      %v6203 = vpop.f32.mrf.mxu0
      %v6204 = vadd.f32 0.0, %v6203
      %v6205 = vpop.f32.mrf.mxu0
      %v6206 = vadd.f32 0.0, %v6205
      %6207 = vmatmul.bf16.gmra.mxu0 %v6119
      %v6208 = vpop.f32.mrf.mxu0
      %v6209 = vadd.f32 0.0, %v6208
      %v6210 = vpop.f32.mrf.mxu0
      %v6211 = vadd.f32 0.0, %v6210
      %6212 = vmatmul.bf16.gmra.mxu0 %v6122
      %v6213 = vpop.f32.mrf.mxu0
      %v6214 = vadd.f32 0.0, %v6213
      %v6215 = vpop.f32.mrf.mxu0
      %v6216 = vadd.f32 0.0, %v6215
      %6217 = vmatmul.bf16.gmra.mxu0 %v6125
      %v6218 = vpop.f32.mrf.mxu0
      %v6219 = vadd.f32 0.0, %v6218
      %v6220 = vpop.f32.mrf.mxu0
      %v6221 = vadd.f32 0.0, %v6220
      %6222 = vmatmul.bf16.gmra.mxu0 %v6128
      %v6223 = vpop.f32.mrf.mxu0
      %v6224 = vadd.f32 0.0, %v6223
      %v6225 = vpop.f32.mrf.mxu0
      %v6226 = vadd.f32 0.0, %v6225
      %6227 = vmatmul.bf16.gmra.mxu0 %v6131
      %v6228 = vpop.f32.mrf.mxu0
      %v6229 = vadd.f32 0.0, %v6228
      %v6230 = vpop.f32.mrf.mxu0
      %v6231 = vadd.f32 0.0, %v6230
      %6232 = vmatmul.bf16.gmra.mxu0 %v6134
      %v6233 = vpop.f32.mrf.mxu0
      %v6234 = vadd.f32 0.0, %v6233
      %v6235 = vpop.f32.mrf.mxu0
      %v6236 = vadd.f32 0.0, %v6235
      %6237 = vmatmul.bf16.gmra.mxu0 %v6137
      %v6238 = vpop.f32.mrf.mxu0
      %v6239 = vadd.f32 0.0, %v6238
      %v6240 = vpop.f32.mrf.mxu0
      %v6241 = vadd.f32 0.0, %v6240
      %6242 = vmatmul.bf16.gmra.mxu0 %v6140
      %v6243 = vpop.f32.mrf.mxu0
      %v6244 = vadd.f32 0.0, %v6243
      %v6245 = vpop.f32.mrf.mxu0
      %v6246 = vadd.f32 0.0, %v6245
      %6247 = vmatmul.bf16.gmra.mxu0 %v6143
      %v6248 = vpop.f32.mrf.mxu0
      %v6249 = vadd.f32 0.0, %v6248
      %v6250 = vpop.f32.mrf.mxu0
      %v6251 = vadd.f32 0.0, %v6250
      %6252 = vmatmul.bf16.gmra.mxu0 %v6146
      %v6253 = vpop.f32.mrf.mxu0
      %v6254 = vadd.f32 0.0, %v6253
      %v6255 = vpop.f32.mrf.mxu0
      %v6256 = vadd.f32 0.0, %v6255
      %6257 = vmatmul.bf16.gmra.mxu0 %v6149
      %v6258 = vpop.f32.mrf.mxu0
      %v6259 = vadd.f32 0.0, %v6258
      %v6260 = vpop.f32.mrf.mxu0
      %v6261 = vadd.f32 0.0, %v6260
      %6262 = vmatmul.bf16.gmra.mxu0 %v6152
      %v6263 = vpop.f32.mrf.mxu0
      %v6264 = vadd.f32 0.0, %v6263
      %v6265 = vpop.f32.mrf.mxu0
      %v6266 = vadd.f32 0.0, %v6265
      %6267 = vmatmul.bf16.gmra.mxu0 %v6155
      %v6268 = vpop.f32.mrf.mxu0
      %v6269 = vadd.f32 0.0, %v6268
      %v6270 = vpop.f32.mrf.mxu0
      %v6271 = vadd.f32 0.0, %v6270
      %6272 = vmatmul.bf16.gmra.mxu0 %v6158
      %v6273 = vpop.f32.mrf.mxu0
      %v6274 = vadd.f32 0.0, %v6273
      %v6275 = vpop.f32.mrf.mxu0
      %v6276 = vadd.f32 0.0, %v6275
      %6277 = vmatmul.bf16.gmra.mxu0 %v6161
      %v6278 = vpop.f32.mrf.mxu0
      %v6279 = vadd.f32 0.0, %v6278
      %v6280 = vpop.f32.mrf.mxu0
      %v6281 = vadd.f32 0.0, %v6280
      %6282 = vmatmul.bf16.gmra.mxu0 %v6164
      %v6283 = vpop.f32.mrf.mxu0
      %v6284 = vadd.f32 0.0, %v6283
      %v6285 = vpop.f32.mrf.mxu0
      %v6286 = vadd.f32 0.0, %v6285
      %6287 = vdwg.mxu0
      %v6288 = vadd.f32 %v5880, %v6179
      %v6289 = vadd.f32 %v5882, %v6181
      %v6290 = vadd.f32 %v5885, %v6184
      %v6291 = vadd.f32 %v5887, %v6186
      %v6292 = vadd.f32 %v5890, %v6189
      %v6293 = vadd.f32 %v5892, %v6191
      %v6294 = vadd.f32 %v5895, %v6194
      %v6295 = vadd.f32 %v5897, %v6196
      %v6296 = vadd.f32 %v5900, %v6199
      %v6297 = vadd.f32 %v5902, %v6201
      %v6298 = vadd.f32 %v5905, %v6204
      %v6299 = vadd.f32 %v5907, %v6206
      %v6300 = vadd.f32 %v5910, %v6209
      %v6301 = vadd.f32 %v5912, %v6211
      %v6302 = vadd.f32 %v5915, %v6214
      %v6303 = vadd.f32 %v5917, %v6216
      %v6304 = vadd.f32 %v5920, %v6219
      %v6305 = vadd.f32 %v5922, %v6221
      %v6306 = vadd.f32 %v5925, %v6224
      %v6307 = vadd.f32 %v5927, %v6226
      %v6308 = vadd.f32 %v5930, %v6229
      %v6309 = vadd.f32 %v5932, %v6231
      %v6310 = vadd.f32 %v5935, %v6234
      %v6311 = vadd.f32 %v5937, %v6236
      %v6312 = vadd.f32 %v5940, %v6239
      %v6313 = vadd.f32 %v5942, %v6241
      %v6314 = vadd.f32 %v5945, %v6244
      %v6315 = vadd.f32 %v5947, %v6246
      %v6316 = vadd.f32 %v5950, %v6249
      %v6317 = vadd.f32 %v5952, %v6251
      %v6318 = vadd.f32 %v5955, %v6254
      %v6319 = vadd.f32 %v5957, %v6256
      %v6320 = vadd.f32 %v5960, %v6259
      %v6321 = vadd.f32 %v5962, %v6261
      %v6322 = vadd.f32 %v5965, %v6264
      %v6323 = vadd.f32 %v5967, %v6266
      %v6324 = vadd.f32 %v5970, %v6269
      %v6325 = vadd.f32 %v5972, %v6271
      %v6326 = vadd.f32 %v5975, %v6274
      %v6327 = vadd.f32 %v5977, %v6276
      %v6328 = vadd.f32 %v5980, %v6279
      %v6329 = vadd.f32 %v5982, %v6281
      %v6330 = vadd.f32 %v5985, %v6284
      %v6331 = vadd.f32 %v5987, %v6286
      %v6332 = vld [vmem:[#allocation2 + $0x20] sm:$0xe]
      %s6333 = scalar_lea.vmem %s4, 24
      %v6334 = vld [vmem:[%s6333] sm:$0x3]
      %v6336 = vunpack.c.l.b16 %v6332
      %v6337 = vpack.c.b16 %v1017, %v6336
      %v6339 = vshrl.u32 %v6337, 16
      %v6341 = vrot.slane %v6339, 1
      %v6342 = vshll.u32 %v6337, 16
      %v6344 = vrot.slane %v6342, 2
      %v6345 = vor.u32 %v6341, %v6344
      %v6346 = vrot.slane %v1094, 1
      %v6347 = vrot.slane %v1097, 2
      %v6348 = vor.u32 %v6346, %v6347
      %v6349 = vsel %vm3969, %v6345, %v6348
      %v6350 = vrot.slane %v1103, 1
      %v6351 = vrot.slane %v1106, 2
      %v6352 = vor.u32 %v6350, %v6351
      %v6353 = vsel %vm3969, %v6348, %v6352
      %v6354 = vrot.slane %v1112, 1
      %v6355 = vrot.slane %v1115, 2
      %v6356 = vor.u32 %v6354, %v6355
      %v6357 = vsel %vm3969, %v6352, %v6356
      %v6358 = vrot.slane %v1121, 1
      %v6359 = vrot.slane %v1124, 2
      %v6360 = vor.u32 %v6358, %v6359
      %v6361 = vsel %vm3969, %v6356, %v6360
      %v6362 = vrot.slane %v1130, 1
      %v6363 = vrot.slane %v1133, 2
      %v6364 = vor.u32 %v6362, %v6363
      %v6365 = vsel %vm3969, %v6360, %v6364
      %v6366 = vrot.slane %v1139, 1
      %v6367 = vrot.slane %v1142, 2
      %v6368 = vor.u32 %v6366, %v6367
      %v6369 = vsel %vm3969, %v6364, %v6368
      %v6370 = vrot.slane %v1148, 1
      %v6371 = vrot.slane %v1151, 2
      %v6372 = vor.u32 %v6370, %v6371
      %v6373 = vsel %vm3969, %v6368, %v6372
      %v6374 = vrot.slane %v1157, 1
      %v6375 = vrot.slane %v1160, 2
      %v6376 = vor.u32 %v6374, %v6375
      %v6377 = vsel %vm3969, %v6372, %v6376
      %v6378 = vrot.slane %v1166, 1
      %v6379 = vrot.slane %v1169, 2
      %v6380 = vor.u32 %v6378, %v6379
      %v6381 = vsel %vm3969, %v6376, %v6380
      %v6382 = vrot.slane %v1175, 1
      %v6383 = vrot.slane %v1178, 2
      %v6384 = vor.u32 %v6382, %v6383
      %v6385 = vsel %vm3969, %v6380, %v6384
      %v6386 = vrot.slane %v1184, 1
      %v6387 = vrot.slane %v1187, 2
      %v6388 = vor.u32 %v6386, %v6387
      %v6389 = vsel %vm3969, %v6384, %v6388
      %v6390 = vrot.slane %v1193, 1
      %v6391 = vrot.slane %v1196, 2
      %v6392 = vor.u32 %v6390, %v6391
      %v6393 = vsel %vm3969, %v6388, %v6392
      %v6394 = vrot.slane %v1202, 1
      %v6395 = vrot.slane %v1205, 2
      %v6396 = vor.u32 %v6394, %v6395
      %v6397 = vsel %vm3969, %v6392, %v6396
      %v6398 = vrot.slane %v1211, 1
      %v6399 = vrot.slane %v1214, 2
      %v6400 = vor.u32 %v6398, %v6399
      %v6401 = vsel %vm3969, %v6396, %v6400
      %v6402 = vrot.slane %v1220, 1
      %v6403 = vrot.slane %v1223, 2
      %v6404 = vor.u32 %v6402, %v6403
      %v6405 = vsel %vm3969, %v6400, %v6404
      %v6406 = vrot.slane %v1229, 1
      %v6407 = vrot.slane %v1232, 2
      %v6408 = vor.u32 %v6406, %v6407
      %v6409 = vsel %vm3969, %v6404, %v6408
      %v6410 = vrot.slane %v1238, 1
      %v6411 = vrot.slane %v1241, 2
      %v6412 = vor.u32 %v6410, %v6411
      %v6413 = vsel %vm3969, %v6408, %v6412
      %v6414 = vrot.slane %v1247, 1
      %v6415 = vrot.slane %v1250, 2
      %v6416 = vor.u32 %v6414, %v6415
      %v6417 = vsel %vm3969, %v6412, %v6416
      %v6418 = vrot.slane %v1256, 1
      %v6419 = vrot.slane %v1259, 2
      %v6420 = vor.u32 %v6418, %v6419
      %v6421 = vsel %vm3969, %v6416, %v6420
      %v6422 = vrot.slane %v1265, 1
      %v6423 = vrot.slane %v1268, 2
      %v6424 = vor.u32 %v6422, %v6423
      %v6425 = vsel %vm3969, %v6420, %v6424
      %v6426 = vrot.slane %v1274, 1
      %v6427 = vrot.slane %v1277, 2
      %v6428 = vor.u32 %v6426, %v6427
      %v6429 = vsel %vm3969, %v6424, %v6428
      %v6431 = vshrl.u32 %v2795, 16
      %v6433 = vrot.slane %v6431, 1
      %v6434 = vshll.u32 %v2795, 16
      %v6436 = vrot.slane %v6434, 2
      %v6437 = vor.u32 %v6433, %v6436
      %v6438 = vsel %vm3969, %v6428, %v6437
      %v6440 = vsel %vm1291, %v6349, 0
      %v6443 = vsel %vm1291, %v6353, 0
      %v6446 = vsel %vm1291, %v6357, 0
      %v6449 = vsel %vm1291, %v6361, 0
      %v6452 = vsel %vm1291, %v6365, 0
      %v6455 = vsel %vm1291, %v6369, 0
      %v6458 = vsel %vm1291, %v6373, 0
      %v6461 = vsel %vm1291, %v6377, 0
      %v6464 = vsel %vm1291, %v6381, 0
      %v6467 = vsel %vm1291, %v6385, 0
      %v6470 = vsel %vm1291, %v6389, 0
      %v6473 = vsel %vm1291, %v6393, 0
      %v6476 = vsel %vm1291, %v6397, 0
      %v6479 = vsel %vm1291, %v6401, 0
      %v6482 = vsel %vm1291, %v6405, 0
      %v6485 = vsel %vm1291, %v6409, 0
      %v6488 = vsel %vm1291, %v6413, 0
      %v6491 = vsel %vm1291, %v6417, 0
      %v6494 = vsel %vm1291, %v6421, 0
      %v6497 = vsel %vm1291, %v6425, 0
      %v6500 = vsel %vm1291, %v6429, 0
      %v6503 = vsel %vm1291, %v6438, 0
      %v6506 = vsel %vm1358, %v6334, 0
      %6508 = vmatpush.bf16.msra.mxu0 0
      %6509 = vmatpush.bf16.msra.mxu0 0
      %6510 = vmatpush.bf16.msra.mxu0 0
      %6511 = vmatpush.bf16.msra.mxu0 0
      %6512 = vmatpush.bf16.msra.mxu0 0
      %6513 = vmatpush.bf16.msra.mxu0 0
      %6514 = vmatpush.bf16.msra.mxu0 0
      %6515 = vmatpush.bf16.msra.mxu0 %v6506
      %6516 = vmatmul.bf16.gmra.mxu0 %v6440
      %v6517 = vpop.f32.mrf.mxu0
      %v6518 = vadd.f32 0.0, %v6517
      %v6519 = vpop.f32.mrf.mxu0
      %v6520 = vadd.f32 0.0, %v6519
      %6521 = vmatmul.bf16.gmra.mxu0 %v6443
      %v6522 = vpop.f32.mrf.mxu0
      %v6523 = vadd.f32 0.0, %v6522
      %v6524 = vpop.f32.mrf.mxu0
      %v6525 = vadd.f32 0.0, %v6524
      %6526 = vmatmul.bf16.gmra.mxu0 %v6446
      %v6527 = vpop.f32.mrf.mxu0
      %v6528 = vadd.f32 0.0, %v6527
      %v6529 = vpop.f32.mrf.mxu0
      %v6530 = vadd.f32 0.0, %v6529
      %6531 = vmatmul.bf16.gmra.mxu0 %v6449
      %v6532 = vpop.f32.mrf.mxu0
      %v6533 = vadd.f32 0.0, %v6532
      %v6534 = vpop.f32.mrf.mxu0
      %v6535 = vadd.f32 0.0, %v6534
      %6536 = vmatmul.bf16.gmra.mxu0 %v6452
      %v6537 = vpop.f32.mrf.mxu0
      %v6538 = vadd.f32 0.0, %v6537
      %v6539 = vpop.f32.mrf.mxu0
      %v6540 = vadd.f32 0.0, %v6539
      %6541 = vmatmul.bf16.gmra.mxu0 %v6455
      %v6542 = vpop.f32.mrf.mxu0
      %v6543 = vadd.f32 0.0, %v6542
      %v6544 = vpop.f32.mrf.mxu0
      %v6545 = vadd.f32 0.0, %v6544
      %6546 = vmatmul.bf16.gmra.mxu0 %v6458
      %v6547 = vpop.f32.mrf.mxu0
      %v6548 = vadd.f32 0.0, %v6547
      %v6549 = vpop.f32.mrf.mxu0
      %v6550 = vadd.f32 0.0, %v6549
      %6551 = vmatmul.bf16.gmra.mxu0 %v6461
      %v6552 = vpop.f32.mrf.mxu0
      %v6553 = vadd.f32 0.0, %v6552
      %v6554 = vpop.f32.mrf.mxu0
      %v6555 = vadd.f32 0.0, %v6554
      %6556 = vmatmul.bf16.gmra.mxu0 %v6464
      %v6557 = vpop.f32.mrf.mxu0
      %v6558 = vadd.f32 0.0, %v6557
      %v6559 = vpop.f32.mrf.mxu0
      %v6560 = vadd.f32 0.0, %v6559
      %6561 = vmatmul.bf16.gmra.mxu0 %v6467
      %v6562 = vpop.f32.mrf.mxu0
      %v6563 = vadd.f32 0.0, %v6562
      %v6564 = vpop.f32.mrf.mxu0
      %v6565 = vadd.f32 0.0, %v6564
      %6566 = vmatmul.bf16.gmra.mxu0 %v6470
      %v6567 = vpop.f32.mrf.mxu0
      %v6568 = vadd.f32 0.0, %v6567
      %v6569 = vpop.f32.mrf.mxu0
      %v6570 = vadd.f32 0.0, %v6569
      %6571 = vmatmul.bf16.gmra.mxu0 %v6473
      %v6572 = vpop.f32.mrf.mxu0
      %v6573 = vadd.f32 0.0, %v6572
      %v6574 = vpop.f32.mrf.mxu0
      %v6575 = vadd.f32 0.0, %v6574
      %6576 = vmatmul.bf16.gmra.mxu0 %v6476
      %v6577 = vpop.f32.mrf.mxu0
      %v6578 = vadd.f32 0.0, %v6577
      %v6579 = vpop.f32.mrf.mxu0
      %v6580 = vadd.f32 0.0, %v6579
      %6581 = vmatmul.bf16.gmra.mxu0 %v6479
      %v6582 = vpop.f32.mrf.mxu0
      %v6583 = vadd.f32 0.0, %v6582
      %v6584 = vpop.f32.mrf.mxu0
      %v6585 = vadd.f32 0.0, %v6584
      %6586 = vmatmul.bf16.gmra.mxu0 %v6482
      %v6587 = vpop.f32.mrf.mxu0
      %v6588 = vadd.f32 0.0, %v6587
      %v6589 = vpop.f32.mrf.mxu0
      %v6590 = vadd.f32 0.0, %v6589
      %6591 = vmatmul.bf16.gmra.mxu0 %v6485
      %v6592 = vpop.f32.mrf.mxu0
      %v6593 = vadd.f32 0.0, %v6592
      %v6594 = vpop.f32.mrf.mxu0
      %v6595 = vadd.f32 0.0, %v6594
      %6596 = vmatmul.bf16.gmra.mxu0 %v6488
      %v6597 = vpop.f32.mrf.mxu0
      %v6598 = vadd.f32 0.0, %v6597
      %v6599 = vpop.f32.mrf.mxu0
      %v6600 = vadd.f32 0.0, %v6599
      %6601 = vmatmul.bf16.gmra.mxu0 %v6491
      %v6602 = vpop.f32.mrf.mxu0
      %v6603 = vadd.f32 0.0, %v6602
      %v6604 = vpop.f32.mrf.mxu0
      %v6605 = vadd.f32 0.0, %v6604
      %6606 = vmatmul.bf16.gmra.mxu0 %v6494
      %v6607 = vpop.f32.mrf.mxu0
      %v6608 = vadd.f32 0.0, %v6607
      %v6609 = vpop.f32.mrf.mxu0
      %v6610 = vadd.f32 0.0, %v6609
      %6611 = vmatmul.bf16.gmra.mxu0 %v6497
      %v6612 = vpop.f32.mrf.mxu0
      %v6613 = vadd.f32 0.0, %v6612
      %v6614 = vpop.f32.mrf.mxu0
      %v6615 = vadd.f32 0.0, %v6614
      %6616 = vmatmul.bf16.gmra.mxu0 %v6500
      %v6617 = vpop.f32.mrf.mxu0
      %v6618 = vadd.f32 0.0, %v6617
      %v6619 = vpop.f32.mrf.mxu0
      %v6620 = vadd.f32 0.0, %v6619
      %6621 = vmatmul.bf16.gmra.mxu0 %v6503
      %v6622 = vpop.f32.mrf.mxu0
      %v6623 = vadd.f32 0.0, %v6622
      %v6624 = vpop.f32.mrf.mxu0
      %v6625 = vadd.f32 0.0, %v6624
      %6626 = vdwg.mxu0
      %v6627 = vadd.f32 %v6288, %v6518
      %v6628 = vadd.f32 %v6289, %v6520
      %v6629 = vadd.f32 %v6290, %v6523
      %v6630 = vadd.f32 %v6291, %v6525
      %v6631 = vadd.f32 %v6292, %v6528
      %v6632 = vadd.f32 %v6293, %v6530
      %v6633 = vadd.f32 %v6294, %v6533
      %v6634 = vadd.f32 %v6295, %v6535
      %v6635 = vadd.f32 %v6296, %v6538
      %v6636 = vadd.f32 %v6297, %v6540
      %v6637 = vadd.f32 %v6298, %v6543
      %v6638 = vadd.f32 %v6299, %v6545
      %v6639 = vadd.f32 %v6300, %v6548
      %v6640 = vadd.f32 %v6301, %v6550
      %v6641 = vadd.f32 %v6302, %v6553
      %v6642 = vadd.f32 %v6303, %v6555
      %v6643 = vadd.f32 %v6304, %v6558
      %v6644 = vadd.f32 %v6305, %v6560
      %v6645 = vadd.f32 %v6306, %v6563
      %v6646 = vadd.f32 %v6307, %v6565
      %v6647 = vadd.f32 %v6308, %v6568
      %v6648 = vadd.f32 %v6309, %v6570
      %v6649 = vadd.f32 %v6310, %v6573
      %v6650 = vadd.f32 %v6311, %v6575
      %v6651 = vadd.f32 %v6312, %v6578
      %v6652 = vadd.f32 %v6313, %v6580
      %v6653 = vadd.f32 %v6314, %v6583
      %v6654 = vadd.f32 %v6315, %v6585
      %v6655 = vadd.f32 %v6316, %v6588
      %v6656 = vadd.f32 %v6317, %v6590
      %v6657 = vadd.f32 %v6318, %v6593
      %v6658 = vadd.f32 %v6319, %v6595
      %v6659 = vadd.f32 %v6320, %v6598
      %v6660 = vadd.f32 %v6321, %v6600
      %v6661 = vadd.f32 %v6322, %v6603
      %v6662 = vadd.f32 %v6323, %v6605
      %v6663 = vadd.f32 %v6324, %v6608
      %v6664 = vadd.f32 %v6325, %v6610
      %v6665 = vadd.f32 %v6326, %v6613
      %v6666 = vadd.f32 %v6327, %v6615
      %v6667 = vadd.f32 %v6328, %v6618
      %v6668 = vadd.f32 %v6329, %v6620
      %v6669 = vadd.f32 %v6330, %v6623
      %v6670 = vadd.f32 %v6331, %v6625
      %s6671 = scalar_lea.vmem %s4, 26
      %v6672 = vld [vmem:[%s6671] sm:$0x3]
      %v6674 = vsel %vm1358, %v6672, 0
      %6676 = vmatpush.bf16.msra.mxu0 0
      %6677 = vmatpush.bf16.msra.mxu0 0
      %6678 = vmatpush.bf16.msra.mxu0 0
      %6679 = vmatpush.bf16.msra.mxu0 0
      %6680 = vmatpush.bf16.msra.mxu0 0
      %6681 = vmatpush.bf16.msra.mxu0 0
      %6682 = vmatpush.bf16.msra.mxu0 0
      %6683 = vmatpush.bf16.msra.mxu0 %v6674
      %6684 = vmatmul.bf16.gmra.mxu0 %v1293
      %v6685 = vpop.f32.mrf.mxu0
      %v6686 = vadd.f32 0.0, %v6685
      %v6687 = vpop.f32.mrf.mxu0
      %v6688 = vadd.f32 0.0, %v6687
      %6689 = vmatmul.bf16.gmra.mxu0 %v1296
      %v6690 = vpop.f32.mrf.mxu0
      %v6691 = vadd.f32 0.0, %v6690
      %v6692 = vpop.f32.mrf.mxu0
      %v6693 = vadd.f32 0.0, %v6692
      %6694 = vmatmul.bf16.gmra.mxu0 %v1299
      %v6695 = vpop.f32.mrf.mxu0
      %v6696 = vadd.f32 0.0, %v6695
      %v6697 = vpop.f32.mrf.mxu0
      %v6698 = vadd.f32 0.0, %v6697
      %6699 = vmatmul.bf16.gmra.mxu0 %v1302
      %v6700 = vpop.f32.mrf.mxu0
      %v6701 = vadd.f32 0.0, %v6700
      %v6702 = vpop.f32.mrf.mxu0
      %v6703 = vadd.f32 0.0, %v6702
      %6704 = vmatmul.bf16.gmra.mxu0 %v1305
      %v6705 = vpop.f32.mrf.mxu0
      %v6706 = vadd.f32 0.0, %v6705
      %v6707 = vpop.f32.mrf.mxu0
      %v6708 = vadd.f32 0.0, %v6707
      %6709 = vmatmul.bf16.gmra.mxu0 %v1308
      %v6710 = vpop.f32.mrf.mxu0
      %v6711 = vadd.f32 0.0, %v6710
      %v6712 = vpop.f32.mrf.mxu0
      %v6713 = vadd.f32 0.0, %v6712
      %6714 = vmatmul.bf16.gmra.mxu0 %v1311
      %v6715 = vpop.f32.mrf.mxu0
      %v6716 = vadd.f32 0.0, %v6715
      %v6717 = vpop.f32.mrf.mxu0
      %v6718 = vadd.f32 0.0, %v6717
      %6719 = vmatmul.bf16.gmra.mxu0 %v1314
      %v6720 = vpop.f32.mrf.mxu0
      %v6721 = vadd.f32 0.0, %v6720
      %v6722 = vpop.f32.mrf.mxu0
      %v6723 = vadd.f32 0.0, %v6722
      %6724 = vmatmul.bf16.gmra.mxu0 %v1317
      %v6725 = vpop.f32.mrf.mxu0
      %v6726 = vadd.f32 0.0, %v6725
      %v6727 = vpop.f32.mrf.mxu0
      %v6728 = vadd.f32 0.0, %v6727
      %6729 = vmatmul.bf16.gmra.mxu0 %v1320
      %v6730 = vpop.f32.mrf.mxu0
      %v6731 = vadd.f32 0.0, %v6730
      %v6732 = vpop.f32.mrf.mxu0
      %v6733 = vadd.f32 0.0, %v6732
      %6734 = vmatmul.bf16.gmra.mxu0 %v1323
      %v6735 = vpop.f32.mrf.mxu0
      %v6736 = vadd.f32 0.0, %v6735
      %v6737 = vpop.f32.mrf.mxu0
      %v6738 = vadd.f32 0.0, %v6737
      %6739 = vmatmul.bf16.gmra.mxu0 %v1326
      %v6740 = vpop.f32.mrf.mxu0
      %v6741 = vadd.f32 0.0, %v6740
      %v6742 = vpop.f32.mrf.mxu0
      %v6743 = vadd.f32 0.0, %v6742
      %6744 = vmatmul.bf16.gmra.mxu0 %v1329
      %v6745 = vpop.f32.mrf.mxu0
      %v6746 = vadd.f32 0.0, %v6745
      %v6747 = vpop.f32.mrf.mxu0
      %v6748 = vadd.f32 0.0, %v6747
      %6749 = vmatmul.bf16.gmra.mxu0 %v1332
      %v6750 = vpop.f32.mrf.mxu0
      %v6751 = vadd.f32 0.0, %v6750
      %v6752 = vpop.f32.mrf.mxu0
      %v6753 = vadd.f32 0.0, %v6752
      %6754 = vmatmul.bf16.gmra.mxu0 %v1335
      %v6755 = vpop.f32.mrf.mxu0
      %v6756 = vadd.f32 0.0, %v6755
      %v6757 = vpop.f32.mrf.mxu0
      %v6758 = vadd.f32 0.0, %v6757
      %6759 = vmatmul.bf16.gmra.mxu0 %v1338
      %v6760 = vpop.f32.mrf.mxu0
      %v6761 = vadd.f32 0.0, %v6760
      %v6762 = vpop.f32.mrf.mxu0
      %v6763 = vadd.f32 0.0, %v6762
      %6764 = vmatmul.bf16.gmra.mxu0 %v1341
      %v6765 = vpop.f32.mrf.mxu0
      %v6766 = vadd.f32 0.0, %v6765
      %v6767 = vpop.f32.mrf.mxu0
      %v6768 = vadd.f32 0.0, %v6767
      %6769 = vmatmul.bf16.gmra.mxu0 %v1344
      %v6770 = vpop.f32.mrf.mxu0
      %v6771 = vadd.f32 0.0, %v6770
      %v6772 = vpop.f32.mrf.mxu0
      %v6773 = vadd.f32 0.0, %v6772
      %6774 = vmatmul.bf16.gmra.mxu0 %v1347
      %v6775 = vpop.f32.mrf.mxu0
      %v6776 = vadd.f32 0.0, %v6775
      %v6777 = vpop.f32.mrf.mxu0
      %v6778 = vadd.f32 0.0, %v6777
      %6779 = vmatmul.bf16.gmra.mxu0 %v1350
      %v6780 = vpop.f32.mrf.mxu0
      %v6781 = vadd.f32 0.0, %v6780
      %v6782 = vpop.f32.mrf.mxu0
      %v6783 = vadd.f32 0.0, %v6782
      %6784 = vmatmul.bf16.gmra.mxu0 %v1353
      %v6785 = vpop.f32.mrf.mxu0
      %v6786 = vadd.f32 0.0, %v6785
      %v6787 = vpop.f32.mrf.mxu0
      %v6788 = vadd.f32 0.0, %v6787
      %6789 = vmatmul.bf16.gmra.mxu0 %v1356
      %v6790 = vpop.f32.mrf.mxu0
      %v6791 = vadd.f32 0.0, %v6790
      %v6792 = vpop.f32.mrf.mxu0
      %v6793 = vadd.f32 0.0, %v6792
      %6794 = vdwg.mxu0
      %v6795 = vadd.f32 %v6627, %v6686
      %v6796 = vadd.f32 %v6628, %v6688
      %v6797 = vadd.f32 %v6629, %v6691
      %v6798 = vadd.f32 %v6630, %v6693
      %v6799 = vadd.f32 %v6631, %v6696
      %v6800 = vadd.f32 %v6632, %v6698
      %v6801 = vadd.f32 %v6633, %v6701
      %v6802 = vadd.f32 %v6634, %v6703
      %v6803 = vadd.f32 %v6635, %v6706
      %v6804 = vadd.f32 %v6636, %v6708
      %v6805 = vadd.f32 %v6637, %v6711
      %v6806 = vadd.f32 %v6638, %v6713
      %v6807 = vadd.f32 %v6639, %v6716
      %v6808 = vadd.f32 %v6640, %v6718
      %v6809 = vadd.f32 %v6641, %v6721
      %v6810 = vadd.f32 %v6642, %v6723
      %v6811 = vadd.f32 %v6643, %v6726
      %v6812 = vadd.f32 %v6644, %v6728
      %v6813 = vadd.f32 %v6645, %v6731
      %v6814 = vadd.f32 %v6646, %v6733
      %v6815 = vadd.f32 %v6647, %v6736
      %v6816 = vadd.f32 %v6648, %v6738
      %v6817 = vadd.f32 %v6649, %v6741
      %v6818 = vadd.f32 %v6650, %v6743
      %v6819 = vadd.f32 %v6651, %v6746
      %v6820 = vadd.f32 %v6652, %v6748
      %v6821 = vadd.f32 %v6653, %v6751
      %v6822 = vadd.f32 %v6654, %v6753
      %v6823 = vadd.f32 %v6655, %v6756
      %v6824 = vadd.f32 %v6656, %v6758
      %v6825 = vadd.f32 %v6657, %v6761
      %v6826 = vadd.f32 %v6658, %v6763
      %v6827 = vadd.f32 %v6659, %v6766
      %v6828 = vadd.f32 %v6660, %v6768
      %v6829 = vadd.f32 %v6661, %v6771
      %v6830 = vadd.f32 %v6662, %v6773
      %v6831 = vadd.f32 %v6663, %v6776
      %v6832 = vadd.f32 %v6664, %v6778
      %v6833 = vadd.f32 %v6665, %v6781
      %v6834 = vadd.f32 %v6666, %v6783
      %v6835 = vadd.f32 %v6667, %v6786
      %v6836 = vadd.f32 %v6668, %v6788
      %v6837 = vadd.f32 %v6669, %v6791
      %v6838 = vadd.f32 %v6670, %v6793
      %v6839 = vld [vmem:[#allocation2 + $0xd0] sm:$0xf]
      %s6840 = scalar_lea.vmem %s4, 28
      %v6841 = vld [vmem:[%s6840] sm:$0x3]
      %v6843 = vunpack.c.l.b16 %v6839
      %v6844 = vpack.c.b16 %v6843, %v6843
      %v6846 = vshrl.u32 %v3247, 16
      %v6848 = vrot.slane %v6846, 3
      %v6849 = vshll.u32 %v3247, 16
      %v6851 = vrot.slane %v6849, 4
      %v6852 = vor.u32 %v6848, %v6851
      %v6853 = vrot.slane %v1094, 3
      %v6854 = vrot.slane %v1097, 4
      %v6855 = vor.u32 %v6853, %v6854
      %v6856 = vsel %vm1902, %v6852, %v6855
      %v6857 = vrot.slane %v1103, 3
      %v6858 = vrot.slane %v1106, 4
      %v6859 = vor.u32 %v6857, %v6858
      %v6860 = vsel %vm1902, %v6855, %v6859
      %v6861 = vrot.slane %v1112, 3
      %v6862 = vrot.slane %v1115, 4
      %v6863 = vor.u32 %v6861, %v6862
      %v6864 = vsel %vm1902, %v6859, %v6863
      %v6865 = vrot.slane %v1121, 3
      %v6866 = vrot.slane %v1124, 4
      %v6867 = vor.u32 %v6865, %v6866
      %v6868 = vsel %vm1902, %v6863, %v6867
      %v6869 = vrot.slane %v1130, 3
      %v6870 = vrot.slane %v1133, 4
      %v6871 = vor.u32 %v6869, %v6870
      %v6872 = vsel %vm1902, %v6867, %v6871
      %v6873 = vrot.slane %v1139, 3
      %v6874 = vrot.slane %v1142, 4
      %v6875 = vor.u32 %v6873, %v6874
      %v6876 = vsel %vm1902, %v6871, %v6875
      %v6877 = vrot.slane %v1148, 3
      %v6878 = vrot.slane %v1151, 4
      %v6879 = vor.u32 %v6877, %v6878
      %v6880 = vsel %vm1902, %v6875, %v6879
      %v6881 = vrot.slane %v1157, 3
      %v6882 = vrot.slane %v1160, 4
      %v6883 = vor.u32 %v6881, %v6882
      %v6884 = vsel %vm1902, %v6879, %v6883
      %v6885 = vrot.slane %v1166, 3
      %v6886 = vrot.slane %v1169, 4
      %v6887 = vor.u32 %v6885, %v6886
      %v6888 = vsel %vm1902, %v6883, %v6887
      %v6889 = vrot.slane %v1175, 3
      %v6890 = vrot.slane %v1178, 4
      %v6891 = vor.u32 %v6889, %v6890
      %v6892 = vsel %vm1902, %v6887, %v6891
      %v6893 = vrot.slane %v1184, 3
      %v6894 = vrot.slane %v1187, 4
      %v6895 = vor.u32 %v6893, %v6894
      %v6896 = vsel %vm1902, %v6891, %v6895
      %v6897 = vrot.slane %v1193, 3
      %v6898 = vrot.slane %v1196, 4
      %v6899 = vor.u32 %v6897, %v6898
      %v6900 = vsel %vm1902, %v6895, %v6899
      %v6901 = vrot.slane %v1202, 3
      %v6902 = vrot.slane %v1205, 4
      %v6903 = vor.u32 %v6901, %v6902
      %v6904 = vsel %vm1902, %v6899, %v6903
      %v6905 = vrot.slane %v1211, 3
      %v6906 = vrot.slane %v1214, 4
      %v6907 = vor.u32 %v6905, %v6906
      %v6908 = vsel %vm1902, %v6903, %v6907
      %v6909 = vrot.slane %v1220, 3
      %v6910 = vrot.slane %v1223, 4
      %v6911 = vor.u32 %v6909, %v6910
      %v6912 = vsel %vm1902, %v6907, %v6911
      %v6913 = vrot.slane %v1229, 3
      %v6914 = vrot.slane %v1232, 4
      %v6915 = vor.u32 %v6913, %v6914
      %v6916 = vsel %vm1902, %v6911, %v6915
      %v6917 = vrot.slane %v1238, 3
      %v6918 = vrot.slane %v1241, 4
      %v6919 = vor.u32 %v6917, %v6918
      %v6920 = vsel %vm1902, %v6915, %v6919
      %v6921 = vrot.slane %v1247, 3
      %v6922 = vrot.slane %v1250, 4
      %v6923 = vor.u32 %v6921, %v6922
      %v6924 = vsel %vm1902, %v6919, %v6923
      %v6925 = vrot.slane %v1256, 3
      %v6926 = vrot.slane %v1259, 4
      %v6927 = vor.u32 %v6925, %v6926
      %v6928 = vsel %vm1902, %v6923, %v6927
      %v6929 = vrot.slane %v1265, 3
      %v6930 = vrot.slane %v1268, 4
      %v6931 = vor.u32 %v6929, %v6930
      %v6932 = vsel %vm1902, %v6927, %v6931
      %v6933 = vrot.slane %v1274, 3
      %v6934 = vrot.slane %v1277, 4
      %v6935 = vor.u32 %v6933, %v6934
      %v6936 = vsel %vm1902, %v6931, %v6935
      %v6938 = vshrl.u32 %v6844, 16
      %v6940 = vrot.slane %v6938, 3
      %v6941 = vshll.u32 %v6844, 16
      %v6943 = vrot.slane %v6941, 4
      %v6944 = vor.u32 %v6940, %v6943
      %v6945 = vsel %vm1902, %v6935, %v6944
      %v6947 = vsel %vm1291, %v6856, 0
      %v6950 = vsel %vm1291, %v6860, 0
      %v6953 = vsel %vm1291, %v6864, 0
      %v6956 = vsel %vm1291, %v6868, 0
      %v6959 = vsel %vm1291, %v6872, 0
      %v6962 = vsel %vm1291, %v6876, 0
      %v6965 = vsel %vm1291, %v6880, 0
      %v6968 = vsel %vm1291, %v6884, 0
      %v6971 = vsel %vm1291, %v6888, 0
      %v6974 = vsel %vm1291, %v6892, 0
      %v6977 = vsel %vm1291, %v6896, 0
      %v6980 = vsel %vm1291, %v6900, 0
      %v6983 = vsel %vm1291, %v6904, 0
      %v6986 = vsel %vm1291, %v6908, 0
      %v6989 = vsel %vm1291, %v6912, 0
      %v6992 = vsel %vm1291, %v6916, 0
      %v6995 = vsel %vm1291, %v6920, 0
      %v6998 = vsel %vm1291, %v6924, 0
      %v7001 = vsel %vm1291, %v6928, 0
      %v7004 = vsel %vm1291, %v6932, 0
      %v7007 = vsel %vm1291, %v6936, 0
      %v7010 = vsel %vm1291, %v6945, 0
      %v7013 = vsel %vm1358, %v6841, 0
      %7015 = vmatpush.bf16.msra.mxu0 0
      %7016 = vmatpush.bf16.msra.mxu0 0
      %7017 = vmatpush.bf16.msra.mxu0 0
      %7018 = vmatpush.bf16.msra.mxu0 0
      %7019 = vmatpush.bf16.msra.mxu0 0
      %7020 = vmatpush.bf16.msra.mxu0 0
      %7021 = vmatpush.bf16.msra.mxu0 0
      %7022 = vmatpush.bf16.msra.mxu0 %v7013
      %7023 = vmatmul.bf16.gmra.mxu0 %v6947
      %v7024 = vpop.f32.mrf.mxu0
      %v7025 = vadd.f32 0.0, %v7024
      %v7026 = vpop.f32.mrf.mxu0
      %v7027 = vadd.f32 0.0, %v7026
      %7028 = vmatmul.bf16.gmra.mxu0 %v6950
      %v7029 = vpop.f32.mrf.mxu0
      %v7030 = vadd.f32 0.0, %v7029
      %v7031 = vpop.f32.mrf.mxu0
      %v7032 = vadd.f32 0.0, %v7031
      %7033 = vmatmul.bf16.gmra.mxu0 %v6953
      %v7034 = vpop.f32.mrf.mxu0
      %v7035 = vadd.f32 0.0, %v7034
      %v7036 = vpop.f32.mrf.mxu0
      %v7037 = vadd.f32 0.0, %v7036
      %7038 = vmatmul.bf16.gmra.mxu0 %v6956
      %v7039 = vpop.f32.mrf.mxu0
      %v7040 = vadd.f32 0.0, %v7039
      %v7041 = vpop.f32.mrf.mxu0
      %v7042 = vadd.f32 0.0, %v7041
      %7043 = vmatmul.bf16.gmra.mxu0 %v6959
      %v7044 = vpop.f32.mrf.mxu0
      %v7045 = vadd.f32 0.0, %v7044
      %v7046 = vpop.f32.mrf.mxu0
      %v7047 = vadd.f32 0.0, %v7046
      %7048 = vmatmul.bf16.gmra.mxu0 %v6962
      %v7049 = vpop.f32.mrf.mxu0
      %v7050 = vadd.f32 0.0, %v7049
      %v7051 = vpop.f32.mrf.mxu0
      %v7052 = vadd.f32 0.0, %v7051
      %7053 = vmatmul.bf16.gmra.mxu0 %v6965
      %v7054 = vpop.f32.mrf.mxu0
      %v7055 = vadd.f32 0.0, %v7054
      %v7056 = vpop.f32.mrf.mxu0
      %v7057 = vadd.f32 0.0, %v7056
      %7058 = vmatmul.bf16.gmra.mxu0 %v6968
      %v7059 = vpop.f32.mrf.mxu0
      %v7060 = vadd.f32 0.0, %v7059
      %v7061 = vpop.f32.mrf.mxu0
      %v7062 = vadd.f32 0.0, %v7061
      %7063 = vmatmul.bf16.gmra.mxu0 %v6971
      %v7064 = vpop.f32.mrf.mxu0
      %v7065 = vadd.f32 0.0, %v7064
      %v7066 = vpop.f32.mrf.mxu0
      %v7067 = vadd.f32 0.0, %v7066
      %7068 = vmatmul.bf16.gmra.mxu0 %v6974
      %v7069 = vpop.f32.mrf.mxu0
      %v7070 = vadd.f32 0.0, %v7069
      %v7071 = vpop.f32.mrf.mxu0
      %v7072 = vadd.f32 0.0, %v7071
      %7073 = vmatmul.bf16.gmra.mxu0 %v6977
      %v7074 = vpop.f32.mrf.mxu0
      %v7075 = vadd.f32 0.0, %v7074
      %v7076 = vpop.f32.mrf.mxu0
      %v7077 = vadd.f32 0.0, %v7076
      %7078 = vmatmul.bf16.gmra.mxu0 %v6980
      %v7079 = vpop.f32.mrf.mxu0
      %v7080 = vadd.f32 0.0, %v7079
      %v7081 = vpop.f32.mrf.mxu0
      %v7082 = vadd.f32 0.0, %v7081
      %7083 = vmatmul.bf16.gmra.mxu0 %v6983
      %v7084 = vpop.f32.mrf.mxu0
      %v7085 = vadd.f32 0.0, %v7084
      %v7086 = vpop.f32.mrf.mxu0
      %v7087 = vadd.f32 0.0, %v7086
      %7088 = vmatmul.bf16.gmra.mxu0 %v6986
      %v7089 = vpop.f32.mrf.mxu0
      %v7090 = vadd.f32 0.0, %v7089
      %v7091 = vpop.f32.mrf.mxu0
      %v7092 = vadd.f32 0.0, %v7091
      %7093 = vmatmul.bf16.gmra.mxu0 %v6989
      %v7094 = vpop.f32.mrf.mxu0
      %v7095 = vadd.f32 0.0, %v7094
      %v7096 = vpop.f32.mrf.mxu0
      %v7097 = vadd.f32 0.0, %v7096
      %7098 = vmatmul.bf16.gmra.mxu0 %v6992
      %v7099 = vpop.f32.mrf.mxu0
      %v7100 = vadd.f32 0.0, %v7099
      %v7101 = vpop.f32.mrf.mxu0
      %v7102 = vadd.f32 0.0, %v7101
      %7103 = vmatmul.bf16.gmra.mxu0 %v6995
      %v7104 = vpop.f32.mrf.mxu0
      %v7105 = vadd.f32 0.0, %v7104
      %v7106 = vpop.f32.mrf.mxu0
      %v7107 = vadd.f32 0.0, %v7106
      %7108 = vmatmul.bf16.gmra.mxu0 %v6998
      %v7109 = vpop.f32.mrf.mxu0
      %v7110 = vadd.f32 0.0, %v7109
      %v7111 = vpop.f32.mrf.mxu0
      %v7112 = vadd.f32 0.0, %v7111
      %7113 = vmatmul.bf16.gmra.mxu0 %v7001
      %v7114 = vpop.f32.mrf.mxu0
      %v7115 = vadd.f32 0.0, %v7114
      %v7116 = vpop.f32.mrf.mxu0
      %v7117 = vadd.f32 0.0, %v7116
      %7118 = vmatmul.bf16.gmra.mxu0 %v7004
      %v7119 = vpop.f32.mrf.mxu0
      %v7120 = vadd.f32 0.0, %v7119
      %v7121 = vpop.f32.mrf.mxu0
      %v7122 = vadd.f32 0.0, %v7121
      %7123 = vmatmul.bf16.gmra.mxu0 %v7007
      %v7124 = vpop.f32.mrf.mxu0
      %v7125 = vadd.f32 0.0, %v7124
      %v7126 = vpop.f32.mrf.mxu0
      %v7127 = vadd.f32 0.0, %v7126
      %7128 = vmatmul.bf16.gmra.mxu0 %v7010
      %v7129 = vpop.f32.mrf.mxu0
      %v7130 = vadd.f32 0.0, %v7129
      %v7131 = vpop.f32.mrf.mxu0
      %v7132 = vadd.f32 0.0, %v7131
      %7133 = vdwg.mxu0
      %v7134 = vadd.f32 %v6795, %v7025
      %v7135 = vadd.f32 %v6796, %v7027
      %v7136 = vadd.f32 %v6797, %v7030
      %v7137 = vadd.f32 %v6798, %v7032
      %v7138 = vadd.f32 %v6799, %v7035
      %v7139 = vadd.f32 %v6800, %v7037
      %v7140 = vadd.f32 %v6801, %v7040
      %v7141 = vadd.f32 %v6802, %v7042
      %v7142 = vadd.f32 %v6803, %v7045
      %v7143 = vadd.f32 %v6804, %v7047
      %v7144 = vadd.f32 %v6805, %v7050
      %v7145 = vadd.f32 %v6806, %v7052
      %v7146 = vadd.f32 %v6807, %v7055
      %v7147 = vadd.f32 %v6808, %v7057
      %v7148 = vadd.f32 %v6809, %v7060
      %v7149 = vadd.f32 %v6810, %v7062
      %v7150 = vadd.f32 %v6811, %v7065
      %v7151 = vadd.f32 %v6812, %v7067
      %v7152 = vadd.f32 %v6813, %v7070
      %v7153 = vadd.f32 %v6814, %v7072
      %v7154 = vadd.f32 %v6815, %v7075
      %v7155 = vadd.f32 %v6816, %v7077
      %v7156 = vadd.f32 %v6817, %v7080
      %v7157 = vadd.f32 %v6818, %v7082
      %v7158 = vadd.f32 %v6819, %v7085
      %v7159 = vadd.f32 %v6820, %v7087
      %v7160 = vadd.f32 %v6821, %v7090
      %v7161 = vadd.f32 %v6822, %v7092
      %v7162 = vadd.f32 %v6823, %v7095
      %v7163 = vadd.f32 %v6824, %v7097
      %v7164 = vadd.f32 %v6825, %v7100
      %v7165 = vadd.f32 %v6826, %v7102
      %v7166 = vadd.f32 %v6827, %v7105
      %v7167 = vadd.f32 %v6828, %v7107
      %v7168 = vadd.f32 %v6829, %v7110
      %v7169 = vadd.f32 %v6830, %v7112
      %v7170 = vadd.f32 %v6831, %v7115
      %v7171 = vadd.f32 %v6832, %v7117
      %v7172 = vadd.f32 %v6833, %v7120
      %v7173 = vadd.f32 %v6834, %v7122
      %v7174 = vadd.f32 %v6835, %v7125
      %v7175 = vadd.f32 %v6836, %v7127
      %v7176 = vadd.f32 %v6837, %v7130
      %v7177 = vadd.f32 %v6838, %v7132
      %v7178 = vld [vmem:[#allocation2 + $0x34] sm:$0x8]
      %v7179 = vld [vmem:[#allocation2 + $0x38] sm:$0xf]
      %v7180 = vld [vmem:[#allocation2 + $0x3c] sm:$0xf]
      %v7181 = vld [vmem:[#allocation2 + $0x40] sm:$0xf]
      %v7182 = vld [vmem:[#allocation2 + $0x44] sm:$0xf]
      %v7183 = vld [vmem:[#allocation2 + $0x48] sm:$0xf]
      %v7184 = vld [vmem:[#allocation2 + $0x4c] sm:$0xf]
      %v7185 = vld [vmem:[#allocation2 + $0x50] sm:$0xf]
      %v7186 = vld [vmem:[#allocation2 + $0x54] sm:$0xf]
      %v7187 = vld [vmem:[#allocation2 + $0x58] sm:$0xf]
      %v7188 = vld [vmem:[#allocation2 + $0x5c] sm:$0xf]
      %v7189 = vld [vmem:[#allocation2 + $0x60] sm:$0xf]
      %v7190 = vld [vmem:[#allocation2 + $0x64] sm:$0xf]
      %v7191 = vld [vmem:[#allocation2 + $0x68] sm:$0xf]
      %v7192 = vld [vmem:[#allocation2 + $0x6c] sm:$0xf]
      %v7193 = vld [vmem:[#allocation2 + $0x70] sm:$0xf]
      %v7194 = vld [vmem:[#allocation2 + $0x74] sm:$0xf]
      %v7195 = vld [vmem:[#allocation2 + $0x78] sm:$0xf]
      %v7196 = vld [vmem:[#allocation2 + $0x7c] sm:$0xf]
      %v7197 = vld [vmem:[#allocation2 + $0x80] sm:$0xf]
      %v7198 = vld [vmem:[#allocation2 + $0x84] sm:$0xf]
      %v7199 = vld [vmem:[#allocation2 + $0x88] sm:$0xf]
      %v7200 = vld [vmem:[#allocation2 + $0x8c] sm:$0xf]
      %v7201 = vld [vmem:[#allocation2 + $0x90] sm:$0xf]
      %v7202 = vld [vmem:[#allocation2 + $0x94] sm:$0xf]
      %v7203 = vld [vmem:[#allocation2 + $0x98] sm:$0xf]
      %v7204 = vld [vmem:[#allocation2 + $0x9c] sm:$0xf]
      %v7205 = vld [vmem:[#allocation2 + $0xa0] sm:$0xf]
      %v7206 = vld [vmem:[#allocation2 + $0xa4] sm:$0xf]
      %v7207 = vld [vmem:[#allocation2 + $0xa8] sm:$0xf]
      %v7208 = vld [vmem:[#allocation2 + $0xac] sm:$0xf]
      %v7209 = vld [vmem:[#allocation2 + $0xb0] sm:$0xf]
      %v7210 = vld [vmem:[#allocation2 + $0xb4] sm:$0xf]
      %v7211 = vld [vmem:[#allocation2 + $0xb8] sm:$0xf]
      %v7212 = vld [vmem:[#allocation2 + $0xbc] sm:$0xf]
      %v7213 = vld [vmem:[#allocation2 + $0xc0] sm:$0xf]
      %v7214 = vld [vmem:[#allocation2 + $0xc4] sm:$0xf]
      %v7215 = vld [vmem:[#allocation2 + $0xc8] sm:$0xf]
      %v7216 = vld [vmem:[#allocation2 + $0xcc] sm:$0xf]
      %v7217 = vld [vmem:[#allocation2 + $0xd0] sm:$0xf]
      %v7218 = vld [vmem:[#allocation2 + $0xd4] sm:$0xf]
      %v7219 = vld [vmem:[#allocation2 + $0xd8] sm:$0xf]
      %v7220 = vld [vmem:[#allocation2 + $0xdc] sm:$0xf]
      %v7221 = vld [vmem:[#allocation2 + $0xe0] sm:$0xf]
      %v7222 = vld [vmem:[#allocation2 + $0xe4] sm:$0xf]
      %s7223 = scalar_lea.vmem %s4, 30
      %v7224 = vld [vmem:[%s7223] sm:$0x3]
      %v7270 = vunpack.c.l.b16 %v7178
      %v7271 = vunpack.c.l.b16 %v7179
      %v7272 = vunpack.c.l.b16 %v7180
      %v7273 = vunpack.c.l.b16 %v7181
      %v7274 = vunpack.c.l.b16 %v7182
      %v7275 = vunpack.c.l.b16 %v7183
      %v7276 = vunpack.c.l.b16 %v7184
      %v7277 = vunpack.c.l.b16 %v7185
      %v7278 = vunpack.c.l.b16 %v7186
      %v7279 = vunpack.c.l.b16 %v7187
      %v7280 = vunpack.c.l.b16 %v7188
      %v7281 = vunpack.c.l.b16 %v7189
      %v7282 = vunpack.c.l.b16 %v7190
      %v7283 = vunpack.c.l.b16 %v7191
      %v7284 = vunpack.c.l.b16 %v7192
      %v7285 = vunpack.c.l.b16 %v7193
      %v7286 = vunpack.c.l.b16 %v7194
      %v7287 = vunpack.c.l.b16 %v7195
      %v7288 = vunpack.c.l.b16 %v7196
      %v7289 = vunpack.c.l.b16 %v7197
      %v7290 = vunpack.c.l.b16 %v7198
      %v7291 = vunpack.c.l.b16 %v7199
      %v7292 = vunpack.c.l.b16 %v7200
      %v7293 = vunpack.c.l.b16 %v7201
      %v7294 = vunpack.c.l.b16 %v7202
      %v7295 = vunpack.c.l.b16 %v7203
      %v7296 = vunpack.c.l.b16 %v7204
      %v7297 = vunpack.c.l.b16 %v7205
      %v7298 = vunpack.c.l.b16 %v7206
      %v7299 = vunpack.c.l.b16 %v7207
      %v7300 = vunpack.c.l.b16 %v7208
      %v7301 = vunpack.c.l.b16 %v7209
      %v7302 = vunpack.c.l.b16 %v7210
      %v7303 = vunpack.c.l.b16 %v7211
      %v7304 = vunpack.c.l.b16 %v7212
      %v7305 = vunpack.c.l.b16 %v7213
      %v7306 = vunpack.c.l.b16 %v7214
      %v7307 = vunpack.c.l.b16 %v7215
      %v7308 = vunpack.c.l.b16 %v7216
      %v7309 = vunpack.c.l.b16 %v7217
      %v7310 = vunpack.c.l.b16 %v7218
      %v7311 = vunpack.c.l.b16 %v7219
      %v7312 = vunpack.c.l.b16 %v7220
      %v7313 = vunpack.c.l.b16 %v7221
      %v7314 = vunpack.c.l.b16 %v7222
      %v7315 = vpack.c.b16 %v7271, %v7270
      %v7316 = vpack.c.b16 %v7273, %v7272
      %v7317 = vpack.c.b16 %v7275, %v7274
      %v7318 = vpack.c.b16 %v7277, %v7276
      %v7319 = vpack.c.b16 %v7279, %v7278
      %v7320 = vpack.c.b16 %v7281, %v7280
      %v7321 = vpack.c.b16 %v7283, %v7282
      %v7322 = vpack.c.b16 %v7285, %v7284
      %v7323 = vpack.c.b16 %v7287, %v7286
      %v7324 = vpack.c.b16 %v7289, %v7288
      %v7325 = vpack.c.b16 %v7291, %v7290
      %v7326 = vpack.c.b16 %v7293, %v7292
      %v7327 = vpack.c.b16 %v7295, %v7294
      %v7328 = vpack.c.b16 %v7297, %v7296
      %v7329 = vpack.c.b16 %v7299, %v7298
      %v7330 = vpack.c.b16 %v7301, %v7300
      %v7331 = vpack.c.b16 %v7303, %v7302
      %v7332 = vpack.c.b16 %v7305, %v7304
      %v7333 = vpack.c.b16 %v7307, %v7306
      %v7334 = vpack.c.b16 %v7309, %v7308
      %v7335 = vpack.c.b16 %v7311, %v7310
      %v7336 = vpack.c.b16 %v7313, %v7312
      %v7337 = vpack.c.b16 %v7314, %v7314
      %v7339 = vshrl.u32 %v7315, 16
      %v7341 = vrot.slane %v7339, 3
      %v7342 = vshll.u32 %v7315, 16
      %v7344 = vrot.slane %v7342, 4
      %v7345 = vor.u32 %v7341, %v7344
      %v7347 = vshrl.u32 %v7316, 16
      %v7349 = vrot.slane %v7347, 3
      %v7350 = vshll.u32 %v7316, 16
      %v7352 = vrot.slane %v7350, 4
      %v7353 = vor.u32 %v7349, %v7352
      %v7354 = vsel %vm1902, %v7345, %v7353
      %v7356 = vshrl.u32 %v7317, 16
      %v7358 = vrot.slane %v7356, 3
      %v7359 = vshll.u32 %v7317, 16
      %v7361 = vrot.slane %v7359, 4
      %v7362 = vor.u32 %v7358, %v7361
      %v7363 = vsel %vm1902, %v7353, %v7362
      %v7365 = vshrl.u32 %v7318, 16
      %v7367 = vrot.slane %v7365, 3
      %v7368 = vshll.u32 %v7318, 16
      %v7370 = vrot.slane %v7368, 4
      %v7371 = vor.u32 %v7367, %v7370
      %v7372 = vsel %vm1902, %v7362, %v7371
      %v7374 = vshrl.u32 %v7319, 16
      %v7376 = vrot.slane %v7374, 3
      %v7377 = vshll.u32 %v7319, 16
      %v7379 = vrot.slane %v7377, 4
      %v7380 = vor.u32 %v7376, %v7379
      %v7381 = vsel %vm1902, %v7371, %v7380
      %v7383 = vshrl.u32 %v7320, 16
      %v7385 = vrot.slane %v7383, 3
      %v7386 = vshll.u32 %v7320, 16
      %v7388 = vrot.slane %v7386, 4
      %v7389 = vor.u32 %v7385, %v7388
      %v7390 = vsel %vm1902, %v7380, %v7389
      %v7392 = vshrl.u32 %v7321, 16
      %v7394 = vrot.slane %v7392, 3
      %v7395 = vshll.u32 %v7321, 16
      %v7397 = vrot.slane %v7395, 4
      %v7398 = vor.u32 %v7394, %v7397
      %v7399 = vsel %vm1902, %v7389, %v7398
      %v7401 = vshrl.u32 %v7322, 16
      %v7403 = vrot.slane %v7401, 3
      %v7404 = vshll.u32 %v7322, 16
      %v7406 = vrot.slane %v7404, 4
      %v7407 = vor.u32 %v7403, %v7406
      %v7408 = vsel %vm1902, %v7398, %v7407
      %v7410 = vshrl.u32 %v7323, 16
      %v7412 = vrot.slane %v7410, 3
      %v7413 = vshll.u32 %v7323, 16
      %v7415 = vrot.slane %v7413, 4
      %v7416 = vor.u32 %v7412, %v7415
      %v7417 = vsel %vm1902, %v7407, %v7416
      %v7419 = vshrl.u32 %v7324, 16
      %v7421 = vrot.slane %v7419, 3
      %v7422 = vshll.u32 %v7324, 16
      %v7424 = vrot.slane %v7422, 4
      %v7425 = vor.u32 %v7421, %v7424
      %v7426 = vsel %vm1902, %v7416, %v7425
      %v7428 = vshrl.u32 %v7325, 16
      %v7430 = vrot.slane %v7428, 3
      %v7431 = vshll.u32 %v7325, 16
      %v7433 = vrot.slane %v7431, 4
      %v7434 = vor.u32 %v7430, %v7433
      %v7435 = vsel %vm1902, %v7425, %v7434
      %v7437 = vshrl.u32 %v7326, 16
      %v7439 = vrot.slane %v7437, 3
      %v7440 = vshll.u32 %v7326, 16
      %v7442 = vrot.slane %v7440, 4
      %v7443 = vor.u32 %v7439, %v7442
      %v7444 = vsel %vm1902, %v7434, %v7443
      %v7446 = vshrl.u32 %v7327, 16
      %v7448 = vrot.slane %v7446, 3
      %v7449 = vshll.u32 %v7327, 16
      %v7451 = vrot.slane %v7449, 4
      %v7452 = vor.u32 %v7448, %v7451
      %v7453 = vsel %vm1902, %v7443, %v7452
      %v7455 = vshrl.u32 %v7328, 16
      %v7457 = vrot.slane %v7455, 3
      %v7458 = vshll.u32 %v7328, 16
      %v7460 = vrot.slane %v7458, 4
      %v7461 = vor.u32 %v7457, %v7460
      %v7462 = vsel %vm1902, %v7452, %v7461
      %v7464 = vshrl.u32 %v7329, 16
      %v7466 = vrot.slane %v7464, 3
      %v7467 = vshll.u32 %v7329, 16
      %v7469 = vrot.slane %v7467, 4
      %v7470 = vor.u32 %v7466, %v7469
      %v7471 = vsel %vm1902, %v7461, %v7470
      %v7473 = vshrl.u32 %v7330, 16
      %v7475 = vrot.slane %v7473, 3
      %v7476 = vshll.u32 %v7330, 16
      %v7478 = vrot.slane %v7476, 4
      %v7479 = vor.u32 %v7475, %v7478
      %v7480 = vsel %vm1902, %v7470, %v7479
      %v7482 = vshrl.u32 %v7331, 16
      %v7484 = vrot.slane %v7482, 3
      %v7485 = vshll.u32 %v7331, 16
      %v7487 = vrot.slane %v7485, 4
      %v7488 = vor.u32 %v7484, %v7487
      %v7489 = vsel %vm1902, %v7479, %v7488
      %v7491 = vshrl.u32 %v7332, 16
      %v7493 = vrot.slane %v7491, 3
      %v7494 = vshll.u32 %v7332, 16
      %v7496 = vrot.slane %v7494, 4
      %v7497 = vor.u32 %v7493, %v7496
      %v7498 = vsel %vm1902, %v7488, %v7497
      %v7500 = vshrl.u32 %v7333, 16
      %v7502 = vrot.slane %v7500, 3
      %v7503 = vshll.u32 %v7333, 16
      %v7505 = vrot.slane %v7503, 4
      %v7506 = vor.u32 %v7502, %v7505
      %v7507 = vsel %vm1902, %v7497, %v7506
      %v7509 = vshrl.u32 %v7334, 16
      %v7511 = vrot.slane %v7509, 3
      %v7512 = vshll.u32 %v7334, 16
      %v7514 = vrot.slane %v7512, 4
      %v7515 = vor.u32 %v7511, %v7514
      %v7516 = vsel %vm1902, %v7506, %v7515
      %v7518 = vshrl.u32 %v7335, 16
      %v7520 = vrot.slane %v7518, 3
      %v7521 = vshll.u32 %v7335, 16
      %v7523 = vrot.slane %v7521, 4
      %v7524 = vor.u32 %v7520, %v7523
      %v7525 = vsel %vm1902, %v7515, %v7524
      %v7527 = vshrl.u32 %v7336, 16
      %v7529 = vrot.slane %v7527, 3
      %v7530 = vshll.u32 %v7336, 16
      %v7532 = vrot.slane %v7530, 4
      %v7533 = vor.u32 %v7529, %v7532
      %v7534 = vsel %vm1902, %v7524, %v7533
      %v7536 = vshrl.u32 %v7337, 16
      %v7538 = vrot.slane %v7536, 3
      %v7539 = vshll.u32 %v7337, 16
      %v7541 = vrot.slane %v7539, 4
      %v7542 = vor.u32 %v7538, %v7541
      %v7543 = vsel %vm1902, %v7533, %v7542
      %v7545 = vsel %vm1291, %v7354, 0
      %v7548 = vsel %vm1291, %v7363, 0
      %v7551 = vsel %vm1291, %v7372, 0
      %v7554 = vsel %vm1291, %v7381, 0
      %v7557 = vsel %vm1291, %v7390, 0
      %v7560 = vsel %vm1291, %v7399, 0
      %v7563 = vsel %vm1291, %v7408, 0
      %v7566 = vsel %vm1291, %v7417, 0
      %v7569 = vsel %vm1291, %v7426, 0
      %v7572 = vsel %vm1291, %v7435, 0
      %v7575 = vsel %vm1291, %v7444, 0
      %v7578 = vsel %vm1291, %v7453, 0
      %v7581 = vsel %vm1291, %v7462, 0
      %v7584 = vsel %vm1291, %v7471, 0
      %v7587 = vsel %vm1291, %v7480, 0
      %v7590 = vsel %vm1291, %v7489, 0
      %v7593 = vsel %vm1291, %v7498, 0
      %v7596 = vsel %vm1291, %v7507, 0
      %v7599 = vsel %vm1291, %v7516, 0
      %v7602 = vsel %vm1291, %v7525, 0
      %v7605 = vsel %vm1291, %v7534, 0
      %v7608 = vsel %vm1291, %v7543, 0
      %v7611 = vsel %vm1358, %v7224, 0
      %7613 = vmatpush.bf16.msra.mxu0 0
      %7614 = vmatpush.bf16.msra.mxu0 0
      %7615 = vmatpush.bf16.msra.mxu0 0
      %7616 = vmatpush.bf16.msra.mxu0 0
      %7617 = vmatpush.bf16.msra.mxu0 0
      %7618 = vmatpush.bf16.msra.mxu0 0
      %7619 = vmatpush.bf16.msra.mxu0 0
      %7620 = vmatpush.bf16.msra.mxu0 %v7611
      %7621 = vmatmul.bf16.gmra.mxu0 %v7545
      %v7622 = vpop.f32.mrf.mxu0
      %v7623 = vadd.f32 0.0, %v7622
      %v7624 = vpop.f32.mrf.mxu0
      %v7625 = vadd.f32 0.0, %v7624
      %7626 = vmatmul.bf16.gmra.mxu0 %v7548
      %v7627 = vpop.f32.mrf.mxu0
      %v7628 = vadd.f32 0.0, %v7627
      %v7629 = vpop.f32.mrf.mxu0
      %v7630 = vadd.f32 0.0, %v7629
      %7631 = vmatmul.bf16.gmra.mxu0 %v7551
      %v7632 = vpop.f32.mrf.mxu0
      %v7633 = vadd.f32 0.0, %v7632
      %v7634 = vpop.f32.mrf.mxu0
      %v7635 = vadd.f32 0.0, %v7634
      %7636 = vmatmul.bf16.gmra.mxu0 %v7554
      %v7637 = vpop.f32.mrf.mxu0
      %v7638 = vadd.f32 0.0, %v7637
      %v7639 = vpop.f32.mrf.mxu0
      %v7640 = vadd.f32 0.0, %v7639
      %7641 = vmatmul.bf16.gmra.mxu0 %v7557
      %v7642 = vpop.f32.mrf.mxu0
      %v7643 = vadd.f32 0.0, %v7642
      %v7644 = vpop.f32.mrf.mxu0
      %v7645 = vadd.f32 0.0, %v7644
      %7646 = vmatmul.bf16.gmra.mxu0 %v7560
      %v7647 = vpop.f32.mrf.mxu0
      %v7648 = vadd.f32 0.0, %v7647
      %v7649 = vpop.f32.mrf.mxu0
      %v7650 = vadd.f32 0.0, %v7649
      %7651 = vmatmul.bf16.gmra.mxu0 %v7563
      %v7652 = vpop.f32.mrf.mxu0
      %v7653 = vadd.f32 0.0, %v7652
      %v7654 = vpop.f32.mrf.mxu0
      %v7655 = vadd.f32 0.0, %v7654
      %7656 = vmatmul.bf16.gmra.mxu0 %v7566
      %v7657 = vpop.f32.mrf.mxu0
      %v7658 = vadd.f32 0.0, %v7657
      %v7659 = vpop.f32.mrf.mxu0
      %v7660 = vadd.f32 0.0, %v7659
      %7661 = vmatmul.bf16.gmra.mxu0 %v7569
      %v7662 = vpop.f32.mrf.mxu0
      %v7663 = vadd.f32 0.0, %v7662
      %v7664 = vpop.f32.mrf.mxu0
      %v7665 = vadd.f32 0.0, %v7664
      %7666 = vmatmul.bf16.gmra.mxu0 %v7572
      %v7667 = vpop.f32.mrf.mxu0
      %v7668 = vadd.f32 0.0, %v7667
      %v7669 = vpop.f32.mrf.mxu0
      %v7670 = vadd.f32 0.0, %v7669
      %7671 = vmatmul.bf16.gmra.mxu0 %v7575
      %v7672 = vpop.f32.mrf.mxu0
      %v7673 = vadd.f32 0.0, %v7672
      %v7674 = vpop.f32.mrf.mxu0
      %v7675 = vadd.f32 0.0, %v7674
      %7676 = vmatmul.bf16.gmra.mxu0 %v7578
      %v7677 = vpop.f32.mrf.mxu0
      %v7678 = vadd.f32 0.0, %v7677
      %v7679 = vpop.f32.mrf.mxu0
      %v7680 = vadd.f32 0.0, %v7679
      %7681 = vmatmul.bf16.gmra.mxu0 %v7581
      %v7682 = vpop.f32.mrf.mxu0
      %v7683 = vadd.f32 0.0, %v7682
      %v7684 = vpop.f32.mrf.mxu0
      %v7685 = vadd.f32 0.0, %v7684
      %7686 = vmatmul.bf16.gmra.mxu0 %v7584
      %v7687 = vpop.f32.mrf.mxu0
      %v7688 = vadd.f32 0.0, %v7687
      %v7689 = vpop.f32.mrf.mxu0
      %v7690 = vadd.f32 0.0, %v7689
      %7691 = vmatmul.bf16.gmra.mxu0 %v7587
      %v7692 = vpop.f32.mrf.mxu0
      %v7693 = vadd.f32 0.0, %v7692
      %v7694 = vpop.f32.mrf.mxu0
      %v7695 = vadd.f32 0.0, %v7694
      %7696 = vmatmul.bf16.gmra.mxu0 %v7590
      %v7697 = vpop.f32.mrf.mxu0
      %v7698 = vadd.f32 0.0, %v7697
      %v7699 = vpop.f32.mrf.mxu0
      %v7700 = vadd.f32 0.0, %v7699
      %7701 = vmatmul.bf16.gmra.mxu0 %v7593
      %v7702 = vpop.f32.mrf.mxu0
      %v7703 = vadd.f32 0.0, %v7702
      %v7704 = vpop.f32.mrf.mxu0
      %v7705 = vadd.f32 0.0, %v7704
      %7706 = vmatmul.bf16.gmra.mxu0 %v7596
      %v7707 = vpop.f32.mrf.mxu0
      %v7708 = vadd.f32 0.0, %v7707
      %v7709 = vpop.f32.mrf.mxu0
      %v7710 = vadd.f32 0.0, %v7709
      %7711 = vmatmul.bf16.gmra.mxu0 %v7599
      %v7712 = vpop.f32.mrf.mxu0
      %v7713 = vadd.f32 0.0, %v7712
      %v7714 = vpop.f32.mrf.mxu0
      %v7715 = vadd.f32 0.0, %v7714
      %7716 = vmatmul.bf16.gmra.mxu0 %v7602
      %v7717 = vpop.f32.mrf.mxu0
      %v7718 = vadd.f32 0.0, %v7717
      %v7719 = vpop.f32.mrf.mxu0
      %v7720 = vadd.f32 0.0, %v7719
      %7721 = vmatmul.bf16.gmra.mxu0 %v7605
      %v7722 = vpop.f32.mrf.mxu0
      %v7723 = vadd.f32 0.0, %v7722
      %v7724 = vpop.f32.mrf.mxu0
      %v7725 = vadd.f32 0.0, %v7724
      %7726 = vmatmul.bf16.gmra.mxu0 %v7608
      %v7727 = vpop.f32.mrf.mxu0
      %v7728 = vadd.f32 0.0, %v7727
      %v7729 = vpop.f32.mrf.mxu0
      %v7730 = vadd.f32 0.0, %v7729
      %7731 = vdwg.mxu0
      %v7732 = vadd.f32 %v7134, %v7623
      %v7733 = vadd.f32 %v7135, %v7625
      %v7734 = vadd.f32 %v7136, %v7628
      %v7735 = vadd.f32 %v7137, %v7630
      %v7736 = vadd.f32 %v7138, %v7633
      %v7737 = vadd.f32 %v7139, %v7635
      %v7738 = vadd.f32 %v7140, %v7638
      %v7739 = vadd.f32 %v7141, %v7640
      %v7740 = vadd.f32 %v7142, %v7643
      %v7741 = vadd.f32 %v7143, %v7645
      %v7742 = vadd.f32 %v7144, %v7648
      %v7743 = vadd.f32 %v7145, %v7650
      %v7744 = vadd.f32 %v7146, %v7653
      %v7745 = vadd.f32 %v7147, %v7655
      %v7746 = vadd.f32 %v7148, %v7658
      %v7747 = vadd.f32 %v7149, %v7660
      %v7748 = vadd.f32 %v7150, %v7663
      %v7749 = vadd.f32 %v7151, %v7665
      %v7750 = vadd.f32 %v7152, %v7668
      %v7751 = vadd.f32 %v7153, %v7670
      %v7752 = vadd.f32 %v7154, %v7673
      %v7753 = vadd.f32 %v7155, %v7675
      %v7754 = vadd.f32 %v7156, %v7678
      %v7755 = vadd.f32 %v7157, %v7680
      %v7756 = vadd.f32 %v7158, %v7683
      %v7757 = vadd.f32 %v7159, %v7685
      %v7758 = vadd.f32 %v7160, %v7688
      %v7759 = vadd.f32 %v7161, %v7690
      %v7760 = vadd.f32 %v7162, %v7693
      %v7761 = vadd.f32 %v7163, %v7695
      %v7762 = vadd.f32 %v7164, %v7698
      %v7763 = vadd.f32 %v7165, %v7700
      %v7764 = vadd.f32 %v7166, %v7703
      %v7765 = vadd.f32 %v7167, %v7705
      %v7766 = vadd.f32 %v7168, %v7708
      %v7767 = vadd.f32 %v7169, %v7710
      %v7768 = vadd.f32 %v7170, %v7713
      %v7769 = vadd.f32 %v7171, %v7715
      %v7770 = vadd.f32 %v7172, %v7718
      %v7771 = vadd.f32 %v7173, %v7720
      %v7772 = vadd.f32 %v7174, %v7723
      %v7773 = vadd.f32 %v7175, %v7725
      %v7774 = vadd.f32 %v7176, %v7728
      %v7775 = vadd.f32 %v7177, %v7730
      %v7776 = vld [vmem:[#allocation2 + $0x38] sm:$0xf]
      %v7777 = vld [vmem:[#allocation2 + $0x3c] sm:$0xf]
      %v7778 = vld [vmem:[#allocation2 + $0x40] sm:$0xf]
      %v7779 = vld [vmem:[#allocation2 + $0x44] sm:$0xf]
      %v7780 = vld [vmem:[#allocation2 + $0x48] sm:$0xf]
      %v7781 = vld [vmem:[#allocation2 + $0x4c] sm:$0xf]
      %v7782 = vld [vmem:[#allocation2 + $0x50] sm:$0xf]
      %v7783 = vld [vmem:[#allocation2 + $0x54] sm:$0xf]
      %v7784 = vld [vmem:[#allocation2 + $0x58] sm:$0xf]
      %v7785 = vld [vmem:[#allocation2 + $0x5c] sm:$0xf]
      %v7786 = vld [vmem:[#allocation2 + $0x60] sm:$0xf]
      %v7787 = vld [vmem:[#allocation2 + $0x64] sm:$0xf]
      %v7788 = vld [vmem:[#allocation2 + $0x68] sm:$0xf]
      %v7789 = vld [vmem:[#allocation2 + $0x6c] sm:$0xf]
      %v7790 = vld [vmem:[#allocation2 + $0x70] sm:$0xf]
      %v7791 = vld [vmem:[#allocation2 + $0x74] sm:$0xf]
      %v7792 = vld [vmem:[#allocation2 + $0x78] sm:$0xf]
      %v7793 = vld [vmem:[#allocation2 + $0x7c] sm:$0xf]
      %v7794 = vld [vmem:[#allocation2 + $0x80] sm:$0xf]
      %v7795 = vld [vmem:[#allocation2 + $0x84] sm:$0xf]
      %v7796 = vld [vmem:[#allocation2 + $0x88] sm:$0xf]
      %v7797 = vld [vmem:[#allocation2 + $0x8c] sm:$0xf]
      %v7798 = vld [vmem:[#allocation2 + $0x90] sm:$0xf]
      %v7799 = vld [vmem:[#allocation2 + $0x94] sm:$0xf]
      %v7800 = vld [vmem:[#allocation2 + $0x98] sm:$0xf]
      %v7801 = vld [vmem:[#allocation2 + $0x9c] sm:$0xf]
      %v7802 = vld [vmem:[#allocation2 + $0xa0] sm:$0xf]
      %v7803 = vld [vmem:[#allocation2 + $0xa4] sm:$0xf]
      %v7804 = vld [vmem:[#allocation2 + $0xa8] sm:$0xf]
      %v7805 = vld [vmem:[#allocation2 + $0xac] sm:$0xf]
      %v7806 = vld [vmem:[#allocation2 + $0xb0] sm:$0xf]
      %v7807 = vld [vmem:[#allocation2 + $0xb4] sm:$0xf]
      %v7808 = vld [vmem:[#allocation2 + $0xb8] sm:$0xf]
      %v7809 = vld [vmem:[#allocation2 + $0xbc] sm:$0xf]
      %v7810 = vld [vmem:[#allocation2 + $0xc0] sm:$0xf]
      %v7811 = vld [vmem:[#allocation2 + $0xc4] sm:$0xf]
      %v7812 = vld [vmem:[#allocation2 + $0xc8] sm:$0xf]
      %v7813 = vld [vmem:[#allocation2 + $0xcc] sm:$0xf]
      %v7814 = vld [vmem:[#allocation2 + $0xd0] sm:$0xf]
      %v7815 = vld [vmem:[#allocation2 + $0xd4] sm:$0xf]
      %v7816 = vld [vmem:[#allocation2 + $0xd8] sm:$0xf]
      %v7817 = vld [vmem:[#allocation2 + $0xdc] sm:$0xf]
      %v7818 = vld [vmem:[#allocation2 + $0xe0] sm:$0xf]
      %v7819 = vld [vmem:[#allocation2 + $0xe4] sm:$0xf]
      %v7820 = vld [vmem:[#allocation2 + $0xe8] sm:$0x1]
      %s7821 = scalar_lea.vmem %s4, 32
      %v7822 = vld [vmem:[%s7821] sm:$0x3]
      %v7868 = vunpack.c.l.b16 %v7776
      %v7869 = vunpack.c.l.b16 %v7777
      %v7870 = vunpack.c.l.b16 %v7778
      %v7871 = vunpack.c.l.b16 %v7779
      %v7872 = vunpack.c.l.b16 %v7780
      %v7873 = vunpack.c.l.b16 %v7781
      %v7874 = vunpack.c.l.b16 %v7782
      %v7875 = vunpack.c.l.b16 %v7783
      %v7876 = vunpack.c.l.b16 %v7784
      %v7877 = vunpack.c.l.b16 %v7785
      %v7878 = vunpack.c.l.b16 %v7786
      %v7879 = vunpack.c.l.b16 %v7787
      %v7880 = vunpack.c.l.b16 %v7788
      %v7881 = vunpack.c.l.b16 %v7789
      %v7882 = vunpack.c.l.b16 %v7790
      %v7883 = vunpack.c.l.b16 %v7791
      %v7884 = vunpack.c.l.b16 %v7792
      %v7885 = vunpack.c.l.b16 %v7793
      %v7886 = vunpack.c.l.b16 %v7794
      %v7887 = vunpack.c.l.b16 %v7795
      %v7888 = vunpack.c.l.b16 %v7796
      %v7889 = vunpack.c.l.b16 %v7797
      %v7890 = vunpack.c.l.b16 %v7798
      %v7891 = vunpack.c.l.b16 %v7799
      %v7892 = vunpack.c.l.b16 %v7800
      %v7893 = vunpack.c.l.b16 %v7801
      %v7894 = vunpack.c.l.b16 %v7802
      %v7895 = vunpack.c.l.b16 %v7803
      %v7896 = vunpack.c.l.b16 %v7804
      %v7897 = vunpack.c.l.b16 %v7805
      %v7898 = vunpack.c.l.b16 %v7806
      %v7899 = vunpack.c.l.b16 %v7807
      %v7900 = vunpack.c.l.b16 %v7808
      %v7901 = vunpack.c.l.b16 %v7809
      %v7902 = vunpack.c.l.b16 %v7810
      %v7903 = vunpack.c.l.b16 %v7811
      %v7904 = vunpack.c.l.b16 %v7812
      %v7905 = vunpack.c.l.b16 %v7813
      %v7906 = vunpack.c.l.b16 %v7814
      %v7907 = vunpack.c.l.b16 %v7815
      %v7908 = vunpack.c.l.b16 %v7816
      %v7909 = vunpack.c.l.b16 %v7817
      %v7910 = vunpack.c.l.b16 %v7818
      %v7911 = vunpack.c.l.b16 %v7819
      %v7912 = vunpack.c.l.b16 %v7820
      %v7913 = vpack.c.b16 %v7869, %v7868
      %v7914 = vpack.c.b16 %v7871, %v7870
      %v7915 = vpack.c.b16 %v7873, %v7872
      %v7916 = vpack.c.b16 %v7875, %v7874
      %v7917 = vpack.c.b16 %v7877, %v7876
      %v7918 = vpack.c.b16 %v7879, %v7878
      %v7919 = vpack.c.b16 %v7881, %v7880
      %v7920 = vpack.c.b16 %v7883, %v7882
      %v7921 = vpack.c.b16 %v7885, %v7884
      %v7922 = vpack.c.b16 %v7887, %v7886
      %v7923 = vpack.c.b16 %v7889, %v7888
      %v7924 = vpack.c.b16 %v7891, %v7890
      %v7925 = vpack.c.b16 %v7893, %v7892
      %v7926 = vpack.c.b16 %v7895, %v7894
      %v7927 = vpack.c.b16 %v7897, %v7896
      %v7928 = vpack.c.b16 %v7899, %v7898
      %v7929 = vpack.c.b16 %v7901, %v7900
      %v7930 = vpack.c.b16 %v7903, %v7902
      %v7931 = vpack.c.b16 %v7905, %v7904
      %v7932 = vpack.c.b16 %v7907, %v7906
      %v7933 = vpack.c.b16 %v7909, %v7908
      %v7934 = vpack.c.b16 %v7911, %v7910
      %v7935 = vpack.c.b16 %v7912, %v7912
      %v7937 = vshrl.u32 %v7913, 16
      %v7939 = vshll.u32 %v7913, 16
      %v7941 = vrot.slane %v7939, 1
      %v7942 = vor.u32 %v7937, %v7941
      %v7944 = vshll.u32 %v7914, 16
      %v7946 = vrot.slane %v7944, 1
      %v7947 = vsel %vm5201, %v7942, %v7946
      %v7948 = vshrl.u32 %v7914, 16
      %v7950 = vor.u32 %v7948, %v7946
      %v7952 = vshll.u32 %v7915, 16
      %v7954 = vrot.slane %v7952, 1
      %v7955 = vsel %vm5201, %v7950, %v7954
      %v7956 = vshrl.u32 %v7915, 16
      %v7958 = vor.u32 %v7956, %v7954
      %v7960 = vshll.u32 %v7916, 16
      %v7962 = vrot.slane %v7960, 1
      %v7963 = vsel %vm5201, %v7958, %v7962
      %v7964 = vshrl.u32 %v7916, 16
      %v7966 = vor.u32 %v7964, %v7962
      %v7968 = vshll.u32 %v7917, 16
      %v7970 = vrot.slane %v7968, 1
      %v7971 = vsel %vm5201, %v7966, %v7970
      %v7972 = vshrl.u32 %v7917, 16
      %v7974 = vor.u32 %v7972, %v7970
      %v7976 = vshll.u32 %v7918, 16
      %v7978 = vrot.slane %v7976, 1
      %v7979 = vsel %vm5201, %v7974, %v7978
      %v7980 = vshrl.u32 %v7918, 16
      %v7982 = vor.u32 %v7980, %v7978
      %v7984 = vshll.u32 %v7919, 16
      %v7986 = vrot.slane %v7984, 1
      %v7987 = vsel %vm5201, %v7982, %v7986
      %v7988 = vshrl.u32 %v7919, 16
      %v7990 = vor.u32 %v7988, %v7986
      %v7992 = vshll.u32 %v7920, 16
      %v7994 = vrot.slane %v7992, 1
      %v7995 = vsel %vm5201, %v7990, %v7994
      %v7996 = vshrl.u32 %v7920, 16
      %v7998 = vor.u32 %v7996, %v7994
      %v8000 = vshll.u32 %v7921, 16
      %v8002 = vrot.slane %v8000, 1
      %v8003 = vsel %vm5201, %v7998, %v8002
      %v8004 = vshrl.u32 %v7921, 16
      %v8006 = vor.u32 %v8004, %v8002
      %v8008 = vshll.u32 %v7922, 16
      %v8010 = vrot.slane %v8008, 1
      %v8011 = vsel %vm5201, %v8006, %v8010
      %v8012 = vshrl.u32 %v7922, 16
      %v8014 = vor.u32 %v8012, %v8010
      %v8016 = vshll.u32 %v7923, 16
      %v8018 = vrot.slane %v8016, 1
      %v8019 = vsel %vm5201, %v8014, %v8018
      %v8020 = vshrl.u32 %v7923, 16
      %v8022 = vor.u32 %v8020, %v8018
      %v8024 = vshll.u32 %v7924, 16
      %v8026 = vrot.slane %v8024, 1
      %v8027 = vsel %vm5201, %v8022, %v8026
      %v8028 = vshrl.u32 %v7924, 16
      %v8030 = vor.u32 %v8028, %v8026
      %v8032 = vshll.u32 %v7925, 16
      %v8034 = vrot.slane %v8032, 1
      %v8035 = vsel %vm5201, %v8030, %v8034
      %v8036 = vshrl.u32 %v7925, 16
      %v8038 = vor.u32 %v8036, %v8034
      %v8040 = vshll.u32 %v7926, 16
      %v8042 = vrot.slane %v8040, 1
      %v8043 = vsel %vm5201, %v8038, %v8042
      %v8044 = vshrl.u32 %v7926, 16
      %v8046 = vor.u32 %v8044, %v8042
      %v8048 = vshll.u32 %v7927, 16
      %v8050 = vrot.slane %v8048, 1
      %v8051 = vsel %vm5201, %v8046, %v8050
      %v8052 = vshrl.u32 %v7927, 16
      %v8054 = vor.u32 %v8052, %v8050
      %v8056 = vshll.u32 %v7928, 16
      %v8058 = vrot.slane %v8056, 1
      %v8059 = vsel %vm5201, %v8054, %v8058
      %v8060 = vshrl.u32 %v7928, 16
      %v8062 = vor.u32 %v8060, %v8058
      %v8064 = vshll.u32 %v7929, 16
      %v8066 = vrot.slane %v8064, 1
      %v8067 = vsel %vm5201, %v8062, %v8066
      %v8068 = vshrl.u32 %v7929, 16
      %v8070 = vor.u32 %v8068, %v8066
      %v8072 = vshll.u32 %v7930, 16
      %v8074 = vrot.slane %v8072, 1
      %v8075 = vsel %vm5201, %v8070, %v8074
      %v8076 = vshrl.u32 %v7930, 16
      %v8078 = vor.u32 %v8076, %v8074
      %v8080 = vshll.u32 %v7931, 16
      %v8082 = vrot.slane %v8080, 1
      %v8083 = vsel %vm5201, %v8078, %v8082
      %v8084 = vshrl.u32 %v7931, 16
      %v8086 = vor.u32 %v8084, %v8082
      %v8088 = vshll.u32 %v7932, 16
      %v8090 = vrot.slane %v8088, 1
      %v8091 = vsel %vm5201, %v8086, %v8090
      %v8092 = vshrl.u32 %v7932, 16
      %v8094 = vor.u32 %v8092, %v8090
      %v8096 = vshll.u32 %v7933, 16
      %v8098 = vrot.slane %v8096, 1
      %v8099 = vsel %vm5201, %v8094, %v8098
      %v8100 = vshrl.u32 %v7933, 16
      %v8102 = vor.u32 %v8100, %v8098
      %v8104 = vshll.u32 %v7934, 16
      %v8106 = vrot.slane %v8104, 1
      %v8107 = vsel %vm5201, %v8102, %v8106
      %v8108 = vshrl.u32 %v7934, 16
      %v8110 = vor.u32 %v8108, %v8106
      %v8112 = vshll.u32 %v7935, 16
      %v8114 = vrot.slane %v8112, 1
      %v8115 = vsel %vm5201, %v8110, %v8114
      %v8117 = vsel %vm1291, %v7947, 0
      %v8120 = vsel %vm1291, %v7955, 0
      %v8123 = vsel %vm1291, %v7963, 0
      %v8126 = vsel %vm1291, %v7971, 0
      %v8129 = vsel %vm1291, %v7979, 0
      %v8132 = vsel %vm1291, %v7987, 0
      %v8135 = vsel %vm1291, %v7995, 0
      %v8138 = vsel %vm1291, %v8003, 0
      %v8141 = vsel %vm1291, %v8011, 0
      %v8144 = vsel %vm1291, %v8019, 0
      %v8147 = vsel %vm1291, %v8027, 0
      %v8150 = vsel %vm1291, %v8035, 0
      %v8153 = vsel %vm1291, %v8043, 0
      %v8156 = vsel %vm1291, %v8051, 0
      %v8159 = vsel %vm1291, %v8059, 0
      %v8162 = vsel %vm1291, %v8067, 0
      %v8165 = vsel %vm1291, %v8075, 0
      %v8168 = vsel %vm1291, %v8083, 0
      %v8171 = vsel %vm1291, %v8091, 0
      %v8174 = vsel %vm1291, %v8099, 0
      %v8177 = vsel %vm1291, %v8107, 0
      %v8180 = vsel %vm1291, %v8115, 0
      %v8183 = vsel %vm1358, %v7822, 0
      %8185 = vmatpush.bf16.msra.mxu0 0
      %8186 = vmatpush.bf16.msra.mxu0 0
      %8187 = vmatpush.bf16.msra.mxu0 0
      %8188 = vmatpush.bf16.msra.mxu0 0
      %8189 = vmatpush.bf16.msra.mxu0 0
      %8190 = vmatpush.bf16.msra.mxu0 0
      %8191 = vmatpush.bf16.msra.mxu0 0
      %8192 = vmatpush.bf16.msra.mxu0 %v8183
      %8193 = vmatmul.bf16.gmra.mxu0 %v8117
      %v8194 = vpop.f32.mrf.mxu0
      %v8195 = vadd.f32 0.0, %v8194
      %v8196 = vpop.f32.mrf.mxu0
      %v8197 = vadd.f32 0.0, %v8196
      %8198 = vmatmul.bf16.gmra.mxu0 %v8120
      %v8199 = vpop.f32.mrf.mxu0
      %v8200 = vadd.f32 0.0, %v8199
      %v8201 = vpop.f32.mrf.mxu0
      %v8202 = vadd.f32 0.0, %v8201
      %8203 = vmatmul.bf16.gmra.mxu0 %v8123
      %v8204 = vpop.f32.mrf.mxu0
      %v8205 = vadd.f32 0.0, %v8204
      %v8206 = vpop.f32.mrf.mxu0
      %v8207 = vadd.f32 0.0, %v8206
      %8208 = vmatmul.bf16.gmra.mxu0 %v8126
      %v8209 = vpop.f32.mrf.mxu0
      %v8210 = vadd.f32 0.0, %v8209
      %v8211 = vpop.f32.mrf.mxu0
      %v8212 = vadd.f32 0.0, %v8211
      %8213 = vmatmul.bf16.gmra.mxu0 %v8129
      %v8214 = vpop.f32.mrf.mxu0
      %v8215 = vadd.f32 0.0, %v8214
      %v8216 = vpop.f32.mrf.mxu0
      %v8217 = vadd.f32 0.0, %v8216
      %8218 = vmatmul.bf16.gmra.mxu0 %v8132
      %v8219 = vpop.f32.mrf.mxu0
      %v8220 = vadd.f32 0.0, %v8219
      %v8221 = vpop.f32.mrf.mxu0
      %v8222 = vadd.f32 0.0, %v8221
      %8223 = vmatmul.bf16.gmra.mxu0 %v8135
      %v8224 = vpop.f32.mrf.mxu0
      %v8225 = vadd.f32 0.0, %v8224
      %v8226 = vpop.f32.mrf.mxu0
      %v8227 = vadd.f32 0.0, %v8226
      %8228 = vmatmul.bf16.gmra.mxu0 %v8138
      %v8229 = vpop.f32.mrf.mxu0
      %v8230 = vadd.f32 0.0, %v8229
      %v8231 = vpop.f32.mrf.mxu0
      %v8232 = vadd.f32 0.0, %v8231
      %8233 = vmatmul.bf16.gmra.mxu0 %v8141
      %v8234 = vpop.f32.mrf.mxu0
      %v8235 = vadd.f32 0.0, %v8234
      %v8236 = vpop.f32.mrf.mxu0
      %v8237 = vadd.f32 0.0, %v8236
      %8238 = vmatmul.bf16.gmra.mxu0 %v8144
      %v8239 = vpop.f32.mrf.mxu0
      %v8240 = vadd.f32 0.0, %v8239
      %v8241 = vpop.f32.mrf.mxu0
      %v8242 = vadd.f32 0.0, %v8241
      %8243 = vmatmul.bf16.gmra.mxu0 %v8147
      %v8244 = vpop.f32.mrf.mxu0
      %v8245 = vadd.f32 0.0, %v8244
      %v8246 = vpop.f32.mrf.mxu0
      %v8247 = vadd.f32 0.0, %v8246
      %8248 = vmatmul.bf16.gmra.mxu0 %v8150
      %v8249 = vpop.f32.mrf.mxu0
      %v8250 = vadd.f32 0.0, %v8249
      %v8251 = vpop.f32.mrf.mxu0
      %v8252 = vadd.f32 0.0, %v8251
      %8253 = vmatmul.bf16.gmra.mxu0 %v8153
      %v8254 = vpop.f32.mrf.mxu0
      %v8255 = vadd.f32 0.0, %v8254
      %v8256 = vpop.f32.mrf.mxu0
      %v8257 = vadd.f32 0.0, %v8256
      %8258 = vmatmul.bf16.gmra.mxu0 %v8156
      %v8259 = vpop.f32.mrf.mxu0
      %v8260 = vadd.f32 0.0, %v8259
      %v8261 = vpop.f32.mrf.mxu0
      %v8262 = vadd.f32 0.0, %v8261
      %8263 = vmatmul.bf16.gmra.mxu0 %v8159
      %v8264 = vpop.f32.mrf.mxu0
      %v8265 = vadd.f32 0.0, %v8264
      %v8266 = vpop.f32.mrf.mxu0
      %v8267 = vadd.f32 0.0, %v8266
      %8268 = vmatmul.bf16.gmra.mxu0 %v8162
      %v8269 = vpop.f32.mrf.mxu0
      %v8270 = vadd.f32 0.0, %v8269
      %v8271 = vpop.f32.mrf.mxu0
      %v8272 = vadd.f32 0.0, %v8271
      %8273 = vmatmul.bf16.gmra.mxu0 %v8165
      %v8274 = vpop.f32.mrf.mxu0
      %v8275 = vadd.f32 0.0, %v8274
      %v8276 = vpop.f32.mrf.mxu0
      %v8277 = vadd.f32 0.0, %v8276
      %8278 = vmatmul.bf16.gmra.mxu0 %v8168
      %v8279 = vpop.f32.mrf.mxu0
      %v8280 = vadd.f32 0.0, %v8279
      %v8281 = vpop.f32.mrf.mxu0
      %v8282 = vadd.f32 0.0, %v8281
      %8283 = vmatmul.bf16.gmra.mxu0 %v8171
      %v8284 = vpop.f32.mrf.mxu0
      %v8285 = vadd.f32 0.0, %v8284
      %v8286 = vpop.f32.mrf.mxu0
      %v8287 = vadd.f32 0.0, %v8286
      %8288 = vmatmul.bf16.gmra.mxu0 %v8174
      %v8289 = vpop.f32.mrf.mxu0
      %v8290 = vadd.f32 0.0, %v8289
      %v8291 = vpop.f32.mrf.mxu0
      %v8292 = vadd.f32 0.0, %v8291
      %8293 = vmatmul.bf16.gmra.mxu0 %v8177
      %v8294 = vpop.f32.mrf.mxu0
      %v8295 = vadd.f32 0.0, %v8294
      %v8296 = vpop.f32.mrf.mxu0
      %v8297 = vadd.f32 0.0, %v8296
      %8298 = vmatmul.bf16.gmra.mxu0 %v8180
      %v8299 = vpop.f32.mrf.mxu0
      %v8300 = vadd.f32 0.0, %v8299
      %v8301 = vpop.f32.mrf.mxu0
      %v8302 = vadd.f32 0.0, %v8301
      %8303 = vdwg.mxu0
      %v8304 = vadd.f32 %v7732, %v8195
      %v8305 = vadd.f32 %v7733, %v8197
      %v8306 = vadd.f32 %v7734, %v8200
      %v8307 = vadd.f32 %v7735, %v8202
      %v8308 = vadd.f32 %v7736, %v8205
      %v8309 = vadd.f32 %v7737, %v8207
      %v8310 = vadd.f32 %v7738, %v8210
      %v8311 = vadd.f32 %v7739, %v8212
      %v8312 = vadd.f32 %v7740, %v8215
      %v8313 = vadd.f32 %v7741, %v8217
      %v8314 = vadd.f32 %v7742, %v8220
      %v8315 = vadd.f32 %v7743, %v8222
      %v8316 = vadd.f32 %v7744, %v8225
      %v8317 = vadd.f32 %v7745, %v8227
      %v8318 = vadd.f32 %v7746, %v8230
      %v8319 = vadd.f32 %v7747, %v8232
      %v8320 = vadd.f32 %v7748, %v8235
      %v8321 = vadd.f32 %v7749, %v8237
      %v8322 = vadd.f32 %v7750, %v8240
      %v8323 = vadd.f32 %v7751, %v8242
      %v8324 = vadd.f32 %v7752, %v8245
      %v8325 = vadd.f32 %v7753, %v8247
      %v8326 = vadd.f32 %v7754, %v8250
      %v8327 = vadd.f32 %v7755, %v8252
      %v8328 = vadd.f32 %v7756, %v8255
      %v8329 = vadd.f32 %v7757, %v8257
      %v8330 = vadd.f32 %v7758, %v8260
      %v8331 = vadd.f32 %v7759, %v8262
      %v8332 = vadd.f32 %v7760, %v8265
      %v8333 = vadd.f32 %v7761, %v8267
      %v8334 = vadd.f32 %v7762, %v8270
      %v8335 = vadd.f32 %v7763, %v8272
      %v8336 = vadd.f32 %v7764, %v8275
      %v8337 = vadd.f32 %v7765, %v8277
      %v8338 = vadd.f32 %v7766, %v8280
      %v8339 = vadd.f32 %v7767, %v8282
      %v8340 = vadd.f32 %v7768, %v8285
      %v8341 = vadd.f32 %v7769, %v8287
      %v8342 = vadd.f32 %v7770, %v8290
      %v8343 = vadd.f32 %v7771, %v8292
      %v8344 = vadd.f32 %v7772, %v8295
      %v8345 = vadd.f32 %v7773, %v8297
      %v8346 = vadd.f32 %v7774, %v8300
      %v8347 = vadd.f32 %v7775, %v8302
      %v8348 = vld [vmem:[#allocation2 + $0x38] sm:$0xe]
      %v8349 = vld [vmem:[#allocation2 + $0xe8] sm:$0x3]
      %s8350 = scalar_lea.vmem %s4, 34
      %v8351 = vld [vmem:[%s8350] sm:$0x3]
      %v8354 = vunpack.c.l.b16 %v8348
      %v8355 = vunpack.c.l.b16 %v8349
      %v8356 = vpack.c.b16 %v7869, %v8354
      %v8357 = vpack.c.b16 %v8355, %v8355
      %v8359 = vshrl.u32 %v8356, 16
      %v8361 = vrot.slane %v8359, 1
      %v8362 = vshll.u32 %v8356, 16
      %v8364 = vrot.slane %v8362, 2
      %v8365 = vor.u32 %v8361, %v8364
      %v8366 = vrot.slane %v7948, 1
      %v8367 = vrot.slane %v7944, 2
      %v8368 = vor.u32 %v8366, %v8367
      %v8369 = vsel %vm3969, %v8365, %v8368
      %v8370 = vrot.slane %v7956, 1
      %v8371 = vrot.slane %v7952, 2
      %v8372 = vor.u32 %v8370, %v8371
      %v8373 = vsel %vm3969, %v8368, %v8372
      %v8374 = vrot.slane %v7964, 1
      %v8375 = vrot.slane %v7960, 2
      %v8376 = vor.u32 %v8374, %v8375
      %v8377 = vsel %vm3969, %v8372, %v8376
      %v8378 = vrot.slane %v7972, 1
      %v8379 = vrot.slane %v7968, 2
      %v8380 = vor.u32 %v8378, %v8379
      %v8381 = vsel %vm3969, %v8376, %v8380
      %v8382 = vrot.slane %v7980, 1
      %v8383 = vrot.slane %v7976, 2
      %v8384 = vor.u32 %v8382, %v8383
      %v8385 = vsel %vm3969, %v8380, %v8384
      %v8386 = vrot.slane %v7988, 1
      %v8387 = vrot.slane %v7984, 2
      %v8388 = vor.u32 %v8386, %v8387
      %v8389 = vsel %vm3969, %v8384, %v8388
      %v8390 = vrot.slane %v7996, 1
      %v8391 = vrot.slane %v7992, 2
      %v8392 = vor.u32 %v8390, %v8391
      %v8393 = vsel %vm3969, %v8388, %v8392
      %v8394 = vrot.slane %v8004, 1
      %v8395 = vrot.slane %v8000, 2
      %v8396 = vor.u32 %v8394, %v8395
      %v8397 = vsel %vm3969, %v8392, %v8396
      %v8398 = vrot.slane %v8012, 1
      %v8399 = vrot.slane %v8008, 2
      %v8400 = vor.u32 %v8398, %v8399
      %v8401 = vsel %vm3969, %v8396, %v8400
      %v8402 = vrot.slane %v8020, 1
      %v8403 = vrot.slane %v8016, 2
      %v8404 = vor.u32 %v8402, %v8403
      %v8405 = vsel %vm3969, %v8400, %v8404
      %v8406 = vrot.slane %v8028, 1
      %v8407 = vrot.slane %v8024, 2
      %v8408 = vor.u32 %v8406, %v8407
      %v8409 = vsel %vm3969, %v8404, %v8408
      %v8410 = vrot.slane %v8036, 1
      %v8411 = vrot.slane %v8032, 2
      %v8412 = vor.u32 %v8410, %v8411
      %v8413 = vsel %vm3969, %v8408, %v8412
      %v8414 = vrot.slane %v8044, 1
      %v8415 = vrot.slane %v8040, 2
      %v8416 = vor.u32 %v8414, %v8415
      %v8417 = vsel %vm3969, %v8412, %v8416
      %v8418 = vrot.slane %v8052, 1
      %v8419 = vrot.slane %v8048, 2
      %v8420 = vor.u32 %v8418, %v8419
      %v8421 = vsel %vm3969, %v8416, %v8420
      %v8422 = vrot.slane %v8060, 1
      %v8423 = vrot.slane %v8056, 2
      %v8424 = vor.u32 %v8422, %v8423
      %v8425 = vsel %vm3969, %v8420, %v8424
      %v8426 = vrot.slane %v8068, 1
      %v8427 = vrot.slane %v8064, 2
      %v8428 = vor.u32 %v8426, %v8427
      %v8429 = vsel %vm3969, %v8424, %v8428
      %v8430 = vrot.slane %v8076, 1
      %v8431 = vrot.slane %v8072, 2
      %v8432 = vor.u32 %v8430, %v8431
      %v8433 = vsel %vm3969, %v8428, %v8432
      %v8434 = vrot.slane %v8084, 1
      %v8435 = vrot.slane %v8080, 2
      %v8436 = vor.u32 %v8434, %v8435
      %v8437 = vsel %vm3969, %v8432, %v8436
      %v8438 = vrot.slane %v8092, 1
      %v8439 = vrot.slane %v8088, 2
      %v8440 = vor.u32 %v8438, %v8439
      %v8441 = vsel %vm3969, %v8436, %v8440
      %v8442 = vrot.slane %v8100, 1
      %v8443 = vrot.slane %v8096, 2
      %v8444 = vor.u32 %v8442, %v8443
      %v8445 = vsel %vm3969, %v8440, %v8444
      %v8446 = vrot.slane %v8108, 1
      %v8447 = vrot.slane %v8104, 2
      %v8448 = vor.u32 %v8446, %v8447
      %v8449 = vsel %vm3969, %v8444, %v8448
      %v8451 = vshrl.u32 %v8357, 16
      %v8453 = vrot.slane %v8451, 1
      %v8454 = vshll.u32 %v8357, 16
      %v8456 = vrot.slane %v8454, 2
      %v8457 = vor.u32 %v8453, %v8456
      %v8458 = vsel %vm3969, %v8448, %v8457
      %v8460 = vsel %vm1291, %v8369, 0
      %v8463 = vsel %vm1291, %v8373, 0
      %v8466 = vsel %vm1291, %v8377, 0
      %v8469 = vsel %vm1291, %v8381, 0
      %v8472 = vsel %vm1291, %v8385, 0
      %v8475 = vsel %vm1291, %v8389, 0
      %v8478 = vsel %vm1291, %v8393, 0
      %v8481 = vsel %vm1291, %v8397, 0
      %v8484 = vsel %vm1291, %v8401, 0
      %v8487 = vsel %vm1291, %v8405, 0
      %v8490 = vsel %vm1291, %v8409, 0
      %v8493 = vsel %vm1291, %v8413, 0
      %v8496 = vsel %vm1291, %v8417, 0
      %v8499 = vsel %vm1291, %v8421, 0
      %v8502 = vsel %vm1291, %v8425, 0
      %v8505 = vsel %vm1291, %v8429, 0
      %v8508 = vsel %vm1291, %v8433, 0
      %v8511 = vsel %vm1291, %v8437, 0
      %v8514 = vsel %vm1291, %v8441, 0
      %v8517 = vsel %vm1291, %v8445, 0
      %v8520 = vsel %vm1291, %v8449, 0
      %v8523 = vsel %vm1291, %v8458, 0
      %v8526 = vsel %vm1358, %v8351, 0
      %8528 = vmatpush.bf16.msra.mxu0 0
      %8529 = vmatpush.bf16.msra.mxu0 0
      %8530 = vmatpush.bf16.msra.mxu0 0
      %8531 = vmatpush.bf16.msra.mxu0 0
      %8532 = vmatpush.bf16.msra.mxu0 0
      %8533 = vmatpush.bf16.msra.mxu0 0
      %8534 = vmatpush.bf16.msra.mxu0 0
      %8535 = vmatpush.bf16.msra.mxu0 %v8526
      %8536 = vmatmul.bf16.gmra.mxu0 %v8460
      %v8537 = vpop.f32.mrf.mxu0
      %v8538 = vadd.f32 0.0, %v8537
      %v8539 = vpop.f32.mrf.mxu0
      %v8540 = vadd.f32 0.0, %v8539
      %8541 = vmatmul.bf16.gmra.mxu0 %v8463
      %v8542 = vpop.f32.mrf.mxu0
      %v8543 = vadd.f32 0.0, %v8542
      %v8544 = vpop.f32.mrf.mxu0
      %v8545 = vadd.f32 0.0, %v8544
      %8546 = vmatmul.bf16.gmra.mxu0 %v8466
      %v8547 = vpop.f32.mrf.mxu0
      %v8548 = vadd.f32 0.0, %v8547
      %v8549 = vpop.f32.mrf.mxu0
      %v8550 = vadd.f32 0.0, %v8549
      %8551 = vmatmul.bf16.gmra.mxu0 %v8469
      %v8552 = vpop.f32.mrf.mxu0
      %v8553 = vadd.f32 0.0, %v8552
      %v8554 = vpop.f32.mrf.mxu0
      %v8555 = vadd.f32 0.0, %v8554
      %8556 = vmatmul.bf16.gmra.mxu0 %v8472
      %v8557 = vpop.f32.mrf.mxu0
      %v8558 = vadd.f32 0.0, %v8557
      %v8559 = vpop.f32.mrf.mxu0
      %v8560 = vadd.f32 0.0, %v8559
      %8561 = vmatmul.bf16.gmra.mxu0 %v8475
      %v8562 = vpop.f32.mrf.mxu0
      %v8563 = vadd.f32 0.0, %v8562
      %v8564 = vpop.f32.mrf.mxu0
      %v8565 = vadd.f32 0.0, %v8564
      %8566 = vmatmul.bf16.gmra.mxu0 %v8478
      %v8567 = vpop.f32.mrf.mxu0
      %v8568 = vadd.f32 0.0, %v8567
      %v8569 = vpop.f32.mrf.mxu0
      %v8570 = vadd.f32 0.0, %v8569
      %8571 = vmatmul.bf16.gmra.mxu0 %v8481
      %v8572 = vpop.f32.mrf.mxu0
      %v8573 = vadd.f32 0.0, %v8572
      %v8574 = vpop.f32.mrf.mxu0
      %v8575 = vadd.f32 0.0, %v8574
      %8576 = vmatmul.bf16.gmra.mxu0 %v8484
      %v8577 = vpop.f32.mrf.mxu0
      %v8578 = vadd.f32 0.0, %v8577
      %v8579 = vpop.f32.mrf.mxu0
      %v8580 = vadd.f32 0.0, %v8579
      %8581 = vmatmul.bf16.gmra.mxu0 %v8487
      %v8582 = vpop.f32.mrf.mxu0
      %v8583 = vadd.f32 0.0, %v8582
      %v8584 = vpop.f32.mrf.mxu0
      %v8585 = vadd.f32 0.0, %v8584
      %8586 = vmatmul.bf16.gmra.mxu0 %v8490
      %v8587 = vpop.f32.mrf.mxu0
      %v8588 = vadd.f32 0.0, %v8587
      %v8589 = vpop.f32.mrf.mxu0
      %v8590 = vadd.f32 0.0, %v8589
      %8591 = vmatmul.bf16.gmra.mxu0 %v8493
      %v8592 = vpop.f32.mrf.mxu0
      %v8593 = vadd.f32 0.0, %v8592
      %v8594 = vpop.f32.mrf.mxu0
      %v8595 = vadd.f32 0.0, %v8594
      %8596 = vmatmul.bf16.gmra.mxu0 %v8496
      %v8597 = vpop.f32.mrf.mxu0
      %v8598 = vadd.f32 0.0, %v8597
      %v8599 = vpop.f32.mrf.mxu0
      %v8600 = vadd.f32 0.0, %v8599
      %8601 = vmatmul.bf16.gmra.mxu0 %v8499
      %v8602 = vpop.f32.mrf.mxu0
      %v8603 = vadd.f32 0.0, %v8602
      %v8604 = vpop.f32.mrf.mxu0
      %v8605 = vadd.f32 0.0, %v8604
      %8606 = vmatmul.bf16.gmra.mxu0 %v8502
      %v8607 = vpop.f32.mrf.mxu0
      %v8608 = vadd.f32 0.0, %v8607
      %v8609 = vpop.f32.mrf.mxu0
      %v8610 = vadd.f32 0.0, %v8609
      %8611 = vmatmul.bf16.gmra.mxu0 %v8505
      %v8612 = vpop.f32.mrf.mxu0
      %v8613 = vadd.f32 0.0, %v8612
      %v8614 = vpop.f32.mrf.mxu0
      %v8615 = vadd.f32 0.0, %v8614
      %8616 = vmatmul.bf16.gmra.mxu0 %v8508
      %v8617 = vpop.f32.mrf.mxu0
      %v8618 = vadd.f32 0.0, %v8617
      %v8619 = vpop.f32.mrf.mxu0
      %v8620 = vadd.f32 0.0, %v8619
      %8621 = vmatmul.bf16.gmra.mxu0 %v8511
      %v8622 = vpop.f32.mrf.mxu0
      %v8623 = vadd.f32 0.0, %v8622
      %v8624 = vpop.f32.mrf.mxu0
      %v8625 = vadd.f32 0.0, %v8624
      %8626 = vmatmul.bf16.gmra.mxu0 %v8514
      %v8627 = vpop.f32.mrf.mxu0
      %v8628 = vadd.f32 0.0, %v8627
      %v8629 = vpop.f32.mrf.mxu0
      %v8630 = vadd.f32 0.0, %v8629
      %8631 = vmatmul.bf16.gmra.mxu0 %v8517
      %v8632 = vpop.f32.mrf.mxu0
      %v8633 = vadd.f32 0.0, %v8632
      %v8634 = vpop.f32.mrf.mxu0
      %v8635 = vadd.f32 0.0, %v8634
      %8636 = vmatmul.bf16.gmra.mxu0 %v8520
      %v8637 = vpop.f32.mrf.mxu0
      %v8638 = vadd.f32 0.0, %v8637
      %v8639 = vpop.f32.mrf.mxu0
      %v8640 = vadd.f32 0.0, %v8639
      %8641 = vmatmul.bf16.gmra.mxu0 %v8523
      %v8642 = vpop.f32.mrf.mxu0
      %v8643 = vadd.f32 0.0, %v8642
      %v8644 = vpop.f32.mrf.mxu0
      %v8645 = vadd.f32 0.0, %v8644
      %8646 = vdwg.mxu0
      %v8647 = vadd.f32 %v8304, %v8538
      %v8648 = vadd.f32 %v8305, %v8540
      %v8649 = vadd.f32 %v8306, %v8543
      %v8650 = vadd.f32 %v8307, %v8545
      %v8651 = vadd.f32 %v8308, %v8548
      %v8652 = vadd.f32 %v8309, %v8550
      %v8653 = vadd.f32 %v8310, %v8553
      %v8654 = vadd.f32 %v8311, %v8555
      %v8655 = vadd.f32 %v8312, %v8558
      %v8656 = vadd.f32 %v8313, %v8560
      %v8657 = vadd.f32 %v8314, %v8563
      %v8658 = vadd.f32 %v8315, %v8565
      %v8659 = vadd.f32 %v8316, %v8568
      %v8660 = vadd.f32 %v8317, %v8570
      %v8661 = vadd.f32 %v8318, %v8573
      %v8662 = vadd.f32 %v8319, %v8575
      %v8663 = vadd.f32 %v8320, %v8578
      %v8664 = vadd.f32 %v8321, %v8580
      %v8665 = vadd.f32 %v8322, %v8583
      %v8666 = vadd.f32 %v8323, %v8585
      %v8667 = vadd.f32 %v8324, %v8588
      %v8668 = vadd.f32 %v8325, %v8590
      %v8669 = vadd.f32 %v8326, %v8593
      %v8670 = vadd.f32 %v8327, %v8595
      %v8671 = vadd.f32 %v8328, %v8598
      %v8672 = vadd.f32 %v8329, %v8600
      %v8673 = vadd.f32 %v8330, %v8603
      %v8674 = vadd.f32 %v8331, %v8605
      %v8675 = vadd.f32 %v8332, %v8608
      %v8676 = vadd.f32 %v8333, %v8610
      %v8677 = vadd.f32 %v8334, %v8613
      %v8678 = vadd.f32 %v8335, %v8615
      %v8679 = vadd.f32 %v8336, %v8618
      %v8680 = vadd.f32 %v8337, %v8620
      %v8681 = vadd.f32 %v8338, %v8623
      %v8682 = vadd.f32 %v8339, %v8625
      %v8683 = vadd.f32 %v8340, %v8628
      %v8684 = vadd.f32 %v8341, %v8630
      %v8685 = vadd.f32 %v8342, %v8633
      %v8686 = vadd.f32 %v8343, %v8635
      %v8687 = vadd.f32 %v8344, %v8638
      %v8688 = vadd.f32 %v8345, %v8640
      %v8689 = vadd.f32 %v8346, %v8643
      %v8690 = vadd.f32 %v8347, %v8645
      %s8691 = scalar_lea.vmem %s5, 1
      %v8692 = vld [vmem:[%s8691] sm:$0x1]
      %v8694 = vperm.slane %v8692, 0
      %v8696 = vadd.f32 %v8647, %v8694
      %v8697 = vadd.f32 %v8648, %v8694
      %v8698 = vadd.f32 %v8649, %v8694
      %v8699 = vadd.f32 %v8650, %v8694
      %v8700 = vadd.f32 %v8651, %v8694
      %v8701 = vadd.f32 %v8652, %v8694
      %v8702 = vadd.f32 %v8653, %v8694
      %v8703 = vadd.f32 %v8654, %v8694
      %v8704 = vadd.f32 %v8655, %v8694
      %v8705 = vadd.f32 %v8656, %v8694
      %v8706 = vadd.f32 %v8657, %v8694
      %v8707 = vadd.f32 %v8658, %v8694
      %v8708 = vadd.f32 %v8659, %v8694
      %v8709 = vadd.f32 %v8660, %v8694
      %v8710 = vadd.f32 %v8661, %v8694
      %v8711 = vadd.f32 %v8662, %v8694
      %v8712 = vadd.f32 %v8663, %v8694
      %v8713 = vadd.f32 %v8664, %v8694
      %v8714 = vadd.f32 %v8665, %v8694
      %v8715 = vadd.f32 %v8666, %v8694
      %v8716 = vadd.f32 %v8667, %v8694
      %v8717 = vadd.f32 %v8668, %v8694
      %v8718 = vadd.f32 %v8669, %v8694
      %v8719 = vadd.f32 %v8670, %v8694
      %v8720 = vadd.f32 %v8671, %v8694
      %v8721 = vadd.f32 %v8672, %v8694
      %v8722 = vadd.f32 %v8673, %v8694
      %v8723 = vadd.f32 %v8674, %v8694
      %v8724 = vadd.f32 %v8675, %v8694
      %v8725 = vadd.f32 %v8676, %v8694
      %v8726 = vadd.f32 %v8677, %v8694
      %v8727 = vadd.f32 %v8678, %v8694
      %v8728 = vadd.f32 %v8679, %v8694
      %v8729 = vadd.f32 %v8680, %v8694
      %v8730 = vadd.f32 %v8681, %v8694
      %v8731 = vadd.f32 %v8682, %v8694
      %v8732 = vadd.f32 %v8683, %v8694
      %v8733 = vadd.f32 %v8684, %v8694
      %v8734 = vadd.f32 %v8685, %v8694
      %v8735 = vadd.f32 %v8686, %v8694
      %v8736 = vadd.f32 %v8687, %v8694
      %v8737 = vadd.f32 %v8688, %v8694
      %v8738 = vadd.f32 %v8689, %v8694
      %v8739 = vadd.f32 %v8690, %v8694
      %v8740 = vmax.f32 %v8696, 0.0
      %v8741 = vmax.f32 %v8697, 0.0
      %v8742 = vmax.f32 %v8698, 0.0
      %v8743 = vmax.f32 %v8699, 0.0
      %v8744 = vmax.f32 %v8700, 0.0
      %v8745 = vmax.f32 %v8701, 0.0
      %v8746 = vmax.f32 %v8702, 0.0
      %v8747 = vmax.f32 %v8703, 0.0
      %v8748 = vmax.f32 %v8704, 0.0
      %v8749 = vmax.f32 %v8705, 0.0
      %v8750 = vmax.f32 %v8706, 0.0
      %v8751 = vmax.f32 %v8707, 0.0
      %v8752 = vmax.f32 %v8708, 0.0
      %v8753 = vmax.f32 %v8709, 0.0
      %v8754 = vmax.f32 %v8710, 0.0
      %v8755 = vmax.f32 %v8711, 0.0
      %v8756 = vmax.f32 %v8712, 0.0
      %v8757 = vmax.f32 %v8713, 0.0
      %v8758 = vmax.f32 %v8714, 0.0
      %v8759 = vmax.f32 %v8715, 0.0
      %v8760 = vmax.f32 %v8716, 0.0
      %v8761 = vmax.f32 %v8717, 0.0
      %v8762 = vmax.f32 %v8718, 0.0
      %v8763 = vmax.f32 %v8719, 0.0
      %v8764 = vmax.f32 %v8720, 0.0
      %v8765 = vmax.f32 %v8721, 0.0
      %v8766 = vmax.f32 %v8722, 0.0
      %v8767 = vmax.f32 %v8723, 0.0
      %v8768 = vmax.f32 %v8724, 0.0
      %v8769 = vmax.f32 %v8725, 0.0
      %v8770 = vmax.f32 %v8726, 0.0
      %v8771 = vmax.f32 %v8727, 0.0
      %v8772 = vmax.f32 %v8728, 0.0
      %v8773 = vmax.f32 %v8729, 0.0
      %v8774 = vmax.f32 %v8730, 0.0
      %v8775 = vmax.f32 %v8731, 0.0
      %v8776 = vmax.f32 %v8732, 0.0
      %v8777 = vmax.f32 %v8733, 0.0
      %v8778 = vmax.f32 %v8734, 0.0
      %v8779 = vmax.f32 %v8735, 0.0
      %v8780 = vmax.f32 %v8736, 0.0
      %v8781 = vmax.f32 %v8737, 0.0
      %v8782 = vmax.f32 %v8738, 0.0
      %v8783 = vmax.f32 %v8739, 0.0
      %v8784 = vpack.c.bf16 %v8741, %v8740
      %v8785 = vpack.c.bf16 %v8743, %v8742
      %v8786 = vpack.c.bf16 %v8745, %v8744
      %v8787 = vpack.c.bf16 %v8747, %v8746
      %v8788 = vpack.c.bf16 %v8749, %v8748
      %v8789 = vpack.c.bf16 %v8751, %v8750
      %v8790 = vpack.c.bf16 %v8753, %v8752
      %v8791 = vpack.c.bf16 %v8755, %v8754
      %v8792 = vpack.c.bf16 %v8757, %v8756
      %v8793 = vpack.c.bf16 %v8759, %v8758
      %v8794 = vpack.c.bf16 %v8761, %v8760
      %v8795 = vpack.c.bf16 %v8763, %v8762
      %v8796 = vpack.c.bf16 %v8765, %v8764
      %v8797 = vpack.c.bf16 %v8767, %v8766
      %v8798 = vpack.c.bf16 %v8769, %v8768
      %v8799 = vpack.c.bf16 %v8771, %v8770
      %v8800 = vpack.c.bf16 %v8773, %v8772
      %v8801 = vpack.c.bf16 %v8775, %v8774
      %v8802 = vpack.c.bf16 %v8777, %v8776
      %v8803 = vpack.c.bf16 %v8779, %v8778
      %v8804 = vpack.c.bf16 %v8781, %v8780
      %v8805 = vpack.c.bf16 %v8783, %v8782
      %s8806 = scalar_lea.vmem %s7, 2
      %v8807 = vld [vmem:[%s8806] sm:$0x3]
      %v8809 = vsel %vm1291, %v8784, 0
      %v8812 = vsel %vm1291, %v8785, 0
      %v8815 = vsel %vm1291, %v8786, 0
      %v8818 = vsel %vm1291, %v8787, 0
      %v8821 = vsel %vm1291, %v8788, 0
      %v8824 = vsel %vm1291, %v8789, 0
      %v8827 = vsel %vm1291, %v8790, 0
      %v8830 = vsel %vm1291, %v8791, 0
      %v8833 = vsel %vm1291, %v8792, 0
      %v8836 = vsel %vm1291, %v8793, 0
      %v8839 = vsel %vm1291, %v8794, 0
      %v8842 = vsel %vm1291, %v8795, 0
      %v8845 = vsel %vm1291, %v8796, 0
      %v8848 = vsel %vm1291, %v8797, 0
      %v8851 = vsel %vm1291, %v8798, 0
      %v8854 = vsel %vm1291, %v8799, 0
      %v8857 = vsel %vm1291, %v8800, 0
      %v8860 = vsel %vm1291, %v8801, 0
      %v8863 = vsel %vm1291, %v8802, 0
      %v8866 = vsel %vm1291, %v8803, 0
      %v8869 = vsel %vm1291, %v8804, 0
      %v8872 = vsel %vm1291, %v8805, 0
      %v8875 = vsel %vm1358, %v8807, 0
      %8877 = vmatpush.bf16.msra.mxu0 0
      %8878 = vmatpush.bf16.msra.mxu0 0
      %8879 = vmatpush.bf16.msra.mxu0 0
      %8880 = vmatpush.bf16.msra.mxu0 0
      %8881 = vmatpush.bf16.msra.mxu0 0
      %8882 = vmatpush.bf16.msra.mxu0 0
      %8883 = vmatpush.bf16.msra.mxu0 0
      %8884 = vmatpush.bf16.msra.mxu0 %v8875
      %8885 = vmatmul.bf16.gmra.mxu0 %v8809
      %v8886 = vpop.f32.mrf.mxu0
      %v8887 = vadd.f32 0.0, %v8886
      %v8888 = vpop.f32.mrf.mxu0
      %v8889 = vadd.f32 0.0, %v8888
      %8890 = vmatmul.bf16.gmra.mxu0 %v8812
      %v8891 = vpop.f32.mrf.mxu0
      %v8892 = vadd.f32 0.0, %v8891
      %v8893 = vpop.f32.mrf.mxu0
      %v8894 = vadd.f32 0.0, %v8893
      %8895 = vmatmul.bf16.gmra.mxu0 %v8815
      %v8896 = vpop.f32.mrf.mxu0
      %v8897 = vadd.f32 0.0, %v8896
      %v8898 = vpop.f32.mrf.mxu0
      %v8899 = vadd.f32 0.0, %v8898
      %8900 = vmatmul.bf16.gmra.mxu0 %v8818
      %v8901 = vpop.f32.mrf.mxu0
      %v8902 = vadd.f32 0.0, %v8901
      %v8903 = vpop.f32.mrf.mxu0
      %v8904 = vadd.f32 0.0, %v8903
      %8905 = vmatmul.bf16.gmra.mxu0 %v8821
      %v8906 = vpop.f32.mrf.mxu0
      %v8907 = vadd.f32 0.0, %v8906
      %v8908 = vpop.f32.mrf.mxu0
      %v8909 = vadd.f32 0.0, %v8908
      %8910 = vmatmul.bf16.gmra.mxu0 %v8824
      %v8911 = vpop.f32.mrf.mxu0
      %v8912 = vadd.f32 0.0, %v8911
      %v8913 = vpop.f32.mrf.mxu0
      %v8914 = vadd.f32 0.0, %v8913
      %8915 = vmatmul.bf16.gmra.mxu0 %v8827
      %v8916 = vpop.f32.mrf.mxu0
      %v8917 = vadd.f32 0.0, %v8916
      %v8918 = vpop.f32.mrf.mxu0
      %v8919 = vadd.f32 0.0, %v8918
      %8920 = vmatmul.bf16.gmra.mxu0 %v8830
      %v8921 = vpop.f32.mrf.mxu0
      %v8922 = vadd.f32 0.0, %v8921
      %v8923 = vpop.f32.mrf.mxu0
      %v8924 = vadd.f32 0.0, %v8923
      %8925 = vmatmul.bf16.gmra.mxu0 %v8833
      %v8926 = vpop.f32.mrf.mxu0
      %v8927 = vadd.f32 0.0, %v8926
      %v8928 = vpop.f32.mrf.mxu0
      %v8929 = vadd.f32 0.0, %v8928
      %8930 = vmatmul.bf16.gmra.mxu0 %v8836
      %v8931 = vpop.f32.mrf.mxu0
      %v8932 = vadd.f32 0.0, %v8931
      %v8933 = vpop.f32.mrf.mxu0
      %v8934 = vadd.f32 0.0, %v8933
      %8935 = vmatmul.bf16.gmra.mxu0 %v8839
      %v8936 = vpop.f32.mrf.mxu0
      %v8937 = vadd.f32 0.0, %v8936
      %v8938 = vpop.f32.mrf.mxu0
      %v8939 = vadd.f32 0.0, %v8938
      %8940 = vmatmul.bf16.gmra.mxu0 %v8842
      %v8941 = vpop.f32.mrf.mxu0
      %v8942 = vadd.f32 0.0, %v8941
      %v8943 = vpop.f32.mrf.mxu0
      %v8944 = vadd.f32 0.0, %v8943
      %8945 = vmatmul.bf16.gmra.mxu0 %v8845
      %v8946 = vpop.f32.mrf.mxu0
      %v8947 = vadd.f32 0.0, %v8946
      %v8948 = vpop.f32.mrf.mxu0
      %v8949 = vadd.f32 0.0, %v8948
      %8950 = vmatmul.bf16.gmra.mxu0 %v8848
      %v8951 = vpop.f32.mrf.mxu0
      %v8952 = vadd.f32 0.0, %v8951
      %v8953 = vpop.f32.mrf.mxu0
      %v8954 = vadd.f32 0.0, %v8953
      %8955 = vmatmul.bf16.gmra.mxu0 %v8851
      %v8956 = vpop.f32.mrf.mxu0
      %v8957 = vadd.f32 0.0, %v8956
      %v8958 = vpop.f32.mrf.mxu0
      %v8959 = vadd.f32 0.0, %v8958
      %8960 = vmatmul.bf16.gmra.mxu0 %v8854
      %v8961 = vpop.f32.mrf.mxu0
      %v8962 = vadd.f32 0.0, %v8961
      %v8963 = vpop.f32.mrf.mxu0
      %v8964 = vadd.f32 0.0, %v8963
      %8965 = vmatmul.bf16.gmra.mxu0 %v8857
      %v8966 = vpop.f32.mrf.mxu0
      %v8967 = vadd.f32 0.0, %v8966
      %v8968 = vpop.f32.mrf.mxu0
      %v8969 = vadd.f32 0.0, %v8968
      %8970 = vmatmul.bf16.gmra.mxu0 %v8860
      %v8971 = vpop.f32.mrf.mxu0
      %v8972 = vadd.f32 0.0, %v8971
      %v8973 = vpop.f32.mrf.mxu0
      %v8974 = vadd.f32 0.0, %v8973
      %8975 = vmatmul.bf16.gmra.mxu0 %v8863
      %v8976 = vpop.f32.mrf.mxu0
      %v8977 = vadd.f32 0.0, %v8976
      %v8978 = vpop.f32.mrf.mxu0
      %v8979 = vadd.f32 0.0, %v8978
      %8980 = vmatmul.bf16.gmra.mxu0 %v8866
      %v8981 = vpop.f32.mrf.mxu0
      %v8982 = vadd.f32 0.0, %v8981
      %v8983 = vpop.f32.mrf.mxu0
      %v8984 = vadd.f32 0.0, %v8983
      %8985 = vmatmul.bf16.gmra.mxu0 %v8869
      %v8986 = vpop.f32.mrf.mxu0
      %v8987 = vadd.f32 0.0, %v8986
      %v8988 = vpop.f32.mrf.mxu0
      %v8989 = vadd.f32 0.0, %v8988
      %8990 = vmatmul.bf16.gmra.mxu0 %v8872
      %v8991 = vpop.f32.mrf.mxu0
      %v8992 = vadd.f32 0.0, %v8991
      %v8993 = vpop.f32.mrf.mxu0
      %v8994 = vadd.f32 0.0, %v8993
      %8995 = vdwg.mxu0
      %v8996 = vadd.f32 %v4994, %v8887
      %v8997 = vadd.f32 %v4995, %v8889
      %v8998 = vadd.f32 %v4996, %v8892
      %v8999 = vadd.f32 %v4997, %v8894
      %v9000 = vadd.f32 %v4998, %v8897
      %v9001 = vadd.f32 %v4999, %v8899
      %v9002 = vadd.f32 %v5000, %v8902
      %v9003 = vadd.f32 %v5001, %v8904
      %v9004 = vadd.f32 %v5002, %v8907
      %v9005 = vadd.f32 %v5003, %v8909
      %v9006 = vadd.f32 %v5004, %v8912
      %v9007 = vadd.f32 %v5005, %v8914
      %v9008 = vadd.f32 %v5006, %v8917
      %v9009 = vadd.f32 %v5007, %v8919
      %v9010 = vadd.f32 %v5008, %v8922
      %v9011 = vadd.f32 %v5009, %v8924
      %v9012 = vadd.f32 %v5010, %v8927
      %v9013 = vadd.f32 %v5011, %v8929
      %v9014 = vadd.f32 %v5012, %v8932
      %v9015 = vadd.f32 %v5013, %v8934
      %v9016 = vadd.f32 %v5014, %v8937
      %v9017 = vadd.f32 %v5015, %v8939
      %v9018 = vadd.f32 %v5016, %v8942
      %v9019 = vadd.f32 %v5017, %v8944
      %v9020 = vadd.f32 %v5018, %v8947
      %v9021 = vadd.f32 %v5019, %v8949
      %v9022 = vadd.f32 %v5020, %v8952
      %v9023 = vadd.f32 %v5021, %v8954
      %v9024 = vadd.f32 %v5022, %v8957
      %v9025 = vadd.f32 %v5023, %v8959
      %v9026 = vadd.f32 %v5024, %v8962
      %v9027 = vadd.f32 %v5025, %v8964
      %v9028 = vadd.f32 %v5026, %v8967
      %v9029 = vadd.f32 %v5027, %v8969
      %v9030 = vadd.f32 %v5028, %v8972
      %v9031 = vadd.f32 %v5029, %v8974
      %v9032 = vadd.f32 %v5030, %v8977
      %v9033 = vadd.f32 %v5031, %v8979
      %v9034 = vadd.f32 %v5032, %v8982
      %v9035 = vadd.f32 %v5033, %v8984
      %v9036 = vadd.f32 %v5034, %v8987
      %v9037 = vadd.f32 %v5035, %v8989
      %v9038 = vadd.f32 %v5036, %v8992
      %v9039 = vadd.f32 %v5037, %v8994
      %v9040 = vld [vmem:[#allocation2] sm:$0xf]
      %v9041 = vld [vmem:[#allocation2 + $0x4] sm:$0xf]
      %v9042 = vld [vmem:[#allocation2 + $0x8] sm:$0xf]
      %v9043 = vld [vmem:[#allocation2 + $0xc] sm:$0xf]
      %v9044 = vld [vmem:[#allocation2 + $0x10] sm:$0xf]
      %v9045 = vld [vmem:[#allocation2 + $0x14] sm:$0xf]
      %v9046 = vld [vmem:[#allocation2 + $0x18] sm:$0xf]
      %v9047 = vld [vmem:[#allocation2 + $0x1c] sm:$0xf]
      %v9048 = vld [vmem:[#allocation2 + $0x20] sm:$0xf]
      %v9049 = vld [vmem:[#allocation2 + $0x24] sm:$0xf]
      %v9050 = vld [vmem:[#allocation2 + $0x28] sm:$0xf]
      %v9051 = vld [vmem:[#allocation2 + $0x2c] sm:$0xf]
      %v9052 = vld [vmem:[#allocation2 + $0x30] sm:$0xf]
      %v9053 = vld [vmem:[#allocation2 + $0x34] sm:$0xf]
      %v9054 = vld [vmem:[#allocation2 + $0x38] sm:$0xf]
      %v9055 = vld [vmem:[#allocation2 + $0x3c] sm:$0xf]
      %v9056 = vld [vmem:[#allocation2 + $0x40] sm:$0xf]
      %v9057 = vld [vmem:[#allocation2 + $0x44] sm:$0xf]
      %v9058 = vld [vmem:[#allocation2 + $0x48] sm:$0xf]
      %v9059 = vld [vmem:[#allocation2 + $0x4c] sm:$0xf]
      %v9060 = vld [vmem:[#allocation2 + $0x50] sm:$0xf]
      %v9061 = vld [vmem:[#allocation2 + $0x54] sm:$0xf]
      %v9062 = vld [vmem:[#allocation2 + $0x58] sm:$0xf]
      %v9063 = vld [vmem:[#allocation2 + $0x5c] sm:$0xf]
      %v9064 = vld [vmem:[#allocation2 + $0x60] sm:$0xf]
      %v9065 = vld [vmem:[#allocation2 + $0x64] sm:$0xf]
      %v9066 = vld [vmem:[#allocation2 + $0x68] sm:$0xf]
      %v9067 = vld [vmem:[#allocation2 + $0x6c] sm:$0xf]
      %v9068 = vld [vmem:[#allocation2 + $0x70] sm:$0xf]
      %v9069 = vld [vmem:[#allocation2 + $0x74] sm:$0xf]
      %v9070 = vld [vmem:[#allocation2 + $0x78] sm:$0xf]
      %v9071 = vld [vmem:[#allocation2 + $0x7c] sm:$0xf]
      %v9072 = vld [vmem:[#allocation2 + $0x80] sm:$0xf]
      %v9073 = vld [vmem:[#allocation2 + $0x84] sm:$0xf]
      %v9074 = vld [vmem:[#allocation2 + $0x88] sm:$0xf]
      %v9075 = vld [vmem:[#allocation2 + $0x8c] sm:$0xf]
      %v9076 = vld [vmem:[#allocation2 + $0x90] sm:$0xf]
      %v9077 = vld [vmem:[#allocation2 + $0x94] sm:$0xf]
      %v9078 = vld [vmem:[#allocation2 + $0x98] sm:$0xf]
      %v9079 = vld [vmem:[#allocation2 + $0x9c] sm:$0xf]
      %v9080 = vld [vmem:[#allocation2 + $0xa0] sm:$0xf]
      %v9081 = vld [vmem:[#allocation2 + $0xa4] sm:$0xf]
      %v9082 = vld [vmem:[#allocation2 + $0xa8] sm:$0xf]
      %v9083 = vld [vmem:[#allocation2 + $0xac] sm:$0xf]
      %s9084 = scalar_lea.vmem %s4, 36
      %v9085 = vld [vmem:[%s9084] sm:$0x3]
      %v9086 = vld [vmem:[#allocation2] sm:$0xe]
      %v9087 = vld [vmem:[#allocation2 + $0xb0] sm:$0x3]
      %s9088 = scalar_lea.vmem %s4, 38
      %v9089 = vld [vmem:[%s9088] sm:$0x3]
      %v9135 = vunpack.c.l.b16 %v9086
      %v9136 = vunpack.c.l.b16 %v9041
      %v9137 = vunpack.c.l.b16 %v9042
      %v9138 = vunpack.c.l.b16 %v9043
      %v9139 = vunpack.c.l.b16 %v9044
      %v9140 = vunpack.c.l.b16 %v9045
      %v9141 = vunpack.c.l.b16 %v9046
      %v9142 = vunpack.c.l.b16 %v9047
      %v9143 = vunpack.c.l.b16 %v9048
      %v9144 = vunpack.c.l.b16 %v9049
      %v9145 = vunpack.c.l.b16 %v9050
      %v9146 = vunpack.c.l.b16 %v9051
      %v9147 = vunpack.c.l.b16 %v9052
      %v9148 = vunpack.c.l.b16 %v9053
      %v9149 = vunpack.c.l.b16 %v9054
      %v9150 = vunpack.c.l.b16 %v9055
      %v9151 = vunpack.c.l.b16 %v9056
      %v9152 = vunpack.c.l.b16 %v9057
      %v9153 = vunpack.c.l.b16 %v9058
      %v9154 = vunpack.c.l.b16 %v9059
      %v9155 = vunpack.c.l.b16 %v9060
      %v9156 = vunpack.c.l.b16 %v9061
      %v9157 = vunpack.c.l.b16 %v9062
      %v9158 = vunpack.c.l.b16 %v9063
      %v9159 = vunpack.c.l.b16 %v9064
      %v9160 = vunpack.c.l.b16 %v9065
      %v9161 = vunpack.c.l.b16 %v9066
      %v9162 = vunpack.c.l.b16 %v9067
      %v9163 = vunpack.c.l.b16 %v9068
      %v9164 = vunpack.c.l.b16 %v9069
      %v9165 = vunpack.c.l.b16 %v9070
      %v9166 = vunpack.c.l.b16 %v9071
      %v9167 = vunpack.c.l.b16 %v9072
      %v9168 = vunpack.c.l.b16 %v9073
      %v9169 = vunpack.c.l.b16 %v9074
      %v9170 = vunpack.c.l.b16 %v9075
      %v9171 = vunpack.c.l.b16 %v9076
      %v9172 = vunpack.c.l.b16 %v9077
      %v9173 = vunpack.c.l.b16 %v9078
      %v9174 = vunpack.c.l.b16 %v9079
      %v9175 = vunpack.c.l.b16 %v9080
      %v9176 = vunpack.c.l.b16 %v9081
      %v9177 = vunpack.c.l.b16 %v9082
      %v9178 = vunpack.c.l.b16 %v9083
      %v9179 = vunpack.c.l.b16 %v9087
      %v9180 = vpack.c.b16 %v9136, %v9135
      %v9181 = vpack.c.b16 %v9138, %v9137
      %v9182 = vpack.c.b16 %v9140, %v9139
      %v9183 = vpack.c.b16 %v9142, %v9141
      %v9184 = vpack.c.b16 %v9144, %v9143
      %v9185 = vpack.c.b16 %v9146, %v9145
      %v9186 = vpack.c.b16 %v9148, %v9147
      %v9187 = vpack.c.b16 %v9150, %v9149
      %v9188 = vpack.c.b16 %v9152, %v9151
      %v9189 = vpack.c.b16 %v9154, %v9153
      %v9190 = vpack.c.b16 %v9156, %v9155
      %v9191 = vpack.c.b16 %v9158, %v9157
      %v9192 = vpack.c.b16 %v9160, %v9159
      %v9193 = vpack.c.b16 %v9162, %v9161
      %v9194 = vpack.c.b16 %v9164, %v9163
      %v9195 = vpack.c.b16 %v9166, %v9165
      %v9196 = vpack.c.b16 %v9168, %v9167
      %v9197 = vpack.c.b16 %v9170, %v9169
      %v9198 = vpack.c.b16 %v9172, %v9171
      %v9199 = vpack.c.b16 %v9174, %v9173
      %v9200 = vpack.c.b16 %v9176, %v9175
      %v9201 = vpack.c.b16 %v9178, %v9177
      %v9202 = vpack.c.b16 %v9179, %v9179
      %v9204 = vshrl.u32 %v9180, 16
      %v9206 = vrot.slane %v9204, 1
      %v9207 = vshll.u32 %v9180, 16
      %v9209 = vrot.slane %v9207, 2
      %v9210 = vor.u32 %v9206, %v9209
      %v9212 = vshrl.u32 %v9181, 16
      %v9214 = vrot.slane %v9212, 1
      %v9215 = vshll.u32 %v9181, 16
      %v9217 = vrot.slane %v9215, 2
      %v9218 = vor.u32 %v9214, %v9217
      %v9219 = vsel %vm3969, %v9210, %v9218
      %v9221 = vshrl.u32 %v9182, 16
      %v9223 = vrot.slane %v9221, 1
      %v9224 = vshll.u32 %v9182, 16
      %v9226 = vrot.slane %v9224, 2
      %v9227 = vor.u32 %v9223, %v9226
      %v9228 = vsel %vm3969, %v9218, %v9227
      %v9230 = vshrl.u32 %v9183, 16
      %v9232 = vrot.slane %v9230, 1
      %v9233 = vshll.u32 %v9183, 16
      %v9235 = vrot.slane %v9233, 2
      %v9236 = vor.u32 %v9232, %v9235
      %v9237 = vsel %vm3969, %v9227, %v9236
      %v9239 = vshrl.u32 %v9184, 16
      %v9241 = vrot.slane %v9239, 1
      %v9242 = vshll.u32 %v9184, 16
      %v9244 = vrot.slane %v9242, 2
      %v9245 = vor.u32 %v9241, %v9244
      %v9246 = vsel %vm3969, %v9236, %v9245
      %v9248 = vshrl.u32 %v9185, 16
      %v9250 = vrot.slane %v9248, 1
      %v9251 = vshll.u32 %v9185, 16
      %v9253 = vrot.slane %v9251, 2
      %v9254 = vor.u32 %v9250, %v9253
      %v9255 = vsel %vm3969, %v9245, %v9254
      %v9257 = vshrl.u32 %v9186, 16
      %v9259 = vrot.slane %v9257, 1
      %v9260 = vshll.u32 %v9186, 16
      %v9262 = vrot.slane %v9260, 2
      %v9263 = vor.u32 %v9259, %v9262
      %v9264 = vsel %vm3969, %v9254, %v9263
      %v9266 = vshrl.u32 %v9187, 16
      %v9268 = vrot.slane %v9266, 1
      %v9269 = vshll.u32 %v9187, 16
      %v9271 = vrot.slane %v9269, 2
      %v9272 = vor.u32 %v9268, %v9271
      %v9273 = vsel %vm3969, %v9263, %v9272
      %v9275 = vshrl.u32 %v9188, 16
      %v9277 = vrot.slane %v9275, 1
      %v9278 = vshll.u32 %v9188, 16
      %v9280 = vrot.slane %v9278, 2
      %v9281 = vor.u32 %v9277, %v9280
      %v9282 = vsel %vm3969, %v9272, %v9281
      %v9284 = vshrl.u32 %v9189, 16
      %v9286 = vrot.slane %v9284, 1
      %v9287 = vshll.u32 %v9189, 16
      %v9289 = vrot.slane %v9287, 2
      %v9290 = vor.u32 %v9286, %v9289
      %v9291 = vsel %vm3969, %v9281, %v9290
      %v9293 = vshrl.u32 %v9190, 16
      %v9295 = vrot.slane %v9293, 1
      %v9296 = vshll.u32 %v9190, 16
      %v9298 = vrot.slane %v9296, 2
      %v9299 = vor.u32 %v9295, %v9298
      %v9300 = vsel %vm3969, %v9290, %v9299
      %v9302 = vshrl.u32 %v9191, 16
      %v9304 = vrot.slane %v9302, 1
      %v9305 = vshll.u32 %v9191, 16
      %v9307 = vrot.slane %v9305, 2
      %v9308 = vor.u32 %v9304, %v9307
      %v9309 = vsel %vm3969, %v9299, %v9308
      %v9311 = vshrl.u32 %v9192, 16
      %v9313 = vrot.slane %v9311, 1
      %v9314 = vshll.u32 %v9192, 16
      %v9316 = vrot.slane %v9314, 2
      %v9317 = vor.u32 %v9313, %v9316
      %v9318 = vsel %vm3969, %v9308, %v9317
      %v9320 = vshrl.u32 %v9193, 16
      %v9322 = vrot.slane %v9320, 1
      %v9323 = vshll.u32 %v9193, 16
      %v9325 = vrot.slane %v9323, 2
      %v9326 = vor.u32 %v9322, %v9325
      %v9327 = vsel %vm3969, %v9317, %v9326
      %v9329 = vshrl.u32 %v9194, 16
      %v9331 = vrot.slane %v9329, 1
      %v9332 = vshll.u32 %v9194, 16
      %v9334 = vrot.slane %v9332, 2
      %v9335 = vor.u32 %v9331, %v9334
      %v9336 = vsel %vm3969, %v9326, %v9335
      %v9338 = vshrl.u32 %v9195, 16
      %v9340 = vrot.slane %v9338, 1
      %v9341 = vshll.u32 %v9195, 16
      %v9343 = vrot.slane %v9341, 2
      %v9344 = vor.u32 %v9340, %v9343
      %v9345 = vsel %vm3969, %v9335, %v9344
      %v9347 = vshrl.u32 %v9196, 16
      %v9349 = vrot.slane %v9347, 1
      %v9350 = vshll.u32 %v9196, 16
      %v9352 = vrot.slane %v9350, 2
      %v9353 = vor.u32 %v9349, %v9352
      %v9354 = vsel %vm3969, %v9344, %v9353
      %v9356 = vshrl.u32 %v9197, 16
      %v9358 = vrot.slane %v9356, 1
      %v9359 = vshll.u32 %v9197, 16
      %v9361 = vrot.slane %v9359, 2
      %v9362 = vor.u32 %v9358, %v9361
      %v9363 = vsel %vm3969, %v9353, %v9362
      %v9365 = vshrl.u32 %v9198, 16
      %v9367 = vrot.slane %v9365, 1
      %v9368 = vshll.u32 %v9198, 16
      %v9370 = vrot.slane %v9368, 2
      %v9371 = vor.u32 %v9367, %v9370
      %v9372 = vsel %vm3969, %v9362, %v9371
      %v9374 = vshrl.u32 %v9199, 16
      %v9376 = vrot.slane %v9374, 1
      %v9377 = vshll.u32 %v9199, 16
      %v9379 = vrot.slane %v9377, 2
      %v9380 = vor.u32 %v9376, %v9379
      %v9381 = vsel %vm3969, %v9371, %v9380
      %v9383 = vshrl.u32 %v9200, 16
      %v9385 = vrot.slane %v9383, 1
      %v9386 = vshll.u32 %v9200, 16
      %v9388 = vrot.slane %v9386, 2
      %v9389 = vor.u32 %v9385, %v9388
      %v9390 = vsel %vm3969, %v9380, %v9389
      %v9392 = vshrl.u32 %v9201, 16
      %v9394 = vrot.slane %v9392, 1
      %v9395 = vshll.u32 %v9201, 16
      %v9397 = vrot.slane %v9395, 2
      %v9398 = vor.u32 %v9394, %v9397
      %v9399 = vsel %vm3969, %v9389, %v9398
      %v9401 = vshrl.u32 %v9202, 16
      %v9403 = vrot.slane %v9401, 1
      %v9404 = vshll.u32 %v9202, 16
      %v9406 = vrot.slane %v9404, 2
      %v9407 = vor.u32 %v9403, %v9406
      %v9408 = vsel %vm3969, %v9398, %v9407
      %v9410 = vsel %vm1291, %v9219, 0
      %v9413 = vsel %vm1291, %v9228, 0
      %v9416 = vsel %vm1291, %v9237, 0
      %v9419 = vsel %vm1291, %v9246, 0
      %v9422 = vsel %vm1291, %v9255, 0
      %v9425 = vsel %vm1291, %v9264, 0
      %v9428 = vsel %vm1291, %v9273, 0
      %v9431 = vsel %vm1291, %v9282, 0
      %v9434 = vsel %vm1291, %v9291, 0
      %v9437 = vsel %vm1291, %v9300, 0
      %v9440 = vsel %vm1291, %v9309, 0
      %v9443 = vsel %vm1291, %v9318, 0
      %v9446 = vsel %vm1291, %v9327, 0
      %v9449 = vsel %vm1291, %v9336, 0
      %v9452 = vsel %vm1291, %v9345, 0
      %v9455 = vsel %vm1291, %v9354, 0
      %v9458 = vsel %vm1291, %v9363, 0
      %v9461 = vsel %vm1291, %v9372, 0
      %v9464 = vsel %vm1291, %v9381, 0
      %v9467 = vsel %vm1291, %v9390, 0
      %v9470 = vsel %vm1291, %v9399, 0
      %v9473 = vsel %vm1291, %v9408, 0
      %v9476 = vsel %vm1358, %v9089, 0
      %9478 = vmatpush.bf16.msra.mxu0 0
      %9479 = vmatpush.bf16.msra.mxu0 0
      %9480 = vmatpush.bf16.msra.mxu0 0
      %9481 = vmatpush.bf16.msra.mxu0 0
      %9482 = vmatpush.bf16.msra.mxu0 0
      %9483 = vmatpush.bf16.msra.mxu0 0
      %9484 = vmatpush.bf16.msra.mxu0 0
      %9485 = vmatpush.bf16.msra.mxu0 %v9476
      %9486 = vmatmul.bf16.gmra.mxu0 %v9410
      %v9487 = vpop.f32.mrf.mxu0
      %v9488 = vadd.f32 0.0, %v9487
      %v9489 = vpop.f32.mrf.mxu0
      %v9490 = vadd.f32 0.0, %v9489
      %9491 = vmatmul.bf16.gmra.mxu0 %v9413
      %v9492 = vpop.f32.mrf.mxu0
      %v9493 = vadd.f32 0.0, %v9492
      %v9494 = vpop.f32.mrf.mxu0
      %v9495 = vadd.f32 0.0, %v9494
      %9496 = vmatmul.bf16.gmra.mxu0 %v9416
      %v9497 = vpop.f32.mrf.mxu0
      %v9498 = vadd.f32 0.0, %v9497
      %v9499 = vpop.f32.mrf.mxu0
      %v9500 = vadd.f32 0.0, %v9499
      %9501 = vmatmul.bf16.gmra.mxu0 %v9419
      %v9502 = vpop.f32.mrf.mxu0
      %v9503 = vadd.f32 0.0, %v9502
      %v9504 = vpop.f32.mrf.mxu0
      %v9505 = vadd.f32 0.0, %v9504
      %9506 = vmatmul.bf16.gmra.mxu0 %v9422
      %v9507 = vpop.f32.mrf.mxu0
      %v9508 = vadd.f32 0.0, %v9507
      %v9509 = vpop.f32.mrf.mxu0
      %v9510 = vadd.f32 0.0, %v9509
      %9511 = vmatmul.bf16.gmra.mxu0 %v9425
      %v9512 = vpop.f32.mrf.mxu0
      %v9513 = vadd.f32 0.0, %v9512
      %v9514 = vpop.f32.mrf.mxu0
      %v9515 = vadd.f32 0.0, %v9514
      %9516 = vmatmul.bf16.gmra.mxu0 %v9428
      %v9517 = vpop.f32.mrf.mxu0
      %v9518 = vadd.f32 0.0, %v9517
      %v9519 = vpop.f32.mrf.mxu0
      %v9520 = vadd.f32 0.0, %v9519
      %9521 = vmatmul.bf16.gmra.mxu0 %v9431
      %v9522 = vpop.f32.mrf.mxu0
      %v9523 = vadd.f32 0.0, %v9522
      %v9524 = vpop.f32.mrf.mxu0
      %v9525 = vadd.f32 0.0, %v9524
      %9526 = vmatmul.bf16.gmra.mxu0 %v9434
      %v9527 = vpop.f32.mrf.mxu0
      %v9528 = vadd.f32 0.0, %v9527
      %v9529 = vpop.f32.mrf.mxu0
      %v9530 = vadd.f32 0.0, %v9529
      %9531 = vmatmul.bf16.gmra.mxu0 %v9437
      %v9532 = vpop.f32.mrf.mxu0
      %v9533 = vadd.f32 0.0, %v9532
      %v9534 = vpop.f32.mrf.mxu0
      %v9535 = vadd.f32 0.0, %v9534
      %9536 = vmatmul.bf16.gmra.mxu0 %v9440
      %v9537 = vpop.f32.mrf.mxu0
      %v9538 = vadd.f32 0.0, %v9537
      %v9539 = vpop.f32.mrf.mxu0
      %v9540 = vadd.f32 0.0, %v9539
      %9541 = vmatmul.bf16.gmra.mxu0 %v9443
      %v9542 = vpop.f32.mrf.mxu0
      %v9543 = vadd.f32 0.0, %v9542
      %v9544 = vpop.f32.mrf.mxu0
      %v9545 = vadd.f32 0.0, %v9544
      %9546 = vmatmul.bf16.gmra.mxu0 %v9446
      %v9547 = vpop.f32.mrf.mxu0
      %v9548 = vadd.f32 0.0, %v9547
      %v9549 = vpop.f32.mrf.mxu0
      %v9550 = vadd.f32 0.0, %v9549
      %9551 = vmatmul.bf16.gmra.mxu0 %v9449
      %v9552 = vpop.f32.mrf.mxu0
      %v9553 = vadd.f32 0.0, %v9552
      %v9554 = vpop.f32.mrf.mxu0
      %v9555 = vadd.f32 0.0, %v9554
      %9556 = vmatmul.bf16.gmra.mxu0 %v9452
      %v9557 = vpop.f32.mrf.mxu0
      %v9558 = vadd.f32 0.0, %v9557
      %v9559 = vpop.f32.mrf.mxu0
      %v9560 = vadd.f32 0.0, %v9559
      %9561 = vmatmul.bf16.gmra.mxu0 %v9455
      %v9562 = vpop.f32.mrf.mxu0
      %v9563 = vadd.f32 0.0, %v9562
      %v9564 = vpop.f32.mrf.mxu0
      %v9565 = vadd.f32 0.0, %v9564
      %9566 = vmatmul.bf16.gmra.mxu0 %v9458
      %v9567 = vpop.f32.mrf.mxu0
      %v9568 = vadd.f32 0.0, %v9567
      %v9569 = vpop.f32.mrf.mxu0
      %v9570 = vadd.f32 0.0, %v9569
      %9571 = vmatmul.bf16.gmra.mxu0 %v9461
      %v9572 = vpop.f32.mrf.mxu0
      %v9573 = vadd.f32 0.0, %v9572
      %v9574 = vpop.f32.mrf.mxu0
      %v9575 = vadd.f32 0.0, %v9574
      %9576 = vmatmul.bf16.gmra.mxu0 %v9464
      %v9577 = vpop.f32.mrf.mxu0
      %v9578 = vadd.f32 0.0, %v9577
      %v9579 = vpop.f32.mrf.mxu0
      %v9580 = vadd.f32 0.0, %v9579
      %9581 = vmatmul.bf16.gmra.mxu0 %v9467
      %v9582 = vpop.f32.mrf.mxu0
      %v9583 = vadd.f32 0.0, %v9582
      %v9584 = vpop.f32.mrf.mxu0
      %v9585 = vadd.f32 0.0, %v9584
      %9586 = vmatmul.bf16.gmra.mxu0 %v9470
      %v9587 = vpop.f32.mrf.mxu0
      %v9588 = vadd.f32 0.0, %v9587
      %v9589 = vpop.f32.mrf.mxu0
      %v9590 = vadd.f32 0.0, %v9589
      %9591 = vmatmul.bf16.gmra.mxu0 %v9473
      %v9592 = vpop.f32.mrf.mxu0
      %v9593 = vadd.f32 0.0, %v9592
      %v9594 = vpop.f32.mrf.mxu0
      %v9595 = vadd.f32 0.0, %v9594
      %9596 = vdwg.mxu0
      %v9598 = vunpack.c.l.b16 %v9040
      %v9599 = vpack.c.b16 %v9136, %v9598
      %v9601 = vsel %vm1291, %v9599, 0
      %v9603 = vsel %vm1291, %v9181, 0
      %v9605 = vsel %vm1291, %v9182, 0
      %v9607 = vsel %vm1291, %v9183, 0
      %v9609 = vsel %vm1291, %v9184, 0
      %v9611 = vsel %vm1291, %v9185, 0
      %v9613 = vsel %vm1291, %v9186, 0
      %v9615 = vsel %vm1291, %v9187, 0
      %v9617 = vsel %vm1291, %v9188, 0
      %v9619 = vsel %vm1291, %v9189, 0
      %v9621 = vsel %vm1291, %v9190, 0
      %v9623 = vsel %vm1291, %v9191, 0
      %v9625 = vsel %vm1291, %v9192, 0
      %v9627 = vsel %vm1291, %v9193, 0
      %v9629 = vsel %vm1291, %v9194, 0
      %v9631 = vsel %vm1291, %v9195, 0
      %v9633 = vsel %vm1291, %v9196, 0
      %v9635 = vsel %vm1291, %v9197, 0
      %v9637 = vsel %vm1291, %v9198, 0
      %v9639 = vsel %vm1291, %v9199, 0
      %v9641 = vsel %vm1291, %v9200, 0
      %v9643 = vsel %vm1291, %v9201, 0
      %v9646 = vsel %vm1358, %v9085, 0
      %9648 = vmatpush.bf16.msra.mxu0 0
      %9649 = vmatpush.bf16.msra.mxu0 0
      %9650 = vmatpush.bf16.msra.mxu0 0
      %9651 = vmatpush.bf16.msra.mxu0 0
      %9652 = vmatpush.bf16.msra.mxu0 0
      %9653 = vmatpush.bf16.msra.mxu0 0
      %9654 = vmatpush.bf16.msra.mxu0 0
      %9655 = vmatpush.bf16.msra.mxu0 %v9646
      %9656 = vmatmul.bf16.gmra.mxu0 %v9601
      %v9657 = vpop.f32.mrf.mxu0
      %v9658 = vadd.f32 %v9488, %v9657
      %v9659 = vpop.f32.mrf.mxu0
      %v9660 = vadd.f32 %v9490, %v9659
      %9661 = vmatmul.bf16.gmra.mxu0 %v9603
      %v9662 = vpop.f32.mrf.mxu0
      %v9663 = vadd.f32 %v9493, %v9662
      %v9664 = vpop.f32.mrf.mxu0
      %v9665 = vadd.f32 %v9495, %v9664
      %9666 = vmatmul.bf16.gmra.mxu0 %v9605
      %v9667 = vpop.f32.mrf.mxu0
      %v9668 = vadd.f32 %v9498, %v9667
      %v9669 = vpop.f32.mrf.mxu0
      %v9670 = vadd.f32 %v9500, %v9669
      %9671 = vmatmul.bf16.gmra.mxu0 %v9607
      %v9672 = vpop.f32.mrf.mxu0
      %v9673 = vadd.f32 %v9503, %v9672
      %v9674 = vpop.f32.mrf.mxu0
      %v9675 = vadd.f32 %v9505, %v9674
      %9676 = vmatmul.bf16.gmra.mxu0 %v9609
      %v9677 = vpop.f32.mrf.mxu0
      %v9678 = vadd.f32 %v9508, %v9677
      %v9679 = vpop.f32.mrf.mxu0
      %v9680 = vadd.f32 %v9510, %v9679
      %9681 = vmatmul.bf16.gmra.mxu0 %v9611
      %v9682 = vpop.f32.mrf.mxu0
      %v9683 = vadd.f32 %v9513, %v9682
      %v9684 = vpop.f32.mrf.mxu0
      %v9685 = vadd.f32 %v9515, %v9684
      %9686 = vmatmul.bf16.gmra.mxu0 %v9613
      %v9687 = vpop.f32.mrf.mxu0
      %v9688 = vadd.f32 %v9518, %v9687
      %v9689 = vpop.f32.mrf.mxu0
      %v9690 = vadd.f32 %v9520, %v9689
      %9691 = vmatmul.bf16.gmra.mxu0 %v9615
      %v9692 = vpop.f32.mrf.mxu0
      %v9693 = vadd.f32 %v9523, %v9692
      %v9694 = vpop.f32.mrf.mxu0
      %v9695 = vadd.f32 %v9525, %v9694
      %9696 = vmatmul.bf16.gmra.mxu0 %v9617
      %v9697 = vpop.f32.mrf.mxu0
      %v9698 = vadd.f32 %v9528, %v9697
      %v9699 = vpop.f32.mrf.mxu0
      %v9700 = vadd.f32 %v9530, %v9699
      %9701 = vmatmul.bf16.gmra.mxu0 %v9619
      %v9702 = vpop.f32.mrf.mxu0
      %v9703 = vadd.f32 %v9533, %v9702
      %v9704 = vpop.f32.mrf.mxu0
      %v9705 = vadd.f32 %v9535, %v9704
      %9706 = vmatmul.bf16.gmra.mxu0 %v9621
      %v9707 = vpop.f32.mrf.mxu0
      %v9708 = vadd.f32 %v9538, %v9707
      %v9709 = vpop.f32.mrf.mxu0
      %v9710 = vadd.f32 %v9540, %v9709
      %9711 = vmatmul.bf16.gmra.mxu0 %v9623
      %v9712 = vpop.f32.mrf.mxu0
      %v9713 = vadd.f32 %v9543, %v9712
      %v9714 = vpop.f32.mrf.mxu0
      %v9715 = vadd.f32 %v9545, %v9714
      %9716 = vmatmul.bf16.gmra.mxu0 %v9625
      %v9717 = vpop.f32.mrf.mxu0
      %v9718 = vadd.f32 %v9548, %v9717
      %v9719 = vpop.f32.mrf.mxu0
      %v9720 = vadd.f32 %v9550, %v9719
      %9721 = vmatmul.bf16.gmra.mxu0 %v9627
      %v9722 = vpop.f32.mrf.mxu0
      %v9723 = vadd.f32 %v9553, %v9722
      %v9724 = vpop.f32.mrf.mxu0
      %v9725 = vadd.f32 %v9555, %v9724
      %9726 = vmatmul.bf16.gmra.mxu0 %v9629
      %v9727 = vpop.f32.mrf.mxu0
      %v9728 = vadd.f32 %v9558, %v9727
      %v9729 = vpop.f32.mrf.mxu0
      %v9730 = vadd.f32 %v9560, %v9729
      %9731 = vmatmul.bf16.gmra.mxu0 %v9631
      %v9732 = vpop.f32.mrf.mxu0
      %v9733 = vadd.f32 %v9563, %v9732
      %v9734 = vpop.f32.mrf.mxu0
      %v9735 = vadd.f32 %v9565, %v9734
      %9736 = vmatmul.bf16.gmra.mxu0 %v9633
      %v9737 = vpop.f32.mrf.mxu0
      %v9738 = vadd.f32 %v9568, %v9737
      %v9739 = vpop.f32.mrf.mxu0
      %v9740 = vadd.f32 %v9570, %v9739
      %9741 = vmatmul.bf16.gmra.mxu0 %v9635
      %v9742 = vpop.f32.mrf.mxu0
      %v9743 = vadd.f32 %v9573, %v9742
      %v9744 = vpop.f32.mrf.mxu0
      %v9745 = vadd.f32 %v9575, %v9744
      %9746 = vmatmul.bf16.gmra.mxu0 %v9637
      %v9747 = vpop.f32.mrf.mxu0
      %v9748 = vadd.f32 %v9578, %v9747
      %v9749 = vpop.f32.mrf.mxu0
      %v9750 = vadd.f32 %v9580, %v9749
      %9751 = vmatmul.bf16.gmra.mxu0 %v9639
      %v9752 = vpop.f32.mrf.mxu0
      %v9753 = vadd.f32 %v9583, %v9752
      %v9754 = vpop.f32.mrf.mxu0
      %v9755 = vadd.f32 %v9585, %v9754
      %9756 = vmatmul.bf16.gmra.mxu0 %v9641
      %v9757 = vpop.f32.mrf.mxu0
      %v9758 = vadd.f32 %v9588, %v9757
      %v9759 = vpop.f32.mrf.mxu0
      %v9760 = vadd.f32 %v9590, %v9759
      %9761 = vmatmul.bf16.gmra.mxu0 %v9643
      %v9762 = vpop.f32.mrf.mxu0
      %v9763 = vadd.f32 %v9593, %v9762
      %v9764 = vpop.f32.mrf.mxu0
      %v9765 = vadd.f32 %v9595, %v9764
      %9766 = vdwg.mxu0
      %v9767 = vld [vmem:[#allocation2] sm:$0x8]
      %v9768 = vld [vmem:[#allocation2 + $0xb0] sm:$0x7]
      %s9769 = scalar_lea.vmem %s4, 40
      %v9770 = vld [vmem:[%s9769] sm:$0x3]
      %v9773 = vunpack.c.l.b16 %v9767
      %v9774 = vunpack.c.l.b16 %v9768
      %v9775 = vpack.c.b16 %v9136, %v9773
      %v9776 = vpack.c.b16 %v9774, %v9774
      %v9777 = vrot.slane %v9775, 3
      %v9778 = vrot.slane %v9181, 3
      %v9779 = vsel %vm2300, %v9777, %v9778
      %v9780 = vrot.slane %v9182, 3
      %v9781 = vsel %vm2300, %v9778, %v9780
      %v9782 = vrot.slane %v9183, 3
      %v9783 = vsel %vm2300, %v9780, %v9782
      %v9784 = vrot.slane %v9184, 3
      %v9785 = vsel %vm2300, %v9782, %v9784
      %v9786 = vrot.slane %v9185, 3
      %v9787 = vsel %vm2300, %v9784, %v9786
      %v9788 = vrot.slane %v9186, 3
      %v9789 = vsel %vm2300, %v9786, %v9788
      %v9790 = vrot.slane %v9187, 3
      %v9791 = vsel %vm2300, %v9788, %v9790
      %v9792 = vrot.slane %v9188, 3
      %v9793 = vsel %vm2300, %v9790, %v9792
      %v9794 = vrot.slane %v9189, 3
      %v9795 = vsel %vm2300, %v9792, %v9794
      %v9796 = vrot.slane %v9190, 3
      %v9797 = vsel %vm2300, %v9794, %v9796
      %v9798 = vrot.slane %v9191, 3
      %v9799 = vsel %vm2300, %v9796, %v9798
      %v9800 = vrot.slane %v9192, 3
      %v9801 = vsel %vm2300, %v9798, %v9800
      %v9802 = vrot.slane %v9193, 3
      %v9803 = vsel %vm2300, %v9800, %v9802
      %v9804 = vrot.slane %v9194, 3
      %v9805 = vsel %vm2300, %v9802, %v9804
      %v9806 = vrot.slane %v9195, 3
      %v9807 = vsel %vm2300, %v9804, %v9806
      %v9808 = vrot.slane %v9196, 3
      %v9809 = vsel %vm2300, %v9806, %v9808
      %v9810 = vrot.slane %v9197, 3
      %v9811 = vsel %vm2300, %v9808, %v9810
      %v9812 = vrot.slane %v9198, 3
      %v9813 = vsel %vm2300, %v9810, %v9812
      %v9814 = vrot.slane %v9199, 3
      %v9815 = vsel %vm2300, %v9812, %v9814
      %v9816 = vrot.slane %v9200, 3
      %v9817 = vsel %vm2300, %v9814, %v9816
      %v9818 = vrot.slane %v9201, 3
      %v9819 = vsel %vm2300, %v9816, %v9818
      %v9820 = vrot.slane %v9776, 3
      %v9821 = vsel %vm2300, %v9818, %v9820
      %v9823 = vsel %vm1291, %v9779, 0
      %v9826 = vsel %vm1291, %v9781, 0
      %v9829 = vsel %vm1291, %v9783, 0
      %v9832 = vsel %vm1291, %v9785, 0
      %v9835 = vsel %vm1291, %v9787, 0
      %v9838 = vsel %vm1291, %v9789, 0
      %v9841 = vsel %vm1291, %v9791, 0
      %v9844 = vsel %vm1291, %v9793, 0
      %v9847 = vsel %vm1291, %v9795, 0
      %v9850 = vsel %vm1291, %v9797, 0
      %v9853 = vsel %vm1291, %v9799, 0
      %v9856 = vsel %vm1291, %v9801, 0
      %v9859 = vsel %vm1291, %v9803, 0
      %v9862 = vsel %vm1291, %v9805, 0
      %v9865 = vsel %vm1291, %v9807, 0
      %v9868 = vsel %vm1291, %v9809, 0
      %v9871 = vsel %vm1291, %v9811, 0
      %v9874 = vsel %vm1291, %v9813, 0
      %v9877 = vsel %vm1291, %v9815, 0
      %v9880 = vsel %vm1291, %v9817, 0
      %v9883 = vsel %vm1291, %v9819, 0
      %v9886 = vsel %vm1291, %v9821, 0
      %v9889 = vsel %vm1358, %v9770, 0
      %9891 = vmatpush.bf16.msra.mxu0 0
      %9892 = vmatpush.bf16.msra.mxu0 0
      %9893 = vmatpush.bf16.msra.mxu0 0
      %9894 = vmatpush.bf16.msra.mxu0 0
      %9895 = vmatpush.bf16.msra.mxu0 0
      %9896 = vmatpush.bf16.msra.mxu0 0
      %9897 = vmatpush.bf16.msra.mxu0 0
      %9898 = vmatpush.bf16.msra.mxu0 %v9889
      %9899 = vmatmul.bf16.gmra.mxu0 %v9823
      %v9900 = vpop.f32.mrf.mxu0
      %v9901 = vadd.f32 0.0, %v9900
      %v9902 = vpop.f32.mrf.mxu0
      %v9903 = vadd.f32 0.0, %v9902
      %9904 = vmatmul.bf16.gmra.mxu0 %v9826
      %v9905 = vpop.f32.mrf.mxu0
      %v9906 = vadd.f32 0.0, %v9905
      %v9907 = vpop.f32.mrf.mxu0
      %v9908 = vadd.f32 0.0, %v9907
      %9909 = vmatmul.bf16.gmra.mxu0 %v9829
      %v9910 = vpop.f32.mrf.mxu0
      %v9911 = vadd.f32 0.0, %v9910
      %v9912 = vpop.f32.mrf.mxu0
      %v9913 = vadd.f32 0.0, %v9912
      %9914 = vmatmul.bf16.gmra.mxu0 %v9832
      %v9915 = vpop.f32.mrf.mxu0
      %v9916 = vadd.f32 0.0, %v9915
      %v9917 = vpop.f32.mrf.mxu0
      %v9918 = vadd.f32 0.0, %v9917
      %9919 = vmatmul.bf16.gmra.mxu0 %v9835
      %v9920 = vpop.f32.mrf.mxu0
      %v9921 = vadd.f32 0.0, %v9920
      %v9922 = vpop.f32.mrf.mxu0
      %v9923 = vadd.f32 0.0, %v9922
      %9924 = vmatmul.bf16.gmra.mxu0 %v9838
      %v9925 = vpop.f32.mrf.mxu0
      %v9926 = vadd.f32 0.0, %v9925
      %v9927 = vpop.f32.mrf.mxu0
      %v9928 = vadd.f32 0.0, %v9927
      %9929 = vmatmul.bf16.gmra.mxu0 %v9841
      %v9930 = vpop.f32.mrf.mxu0
      %v9931 = vadd.f32 0.0, %v9930
      %v9932 = vpop.f32.mrf.mxu0
      %v9933 = vadd.f32 0.0, %v9932
      %9934 = vmatmul.bf16.gmra.mxu0 %v9844
      %v9935 = vpop.f32.mrf.mxu0
      %v9936 = vadd.f32 0.0, %v9935
      %v9937 = vpop.f32.mrf.mxu0
      %v9938 = vadd.f32 0.0, %v9937
      %9939 = vmatmul.bf16.gmra.mxu0 %v9847
      %v9940 = vpop.f32.mrf.mxu0
      %v9941 = vadd.f32 0.0, %v9940
      %v9942 = vpop.f32.mrf.mxu0
      %v9943 = vadd.f32 0.0, %v9942
      %9944 = vmatmul.bf16.gmra.mxu0 %v9850
      %v9945 = vpop.f32.mrf.mxu0
      %v9946 = vadd.f32 0.0, %v9945
      %v9947 = vpop.f32.mrf.mxu0
      %v9948 = vadd.f32 0.0, %v9947
      %9949 = vmatmul.bf16.gmra.mxu0 %v9853
      %v9950 = vpop.f32.mrf.mxu0
      %v9951 = vadd.f32 0.0, %v9950
      %v9952 = vpop.f32.mrf.mxu0
      %v9953 = vadd.f32 0.0, %v9952
      %9954 = vmatmul.bf16.gmra.mxu0 %v9856
      %v9955 = vpop.f32.mrf.mxu0
      %v9956 = vadd.f32 0.0, %v9955
      %v9957 = vpop.f32.mrf.mxu0
      %v9958 = vadd.f32 0.0, %v9957
      %9959 = vmatmul.bf16.gmra.mxu0 %v9859
      %v9960 = vpop.f32.mrf.mxu0
      %v9961 = vadd.f32 0.0, %v9960
      %v9962 = vpop.f32.mrf.mxu0
      %v9963 = vadd.f32 0.0, %v9962
      %9964 = vmatmul.bf16.gmra.mxu0 %v9862
      %v9965 = vpop.f32.mrf.mxu0
      %v9966 = vadd.f32 0.0, %v9965
      %v9967 = vpop.f32.mrf.mxu0
      %v9968 = vadd.f32 0.0, %v9967
      %9969 = vmatmul.bf16.gmra.mxu0 %v9865
      %v9970 = vpop.f32.mrf.mxu0
      %v9971 = vadd.f32 0.0, %v9970
      %v9972 = vpop.f32.mrf.mxu0
      %v9973 = vadd.f32 0.0, %v9972
      %9974 = vmatmul.bf16.gmra.mxu0 %v9868
      %v9975 = vpop.f32.mrf.mxu0
      %v9976 = vadd.f32 0.0, %v9975
      %v9977 = vpop.f32.mrf.mxu0
      %v9978 = vadd.f32 0.0, %v9977
      %9979 = vmatmul.bf16.gmra.mxu0 %v9871
      %v9980 = vpop.f32.mrf.mxu0
      %v9981 = vadd.f32 0.0, %v9980
      %v9982 = vpop.f32.mrf.mxu0
      %v9983 = vadd.f32 0.0, %v9982
      %9984 = vmatmul.bf16.gmra.mxu0 %v9874
      %v9985 = vpop.f32.mrf.mxu0
      %v9986 = vadd.f32 0.0, %v9985
      %v9987 = vpop.f32.mrf.mxu0
      %v9988 = vadd.f32 0.0, %v9987
      %9989 = vmatmul.bf16.gmra.mxu0 %v9877
      %v9990 = vpop.f32.mrf.mxu0
      %v9991 = vadd.f32 0.0, %v9990
      %v9992 = vpop.f32.mrf.mxu0
      %v9993 = vadd.f32 0.0, %v9992
      %9994 = vmatmul.bf16.gmra.mxu0 %v9880
      %v9995 = vpop.f32.mrf.mxu0
      %v9996 = vadd.f32 0.0, %v9995
      %v9997 = vpop.f32.mrf.mxu0
      %v9998 = vadd.f32 0.0, %v9997
      %9999 = vmatmul.bf16.gmra.mxu0 %v9883
      %v10000 = vpop.f32.mrf.mxu0
      %v10001 = vadd.f32 0.0, %v10000
      %v10002 = vpop.f32.mrf.mxu0
      %v10003 = vadd.f32 0.0, %v10002
      %10004 = vmatmul.bf16.gmra.mxu0 %v9886
      %v10005 = vpop.f32.mrf.mxu0
      %v10006 = vadd.f32 0.0, %v10005
      %v10007 = vpop.f32.mrf.mxu0
      %v10008 = vadd.f32 0.0, %v10007
      %10009 = vdwg.mxu0
      %v10010 = vadd.f32 %v9658, %v9901
      %v10011 = vadd.f32 %v9660, %v9903
      %v10012 = vadd.f32 %v9663, %v9906
      %v10013 = vadd.f32 %v9665, %v9908
      %v10014 = vadd.f32 %v9668, %v9911
      %v10015 = vadd.f32 %v9670, %v9913
      %v10016 = vadd.f32 %v9673, %v9916
      %v10017 = vadd.f32 %v9675, %v9918
      %v10018 = vadd.f32 %v9678, %v9921
      %v10019 = vadd.f32 %v9680, %v9923
      %v10020 = vadd.f32 %v9683, %v9926
      %v10021 = vadd.f32 %v9685, %v9928
      %v10022 = vadd.f32 %v9688, %v9931
      %v10023 = vadd.f32 %v9690, %v9933
      %v10024 = vadd.f32 %v9693, %v9936
      %v10025 = vadd.f32 %v9695, %v9938
      %v10026 = vadd.f32 %v9698, %v9941
      %v10027 = vadd.f32 %v9700, %v9943
      %v10028 = vadd.f32 %v9703, %v9946
      %v10029 = vadd.f32 %v9705, %v9948
      %v10030 = vadd.f32 %v9708, %v9951
      %v10031 = vadd.f32 %v9710, %v9953
      %v10032 = vadd.f32 %v9713, %v9956
      %v10033 = vadd.f32 %v9715, %v9958
      %v10034 = vadd.f32 %v9718, %v9961
      %v10035 = vadd.f32 %v9720, %v9963
      %v10036 = vadd.f32 %v9723, %v9966
      %v10037 = vadd.f32 %v9725, %v9968
      %v10038 = vadd.f32 %v9728, %v9971
      %v10039 = vadd.f32 %v9730, %v9973
      %v10040 = vadd.f32 %v9733, %v9976
      %v10041 = vadd.f32 %v9735, %v9978
      %v10042 = vadd.f32 %v9738, %v9981
      %v10043 = vadd.f32 %v9740, %v9983
      %v10044 = vadd.f32 %v9743, %v9986
      %v10045 = vadd.f32 %v9745, %v9988
      %v10046 = vadd.f32 %v9748, %v9991
      %v10047 = vadd.f32 %v9750, %v9993
      %v10048 = vadd.f32 %v9753, %v9996
      %v10049 = vadd.f32 %v9755, %v9998
      %v10050 = vadd.f32 %v9758, %v10001
      %v10051 = vadd.f32 %v9760, %v10003
      %v10052 = vadd.f32 %v9763, %v10006
      %v10053 = vadd.f32 %v9765, %v10008
      %v10054 = vld [vmem:[#allocation2 + $0xd0] sm:$0x1]
      %s10055 = scalar_lea.vmem %s4, 42
      %v10056 = vld [vmem:[%s10055] sm:$0x3]
      %v10058 = vunpack.c.l.b16 %v10054
      %v10059 = vpack.c.b16 %v10058, %v10058
      %v10060 = vrot.slane %v6337, 1
      %v10061 = vrot.slane %v1062, 1
      %v10062 = vsel %vm3685, %v10060, %v10061
      %v10063 = vrot.slane %v1063, 1
      %v10064 = vsel %vm3685, %v10061, %v10063
      %v10065 = vrot.slane %v1064, 1
      %v10066 = vsel %vm3685, %v10063, %v10065
      %v10067 = vrot.slane %v1065, 1
      %v10068 = vsel %vm3685, %v10065, %v10067
      %v10069 = vrot.slane %v1066, 1
      %v10070 = vsel %vm3685, %v10067, %v10069
      %v10071 = vrot.slane %v1067, 1
      %v10072 = vsel %vm3685, %v10069, %v10071
      %v10073 = vrot.slane %v1068, 1
      %v10074 = vsel %vm3685, %v10071, %v10073
      %v10075 = vrot.slane %v1069, 1
      %v10076 = vsel %vm3685, %v10073, %v10075
      %v10077 = vrot.slane %v1070, 1
      %v10078 = vsel %vm3685, %v10075, %v10077
      %v10079 = vrot.slane %v1071, 1
      %v10080 = vsel %vm3685, %v10077, %v10079
      %v10081 = vrot.slane %v1072, 1
      %v10082 = vsel %vm3685, %v10079, %v10081
      %v10083 = vrot.slane %v1073, 1
      %v10084 = vsel %vm3685, %v10081, %v10083
      %v10085 = vrot.slane %v1074, 1
      %v10086 = vsel %vm3685, %v10083, %v10085
      %v10087 = vrot.slane %v1075, 1
      %v10088 = vsel %vm3685, %v10085, %v10087
      %v10089 = vrot.slane %v1076, 1
      %v10090 = vsel %vm3685, %v10087, %v10089
      %v10091 = vrot.slane %v1077, 1
      %v10092 = vsel %vm3685, %v10089, %v10091
      %v10093 = vrot.slane %v1078, 1
      %v10094 = vsel %vm3685, %v10091, %v10093
      %v10095 = vrot.slane %v1079, 1
      %v10096 = vsel %vm3685, %v10093, %v10095
      %v10097 = vrot.slane %v1080, 1
      %v10098 = vsel %vm3685, %v10095, %v10097
      %v10099 = vrot.slane %v1081, 1
      %v10100 = vsel %vm3685, %v10097, %v10099
      %v10101 = vrot.slane %v1082, 1
      %v10102 = vsel %vm3685, %v10099, %v10101
      %v10103 = vrot.slane %v10059, 1
      %v10104 = vsel %vm3685, %v10101, %v10103
      %v10106 = vsel %vm1291, %v10062, 0
      %v10109 = vsel %vm1291, %v10064, 0
      %v10112 = vsel %vm1291, %v10066, 0
      %v10115 = vsel %vm1291, %v10068, 0
      %v10118 = vsel %vm1291, %v10070, 0
      %v10121 = vsel %vm1291, %v10072, 0
      %v10124 = vsel %vm1291, %v10074, 0
      %v10127 = vsel %vm1291, %v10076, 0
      %v10130 = vsel %vm1291, %v10078, 0
      %v10133 = vsel %vm1291, %v10080, 0
      %v10136 = vsel %vm1291, %v10082, 0
      %v10139 = vsel %vm1291, %v10084, 0
      %v10142 = vsel %vm1291, %v10086, 0
      %v10145 = vsel %vm1291, %v10088, 0
      %v10148 = vsel %vm1291, %v10090, 0
      %v10151 = vsel %vm1291, %v10092, 0
      %v10154 = vsel %vm1291, %v10094, 0
      %v10157 = vsel %vm1291, %v10096, 0
      %v10160 = vsel %vm1291, %v10098, 0
      %v10163 = vsel %vm1291, %v10100, 0
      %v10166 = vsel %vm1291, %v10102, 0
      %v10169 = vsel %vm1291, %v10104, 0
      %v10172 = vsel %vm1358, %v10056, 0
      %10174 = vmatpush.bf16.msra.mxu0 0
      %10175 = vmatpush.bf16.msra.mxu0 0
      %10176 = vmatpush.bf16.msra.mxu0 0
      %10177 = vmatpush.bf16.msra.mxu0 0
      %10178 = vmatpush.bf16.msra.mxu0 0
      %10179 = vmatpush.bf16.msra.mxu0 0
      %10180 = vmatpush.bf16.msra.mxu0 0
      %10181 = vmatpush.bf16.msra.mxu0 %v10172
      %10182 = vmatmul.bf16.gmra.mxu0 %v10106
      %v10183 = vpop.f32.mrf.mxu0
      %v10184 = vadd.f32 0.0, %v10183
      %v10185 = vpop.f32.mrf.mxu0
      %v10186 = vadd.f32 0.0, %v10185
      %10187 = vmatmul.bf16.gmra.mxu0 %v10109
      %v10188 = vpop.f32.mrf.mxu0
      %v10189 = vadd.f32 0.0, %v10188
      %v10190 = vpop.f32.mrf.mxu0
      %v10191 = vadd.f32 0.0, %v10190
      %10192 = vmatmul.bf16.gmra.mxu0 %v10112
      %v10193 = vpop.f32.mrf.mxu0
      %v10194 = vadd.f32 0.0, %v10193
      %v10195 = vpop.f32.mrf.mxu0
      %v10196 = vadd.f32 0.0, %v10195
      %10197 = vmatmul.bf16.gmra.mxu0 %v10115
      %v10198 = vpop.f32.mrf.mxu0
      %v10199 = vadd.f32 0.0, %v10198
      %v10200 = vpop.f32.mrf.mxu0
      %v10201 = vadd.f32 0.0, %v10200
      %10202 = vmatmul.bf16.gmra.mxu0 %v10118
      %v10203 = vpop.f32.mrf.mxu0
      %v10204 = vadd.f32 0.0, %v10203
      %v10205 = vpop.f32.mrf.mxu0
      %v10206 = vadd.f32 0.0, %v10205
      %10207 = vmatmul.bf16.gmra.mxu0 %v10121
      %v10208 = vpop.f32.mrf.mxu0
      %v10209 = vadd.f32 0.0, %v10208
      %v10210 = vpop.f32.mrf.mxu0
      %v10211 = vadd.f32 0.0, %v10210
      %10212 = vmatmul.bf16.gmra.mxu0 %v10124
      %v10213 = vpop.f32.mrf.mxu0
      %v10214 = vadd.f32 0.0, %v10213
      %v10215 = vpop.f32.mrf.mxu0
      %v10216 = vadd.f32 0.0, %v10215
      %10217 = vmatmul.bf16.gmra.mxu0 %v10127
      %v10218 = vpop.f32.mrf.mxu0
      %v10219 = vadd.f32 0.0, %v10218
      %v10220 = vpop.f32.mrf.mxu0
      %v10221 = vadd.f32 0.0, %v10220
      %10222 = vmatmul.bf16.gmra.mxu0 %v10130
      %v10223 = vpop.f32.mrf.mxu0
      %v10224 = vadd.f32 0.0, %v10223
      %v10225 = vpop.f32.mrf.mxu0
      %v10226 = vadd.f32 0.0, %v10225
      %10227 = vmatmul.bf16.gmra.mxu0 %v10133
      %v10228 = vpop.f32.mrf.mxu0
      %v10229 = vadd.f32 0.0, %v10228
      %v10230 = vpop.f32.mrf.mxu0
      %v10231 = vadd.f32 0.0, %v10230
      %10232 = vmatmul.bf16.gmra.mxu0 %v10136
      %v10233 = vpop.f32.mrf.mxu0
      %v10234 = vadd.f32 0.0, %v10233
      %v10235 = vpop.f32.mrf.mxu0
      %v10236 = vadd.f32 0.0, %v10235
      %10237 = vmatmul.bf16.gmra.mxu0 %v10139
      %v10238 = vpop.f32.mrf.mxu0
      %v10239 = vadd.f32 0.0, %v10238
      %v10240 = vpop.f32.mrf.mxu0
      %v10241 = vadd.f32 0.0, %v10240
      %10242 = vmatmul.bf16.gmra.mxu0 %v10142
      %v10243 = vpop.f32.mrf.mxu0
      %v10244 = vadd.f32 0.0, %v10243
      %v10245 = vpop.f32.mrf.mxu0
      %v10246 = vadd.f32 0.0, %v10245
      %10247 = vmatmul.bf16.gmra.mxu0 %v10145
      %v10248 = vpop.f32.mrf.mxu0
      %v10249 = vadd.f32 0.0, %v10248
      %v10250 = vpop.f32.mrf.mxu0
      %v10251 = vadd.f32 0.0, %v10250
      %10252 = vmatmul.bf16.gmra.mxu0 %v10148
      %v10253 = vpop.f32.mrf.mxu0
      %v10254 = vadd.f32 0.0, %v10253
      %v10255 = vpop.f32.mrf.mxu0
      %v10256 = vadd.f32 0.0, %v10255
      %10257 = vmatmul.bf16.gmra.mxu0 %v10151
      %v10258 = vpop.f32.mrf.mxu0
      %v10259 = vadd.f32 0.0, %v10258
      %v10260 = vpop.f32.mrf.mxu0
      %v10261 = vadd.f32 0.0, %v10260
      %10262 = vmatmul.bf16.gmra.mxu0 %v10154
      %v10263 = vpop.f32.mrf.mxu0
      %v10264 = vadd.f32 0.0, %v10263
      %v10265 = vpop.f32.mrf.mxu0
      %v10266 = vadd.f32 0.0, %v10265
      %10267 = vmatmul.bf16.gmra.mxu0 %v10157
      %v10268 = vpop.f32.mrf.mxu0
      %v10269 = vadd.f32 0.0, %v10268
      %v10270 = vpop.f32.mrf.mxu0
      %v10271 = vadd.f32 0.0, %v10270
      %10272 = vmatmul.bf16.gmra.mxu0 %v10160
      %v10273 = vpop.f32.mrf.mxu0
      %v10274 = vadd.f32 0.0, %v10273
      %v10275 = vpop.f32.mrf.mxu0
      %v10276 = vadd.f32 0.0, %v10275
      %10277 = vmatmul.bf16.gmra.mxu0 %v10163
      %v10278 = vpop.f32.mrf.mxu0
      %v10279 = vadd.f32 0.0, %v10278
      %v10280 = vpop.f32.mrf.mxu0
      %v10281 = vadd.f32 0.0, %v10280
      %10282 = vmatmul.bf16.gmra.mxu0 %v10166
      %v10283 = vpop.f32.mrf.mxu0
      %v10284 = vadd.f32 0.0, %v10283
      %v10285 = vpop.f32.mrf.mxu0
      %v10286 = vadd.f32 0.0, %v10285
      %10287 = vmatmul.bf16.gmra.mxu0 %v10169
      %v10288 = vpop.f32.mrf.mxu0
      %v10289 = vadd.f32 0.0, %v10288
      %v10290 = vpop.f32.mrf.mxu0
      %v10291 = vadd.f32 0.0, %v10290
      %10292 = vdwg.mxu0
      %v10293 = vadd.f32 %v10010, %v10184
      %v10294 = vadd.f32 %v10011, %v10186
      %v10295 = vadd.f32 %v10012, %v10189
      %v10296 = vadd.f32 %v10013, %v10191
      %v10297 = vadd.f32 %v10014, %v10194
      %v10298 = vadd.f32 %v10015, %v10196
      %v10299 = vadd.f32 %v10016, %v10199
      %v10300 = vadd.f32 %v10017, %v10201
      %v10301 = vadd.f32 %v10018, %v10204
      %v10302 = vadd.f32 %v10019, %v10206
      %v10303 = vadd.f32 %v10020, %v10209
      %v10304 = vadd.f32 %v10021, %v10211
      %v10305 = vadd.f32 %v10022, %v10214
      %v10306 = vadd.f32 %v10023, %v10216
      %v10307 = vadd.f32 %v10024, %v10219
      %v10308 = vadd.f32 %v10025, %v10221
      %v10309 = vadd.f32 %v10026, %v10224
      %v10310 = vadd.f32 %v10027, %v10226
      %v10311 = vadd.f32 %v10028, %v10229
      %v10312 = vadd.f32 %v10029, %v10231
      %v10313 = vadd.f32 %v10030, %v10234
      %v10314 = vadd.f32 %v10031, %v10236
      %v10315 = vadd.f32 %v10032, %v10239
      %v10316 = vadd.f32 %v10033, %v10241
      %v10317 = vadd.f32 %v10034, %v10244
      %v10318 = vadd.f32 %v10035, %v10246
      %v10319 = vadd.f32 %v10036, %v10249
      %v10320 = vadd.f32 %v10037, %v10251
      %v10321 = vadd.f32 %v10038, %v10254
      %v10322 = vadd.f32 %v10039, %v10256
      %v10323 = vadd.f32 %v10040, %v10259
      %v10324 = vadd.f32 %v10041, %v10261
      %v10325 = vadd.f32 %v10042, %v10264
      %v10326 = vadd.f32 %v10043, %v10266
      %v10327 = vadd.f32 %v10044, %v10269
      %v10328 = vadd.f32 %v10045, %v10271
      %v10329 = vadd.f32 %v10046, %v10274
      %v10330 = vadd.f32 %v10047, %v10276
      %v10331 = vadd.f32 %v10048, %v10279
      %v10332 = vadd.f32 %v10049, %v10281
      %v10333 = vadd.f32 %v10050, %v10284
      %v10334 = vadd.f32 %v10051, %v10286
      %v10335 = vadd.f32 %v10052, %v10289
      %v10336 = vadd.f32 %v10053, %v10291
      %s10337 = scalar_lea.vmem %s4, 44
      %v10338 = vld [vmem:[%s10337] sm:$0x3]
      %v10340 = vsel %vm1358, %v10338, 0
      %10342 = vmatpush.bf16.msra.mxu0 0
      %10343 = vmatpush.bf16.msra.mxu0 0
      %10344 = vmatpush.bf16.msra.mxu0 0
      %10345 = vmatpush.bf16.msra.mxu0 0
      %10346 = vmatpush.bf16.msra.mxu0 0
      %10347 = vmatpush.bf16.msra.mxu0 0
      %10348 = vmatpush.bf16.msra.mxu0 0
      %10349 = vmatpush.bf16.msra.mxu0 %v10340
      %10350 = vmatmul.bf16.gmra.mxu0 %v1293
      %v10351 = vpop.f32.mrf.mxu0
      %v10352 = vadd.f32 0.0, %v10351
      %v10353 = vpop.f32.mrf.mxu0
      %v10354 = vadd.f32 0.0, %v10353
      %10355 = vmatmul.bf16.gmra.mxu0 %v1296
      %v10356 = vpop.f32.mrf.mxu0
      %v10357 = vadd.f32 0.0, %v10356
      %v10358 = vpop.f32.mrf.mxu0
      %v10359 = vadd.f32 0.0, %v10358
      %10360 = vmatmul.bf16.gmra.mxu0 %v1299
      %v10361 = vpop.f32.mrf.mxu0
      %v10362 = vadd.f32 0.0, %v10361
      %v10363 = vpop.f32.mrf.mxu0
      %v10364 = vadd.f32 0.0, %v10363
      %10365 = vmatmul.bf16.gmra.mxu0 %v1302
      %v10366 = vpop.f32.mrf.mxu0
      %v10367 = vadd.f32 0.0, %v10366
      %v10368 = vpop.f32.mrf.mxu0
      %v10369 = vadd.f32 0.0, %v10368
      %10370 = vmatmul.bf16.gmra.mxu0 %v1305
      %v10371 = vpop.f32.mrf.mxu0
      %v10372 = vadd.f32 0.0, %v10371
      %v10373 = vpop.f32.mrf.mxu0
      %v10374 = vadd.f32 0.0, %v10373
      %10375 = vmatmul.bf16.gmra.mxu0 %v1308
      %v10376 = vpop.f32.mrf.mxu0
      %v10377 = vadd.f32 0.0, %v10376
      %v10378 = vpop.f32.mrf.mxu0
      %v10379 = vadd.f32 0.0, %v10378
      %10380 = vmatmul.bf16.gmra.mxu0 %v1311
      %v10381 = vpop.f32.mrf.mxu0
      %v10382 = vadd.f32 0.0, %v10381
      %v10383 = vpop.f32.mrf.mxu0
      %v10384 = vadd.f32 0.0, %v10383
      %10385 = vmatmul.bf16.gmra.mxu0 %v1314
      %v10386 = vpop.f32.mrf.mxu0
      %v10387 = vadd.f32 0.0, %v10386
      %v10388 = vpop.f32.mrf.mxu0
      %v10389 = vadd.f32 0.0, %v10388
      %10390 = vmatmul.bf16.gmra.mxu0 %v1317
      %v10391 = vpop.f32.mrf.mxu0
      %v10392 = vadd.f32 0.0, %v10391
      %v10393 = vpop.f32.mrf.mxu0
      %v10394 = vadd.f32 0.0, %v10393
      %10395 = vmatmul.bf16.gmra.mxu0 %v1320
      %v10396 = vpop.f32.mrf.mxu0
      %v10397 = vadd.f32 0.0, %v10396
      %v10398 = vpop.f32.mrf.mxu0
      %v10399 = vadd.f32 0.0, %v10398
      %10400 = vmatmul.bf16.gmra.mxu0 %v1323
      %v10401 = vpop.f32.mrf.mxu0
      %v10402 = vadd.f32 0.0, %v10401
      %v10403 = vpop.f32.mrf.mxu0
      %v10404 = vadd.f32 0.0, %v10403
      %10405 = vmatmul.bf16.gmra.mxu0 %v1326
      %v10406 = vpop.f32.mrf.mxu0
      %v10407 = vadd.f32 0.0, %v10406
      %v10408 = vpop.f32.mrf.mxu0
      %v10409 = vadd.f32 0.0, %v10408
      %10410 = vmatmul.bf16.gmra.mxu0 %v1329
      %v10411 = vpop.f32.mrf.mxu0
      %v10412 = vadd.f32 0.0, %v10411
      %v10413 = vpop.f32.mrf.mxu0
      %v10414 = vadd.f32 0.0, %v10413
      %10415 = vmatmul.bf16.gmra.mxu0 %v1332
      %v10416 = vpop.f32.mrf.mxu0
      %v10417 = vadd.f32 0.0, %v10416
      %v10418 = vpop.f32.mrf.mxu0
      %v10419 = vadd.f32 0.0, %v10418
      %10420 = vmatmul.bf16.gmra.mxu0 %v1335
      %v10421 = vpop.f32.mrf.mxu0
      %v10422 = vadd.f32 0.0, %v10421
      %v10423 = vpop.f32.mrf.mxu0
      %v10424 = vadd.f32 0.0, %v10423
      %10425 = vmatmul.bf16.gmra.mxu0 %v1338
      %v10426 = vpop.f32.mrf.mxu0
      %v10427 = vadd.f32 0.0, %v10426
      %v10428 = vpop.f32.mrf.mxu0
      %v10429 = vadd.f32 0.0, %v10428
      %10430 = vmatmul.bf16.gmra.mxu0 %v1341
      %v10431 = vpop.f32.mrf.mxu0
      %v10432 = vadd.f32 0.0, %v10431
      %v10433 = vpop.f32.mrf.mxu0
      %v10434 = vadd.f32 0.0, %v10433
      %10435 = vmatmul.bf16.gmra.mxu0 %v1344
      %v10436 = vpop.f32.mrf.mxu0
      %v10437 = vadd.f32 0.0, %v10436
      %v10438 = vpop.f32.mrf.mxu0
      %v10439 = vadd.f32 0.0, %v10438
      %10440 = vmatmul.bf16.gmra.mxu0 %v1347
      %v10441 = vpop.f32.mrf.mxu0
      %v10442 = vadd.f32 0.0, %v10441
      %v10443 = vpop.f32.mrf.mxu0
      %v10444 = vadd.f32 0.0, %v10443
      %10445 = vmatmul.bf16.gmra.mxu0 %v1350
      %v10446 = vpop.f32.mrf.mxu0
      %v10447 = vadd.f32 0.0, %v10446
      %v10448 = vpop.f32.mrf.mxu0
      %v10449 = vadd.f32 0.0, %v10448
      %10450 = vmatmul.bf16.gmra.mxu0 %v1353
      %v10451 = vpop.f32.mrf.mxu0
      %v10452 = vadd.f32 0.0, %v10451
      %v10453 = vpop.f32.mrf.mxu0
      %v10454 = vadd.f32 0.0, %v10453
      %10455 = vmatmul.bf16.gmra.mxu0 %v1356
      %v10456 = vpop.f32.mrf.mxu0
      %v10457 = vadd.f32 0.0, %v10456
      %v10458 = vpop.f32.mrf.mxu0
      %v10459 = vadd.f32 0.0, %v10458
      %10460 = vdwg.mxu0
      %v10461 = vadd.f32 %v10293, %v10352
      %v10462 = vadd.f32 %v10294, %v10354
      %v10463 = vadd.f32 %v10295, %v10357
      %v10464 = vadd.f32 %v10296, %v10359
      %v10465 = vadd.f32 %v10297, %v10362
      %v10466 = vadd.f32 %v10298, %v10364
      %v10467 = vadd.f32 %v10299, %v10367
      %v10468 = vadd.f32 %v10300, %v10369
      %v10469 = vadd.f32 %v10301, %v10372
      %v10470 = vadd.f32 %v10302, %v10374
      %v10471 = vadd.f32 %v10303, %v10377
      %v10472 = vadd.f32 %v10304, %v10379
      %v10473 = vadd.f32 %v10305, %v10382
      %v10474 = vadd.f32 %v10306, %v10384
      %v10475 = vadd.f32 %v10307, %v10387
      %v10476 = vadd.f32 %v10308, %v10389
      %v10477 = vadd.f32 %v10309, %v10392
      %v10478 = vadd.f32 %v10310, %v10394
      %v10479 = vadd.f32 %v10311, %v10397
      %v10480 = vadd.f32 %v10312, %v10399
      %v10481 = vadd.f32 %v10313, %v10402
      %v10482 = vadd.f32 %v10314, %v10404
      %v10483 = vadd.f32 %v10315, %v10407
      %v10484 = vadd.f32 %v10316, %v10409
      %v10485 = vadd.f32 %v10317, %v10412
      %v10486 = vadd.f32 %v10318, %v10414
      %v10487 = vadd.f32 %v10319, %v10417
      %v10488 = vadd.f32 %v10320, %v10419
      %v10489 = vadd.f32 %v10321, %v10422
      %v10490 = vadd.f32 %v10322, %v10424
      %v10491 = vadd.f32 %v10323, %v10427
      %v10492 = vadd.f32 %v10324, %v10429
      %v10493 = vadd.f32 %v10325, %v10432
      %v10494 = vadd.f32 %v10326, %v10434
      %v10495 = vadd.f32 %v10327, %v10437
      %v10496 = vadd.f32 %v10328, %v10439
      %v10497 = vadd.f32 %v10329, %v10442
      %v10498 = vadd.f32 %v10330, %v10444
      %v10499 = vadd.f32 %v10331, %v10447
      %v10500 = vadd.f32 %v10332, %v10449
      %v10501 = vadd.f32 %v10333, %v10452
      %v10502 = vadd.f32 %v10334, %v10454
      %v10503 = vadd.f32 %v10335, %v10457
      %v10504 = vadd.f32 %v10336, %v10459
      %s10505 = scalar_lea.vmem %s4, 46
      %v10506 = vld [vmem:[%s10505] sm:$0x3]
      %v10507 = vpack.c.b16 %v1018, %v1017
      %v10508 = vpack.c.b16 %v1020, %v1019
      %v10509 = vpack.c.b16 %v1022, %v1021
      %v10510 = vpack.c.b16 %v1024, %v1023
      %v10511 = vpack.c.b16 %v1026, %v1025
      %v10512 = vpack.c.b16 %v1028, %v1027
      %v10513 = vpack.c.b16 %v1030, %v1029
      %v10514 = vpack.c.b16 %v1032, %v1031
      %v10515 = vpack.c.b16 %v1034, %v1033
      %v10516 = vpack.c.b16 %v1036, %v1035
      %v10517 = vpack.c.b16 %v1038, %v1037
      %v10518 = vpack.c.b16 %v1040, %v1039
      %v10519 = vpack.c.b16 %v1042, %v1041
      %v10520 = vpack.c.b16 %v1044, %v1043
      %v10521 = vpack.c.b16 %v1046, %v1045
      %v10522 = vpack.c.b16 %v1048, %v1047
      %v10523 = vpack.c.b16 %v1050, %v1049
      %v10524 = vpack.c.b16 %v1052, %v1051
      %v10525 = vpack.c.b16 %v1054, %v1053
      %v10526 = vpack.c.b16 %v1056, %v1055
      %v10527 = vpack.c.b16 %v1058, %v1057
      %v10528 = vpack.c.b16 %v6843, %v1059
      %v10530 = vsel %vm1291, %v10507, 0
      %v10533 = vsel %vm1291, %v10508, 0
      %v10536 = vsel %vm1291, %v10509, 0
      %v10539 = vsel %vm1291, %v10510, 0
      %v10542 = vsel %vm1291, %v10511, 0
      %v10545 = vsel %vm1291, %v10512, 0
      %v10548 = vsel %vm1291, %v10513, 0
      %v10551 = vsel %vm1291, %v10514, 0
      %v10554 = vsel %vm1291, %v10515, 0
      %v10557 = vsel %vm1291, %v10516, 0
      %v10560 = vsel %vm1291, %v10517, 0
      %v10563 = vsel %vm1291, %v10518, 0
      %v10566 = vsel %vm1291, %v10519, 0
      %v10569 = vsel %vm1291, %v10520, 0
      %v10572 = vsel %vm1291, %v10521, 0
      %v10575 = vsel %vm1291, %v10522, 0
      %v10578 = vsel %vm1291, %v10523, 0
      %v10581 = vsel %vm1291, %v10524, 0
      %v10584 = vsel %vm1291, %v10525, 0
      %v10587 = vsel %vm1291, %v10526, 0
      %v10590 = vsel %vm1291, %v10527, 0
      %v10593 = vsel %vm1291, %v10528, 0
      %v10596 = vsel %vm1358, %v10506, 0
      %10598 = vmatpush.bf16.msra.mxu0 0
      %10599 = vmatpush.bf16.msra.mxu0 0
      %10600 = vmatpush.bf16.msra.mxu0 0
      %10601 = vmatpush.bf16.msra.mxu0 0
      %10602 = vmatpush.bf16.msra.mxu0 0
      %10603 = vmatpush.bf16.msra.mxu0 0
      %10604 = vmatpush.bf16.msra.mxu0 0
      %10605 = vmatpush.bf16.msra.mxu0 %v10596
      %10606 = vmatmul.bf16.gmra.mxu0 %v10530
      %v10607 = vpop.f32.mrf.mxu0
      %v10608 = vadd.f32 0.0, %v10607
      %v10609 = vpop.f32.mrf.mxu0
      %v10610 = vadd.f32 0.0, %v10609
      %10611 = vmatmul.bf16.gmra.mxu0 %v10533
      %v10612 = vpop.f32.mrf.mxu0
      %v10613 = vadd.f32 0.0, %v10612
      %v10614 = vpop.f32.mrf.mxu0
      %v10615 = vadd.f32 0.0, %v10614
      %10616 = vmatmul.bf16.gmra.mxu0 %v10536
      %v10617 = vpop.f32.mrf.mxu0
      %v10618 = vadd.f32 0.0, %v10617
      %v10619 = vpop.f32.mrf.mxu0
      %v10620 = vadd.f32 0.0, %v10619
      %10621 = vmatmul.bf16.gmra.mxu0 %v10539
      %v10622 = vpop.f32.mrf.mxu0
      %v10623 = vadd.f32 0.0, %v10622
      %v10624 = vpop.f32.mrf.mxu0
      %v10625 = vadd.f32 0.0, %v10624
      %10626 = vmatmul.bf16.gmra.mxu0 %v10542
      %v10627 = vpop.f32.mrf.mxu0
      %v10628 = vadd.f32 0.0, %v10627
      %v10629 = vpop.f32.mrf.mxu0
      %v10630 = vadd.f32 0.0, %v10629
      %10631 = vmatmul.bf16.gmra.mxu0 %v10545
      %v10632 = vpop.f32.mrf.mxu0
      %v10633 = vadd.f32 0.0, %v10632
      %v10634 = vpop.f32.mrf.mxu0
      %v10635 = vadd.f32 0.0, %v10634
      %10636 = vmatmul.bf16.gmra.mxu0 %v10548
      %v10637 = vpop.f32.mrf.mxu0
      %v10638 = vadd.f32 0.0, %v10637
      %v10639 = vpop.f32.mrf.mxu0
      %v10640 = vadd.f32 0.0, %v10639
      %10641 = vmatmul.bf16.gmra.mxu0 %v10551
      %v10642 = vpop.f32.mrf.mxu0
      %v10643 = vadd.f32 0.0, %v10642
      %v10644 = vpop.f32.mrf.mxu0
      %v10645 = vadd.f32 0.0, %v10644
      %10646 = vmatmul.bf16.gmra.mxu0 %v10554
      %v10647 = vpop.f32.mrf.mxu0
      %v10648 = vadd.f32 0.0, %v10647
      %v10649 = vpop.f32.mrf.mxu0
      %v10650 = vadd.f32 0.0, %v10649
      %10651 = vmatmul.bf16.gmra.mxu0 %v10557
      %v10652 = vpop.f32.mrf.mxu0
      %v10653 = vadd.f32 0.0, %v10652
      %v10654 = vpop.f32.mrf.mxu0
      %v10655 = vadd.f32 0.0, %v10654
      %10656 = vmatmul.bf16.gmra.mxu0 %v10560
      %v10657 = vpop.f32.mrf.mxu0
      %v10658 = vadd.f32 0.0, %v10657
      %v10659 = vpop.f32.mrf.mxu0
      %v10660 = vadd.f32 0.0, %v10659
      %10661 = vmatmul.bf16.gmra.mxu0 %v10563
      %v10662 = vpop.f32.mrf.mxu0
      %v10663 = vadd.f32 0.0, %v10662
      %v10664 = vpop.f32.mrf.mxu0
      %v10665 = vadd.f32 0.0, %v10664
      %10666 = vmatmul.bf16.gmra.mxu0 %v10566
      %v10667 = vpop.f32.mrf.mxu0
      %v10668 = vadd.f32 0.0, %v10667
      %v10669 = vpop.f32.mrf.mxu0
      %v10670 = vadd.f32 0.0, %v10669
      %10671 = vmatmul.bf16.gmra.mxu0 %v10569
      %v10672 = vpop.f32.mrf.mxu0
      %v10673 = vadd.f32 0.0, %v10672
      %v10674 = vpop.f32.mrf.mxu0
      %v10675 = vadd.f32 0.0, %v10674
      %10676 = vmatmul.bf16.gmra.mxu0 %v10572
      %v10677 = vpop.f32.mrf.mxu0
      %v10678 = vadd.f32 0.0, %v10677
      %v10679 = vpop.f32.mrf.mxu0
      %v10680 = vadd.f32 0.0, %v10679
      %10681 = vmatmul.bf16.gmra.mxu0 %v10575
      %v10682 = vpop.f32.mrf.mxu0
      %v10683 = vadd.f32 0.0, %v10682
      %v10684 = vpop.f32.mrf.mxu0
      %v10685 = vadd.f32 0.0, %v10684
      %10686 = vmatmul.bf16.gmra.mxu0 %v10578
      %v10687 = vpop.f32.mrf.mxu0
      %v10688 = vadd.f32 0.0, %v10687
      %v10689 = vpop.f32.mrf.mxu0
      %v10690 = vadd.f32 0.0, %v10689
      %10691 = vmatmul.bf16.gmra.mxu0 %v10581
      %v10692 = vpop.f32.mrf.mxu0
      %v10693 = vadd.f32 0.0, %v10692
      %v10694 = vpop.f32.mrf.mxu0
      %v10695 = vadd.f32 0.0, %v10694
      %10696 = vmatmul.bf16.gmra.mxu0 %v10584
      %v10697 = vpop.f32.mrf.mxu0
      %v10698 = vadd.f32 0.0, %v10697
      %v10699 = vpop.f32.mrf.mxu0
      %v10700 = vadd.f32 0.0, %v10699
      %10701 = vmatmul.bf16.gmra.mxu0 %v10587
      %v10702 = vpop.f32.mrf.mxu0
      %v10703 = vadd.f32 0.0, %v10702
      %v10704 = vpop.f32.mrf.mxu0
      %v10705 = vadd.f32 0.0, %v10704
      %10706 = vmatmul.bf16.gmra.mxu0 %v10590
      %v10707 = vpop.f32.mrf.mxu0
      %v10708 = vadd.f32 0.0, %v10707
      %v10709 = vpop.f32.mrf.mxu0
      %v10710 = vadd.f32 0.0, %v10709
      %10711 = vmatmul.bf16.gmra.mxu0 %v10593
      %v10712 = vpop.f32.mrf.mxu0
      %v10713 = vadd.f32 0.0, %v10712
      %v10714 = vpop.f32.mrf.mxu0
      %v10715 = vadd.f32 0.0, %v10714
      %10716 = vdwg.mxu0
      %v10717 = vadd.f32 %v10461, %v10608
      %v10718 = vadd.f32 %v10462, %v10610
      %v10719 = vadd.f32 %v10463, %v10613
      %v10720 = vadd.f32 %v10464, %v10615
      %v10721 = vadd.f32 %v10465, %v10618
      %v10722 = vadd.f32 %v10466, %v10620
      %v10723 = vadd.f32 %v10467, %v10623
      %v10724 = vadd.f32 %v10468, %v10625
      %v10725 = vadd.f32 %v10469, %v10628
      %v10726 = vadd.f32 %v10470, %v10630
      %v10727 = vadd.f32 %v10471, %v10633
      %v10728 = vadd.f32 %v10472, %v10635
      %v10729 = vadd.f32 %v10473, %v10638
      %v10730 = vadd.f32 %v10474, %v10640
      %v10731 = vadd.f32 %v10475, %v10643
      %v10732 = vadd.f32 %v10476, %v10645
      %v10733 = vadd.f32 %v10477, %v10648
      %v10734 = vadd.f32 %v10478, %v10650
      %v10735 = vadd.f32 %v10479, %v10653
      %v10736 = vadd.f32 %v10480, %v10655
      %v10737 = vadd.f32 %v10481, %v10658
      %v10738 = vadd.f32 %v10482, %v10660
      %v10739 = vadd.f32 %v10483, %v10663
      %v10740 = vadd.f32 %v10484, %v10665
      %v10741 = vadd.f32 %v10485, %v10668
      %v10742 = vadd.f32 %v10486, %v10670
      %v10743 = vadd.f32 %v10487, %v10673
      %v10744 = vadd.f32 %v10488, %v10675
      %v10745 = vadd.f32 %v10489, %v10678
      %v10746 = vadd.f32 %v10490, %v10680
      %v10747 = vadd.f32 %v10491, %v10683
      %v10748 = vadd.f32 %v10492, %v10685
      %v10749 = vadd.f32 %v10493, %v10688
      %v10750 = vadd.f32 %v10494, %v10690
      %v10751 = vadd.f32 %v10495, %v10693
      %v10752 = vadd.f32 %v10496, %v10695
      %v10753 = vadd.f32 %v10497, %v10698
      %v10754 = vadd.f32 %v10498, %v10700
      %v10755 = vadd.f32 %v10499, %v10703
      %v10756 = vadd.f32 %v10500, %v10705
      %v10757 = vadd.f32 %v10501, %v10708
      %v10758 = vadd.f32 %v10502, %v10710
      %v10759 = vadd.f32 %v10503, %v10713
      %v10760 = vadd.f32 %v10504, %v10715
      %v10761 = vld [vmem:[#allocation2 + $0x40] sm:$0xc]
      %v10762 = vld [vmem:[#allocation2 + $0x44] sm:$0xf]
      %v10763 = vld [vmem:[#allocation2 + $0x48] sm:$0xf]
      %v10764 = vld [vmem:[#allocation2 + $0x4c] sm:$0xf]
      %v10765 = vld [vmem:[#allocation2 + $0x50] sm:$0xf]
      %v10766 = vld [vmem:[#allocation2 + $0x54] sm:$0xf]
      %v10767 = vld [vmem:[#allocation2 + $0x58] sm:$0xf]
      %v10768 = vld [vmem:[#allocation2 + $0x5c] sm:$0xf]
      %v10769 = vld [vmem:[#allocation2 + $0x60] sm:$0xf]
      %v10770 = vld [vmem:[#allocation2 + $0x64] sm:$0xf]
      %v10771 = vld [vmem:[#allocation2 + $0x68] sm:$0xf]
      %v10772 = vld [vmem:[#allocation2 + $0x6c] sm:$0xf]
      %v10773 = vld [vmem:[#allocation2 + $0x70] sm:$0xf]
      %v10774 = vld [vmem:[#allocation2 + $0x74] sm:$0xf]
      %v10775 = vld [vmem:[#allocation2 + $0x78] sm:$0xf]
      %v10776 = vld [vmem:[#allocation2 + $0x7c] sm:$0xf]
      %v10777 = vld [vmem:[#allocation2 + $0x80] sm:$0xf]
      %v10778 = vld [vmem:[#allocation2 + $0x84] sm:$0xf]
      %v10779 = vld [vmem:[#allocation2 + $0x88] sm:$0xf]
      %v10780 = vld [vmem:[#allocation2 + $0x8c] sm:$0xf]
      %v10781 = vld [vmem:[#allocation2 + $0x90] sm:$0xf]
      %v10782 = vld [vmem:[#allocation2 + $0x94] sm:$0xf]
      %v10783 = vld [vmem:[#allocation2 + $0x98] sm:$0xf]
      %v10784 = vld [vmem:[#allocation2 + $0x9c] sm:$0xf]
      %v10785 = vld [vmem:[#allocation2 + $0xa0] sm:$0xf]
      %v10786 = vld [vmem:[#allocation2 + $0xa4] sm:$0xf]
      %v10787 = vld [vmem:[#allocation2 + $0xa8] sm:$0xf]
      %v10788 = vld [vmem:[#allocation2 + $0xac] sm:$0xf]
      %v10789 = vld [vmem:[#allocation2 + $0xb0] sm:$0xf]
      %v10790 = vld [vmem:[#allocation2 + $0xb4] sm:$0xf]
      %v10791 = vld [vmem:[#allocation2 + $0xb8] sm:$0xf]
      %v10792 = vld [vmem:[#allocation2 + $0xbc] sm:$0xf]
      %v10793 = vld [vmem:[#allocation2 + $0xc0] sm:$0xf]
      %v10794 = vld [vmem:[#allocation2 + $0xc4] sm:$0xf]
      %v10795 = vld [vmem:[#allocation2 + $0xc8] sm:$0xf]
      %v10796 = vld [vmem:[#allocation2 + $0xcc] sm:$0xf]
      %v10797 = vld [vmem:[#allocation2 + $0xd0] sm:$0xf]
      %v10798 = vld [vmem:[#allocation2 + $0xd4] sm:$0xf]
      %v10799 = vld [vmem:[#allocation2 + $0xd8] sm:$0xf]
      %v10800 = vld [vmem:[#allocation2 + $0xdc] sm:$0xf]
      %v10801 = vld [vmem:[#allocation2 + $0xe0] sm:$0xf]
      %v10802 = vld [vmem:[#allocation2 + $0xe4] sm:$0xf]
      %v10803 = vld [vmem:[#allocation2 + $0xe8] sm:$0xf]
      %v10804 = vld [vmem:[#allocation2 + $0xec] sm:$0xf]
      %v10805 = vld [vmem:[#allocation2 + $0xf0] sm:$0x3]
      %s10806 = scalar_lea.vmem %s4, 48
      %v10807 = vld [vmem:[%s10806] sm:$0x3]
      %v10853 = vunpack.c.l.b16 %v10761
      %v10854 = vunpack.c.l.b16 %v10762
      %v10855 = vunpack.c.l.b16 %v10763
      %v10856 = vunpack.c.l.b16 %v10764
      %v10857 = vunpack.c.l.b16 %v10765
      %v10858 = vunpack.c.l.b16 %v10766
      %v10859 = vunpack.c.l.b16 %v10767
      %v10860 = vunpack.c.l.b16 %v10768
      %v10861 = vunpack.c.l.b16 %v10769
      %v10862 = vunpack.c.l.b16 %v10770
      %v10863 = vunpack.c.l.b16 %v10771
      %v10864 = vunpack.c.l.b16 %v10772
      %v10865 = vunpack.c.l.b16 %v10773
      %v10866 = vunpack.c.l.b16 %v10774
      %v10867 = vunpack.c.l.b16 %v10775
      %v10868 = vunpack.c.l.b16 %v10776
      %v10869 = vunpack.c.l.b16 %v10777
      %v10870 = vunpack.c.l.b16 %v10778
      %v10871 = vunpack.c.l.b16 %v10779
      %v10872 = vunpack.c.l.b16 %v10780
      %v10873 = vunpack.c.l.b16 %v10781
      %v10874 = vunpack.c.l.b16 %v10782
      %v10875 = vunpack.c.l.b16 %v10783
      %v10876 = vunpack.c.l.b16 %v10784
      %v10877 = vunpack.c.l.b16 %v10785
      %v10878 = vunpack.c.l.b16 %v10786
      %v10879 = vunpack.c.l.b16 %v10787
      %v10880 = vunpack.c.l.b16 %v10788
      %v10881 = vunpack.c.l.b16 %v10789
      %v10882 = vunpack.c.l.b16 %v10790
      %v10883 = vunpack.c.l.b16 %v10791
      %v10884 = vunpack.c.l.b16 %v10792
      %v10885 = vunpack.c.l.b16 %v10793
      %v10886 = vunpack.c.l.b16 %v10794
      %v10887 = vunpack.c.l.b16 %v10795
      %v10888 = vunpack.c.l.b16 %v10796
      %v10889 = vunpack.c.l.b16 %v10797
      %v10890 = vunpack.c.l.b16 %v10798
      %v10891 = vunpack.c.l.b16 %v10799
      %v10892 = vunpack.c.l.b16 %v10800
      %v10893 = vunpack.c.l.b16 %v10801
      %v10894 = vunpack.c.l.b16 %v10802
      %v10895 = vunpack.c.l.b16 %v10803
      %v10896 = vunpack.c.l.b16 %v10804
      %v10897 = vunpack.c.l.b16 %v10805
      %v10898 = vpack.c.b16 %v10854, %v10853
      %v10899 = vpack.c.b16 %v10856, %v10855
      %v10900 = vpack.c.b16 %v10858, %v10857
      %v10901 = vpack.c.b16 %v10860, %v10859
      %v10902 = vpack.c.b16 %v10862, %v10861
      %v10903 = vpack.c.b16 %v10864, %v10863
      %v10904 = vpack.c.b16 %v10866, %v10865
      %v10905 = vpack.c.b16 %v10868, %v10867
      %v10906 = vpack.c.b16 %v10870, %v10869
      %v10907 = vpack.c.b16 %v10872, %v10871
      %v10908 = vpack.c.b16 %v10874, %v10873
      %v10909 = vpack.c.b16 %v10876, %v10875
      %v10910 = vpack.c.b16 %v10878, %v10877
      %v10911 = vpack.c.b16 %v10880, %v10879
      %v10912 = vpack.c.b16 %v10882, %v10881
      %v10913 = vpack.c.b16 %v10884, %v10883
      %v10914 = vpack.c.b16 %v10886, %v10885
      %v10915 = vpack.c.b16 %v10888, %v10887
      %v10916 = vpack.c.b16 %v10890, %v10889
      %v10917 = vpack.c.b16 %v10892, %v10891
      %v10918 = vpack.c.b16 %v10894, %v10893
      %v10919 = vpack.c.b16 %v10896, %v10895
      %v10920 = vpack.c.b16 %v10897, %v10897
      %v10921 = vrot.slane %v10898, 2
      %v10922 = vrot.slane %v10899, 2
      %v10923 = vsel %vm2796, %v10921, %v10922
      %v10924 = vrot.slane %v10900, 2
      %v10925 = vsel %vm2796, %v10922, %v10924
      %v10926 = vrot.slane %v10901, 2
      %v10927 = vsel %vm2796, %v10924, %v10926
      %v10928 = vrot.slane %v10902, 2
      %v10929 = vsel %vm2796, %v10926, %v10928
      %v10930 = vrot.slane %v10903, 2
      %v10931 = vsel %vm2796, %v10928, %v10930
      %v10932 = vrot.slane %v10904, 2
      %v10933 = vsel %vm2796, %v10930, %v10932
      %v10934 = vrot.slane %v10905, 2
      %v10935 = vsel %vm2796, %v10932, %v10934
      %v10936 = vrot.slane %v10906, 2
      %v10937 = vsel %vm2796, %v10934, %v10936
      %v10938 = vrot.slane %v10907, 2
      %v10939 = vsel %vm2796, %v10936, %v10938
      %v10940 = vrot.slane %v10908, 2
      %v10941 = vsel %vm2796, %v10938, %v10940
      %v10942 = vrot.slane %v10909, 2
      %v10943 = vsel %vm2796, %v10940, %v10942
      %v10944 = vrot.slane %v10910, 2
      %v10945 = vsel %vm2796, %v10942, %v10944
      %v10946 = vrot.slane %v10911, 2
      %v10947 = vsel %vm2796, %v10944, %v10946
      %v10948 = vrot.slane %v10912, 2
      %v10949 = vsel %vm2796, %v10946, %v10948
      %v10950 = vrot.slane %v10913, 2
      %v10951 = vsel %vm2796, %v10948, %v10950
      %v10952 = vrot.slane %v10914, 2
      %v10953 = vsel %vm2796, %v10950, %v10952
      %v10954 = vrot.slane %v10915, 2
      %v10955 = vsel %vm2796, %v10952, %v10954
      %v10956 = vrot.slane %v10916, 2
      %v10957 = vsel %vm2796, %v10954, %v10956
      %v10958 = vrot.slane %v10917, 2
      %v10959 = vsel %vm2796, %v10956, %v10958
      %v10960 = vrot.slane %v10918, 2
      %v10961 = vsel %vm2796, %v10958, %v10960
      %v10962 = vrot.slane %v10919, 2
      %v10963 = vsel %vm2796, %v10960, %v10962
      %v10964 = vrot.slane %v10920, 2
      %v10965 = vsel %vm2796, %v10962, %v10964
      %v10967 = vsel %vm1291, %v10923, 0
      %v10970 = vsel %vm1291, %v10925, 0
      %v10973 = vsel %vm1291, %v10927, 0
      %v10976 = vsel %vm1291, %v10929, 0
      %v10979 = vsel %vm1291, %v10931, 0
      %v10982 = vsel %vm1291, %v10933, 0
      %v10985 = vsel %vm1291, %v10935, 0
      %v10988 = vsel %vm1291, %v10937, 0
      %v10991 = vsel %vm1291, %v10939, 0
      %v10994 = vsel %vm1291, %v10941, 0
      %v10997 = vsel %vm1291, %v10943, 0
      %v11000 = vsel %vm1291, %v10945, 0
      %v11003 = vsel %vm1291, %v10947, 0
      %v11006 = vsel %vm1291, %v10949, 0
      %v11009 = vsel %vm1291, %v10951, 0
      %v11012 = vsel %vm1291, %v10953, 0
      %v11015 = vsel %vm1291, %v10955, 0
      %v11018 = vsel %vm1291, %v10957, 0
      %v11021 = vsel %vm1291, %v10959, 0
      %v11024 = vsel %vm1291, %v10961, 0
      %v11027 = vsel %vm1291, %v10963, 0
      %v11030 = vsel %vm1291, %v10965, 0
      %v11033 = vsel %vm1358, %v10807, 0
      %11035 = vmatpush.bf16.msra.mxu0 0
      %11036 = vmatpush.bf16.msra.mxu0 0
      %11037 = vmatpush.bf16.msra.mxu0 0
      %11038 = vmatpush.bf16.msra.mxu0 0
      %11039 = vmatpush.bf16.msra.mxu0 0
      %11040 = vmatpush.bf16.msra.mxu0 0
      %11041 = vmatpush.bf16.msra.mxu0 0
      %11042 = vmatpush.bf16.msra.mxu0 %v11033
      %11043 = vmatmul.bf16.gmra.mxu0 %v10967
      %v11044 = vpop.f32.mrf.mxu0
      %v11045 = vadd.f32 0.0, %v11044
      %v11046 = vpop.f32.mrf.mxu0
      %v11047 = vadd.f32 0.0, %v11046
      %11048 = vmatmul.bf16.gmra.mxu0 %v10970
      %v11049 = vpop.f32.mrf.mxu0
      %v11050 = vadd.f32 0.0, %v11049
      %v11051 = vpop.f32.mrf.mxu0
      %v11052 = vadd.f32 0.0, %v11051
      %11053 = vmatmul.bf16.gmra.mxu0 %v10973
      %v11054 = vpop.f32.mrf.mxu0
      %v11055 = vadd.f32 0.0, %v11054
      %v11056 = vpop.f32.mrf.mxu0
      %v11057 = vadd.f32 0.0, %v11056
      %11058 = vmatmul.bf16.gmra.mxu0 %v10976
      %v11059 = vpop.f32.mrf.mxu0
      %v11060 = vadd.f32 0.0, %v11059
      %v11061 = vpop.f32.mrf.mxu0
      %v11062 = vadd.f32 0.0, %v11061
      %11063 = vmatmul.bf16.gmra.mxu0 %v10979
      %v11064 = vpop.f32.mrf.mxu0
      %v11065 = vadd.f32 0.0, %v11064
      %v11066 = vpop.f32.mrf.mxu0
      %v11067 = vadd.f32 0.0, %v11066
      %11068 = vmatmul.bf16.gmra.mxu0 %v10982
      %v11069 = vpop.f32.mrf.mxu0
      %v11070 = vadd.f32 0.0, %v11069
      %v11071 = vpop.f32.mrf.mxu0
      %v11072 = vadd.f32 0.0, %v11071
      %11073 = vmatmul.bf16.gmra.mxu0 %v10985
      %v11074 = vpop.f32.mrf.mxu0
      %v11075 = vadd.f32 0.0, %v11074
      %v11076 = vpop.f32.mrf.mxu0
      %v11077 = vadd.f32 0.0, %v11076
      %11078 = vmatmul.bf16.gmra.mxu0 %v10988
      %v11079 = vpop.f32.mrf.mxu0
      %v11080 = vadd.f32 0.0, %v11079
      %v11081 = vpop.f32.mrf.mxu0
      %v11082 = vadd.f32 0.0, %v11081
      %11083 = vmatmul.bf16.gmra.mxu0 %v10991
      %v11084 = vpop.f32.mrf.mxu0
      %v11085 = vadd.f32 0.0, %v11084
      %v11086 = vpop.f32.mrf.mxu0
      %v11087 = vadd.f32 0.0, %v11086
      %11088 = vmatmul.bf16.gmra.mxu0 %v10994
      %v11089 = vpop.f32.mrf.mxu0
      %v11090 = vadd.f32 0.0, %v11089
      %v11091 = vpop.f32.mrf.mxu0
      %v11092 = vadd.f32 0.0, %v11091
      %11093 = vmatmul.bf16.gmra.mxu0 %v10997
      %v11094 = vpop.f32.mrf.mxu0
      %v11095 = vadd.f32 0.0, %v11094
      %v11096 = vpop.f32.mrf.mxu0
      %v11097 = vadd.f32 0.0, %v11096
      %11098 = vmatmul.bf16.gmra.mxu0 %v11000
      %v11099 = vpop.f32.mrf.mxu0
      %v11100 = vadd.f32 0.0, %v11099
      %v11101 = vpop.f32.mrf.mxu0
      %v11102 = vadd.f32 0.0, %v11101
      %11103 = vmatmul.bf16.gmra.mxu0 %v11003
      %v11104 = vpop.f32.mrf.mxu0
      %v11105 = vadd.f32 0.0, %v11104
      %v11106 = vpop.f32.mrf.mxu0
      %v11107 = vadd.f32 0.0, %v11106
      %11108 = vmatmul.bf16.gmra.mxu0 %v11006
      %v11109 = vpop.f32.mrf.mxu0
      %v11110 = vadd.f32 0.0, %v11109
      %v11111 = vpop.f32.mrf.mxu0
      %v11112 = vadd.f32 0.0, %v11111
      %11113 = vmatmul.bf16.gmra.mxu0 %v11009
      %v11114 = vpop.f32.mrf.mxu0
      %v11115 = vadd.f32 0.0, %v11114
      %v11116 = vpop.f32.mrf.mxu0
      %v11117 = vadd.f32 0.0, %v11116
      %11118 = vmatmul.bf16.gmra.mxu0 %v11012
      %v11119 = vpop.f32.mrf.mxu0
      %v11120 = vadd.f32 0.0, %v11119
      %v11121 = vpop.f32.mrf.mxu0
      %v11122 = vadd.f32 0.0, %v11121
      %11123 = vmatmul.bf16.gmra.mxu0 %v11015
      %v11124 = vpop.f32.mrf.mxu0
      %v11125 = vadd.f32 0.0, %v11124
      %v11126 = vpop.f32.mrf.mxu0
      %v11127 = vadd.f32 0.0, %v11126
      %11128 = vmatmul.bf16.gmra.mxu0 %v11018
      %v11129 = vpop.f32.mrf.mxu0
      %v11130 = vadd.f32 0.0, %v11129
      %v11131 = vpop.f32.mrf.mxu0
      %v11132 = vadd.f32 0.0, %v11131
      %11133 = vmatmul.bf16.gmra.mxu0 %v11021
      %v11134 = vpop.f32.mrf.mxu0
      %v11135 = vadd.f32 0.0, %v11134
      %v11136 = vpop.f32.mrf.mxu0
      %v11137 = vadd.f32 0.0, %v11136
      %11138 = vmatmul.bf16.gmra.mxu0 %v11024
      %v11139 = vpop.f32.mrf.mxu0
      %v11140 = vadd.f32 0.0, %v11139
      %v11141 = vpop.f32.mrf.mxu0
      %v11142 = vadd.f32 0.0, %v11141
      %11143 = vmatmul.bf16.gmra.mxu0 %v11027
      %v11144 = vpop.f32.mrf.mxu0
      %v11145 = vadd.f32 0.0, %v11144
      %v11146 = vpop.f32.mrf.mxu0
      %v11147 = vadd.f32 0.0, %v11146
      %11148 = vmatmul.bf16.gmra.mxu0 %v11030
      %v11149 = vpop.f32.mrf.mxu0
      %v11150 = vadd.f32 0.0, %v11149
      %v11151 = vpop.f32.mrf.mxu0
      %v11152 = vadd.f32 0.0, %v11151
      %11153 = vdwg.mxu0
      %v11154 = vadd.f32 %v10717, %v11045
      %v11155 = vadd.f32 %v10718, %v11047
      %v11156 = vadd.f32 %v10719, %v11050
      %v11157 = vadd.f32 %v10720, %v11052
      %v11158 = vadd.f32 %v10721, %v11055
      %v11159 = vadd.f32 %v10722, %v11057
      %v11160 = vadd.f32 %v10723, %v11060
      %v11161 = vadd.f32 %v10724, %v11062
      %v11162 = vadd.f32 %v10725, %v11065
      %v11163 = vadd.f32 %v10726, %v11067
      %v11164 = vadd.f32 %v10727, %v11070
      %v11165 = vadd.f32 %v10728, %v11072
      %v11166 = vadd.f32 %v10729, %v11075
      %v11167 = vadd.f32 %v10730, %v11077
      %v11168 = vadd.f32 %v10731, %v11080
      %v11169 = vadd.f32 %v10732, %v11082
      %v11170 = vadd.f32 %v10733, %v11085
      %v11171 = vadd.f32 %v10734, %v11087
      %v11172 = vadd.f32 %v10735, %v11090
      %v11173 = vadd.f32 %v10736, %v11092
      %v11174 = vadd.f32 %v10737, %v11095
      %v11175 = vadd.f32 %v10738, %v11097
      %v11176 = vadd.f32 %v10739, %v11100
      %v11177 = vadd.f32 %v10740, %v11102
      %v11178 = vadd.f32 %v10741, %v11105
      %v11179 = vadd.f32 %v10742, %v11107
      %v11180 = vadd.f32 %v10743, %v11110
      %v11181 = vadd.f32 %v10744, %v11112
      %v11182 = vadd.f32 %v10745, %v11115
      %v11183 = vadd.f32 %v10746, %v11117
      %v11184 = vadd.f32 %v10747, %v11120
      %v11185 = vadd.f32 %v10748, %v11122
      %v11186 = vadd.f32 %v10749, %v11125
      %v11187 = vadd.f32 %v10750, %v11127
      %v11188 = vadd.f32 %v10751, %v11130
      %v11189 = vadd.f32 %v10752, %v11132
      %v11190 = vadd.f32 %v10753, %v11135
      %v11191 = vadd.f32 %v10754, %v11137
      %v11192 = vadd.f32 %v10755, %v11140
      %v11193 = vadd.f32 %v10756, %v11142
      %v11194 = vadd.f32 %v10757, %v11145
      %v11195 = vadd.f32 %v10758, %v11147
      %v11196 = vadd.f32 %v10759, %v11150
      %v11197 = vadd.f32 %v10760, %v11152
      %v11198 = vld [vmem:[#allocation2 + $0x40] sm:$0x8]
      %v11199 = vld [vmem:[#allocation2 + $0xf0] sm:$0xf]
      %s11200 = scalar_lea.vmem %s4, 50
      %v11201 = vld [vmem:[%s11200] sm:$0x3]
      %v11204 = vunpack.c.l.b16 %v11198
      %v11205 = vunpack.c.l.b16 %v11199
      %v11206 = vpack.c.b16 %v10854, %v11204
      %v11207 = vpack.c.b16 %v11205, %v11205
      %v11209 = vshrl.u32 %v11206, 16
      %v11211 = vrot.slane %v11209, 3
      %v11212 = vshll.u32 %v11206, 16
      %v11214 = vrot.slane %v11212, 4
      %v11215 = vor.u32 %v11211, %v11214
      %v11217 = vshrl.u32 %v10899, 16
      %v11219 = vrot.slane %v11217, 3
      %v11220 = vshll.u32 %v10899, 16
      %v11222 = vrot.slane %v11220, 4
      %v11223 = vor.u32 %v11219, %v11222
      %v11224 = vsel %vm1902, %v11215, %v11223
      %v11226 = vshrl.u32 %v10900, 16
      %v11228 = vrot.slane %v11226, 3
      %v11229 = vshll.u32 %v10900, 16
      %v11231 = vrot.slane %v11229, 4
      %v11232 = vor.u32 %v11228, %v11231
      %v11233 = vsel %vm1902, %v11223, %v11232
      %v11235 = vshrl.u32 %v10901, 16
      %v11237 = vrot.slane %v11235, 3
      %v11238 = vshll.u32 %v10901, 16
      %v11240 = vrot.slane %v11238, 4
      %v11241 = vor.u32 %v11237, %v11240
      %v11242 = vsel %vm1902, %v11232, %v11241
      %v11244 = vshrl.u32 %v10902, 16
      %v11246 = vrot.slane %v11244, 3
      %v11247 = vshll.u32 %v10902, 16
      %v11249 = vrot.slane %v11247, 4
      %v11250 = vor.u32 %v11246, %v11249
      %v11251 = vsel %vm1902, %v11241, %v11250
      %v11253 = vshrl.u32 %v10903, 16
      %v11255 = vrot.slane %v11253, 3
      %v11256 = vshll.u32 %v10903, 16
      %v11258 = vrot.slane %v11256, 4
      %v11259 = vor.u32 %v11255, %v11258
      %v11260 = vsel %vm1902, %v11250, %v11259
      %v11262 = vshrl.u32 %v10904, 16
      %v11264 = vrot.slane %v11262, 3
      %v11265 = vshll.u32 %v10904, 16
      %v11267 = vrot.slane %v11265, 4
      %v11268 = vor.u32 %v11264, %v11267
      %v11269 = vsel %vm1902, %v11259, %v11268
      %v11271 = vshrl.u32 %v10905, 16
      %v11273 = vrot.slane %v11271, 3
      %v11274 = vshll.u32 %v10905, 16
      %v11276 = vrot.slane %v11274, 4
      %v11277 = vor.u32 %v11273, %v11276
      %v11278 = vsel %vm1902, %v11268, %v11277
      %v11280 = vshrl.u32 %v10906, 16
      %v11282 = vrot.slane %v11280, 3
      %v11283 = vshll.u32 %v10906, 16
      %v11285 = vrot.slane %v11283, 4
      %v11286 = vor.u32 %v11282, %v11285
      %v11287 = vsel %vm1902, %v11277, %v11286
      %v11289 = vshrl.u32 %v10907, 16
      %v11291 = vrot.slane %v11289, 3
      %v11292 = vshll.u32 %v10907, 16
      %v11294 = vrot.slane %v11292, 4
      %v11295 = vor.u32 %v11291, %v11294
      %v11296 = vsel %vm1902, %v11286, %v11295
      %v11298 = vshrl.u32 %v10908, 16
      %v11300 = vrot.slane %v11298, 3
      %v11301 = vshll.u32 %v10908, 16
      %v11303 = vrot.slane %v11301, 4
      %v11304 = vor.u32 %v11300, %v11303
      %v11305 = vsel %vm1902, %v11295, %v11304
      %v11307 = vshrl.u32 %v10909, 16
      %v11309 = vrot.slane %v11307, 3
      %v11310 = vshll.u32 %v10909, 16
      %v11312 = vrot.slane %v11310, 4
      %v11313 = vor.u32 %v11309, %v11312
      %v11314 = vsel %vm1902, %v11304, %v11313
      %v11316 = vshrl.u32 %v10910, 16
      %v11318 = vrot.slane %v11316, 3
      %v11319 = vshll.u32 %v10910, 16
      %v11321 = vrot.slane %v11319, 4
      %v11322 = vor.u32 %v11318, %v11321
      %v11323 = vsel %vm1902, %v11313, %v11322
      %v11325 = vshrl.u32 %v10911, 16
      %v11327 = vrot.slane %v11325, 3
      %v11328 = vshll.u32 %v10911, 16
      %v11330 = vrot.slane %v11328, 4
      %v11331 = vor.u32 %v11327, %v11330
      %v11332 = vsel %vm1902, %v11322, %v11331
      %v11334 = vshrl.u32 %v10912, 16
      %v11336 = vrot.slane %v11334, 3
      %v11337 = vshll.u32 %v10912, 16
      %v11339 = vrot.slane %v11337, 4
      %v11340 = vor.u32 %v11336, %v11339
      %v11341 = vsel %vm1902, %v11331, %v11340
      %v11343 = vshrl.u32 %v10913, 16
      %v11345 = vrot.slane %v11343, 3
      %v11346 = vshll.u32 %v10913, 16
      %v11348 = vrot.slane %v11346, 4
      %v11349 = vor.u32 %v11345, %v11348
      %v11350 = vsel %vm1902, %v11340, %v11349
      %v11352 = vshrl.u32 %v10914, 16
      %v11354 = vrot.slane %v11352, 3
      %v11355 = vshll.u32 %v10914, 16
      %v11357 = vrot.slane %v11355, 4
      %v11358 = vor.u32 %v11354, %v11357
      %v11359 = vsel %vm1902, %v11349, %v11358
      %v11361 = vshrl.u32 %v10915, 16
      %v11363 = vrot.slane %v11361, 3
      %v11364 = vshll.u32 %v10915, 16
      %v11366 = vrot.slane %v11364, 4
      %v11367 = vor.u32 %v11363, %v11366
      %v11368 = vsel %vm1902, %v11358, %v11367
      %v11370 = vshrl.u32 %v10916, 16
      %v11372 = vrot.slane %v11370, 3
      %v11373 = vshll.u32 %v10916, 16
      %v11375 = vrot.slane %v11373, 4
      %v11376 = vor.u32 %v11372, %v11375
      %v11377 = vsel %vm1902, %v11367, %v11376
      %v11379 = vshrl.u32 %v10917, 16
      %v11381 = vrot.slane %v11379, 3
      %v11382 = vshll.u32 %v10917, 16
      %v11384 = vrot.slane %v11382, 4
      %v11385 = vor.u32 %v11381, %v11384
      %v11386 = vsel %vm1902, %v11376, %v11385
      %v11388 = vshrl.u32 %v10918, 16
      %v11390 = vrot.slane %v11388, 3
      %v11391 = vshll.u32 %v10918, 16
      %v11393 = vrot.slane %v11391, 4
      %v11394 = vor.u32 %v11390, %v11393
      %v11395 = vsel %vm1902, %v11385, %v11394
      %v11397 = vshrl.u32 %v10919, 16
      %v11399 = vrot.slane %v11397, 3
      %v11400 = vshll.u32 %v10919, 16
      %v11402 = vrot.slane %v11400, 4
      %v11403 = vor.u32 %v11399, %v11402
      %v11404 = vsel %vm1902, %v11394, %v11403
      %v11406 = vshrl.u32 %v11207, 16
      %v11408 = vrot.slane %v11406, 3
      %v11409 = vshll.u32 %v11207, 16
      %v11411 = vrot.slane %v11409, 4
      %v11412 = vor.u32 %v11408, %v11411
      %v11413 = vsel %vm1902, %v11403, %v11412
      %v11415 = vsel %vm1291, %v11224, 0
      %v11418 = vsel %vm1291, %v11233, 0
      %v11421 = vsel %vm1291, %v11242, 0
      %v11424 = vsel %vm1291, %v11251, 0
      %v11427 = vsel %vm1291, %v11260, 0
      %v11430 = vsel %vm1291, %v11269, 0
      %v11433 = vsel %vm1291, %v11278, 0
      %v11436 = vsel %vm1291, %v11287, 0
      %v11439 = vsel %vm1291, %v11296, 0
      %v11442 = vsel %vm1291, %v11305, 0
      %v11445 = vsel %vm1291, %v11314, 0
      %v11448 = vsel %vm1291, %v11323, 0
      %v11451 = vsel %vm1291, %v11332, 0
      %v11454 = vsel %vm1291, %v11341, 0
      %v11457 = vsel %vm1291, %v11350, 0
      %v11460 = vsel %vm1291, %v11359, 0
      %v11463 = vsel %vm1291, %v11368, 0
      %v11466 = vsel %vm1291, %v11377, 0
      %v11469 = vsel %vm1291, %v11386, 0
      %v11472 = vsel %vm1291, %v11395, 0
      %v11475 = vsel %vm1291, %v11404, 0
      %v11478 = vsel %vm1291, %v11413, 0
      %v11481 = vsel %vm1358, %v11201, 0
      %11483 = vmatpush.bf16.msra.mxu0 0
      %11484 = vmatpush.bf16.msra.mxu0 0
      %11485 = vmatpush.bf16.msra.mxu0 0
      %11486 = vmatpush.bf16.msra.mxu0 0
      %11487 = vmatpush.bf16.msra.mxu0 0
      %11488 = vmatpush.bf16.msra.mxu0 0
      %11489 = vmatpush.bf16.msra.mxu0 0
      %11490 = vmatpush.bf16.msra.mxu0 %v11481
      %11491 = vmatmul.bf16.gmra.mxu0 %v11415
      %v11492 = vpop.f32.mrf.mxu0
      %v11493 = vadd.f32 0.0, %v11492
      %v11494 = vpop.f32.mrf.mxu0
      %v11495 = vadd.f32 0.0, %v11494
      %11496 = vmatmul.bf16.gmra.mxu0 %v11418
      %v11497 = vpop.f32.mrf.mxu0
      %v11498 = vadd.f32 0.0, %v11497
      %v11499 = vpop.f32.mrf.mxu0
      %v11500 = vadd.f32 0.0, %v11499
      %11501 = vmatmul.bf16.gmra.mxu0 %v11421
      %v11502 = vpop.f32.mrf.mxu0
      %v11503 = vadd.f32 0.0, %v11502
      %v11504 = vpop.f32.mrf.mxu0
      %v11505 = vadd.f32 0.0, %v11504
      %11506 = vmatmul.bf16.gmra.mxu0 %v11424
      %v11507 = vpop.f32.mrf.mxu0
      %v11508 = vadd.f32 0.0, %v11507
      %v11509 = vpop.f32.mrf.mxu0
      %v11510 = vadd.f32 0.0, %v11509
      %11511 = vmatmul.bf16.gmra.mxu0 %v11427
      %v11512 = vpop.f32.mrf.mxu0
      %v11513 = vadd.f32 0.0, %v11512
      %v11514 = vpop.f32.mrf.mxu0
      %v11515 = vadd.f32 0.0, %v11514
      %11516 = vmatmul.bf16.gmra.mxu0 %v11430
      %v11517 = vpop.f32.mrf.mxu0
      %v11518 = vadd.f32 0.0, %v11517
      %v11519 = vpop.f32.mrf.mxu0
      %v11520 = vadd.f32 0.0, %v11519
      %11521 = vmatmul.bf16.gmra.mxu0 %v11433
      %v11522 = vpop.f32.mrf.mxu0
      %v11523 = vadd.f32 0.0, %v11522
      %v11524 = vpop.f32.mrf.mxu0
      %v11525 = vadd.f32 0.0, %v11524
      %11526 = vmatmul.bf16.gmra.mxu0 %v11436
      %v11527 = vpop.f32.mrf.mxu0
      %v11528 = vadd.f32 0.0, %v11527
      %v11529 = vpop.f32.mrf.mxu0
      %v11530 = vadd.f32 0.0, %v11529
      %11531 = vmatmul.bf16.gmra.mxu0 %v11439
      %v11532 = vpop.f32.mrf.mxu0
      %v11533 = vadd.f32 0.0, %v11532
      %v11534 = vpop.f32.mrf.mxu0
      %v11535 = vadd.f32 0.0, %v11534
      %11536 = vmatmul.bf16.gmra.mxu0 %v11442
      %v11537 = vpop.f32.mrf.mxu0
      %v11538 = vadd.f32 0.0, %v11537
      %v11539 = vpop.f32.mrf.mxu0
      %v11540 = vadd.f32 0.0, %v11539
      %11541 = vmatmul.bf16.gmra.mxu0 %v11445
      %v11542 = vpop.f32.mrf.mxu0
      %v11543 = vadd.f32 0.0, %v11542
      %v11544 = vpop.f32.mrf.mxu0
      %v11545 = vadd.f32 0.0, %v11544
      %11546 = vmatmul.bf16.gmra.mxu0 %v11448
      %v11547 = vpop.f32.mrf.mxu0
      %v11548 = vadd.f32 0.0, %v11547
      %v11549 = vpop.f32.mrf.mxu0
      %v11550 = vadd.f32 0.0, %v11549
      %11551 = vmatmul.bf16.gmra.mxu0 %v11451
      %v11552 = vpop.f32.mrf.mxu0
      %v11553 = vadd.f32 0.0, %v11552
      %v11554 = vpop.f32.mrf.mxu0
      %v11555 = vadd.f32 0.0, %v11554
      %11556 = vmatmul.bf16.gmra.mxu0 %v11454
      %v11557 = vpop.f32.mrf.mxu0
      %v11558 = vadd.f32 0.0, %v11557
      %v11559 = vpop.f32.mrf.mxu0
      %v11560 = vadd.f32 0.0, %v11559
      %11561 = vmatmul.bf16.gmra.mxu0 %v11457
      %v11562 = vpop.f32.mrf.mxu0
      %v11563 = vadd.f32 0.0, %v11562
      %v11564 = vpop.f32.mrf.mxu0
      %v11565 = vadd.f32 0.0, %v11564
      %11566 = vmatmul.bf16.gmra.mxu0 %v11460
      %v11567 = vpop.f32.mrf.mxu0
      %v11568 = vadd.f32 0.0, %v11567
      %v11569 = vpop.f32.mrf.mxu0
      %v11570 = vadd.f32 0.0, %v11569
      %11571 = vmatmul.bf16.gmra.mxu0 %v11463
      %v11572 = vpop.f32.mrf.mxu0
      %v11573 = vadd.f32 0.0, %v11572
      %v11574 = vpop.f32.mrf.mxu0
      %v11575 = vadd.f32 0.0, %v11574
      %11576 = vmatmul.bf16.gmra.mxu0 %v11466
      %v11577 = vpop.f32.mrf.mxu0
      %v11578 = vadd.f32 0.0, %v11577
      %v11579 = vpop.f32.mrf.mxu0
      %v11580 = vadd.f32 0.0, %v11579
      %11581 = vmatmul.bf16.gmra.mxu0 %v11469
      %v11582 = vpop.f32.mrf.mxu0
      %v11583 = vadd.f32 0.0, %v11582
      %v11584 = vpop.f32.mrf.mxu0
      %v11585 = vadd.f32 0.0, %v11584
      %11586 = vmatmul.bf16.gmra.mxu0 %v11472
      %v11587 = vpop.f32.mrf.mxu0
      %v11588 = vadd.f32 0.0, %v11587
      %v11589 = vpop.f32.mrf.mxu0
      %v11590 = vadd.f32 0.0, %v11589
      %11591 = vmatmul.bf16.gmra.mxu0 %v11475
      %v11592 = vpop.f32.mrf.mxu0
      %v11593 = vadd.f32 0.0, %v11592
      %v11594 = vpop.f32.mrf.mxu0
      %v11595 = vadd.f32 0.0, %v11594
      %11596 = vmatmul.bf16.gmra.mxu0 %v11478
      %v11597 = vpop.f32.mrf.mxu0
      %v11598 = vadd.f32 0.0, %v11597
      %v11599 = vpop.f32.mrf.mxu0
      %v11600 = vadd.f32 0.0, %v11599
      %11601 = vdwg.mxu0
      %v11602 = vadd.f32 %v11154, %v11493
      %v11603 = vadd.f32 %v11155, %v11495
      %v11604 = vadd.f32 %v11156, %v11498
      %v11605 = vadd.f32 %v11157, %v11500
      %v11606 = vadd.f32 %v11158, %v11503
      %v11607 = vadd.f32 %v11159, %v11505
      %v11608 = vadd.f32 %v11160, %v11508
      %v11609 = vadd.f32 %v11161, %v11510
      %v11610 = vadd.f32 %v11162, %v11513
      %v11611 = vadd.f32 %v11163, %v11515
      %v11612 = vadd.f32 %v11164, %v11518
      %v11613 = vadd.f32 %v11165, %v11520
      %v11614 = vadd.f32 %v11166, %v11523
      %v11615 = vadd.f32 %v11167, %v11525
      %v11616 = vadd.f32 %v11168, %v11528
      %v11617 = vadd.f32 %v11169, %v11530
      %v11618 = vadd.f32 %v11170, %v11533
      %v11619 = vadd.f32 %v11171, %v11535
      %v11620 = vadd.f32 %v11172, %v11538
      %v11621 = vadd.f32 %v11173, %v11540
      %v11622 = vadd.f32 %v11174, %v11543
      %v11623 = vadd.f32 %v11175, %v11545
      %v11624 = vadd.f32 %v11176, %v11548
      %v11625 = vadd.f32 %v11177, %v11550
      %v11626 = vadd.f32 %v11178, %v11553
      %v11627 = vadd.f32 %v11179, %v11555
      %v11628 = vadd.f32 %v11180, %v11558
      %v11629 = vadd.f32 %v11181, %v11560
      %v11630 = vadd.f32 %v11182, %v11563
      %v11631 = vadd.f32 %v11183, %v11565
      %v11632 = vadd.f32 %v11184, %v11568
      %v11633 = vadd.f32 %v11185, %v11570
      %v11634 = vadd.f32 %v11186, %v11573
      %v11635 = vadd.f32 %v11187, %v11575
      %v11636 = vadd.f32 %v11188, %v11578
      %v11637 = vadd.f32 %v11189, %v11580
      %v11638 = vadd.f32 %v11190, %v11583
      %v11639 = vadd.f32 %v11191, %v11585
      %v11640 = vadd.f32 %v11192, %v11588
      %v11641 = vadd.f32 %v11193, %v11590
      %v11642 = vadd.f32 %v11194, %v11593
      %v11643 = vadd.f32 %v11195, %v11595
      %v11644 = vadd.f32 %v11196, %v11598
      %v11645 = vadd.f32 %v11197, %v11600
      %v11646 = vld [vmem:[#allocation2 + $0x44] sm:$0xe]
      %v11647 = vld [vmem:[#allocation2 + $0x48] sm:$0xf]
      %v11648 = vld [vmem:[#allocation2 + $0x4c] sm:$0xf]
      %v11649 = vld [vmem:[#allocation2 + $0x50] sm:$0xf]
      %v11650 = vld [vmem:[#allocation2 + $0x54] sm:$0xf]
      %v11651 = vld [vmem:[#allocation2 + $0x58] sm:$0xf]
      %v11652 = vld [vmem:[#allocation2 + $0x5c] sm:$0xf]
      %v11653 = vld [vmem:[#allocation2 + $0x60] sm:$0xf]
      %v11654 = vld [vmem:[#allocation2 + $0x64] sm:$0xf]
      %v11655 = vld [vmem:[#allocation2 + $0x68] sm:$0xf]
      %v11656 = vld [vmem:[#allocation2 + $0x6c] sm:$0xf]
      %v11657 = vld [vmem:[#allocation2 + $0x70] sm:$0xf]
      %v11658 = vld [vmem:[#allocation2 + $0x74] sm:$0xf]
      %v11659 = vld [vmem:[#allocation2 + $0x78] sm:$0xf]
      %v11660 = vld [vmem:[#allocation2 + $0x7c] sm:$0xf]
      %v11661 = vld [vmem:[#allocation2 + $0x80] sm:$0xf]
      %v11662 = vld [vmem:[#allocation2 + $0x84] sm:$0xf]
      %v11663 = vld [vmem:[#allocation2 + $0x88] sm:$0xf]
      %v11664 = vld [vmem:[#allocation2 + $0x8c] sm:$0xf]
      %v11665 = vld [vmem:[#allocation2 + $0x90] sm:$0xf]
      %v11666 = vld [vmem:[#allocation2 + $0x94] sm:$0xf]
      %v11667 = vld [vmem:[#allocation2 + $0x98] sm:$0xf]
      %v11668 = vld [vmem:[#allocation2 + $0x9c] sm:$0xf]
      %v11669 = vld [vmem:[#allocation2 + $0xa0] sm:$0xf]
      %v11670 = vld [vmem:[#allocation2 + $0xa4] sm:$0xf]
      %v11671 = vld [vmem:[#allocation2 + $0xa8] sm:$0xf]
      %v11672 = vld [vmem:[#allocation2 + $0xac] sm:$0xf]
      %v11673 = vld [vmem:[#allocation2 + $0xb0] sm:$0xf]
      %v11674 = vld [vmem:[#allocation2 + $0xb4] sm:$0xf]
      %v11675 = vld [vmem:[#allocation2 + $0xb8] sm:$0xf]
      %v11676 = vld [vmem:[#allocation2 + $0xbc] sm:$0xf]
      %v11677 = vld [vmem:[#allocation2 + $0xc0] sm:$0xf]
      %v11678 = vld [vmem:[#allocation2 + $0xc4] sm:$0xf]
      %v11679 = vld [vmem:[#allocation2 + $0xc8] sm:$0xf]
      %v11680 = vld [vmem:[#allocation2 + $0xcc] sm:$0xf]
      %v11681 = vld [vmem:[#allocation2 + $0xd0] sm:$0xf]
      %v11682 = vld [vmem:[#allocation2 + $0xd4] sm:$0xf]
      %v11683 = vld [vmem:[#allocation2 + $0xd8] sm:$0xf]
      %v11684 = vld [vmem:[#allocation2 + $0xdc] sm:$0xf]
      %v11685 = vld [vmem:[#allocation2 + $0xe0] sm:$0xf]
      %v11686 = vld [vmem:[#allocation2 + $0xe4] sm:$0xf]
      %v11687 = vld [vmem:[#allocation2 + $0xe8] sm:$0xf]
      %v11688 = vld [vmem:[#allocation2 + $0xec] sm:$0xf]
      %v11689 = vld [vmem:[#allocation2 + $0xf0] sm:$0xf]
      %v11690 = vld [vmem:[#allocation2 + $0xf4] sm:$0x1]
      %s11691 = scalar_lea.vmem %s4, 52
      %v11692 = vld [vmem:[%s11691] sm:$0x3]
      %v11738 = vunpack.c.l.b16 %v11646
      %v11739 = vunpack.c.l.b16 %v11647
      %v11740 = vunpack.c.l.b16 %v11648
      %v11741 = vunpack.c.l.b16 %v11649
      %v11742 = vunpack.c.l.b16 %v11650
      %v11743 = vunpack.c.l.b16 %v11651
      %v11744 = vunpack.c.l.b16 %v11652
      %v11745 = vunpack.c.l.b16 %v11653
      %v11746 = vunpack.c.l.b16 %v11654
      %v11747 = vunpack.c.l.b16 %v11655
      %v11748 = vunpack.c.l.b16 %v11656
      %v11749 = vunpack.c.l.b16 %v11657
      %v11750 = vunpack.c.l.b16 %v11658
      %v11751 = vunpack.c.l.b16 %v11659
      %v11752 = vunpack.c.l.b16 %v11660
      %v11753 = vunpack.c.l.b16 %v11661
      %v11754 = vunpack.c.l.b16 %v11662
      %v11755 = vunpack.c.l.b16 %v11663
      %v11756 = vunpack.c.l.b16 %v11664
      %v11757 = vunpack.c.l.b16 %v11665
      %v11758 = vunpack.c.l.b16 %v11666
      %v11759 = vunpack.c.l.b16 %v11667
      %v11760 = vunpack.c.l.b16 %v11668
      %v11761 = vunpack.c.l.b16 %v11669
      %v11762 = vunpack.c.l.b16 %v11670
      %v11763 = vunpack.c.l.b16 %v11671
      %v11764 = vunpack.c.l.b16 %v11672
      %v11765 = vunpack.c.l.b16 %v11673
      %v11766 = vunpack.c.l.b16 %v11674
      %v11767 = vunpack.c.l.b16 %v11675
      %v11768 = vunpack.c.l.b16 %v11676
      %v11769 = vunpack.c.l.b16 %v11677
      %v11770 = vunpack.c.l.b16 %v11678
      %v11771 = vunpack.c.l.b16 %v11679
      %v11772 = vunpack.c.l.b16 %v11680
      %v11773 = vunpack.c.l.b16 %v11681
      %v11774 = vunpack.c.l.b16 %v11682
      %v11775 = vunpack.c.l.b16 %v11683
      %v11776 = vunpack.c.l.b16 %v11684
      %v11777 = vunpack.c.l.b16 %v11685
      %v11778 = vunpack.c.l.b16 %v11686
      %v11779 = vunpack.c.l.b16 %v11687
      %v11780 = vunpack.c.l.b16 %v11688
      %v11781 = vunpack.c.l.b16 %v11689
      %v11782 = vunpack.c.l.b16 %v11690
      %v11783 = vpack.c.b16 %v11739, %v11738
      %v11784 = vpack.c.b16 %v11741, %v11740
      %v11785 = vpack.c.b16 %v11743, %v11742
      %v11786 = vpack.c.b16 %v11745, %v11744
      %v11787 = vpack.c.b16 %v11747, %v11746
      %v11788 = vpack.c.b16 %v11749, %v11748
      %v11789 = vpack.c.b16 %v11751, %v11750
      %v11790 = vpack.c.b16 %v11753, %v11752
      %v11791 = vpack.c.b16 %v11755, %v11754
      %v11792 = vpack.c.b16 %v11757, %v11756
      %v11793 = vpack.c.b16 %v11759, %v11758
      %v11794 = vpack.c.b16 %v11761, %v11760
      %v11795 = vpack.c.b16 %v11763, %v11762
      %v11796 = vpack.c.b16 %v11765, %v11764
      %v11797 = vpack.c.b16 %v11767, %v11766
      %v11798 = vpack.c.b16 %v11769, %v11768
      %v11799 = vpack.c.b16 %v11771, %v11770
      %v11800 = vpack.c.b16 %v11773, %v11772
      %v11801 = vpack.c.b16 %v11775, %v11774
      %v11802 = vpack.c.b16 %v11777, %v11776
      %v11803 = vpack.c.b16 %v11779, %v11778
      %v11804 = vpack.c.b16 %v11781, %v11780
      %v11805 = vpack.c.b16 %v11782, %v11782
      %v11806 = vrot.slane %v11783, 1
      %v11807 = vrot.slane %v11784, 1
      %v11808 = vsel %vm3685, %v11806, %v11807
      %v11809 = vrot.slane %v11785, 1
      %v11810 = vsel %vm3685, %v11807, %v11809
      %v11811 = vrot.slane %v11786, 1
      %v11812 = vsel %vm3685, %v11809, %v11811
      %v11813 = vrot.slane %v11787, 1
      %v11814 = vsel %vm3685, %v11811, %v11813
      %v11815 = vrot.slane %v11788, 1
      %v11816 = vsel %vm3685, %v11813, %v11815
      %v11817 = vrot.slane %v11789, 1
      %v11818 = vsel %vm3685, %v11815, %v11817
      %v11819 = vrot.slane %v11790, 1
      %v11820 = vsel %vm3685, %v11817, %v11819
      %v11821 = vrot.slane %v11791, 1
      %v11822 = vsel %vm3685, %v11819, %v11821
      %v11823 = vrot.slane %v11792, 1
      %v11824 = vsel %vm3685, %v11821, %v11823
      %v11825 = vrot.slane %v11793, 1
      %v11826 = vsel %vm3685, %v11823, %v11825
      %v11827 = vrot.slane %v11794, 1
      %v11828 = vsel %vm3685, %v11825, %v11827
      %v11829 = vrot.slane %v11795, 1
      %v11830 = vsel %vm3685, %v11827, %v11829
      %v11831 = vrot.slane %v11796, 1
      %v11832 = vsel %vm3685, %v11829, %v11831
      %v11833 = vrot.slane %v11797, 1
      %v11834 = vsel %vm3685, %v11831, %v11833
      %v11835 = vrot.slane %v11798, 1
      %v11836 = vsel %vm3685, %v11833, %v11835
      %v11837 = vrot.slane %v11799, 1
      %v11838 = vsel %vm3685, %v11835, %v11837
      %v11839 = vrot.slane %v11800, 1
      %v11840 = vsel %vm3685, %v11837, %v11839
      %v11841 = vrot.slane %v11801, 1
      %v11842 = vsel %vm3685, %v11839, %v11841
      %v11843 = vrot.slane %v11802, 1
      %v11844 = vsel %vm3685, %v11841, %v11843
      %v11845 = vrot.slane %v11803, 1
      %v11846 = vsel %vm3685, %v11843, %v11845
      %v11847 = vrot.slane %v11804, 1
      %v11848 = vsel %vm3685, %v11845, %v11847
      %v11849 = vrot.slane %v11805, 1
      %v11850 = vsel %vm3685, %v11847, %v11849
      %v11852 = vsel %vm1291, %v11808, 0
      %v11855 = vsel %vm1291, %v11810, 0
      %v11858 = vsel %vm1291, %v11812, 0
      %v11861 = vsel %vm1291, %v11814, 0
      %v11864 = vsel %vm1291, %v11816, 0
      %v11867 = vsel %vm1291, %v11818, 0
      %v11870 = vsel %vm1291, %v11820, 0
      %v11873 = vsel %vm1291, %v11822, 0
      %v11876 = vsel %vm1291, %v11824, 0
      %v11879 = vsel %vm1291, %v11826, 0
      %v11882 = vsel %vm1291, %v11828, 0
      %v11885 = vsel %vm1291, %v11830, 0
      %v11888 = vsel %vm1291, %v11832, 0
      %v11891 = vsel %vm1291, %v11834, 0
      %v11894 = vsel %vm1291, %v11836, 0
      %v11897 = vsel %vm1291, %v11838, 0
      %v11900 = vsel %vm1291, %v11840, 0
      %v11903 = vsel %vm1291, %v11842, 0
      %v11906 = vsel %vm1291, %v11844, 0
      %v11909 = vsel %vm1291, %v11846, 0
      %v11912 = vsel %vm1291, %v11848, 0
      %v11915 = vsel %vm1291, %v11850, 0
      %v11918 = vsel %vm1358, %v11692, 0
      %11920 = vmatpush.bf16.msra.mxu0 0
      %11921 = vmatpush.bf16.msra.mxu0 0
      %11922 = vmatpush.bf16.msra.mxu0 0
      %11923 = vmatpush.bf16.msra.mxu0 0
      %11924 = vmatpush.bf16.msra.mxu0 0
      %11925 = vmatpush.bf16.msra.mxu0 0
      %11926 = vmatpush.bf16.msra.mxu0 0
      %11927 = vmatpush.bf16.msra.mxu0 %v11918
      %11928 = vmatmul.bf16.gmra.mxu0 %v11852
      %v11929 = vpop.f32.mrf.mxu0
      %v11930 = vadd.f32 0.0, %v11929
      %v11931 = vpop.f32.mrf.mxu0
      %v11932 = vadd.f32 0.0, %v11931
      %11933 = vmatmul.bf16.gmra.mxu0 %v11855
      %v11934 = vpop.f32.mrf.mxu0
      %v11935 = vadd.f32 0.0, %v11934
      %v11936 = vpop.f32.mrf.mxu0
      %v11937 = vadd.f32 0.0, %v11936
      %11938 = vmatmul.bf16.gmra.mxu0 %v11858
      %v11939 = vpop.f32.mrf.mxu0
      %v11940 = vadd.f32 0.0, %v11939
      %v11941 = vpop.f32.mrf.mxu0
      %v11942 = vadd.f32 0.0, %v11941
      %11943 = vmatmul.bf16.gmra.mxu0 %v11861
      %v11944 = vpop.f32.mrf.mxu0
      %v11945 = vadd.f32 0.0, %v11944
      %v11946 = vpop.f32.mrf.mxu0
      %v11947 = vadd.f32 0.0, %v11946
      %11948 = vmatmul.bf16.gmra.mxu0 %v11864
      %v11949 = vpop.f32.mrf.mxu0
      %v11950 = vadd.f32 0.0, %v11949
      %v11951 = vpop.f32.mrf.mxu0
      %v11952 = vadd.f32 0.0, %v11951
      %11953 = vmatmul.bf16.gmra.mxu0 %v11867
      %v11954 = vpop.f32.mrf.mxu0
      %v11955 = vadd.f32 0.0, %v11954
      %v11956 = vpop.f32.mrf.mxu0
      %v11957 = vadd.f32 0.0, %v11956
      %11958 = vmatmul.bf16.gmra.mxu0 %v11870
      %v11959 = vpop.f32.mrf.mxu0
      %v11960 = vadd.f32 0.0, %v11959
      %v11961 = vpop.f32.mrf.mxu0
      %v11962 = vadd.f32 0.0, %v11961
      %11963 = vmatmul.bf16.gmra.mxu0 %v11873
      %v11964 = vpop.f32.mrf.mxu0
      %v11965 = vadd.f32 0.0, %v11964
      %v11966 = vpop.f32.mrf.mxu0
      %v11967 = vadd.f32 0.0, %v11966
      %11968 = vmatmul.bf16.gmra.mxu0 %v11876
      %v11969 = vpop.f32.mrf.mxu0
      %v11970 = vadd.f32 0.0, %v11969
      %v11971 = vpop.f32.mrf.mxu0
      %v11972 = vadd.f32 0.0, %v11971
      %11973 = vmatmul.bf16.gmra.mxu0 %v11879
      %v11974 = vpop.f32.mrf.mxu0
      %v11975 = vadd.f32 0.0, %v11974
      %v11976 = vpop.f32.mrf.mxu0
      %v11977 = vadd.f32 0.0, %v11976
      %11978 = vmatmul.bf16.gmra.mxu0 %v11882
      %v11979 = vpop.f32.mrf.mxu0
      %v11980 = vadd.f32 0.0, %v11979
      %v11981 = vpop.f32.mrf.mxu0
      %v11982 = vadd.f32 0.0, %v11981
      %11983 = vmatmul.bf16.gmra.mxu0 %v11885
      %v11984 = vpop.f32.mrf.mxu0
      %v11985 = vadd.f32 0.0, %v11984
      %v11986 = vpop.f32.mrf.mxu0
      %v11987 = vadd.f32 0.0, %v11986
      %11988 = vmatmul.bf16.gmra.mxu0 %v11888
      %v11989 = vpop.f32.mrf.mxu0
      %v11990 = vadd.f32 0.0, %v11989
      %v11991 = vpop.f32.mrf.mxu0
      %v11992 = vadd.f32 0.0, %v11991
      %11993 = vmatmul.bf16.gmra.mxu0 %v11891
      %v11994 = vpop.f32.mrf.mxu0
      %v11995 = vadd.f32 0.0, %v11994
      %v11996 = vpop.f32.mrf.mxu0
      %v11997 = vadd.f32 0.0, %v11996
      %11998 = vmatmul.bf16.gmra.mxu0 %v11894
      %v11999 = vpop.f32.mrf.mxu0
      %v12000 = vadd.f32 0.0, %v11999
      %v12001 = vpop.f32.mrf.mxu0
      %v12002 = vadd.f32 0.0, %v12001
      %12003 = vmatmul.bf16.gmra.mxu0 %v11897
      %v12004 = vpop.f32.mrf.mxu0
      %v12005 = vadd.f32 0.0, %v12004
      %v12006 = vpop.f32.mrf.mxu0
      %v12007 = vadd.f32 0.0, %v12006
      %12008 = vmatmul.bf16.gmra.mxu0 %v11900
      %v12009 = vpop.f32.mrf.mxu0
      %v12010 = vadd.f32 0.0, %v12009
      %v12011 = vpop.f32.mrf.mxu0
      %v12012 = vadd.f32 0.0, %v12011
      %12013 = vmatmul.bf16.gmra.mxu0 %v11903
      %v12014 = vpop.f32.mrf.mxu0
      %v12015 = vadd.f32 0.0, %v12014
      %v12016 = vpop.f32.mrf.mxu0
      %v12017 = vadd.f32 0.0, %v12016
      %12018 = vmatmul.bf16.gmra.mxu0 %v11906
      %v12019 = vpop.f32.mrf.mxu0
      %v12020 = vadd.f32 0.0, %v12019
      %v12021 = vpop.f32.mrf.mxu0
      %v12022 = vadd.f32 0.0, %v12021
      %12023 = vmatmul.bf16.gmra.mxu0 %v11909
      %v12024 = vpop.f32.mrf.mxu0
      %v12025 = vadd.f32 0.0, %v12024
      %v12026 = vpop.f32.mrf.mxu0
      %v12027 = vadd.f32 0.0, %v12026
      %12028 = vmatmul.bf16.gmra.mxu0 %v11912
      %v12029 = vpop.f32.mrf.mxu0
      %v12030 = vadd.f32 0.0, %v12029
      %v12031 = vpop.f32.mrf.mxu0
      %v12032 = vadd.f32 0.0, %v12031
      %12033 = vmatmul.bf16.gmra.mxu0 %v11915
      %v12034 = vpop.f32.mrf.mxu0
      %v12035 = vadd.f32 0.0, %v12034
      %v12036 = vpop.f32.mrf.mxu0
      %v12037 = vadd.f32 0.0, %v12036
      %12038 = vdwg.mxu0
      %v12039 = vadd.f32 %v11602, %v11930
      %v12040 = vadd.f32 %v11603, %v11932
      %v12041 = vadd.f32 %v11604, %v11935
      %v12042 = vadd.f32 %v11605, %v11937
      %v12043 = vadd.f32 %v11606, %v11940
      %v12044 = vadd.f32 %v11607, %v11942
      %v12045 = vadd.f32 %v11608, %v11945
      %v12046 = vadd.f32 %v11609, %v11947
      %v12047 = vadd.f32 %v11610, %v11950
      %v12048 = vadd.f32 %v11611, %v11952
      %v12049 = vadd.f32 %v11612, %v11955
      %v12050 = vadd.f32 %v11613, %v11957
      %v12051 = vadd.f32 %v11614, %v11960
      %v12052 = vadd.f32 %v11615, %v11962
      %v12053 = vadd.f32 %v11616, %v11965
      %v12054 = vadd.f32 %v11617, %v11967
      %v12055 = vadd.f32 %v11618, %v11970
      %v12056 = vadd.f32 %v11619, %v11972
      %v12057 = vadd.f32 %v11620, %v11975
      %v12058 = vadd.f32 %v11621, %v11977
      %v12059 = vadd.f32 %v11622, %v11980
      %v12060 = vadd.f32 %v11623, %v11982
      %v12061 = vadd.f32 %v11624, %v11985
      %v12062 = vadd.f32 %v11625, %v11987
      %v12063 = vadd.f32 %v11626, %v11990
      %v12064 = vadd.f32 %v11627, %v11992
      %v12065 = vadd.f32 %v11628, %v11995
      %v12066 = vadd.f32 %v11629, %v11997
      %v12067 = vadd.f32 %v11630, %v12000
      %v12068 = vadd.f32 %v11631, %v12002
      %v12069 = vadd.f32 %v11632, %v12005
      %v12070 = vadd.f32 %v11633, %v12007
      %v12071 = vadd.f32 %v11634, %v12010
      %v12072 = vadd.f32 %v11635, %v12012
      %v12073 = vadd.f32 %v11636, %v12015
      %v12074 = vadd.f32 %v11637, %v12017
      %v12075 = vadd.f32 %v11638, %v12020
      %v12076 = vadd.f32 %v11639, %v12022
      %v12077 = vadd.f32 %v11640, %v12025
      %v12078 = vadd.f32 %v11641, %v12027
      %v12079 = vadd.f32 %v11642, %v12030
      %v12080 = vadd.f32 %v11643, %v12032
      %v12081 = vadd.f32 %v11644, %v12035
      %v12082 = vadd.f32 %v11645, %v12037
      %s12083 = scalar_lea.vmem %s5, 2
      %v12084 = vld [vmem:[%s12083] sm:$0x1]
      %v12086 = vperm.slane %v12084, 0
      %v12088 = vadd.f32 %v12039, %v12086
      %v12089 = vadd.f32 %v12040, %v12086
      %v12090 = vadd.f32 %v12041, %v12086
      %v12091 = vadd.f32 %v12042, %v12086
      %v12092 = vadd.f32 %v12043, %v12086
      %v12093 = vadd.f32 %v12044, %v12086
      %v12094 = vadd.f32 %v12045, %v12086
      %v12095 = vadd.f32 %v12046, %v12086
      %v12096 = vadd.f32 %v12047, %v12086
      %v12097 = vadd.f32 %v12048, %v12086
      %v12098 = vadd.f32 %v12049, %v12086
      %v12099 = vadd.f32 %v12050, %v12086
      %v12100 = vadd.f32 %v12051, %v12086
      %v12101 = vadd.f32 %v12052, %v12086
      %v12102 = vadd.f32 %v12053, %v12086
      %v12103 = vadd.f32 %v12054, %v12086
      %v12104 = vadd.f32 %v12055, %v12086
      %v12105 = vadd.f32 %v12056, %v12086
      %v12106 = vadd.f32 %v12057, %v12086
      %v12107 = vadd.f32 %v12058, %v12086
      %v12108 = vadd.f32 %v12059, %v12086
      %v12109 = vadd.f32 %v12060, %v12086
      %v12110 = vadd.f32 %v12061, %v12086
      %v12111 = vadd.f32 %v12062, %v12086
      %v12112 = vadd.f32 %v12063, %v12086
      %v12113 = vadd.f32 %v12064, %v12086
      %v12114 = vadd.f32 %v12065, %v12086
      %v12115 = vadd.f32 %v12066, %v12086
      %v12116 = vadd.f32 %v12067, %v12086
      %v12117 = vadd.f32 %v12068, %v12086
      %v12118 = vadd.f32 %v12069, %v12086
      %v12119 = vadd.f32 %v12070, %v12086
      %v12120 = vadd.f32 %v12071, %v12086
      %v12121 = vadd.f32 %v12072, %v12086
      %v12122 = vadd.f32 %v12073, %v12086
      %v12123 = vadd.f32 %v12074, %v12086
      %v12124 = vadd.f32 %v12075, %v12086
      %v12125 = vadd.f32 %v12076, %v12086
      %v12126 = vadd.f32 %v12077, %v12086
      %v12127 = vadd.f32 %v12078, %v12086
      %v12128 = vadd.f32 %v12079, %v12086
      %v12129 = vadd.f32 %v12080, %v12086
      %v12130 = vadd.f32 %v12081, %v12086
      %v12131 = vadd.f32 %v12082, %v12086
      %v12132 = vmax.f32 %v12088, 0.0
      %v12133 = vmax.f32 %v12089, 0.0
      %v12134 = vmax.f32 %v12090, 0.0
      %v12135 = vmax.f32 %v12091, 0.0
      %v12136 = vmax.f32 %v12092, 0.0
      %v12137 = vmax.f32 %v12093, 0.0
      %v12138 = vmax.f32 %v12094, 0.0
      %v12139 = vmax.f32 %v12095, 0.0
      %v12140 = vmax.f32 %v12096, 0.0
      %v12141 = vmax.f32 %v12097, 0.0
      %v12142 = vmax.f32 %v12098, 0.0
      %v12143 = vmax.f32 %v12099, 0.0
      %v12144 = vmax.f32 %v12100, 0.0
      %v12145 = vmax.f32 %v12101, 0.0
      %v12146 = vmax.f32 %v12102, 0.0
      %v12147 = vmax.f32 %v12103, 0.0
      %v12148 = vmax.f32 %v12104, 0.0
      %v12149 = vmax.f32 %v12105, 0.0
      %v12150 = vmax.f32 %v12106, 0.0
      %v12151 = vmax.f32 %v12107, 0.0
      %v12152 = vmax.f32 %v12108, 0.0
      %v12153 = vmax.f32 %v12109, 0.0
      %v12154 = vmax.f32 %v12110, 0.0
      %v12155 = vmax.f32 %v12111, 0.0
      %v12156 = vmax.f32 %v12112, 0.0
      %v12157 = vmax.f32 %v12113, 0.0
      %v12158 = vmax.f32 %v12114, 0.0
      %v12159 = vmax.f32 %v12115, 0.0
      %v12160 = vmax.f32 %v12116, 0.0
      %v12161 = vmax.f32 %v12117, 0.0
      %v12162 = vmax.f32 %v12118, 0.0
      %v12163 = vmax.f32 %v12119, 0.0
      %v12164 = vmax.f32 %v12120, 0.0
      %v12165 = vmax.f32 %v12121, 0.0
      %v12166 = vmax.f32 %v12122, 0.0
      %v12167 = vmax.f32 %v12123, 0.0
      %v12168 = vmax.f32 %v12124, 0.0
      %v12169 = vmax.f32 %v12125, 0.0
      %v12170 = vmax.f32 %v12126, 0.0
      %v12171 = vmax.f32 %v12127, 0.0
      %v12172 = vmax.f32 %v12128, 0.0
      %v12173 = vmax.f32 %v12129, 0.0
      %v12174 = vmax.f32 %v12130, 0.0
      %v12175 = vmax.f32 %v12131, 0.0
      %v12176 = vpack.c.bf16 %v12133, %v12132
      %v12177 = vpack.c.bf16 %v12135, %v12134
      %v12178 = vpack.c.bf16 %v12137, %v12136
      %v12179 = vpack.c.bf16 %v12139, %v12138
      %v12180 = vpack.c.bf16 %v12141, %v12140
      %v12181 = vpack.c.bf16 %v12143, %v12142
      %v12182 = vpack.c.bf16 %v12145, %v12144
      %v12183 = vpack.c.bf16 %v12147, %v12146
      %v12184 = vpack.c.bf16 %v12149, %v12148
      %v12185 = vpack.c.bf16 %v12151, %v12150
      %v12186 = vpack.c.bf16 %v12153, %v12152
      %v12187 = vpack.c.bf16 %v12155, %v12154
      %v12188 = vpack.c.bf16 %v12157, %v12156
      %v12189 = vpack.c.bf16 %v12159, %v12158
      %v12190 = vpack.c.bf16 %v12161, %v12160
      %v12191 = vpack.c.bf16 %v12163, %v12162
      %v12192 = vpack.c.bf16 %v12165, %v12164
      %v12193 = vpack.c.bf16 %v12167, %v12166
      %v12194 = vpack.c.bf16 %v12169, %v12168
      %v12195 = vpack.c.bf16 %v12171, %v12170
      %v12196 = vpack.c.bf16 %v12173, %v12172
      %v12197 = vpack.c.bf16 %v12175, %v12174
      %s12198 = scalar_lea.vmem %s7, 4
      %v12199 = vld [vmem:[%s12198] sm:$0x3]
      %v12201 = vsel %vm1291, %v12176, 0
      %v12204 = vsel %vm1291, %v12177, 0
      %v12207 = vsel %vm1291, %v12178, 0
      %v12210 = vsel %vm1291, %v12179, 0
      %v12213 = vsel %vm1291, %v12180, 0
      %v12216 = vsel %vm1291, %v12181, 0
      %v12219 = vsel %vm1291, %v12182, 0
      %v12222 = vsel %vm1291, %v12183, 0
      %v12225 = vsel %vm1291, %v12184, 0
      %v12228 = vsel %vm1291, %v12185, 0
      %v12231 = vsel %vm1291, %v12186, 0
      %v12234 = vsel %vm1291, %v12187, 0
      %v12237 = vsel %vm1291, %v12188, 0
      %v12240 = vsel %vm1291, %v12189, 0
      %v12243 = vsel %vm1291, %v12190, 0
      %v12246 = vsel %vm1291, %v12191, 0
      %v12249 = vsel %vm1291, %v12192, 0
      %v12252 = vsel %vm1291, %v12193, 0
      %v12255 = vsel %vm1291, %v12194, 0
      %v12258 = vsel %vm1291, %v12195, 0
      %v12261 = vsel %vm1291, %v12196, 0
      %v12264 = vsel %vm1291, %v12197, 0
      %v12267 = vsel %vm1358, %v12199, 0
      %12269 = vmatpush.bf16.msra.mxu0 0
      %12270 = vmatpush.bf16.msra.mxu0 0
      %12271 = vmatpush.bf16.msra.mxu0 0
      %12272 = vmatpush.bf16.msra.mxu0 0
      %12273 = vmatpush.bf16.msra.mxu0 0
      %12274 = vmatpush.bf16.msra.mxu0 0
      %12275 = vmatpush.bf16.msra.mxu0 0
      %12276 = vmatpush.bf16.msra.mxu0 %v12267
      %12277 = vmatmul.bf16.gmra.mxu0 %v12201
      %v12278 = vpop.f32.mrf.mxu0
      %v12279 = vadd.f32 0.0, %v12278
      %v12280 = vpop.f32.mrf.mxu0
      %v12281 = vadd.f32 0.0, %v12280
      %12282 = vmatmul.bf16.gmra.mxu0 %v12204
      %v12283 = vpop.f32.mrf.mxu0
      %v12284 = vadd.f32 0.0, %v12283
      %v12285 = vpop.f32.mrf.mxu0
      %v12286 = vadd.f32 0.0, %v12285
      %12287 = vmatmul.bf16.gmra.mxu0 %v12207
      %v12288 = vpop.f32.mrf.mxu0
      %v12289 = vadd.f32 0.0, %v12288
      %v12290 = vpop.f32.mrf.mxu0
      %v12291 = vadd.f32 0.0, %v12290
      %12292 = vmatmul.bf16.gmra.mxu0 %v12210
      %v12293 = vpop.f32.mrf.mxu0
      %v12294 = vadd.f32 0.0, %v12293
      %v12295 = vpop.f32.mrf.mxu0
      %v12296 = vadd.f32 0.0, %v12295
      %12297 = vmatmul.bf16.gmra.mxu0 %v12213
      %v12298 = vpop.f32.mrf.mxu0
      %v12299 = vadd.f32 0.0, %v12298
      %v12300 = vpop.f32.mrf.mxu0
      %v12301 = vadd.f32 0.0, %v12300
      %12302 = vmatmul.bf16.gmra.mxu0 %v12216
      %v12303 = vpop.f32.mrf.mxu0
      %v12304 = vadd.f32 0.0, %v12303
      %v12305 = vpop.f32.mrf.mxu0
      %v12306 = vadd.f32 0.0, %v12305
      %12307 = vmatmul.bf16.gmra.mxu0 %v12219
      %v12308 = vpop.f32.mrf.mxu0
      %v12309 = vadd.f32 0.0, %v12308
      %v12310 = vpop.f32.mrf.mxu0
      %v12311 = vadd.f32 0.0, %v12310
      %12312 = vmatmul.bf16.gmra.mxu0 %v12222
      %v12313 = vpop.f32.mrf.mxu0
      %v12314 = vadd.f32 0.0, %v12313
      %v12315 = vpop.f32.mrf.mxu0
      %v12316 = vadd.f32 0.0, %v12315
      %12317 = vmatmul.bf16.gmra.mxu0 %v12225
      %v12318 = vpop.f32.mrf.mxu0
      %v12319 = vadd.f32 0.0, %v12318
      %v12320 = vpop.f32.mrf.mxu0
      %v12321 = vadd.f32 0.0, %v12320
      %12322 = vmatmul.bf16.gmra.mxu0 %v12228
      %v12323 = vpop.f32.mrf.mxu0
      %v12324 = vadd.f32 0.0, %v12323
      %v12325 = vpop.f32.mrf.mxu0
      %v12326 = vadd.f32 0.0, %v12325
      %12327 = vmatmul.bf16.gmra.mxu0 %v12231
      %v12328 = vpop.f32.mrf.mxu0
      %v12329 = vadd.f32 0.0, %v12328
      %v12330 = vpop.f32.mrf.mxu0
      %v12331 = vadd.f32 0.0, %v12330
      %12332 = vmatmul.bf16.gmra.mxu0 %v12234
      %v12333 = vpop.f32.mrf.mxu0
      %v12334 = vadd.f32 0.0, %v12333
      %v12335 = vpop.f32.mrf.mxu0
      %v12336 = vadd.f32 0.0, %v12335
      %12337 = vmatmul.bf16.gmra.mxu0 %v12237
      %v12338 = vpop.f32.mrf.mxu0
      %v12339 = vadd.f32 0.0, %v12338
      %v12340 = vpop.f32.mrf.mxu0
      %v12341 = vadd.f32 0.0, %v12340
      %12342 = vmatmul.bf16.gmra.mxu0 %v12240
      %v12343 = vpop.f32.mrf.mxu0
      %v12344 = vadd.f32 0.0, %v12343
      %v12345 = vpop.f32.mrf.mxu0
      %v12346 = vadd.f32 0.0, %v12345
      %12347 = vmatmul.bf16.gmra.mxu0 %v12243
      %v12348 = vpop.f32.mrf.mxu0
      %v12349 = vadd.f32 0.0, %v12348
      %v12350 = vpop.f32.mrf.mxu0
      %v12351 = vadd.f32 0.0, %v12350
      %12352 = vmatmul.bf16.gmra.mxu0 %v12246
      %v12353 = vpop.f32.mrf.mxu0
      %v12354 = vadd.f32 0.0, %v12353
      %v12355 = vpop.f32.mrf.mxu0
      %v12356 = vadd.f32 0.0, %v12355
      %12357 = vmatmul.bf16.gmra.mxu0 %v12249
      %v12358 = vpop.f32.mrf.mxu0
      %v12359 = vadd.f32 0.0, %v12358
      %v12360 = vpop.f32.mrf.mxu0
      %v12361 = vadd.f32 0.0, %v12360
      %12362 = vmatmul.bf16.gmra.mxu0 %v12252
      %v12363 = vpop.f32.mrf.mxu0
      %v12364 = vadd.f32 0.0, %v12363
      %v12365 = vpop.f32.mrf.mxu0
      %v12366 = vadd.f32 0.0, %v12365
      %12367 = vmatmul.bf16.gmra.mxu0 %v12255
      %v12368 = vpop.f32.mrf.mxu0
      %v12369 = vadd.f32 0.0, %v12368
      %v12370 = vpop.f32.mrf.mxu0
      %v12371 = vadd.f32 0.0, %v12370
      %12372 = vmatmul.bf16.gmra.mxu0 %v12258
      %v12373 = vpop.f32.mrf.mxu0
      %v12374 = vadd.f32 0.0, %v12373
      %v12375 = vpop.f32.mrf.mxu0
      %v12376 = vadd.f32 0.0, %v12375
      %12377 = vmatmul.bf16.gmra.mxu0 %v12261
      %v12378 = vpop.f32.mrf.mxu0
      %v12379 = vadd.f32 0.0, %v12378
      %v12380 = vpop.f32.mrf.mxu0
      %v12381 = vadd.f32 0.0, %v12380
      %12382 = vmatmul.bf16.gmra.mxu0 %v12264
      %v12383 = vpop.f32.mrf.mxu0
      %v12384 = vadd.f32 0.0, %v12383
      %v12385 = vpop.f32.mrf.mxu0
      %v12386 = vadd.f32 0.0, %v12385
      %12387 = vdwg.mxu0
      %v12388 = vadd.f32 %v8996, %v12279
      %v12389 = vadd.f32 %v8997, %v12281
      %v12390 = vadd.f32 %v8998, %v12284
      %v12391 = vadd.f32 %v8999, %v12286
      %v12392 = vadd.f32 %v9000, %v12289
      %v12393 = vadd.f32 %v9001, %v12291
      %v12394 = vadd.f32 %v9002, %v12294
      %v12395 = vadd.f32 %v9003, %v12296
      %v12396 = vadd.f32 %v9004, %v12299
      %v12397 = vadd.f32 %v9005, %v12301
      %v12398 = vadd.f32 %v9006, %v12304
      %v12399 = vadd.f32 %v9007, %v12306
      %v12400 = vadd.f32 %v9008, %v12309
      %v12401 = vadd.f32 %v9009, %v12311
      %v12402 = vadd.f32 %v9010, %v12314
      %v12403 = vadd.f32 %v9011, %v12316
      %v12404 = vadd.f32 %v9012, %v12319
      %v12405 = vadd.f32 %v9013, %v12321
      %v12406 = vadd.f32 %v9014, %v12324
      %v12407 = vadd.f32 %v9015, %v12326
      %v12408 = vadd.f32 %v9016, %v12329
      %v12409 = vadd.f32 %v9017, %v12331
      %v12410 = vadd.f32 %v9018, %v12334
      %v12411 = vadd.f32 %v9019, %v12336
      %v12412 = vadd.f32 %v9020, %v12339
      %v12413 = vadd.f32 %v9021, %v12341
      %v12414 = vadd.f32 %v9022, %v12344
      %v12415 = vadd.f32 %v9023, %v12346
      %v12416 = vadd.f32 %v9024, %v12349
      %v12417 = vadd.f32 %v9025, %v12351
      %v12418 = vadd.f32 %v9026, %v12354
      %v12419 = vadd.f32 %v9027, %v12356
      %v12420 = vadd.f32 %v9028, %v12359
      %v12421 = vadd.f32 %v9029, %v12361
      %v12422 = vadd.f32 %v9030, %v12364
      %v12423 = vadd.f32 %v9031, %v12366
      %v12424 = vadd.f32 %v9032, %v12369
      %v12425 = vadd.f32 %v9033, %v12371
      %v12426 = vadd.f32 %v9034, %v12374
      %v12427 = vadd.f32 %v9035, %v12376
      %v12428 = vadd.f32 %v9036, %v12379
      %v12429 = vadd.f32 %v9037, %v12381
      %v12430 = vadd.f32 %v9038, %v12384
      %v12431 = vadd.f32 %v9039, %v12386
      %v12432 = vmax.f32 %v12388, 0.0
      %v12433 = vmax.f32 %v12389, 0.0
      %v12434 = vmax.f32 %v12390, 0.0
      %v12435 = vmax.f32 %v12391, 0.0
      %v12436 = vmax.f32 %v12392, 0.0
      %v12437 = vmax.f32 %v12393, 0.0
      %v12438 = vmax.f32 %v12394, 0.0
      %v12439 = vmax.f32 %v12395, 0.0
      %v12440 = vmax.f32 %v12396, 0.0
      %v12441 = vmax.f32 %v12397, 0.0
      %v12442 = vmax.f32 %v12398, 0.0
      %v12443 = vmax.f32 %v12399, 0.0
      %v12444 = vmax.f32 %v12400, 0.0
      %v12445 = vmax.f32 %v12401, 0.0
      %v12446 = vmax.f32 %v12402, 0.0
      %v12447 = vmax.f32 %v12403, 0.0
      %v12448 = vmax.f32 %v12404, 0.0
      %v12449 = vmax.f32 %v12405, 0.0
      %v12450 = vmax.f32 %v12406, 0.0
      %v12451 = vmax.f32 %v12407, 0.0
      %v12452 = vmax.f32 %v12408, 0.0
      %v12453 = vmax.f32 %v12409, 0.0
      %v12454 = vmax.f32 %v12410, 0.0
      %v12455 = vmax.f32 %v12411, 0.0
      %v12456 = vmax.f32 %v12412, 0.0
      %v12457 = vmax.f32 %v12413, 0.0
      %v12458 = vmax.f32 %v12414, 0.0
      %v12459 = vmax.f32 %v12415, 0.0
      %v12460 = vmax.f32 %v12416, 0.0
      %v12461 = vmax.f32 %v12417, 0.0
      %v12462 = vmax.f32 %v12418, 0.0
      %v12463 = vmax.f32 %v12419, 0.0
      %v12464 = vmax.f32 %v12420, 0.0
      %v12465 = vmax.f32 %v12421, 0.0
      %v12466 = vmax.f32 %v12422, 0.0
      %v12467 = vmax.f32 %v12423, 0.0
      %v12468 = vmax.f32 %v12424, 0.0
      %v12469 = vmax.f32 %v12425, 0.0
      %v12470 = vmax.f32 %v12426, 0.0
      %v12471 = vmax.f32 %v12427, 0.0
      %v12472 = vmax.f32 %v12428, 0.0
      %v12473 = vmax.f32 %v12429, 0.0
      %v12474 = vmax.f32 %v12430, 0.0
      %v12475 = vmax.f32 %v12431, 0.0
      %v12520 = vrot.slane %v12432, 2
      %v12521 = vrot.slane %v12432, 4
      %v12522 = vrot.slane %v12432, 6
      %v12523 = vrot.slane %v12433, 2
      %v12524 = vrot.slane %v12433, 4
      %v12525 = vrot.slane %v12433, 6
      %v12526 = vrot.slane %v12434, 6
      %v12527 = vrot.slane %v12435, 2
      %v12528 = vrot.slane %v12435, 4
      %v12529 = vrot.slane %v12435, 6
      %v12530 = vrot.slane %v12436, 2
      %v12531 = vrot.slane %v12436, 4
      %v12532 = vrot.slane %v12437, 4
      %v12533 = vrot.slane %v12437, 6
      %v12534 = vrot.slane %v12438, 2
      %v12535 = vrot.slane %v12438, 4
      %v12536 = vrot.slane %v12438, 6
      %v12537 = vrot.slane %v12439, 2
      %v12538 = vrot.slane %v12440, 2
      %v12539 = vrot.slane %v12440, 4
      %v12540 = vrot.slane %v12440, 6
      %v12541 = vrot.slane %v12441, 2
      %v12542 = vrot.slane %v12441, 4
      %v12543 = vrot.slane %v12441, 6
      %v12544 = vrot.slane %v12443, 2
      %v12545 = vrot.slane %v12443, 4
      %v12546 = vrot.slane %v12443, 6
      %v12547 = vrot.slane %v12444, 2
      %v12548 = vrot.slane %v12444, 4
      %v12549 = vrot.slane %v12444, 6
      %v12550 = vrot.slane %v12445, 6
      %v12551 = vrot.slane %v12446, 2
      %v12552 = vrot.slane %v12446, 4
      %v12553 = vrot.slane %v12446, 6
      %v12554 = vrot.slane %v12447, 2
      %v12555 = vrot.slane %v12447, 4
      %v12556 = vrot.slane %v12448, 4
      %v12557 = vrot.slane %v12448, 6
      %v12558 = vrot.slane %v12449, 2
      %v12559 = vrot.slane %v12449, 4
      %v12560 = vrot.slane %v12449, 6
      %v12561 = vrot.slane %v12450, 2
      %v12562 = vrot.slane %v12451, 2
      %v12563 = vrot.slane %v12451, 4
      %v12564 = vrot.slane %v12451, 6
      %v12565 = vrot.slane %v12452, 2
      %v12566 = vrot.slane %v12452, 4
      %v12567 = vrot.slane %v12452, 6
      %v12568 = vrot.slane %v12454, 2
      %v12569 = vrot.slane %v12454, 4
      %v12570 = vrot.slane %v12454, 6
      %v12571 = vrot.slane %v12455, 2
      %v12572 = vrot.slane %v12455, 4
      %v12573 = vrot.slane %v12455, 6
      %v12574 = vrot.slane %v12456, 6
      %v12575 = vrot.slane %v12457, 2
      %v12576 = vrot.slane %v12457, 4
      %v12577 = vrot.slane %v12457, 6
      %v12578 = vrot.slane %v12458, 2
      %v12579 = vrot.slane %v12458, 4
      %v12580 = vrot.slane %v12459, 4
      %v12581 = vrot.slane %v12459, 6
      %v12582 = vrot.slane %v12460, 2
      %v12583 = vrot.slane %v12460, 4
      %v12584 = vrot.slane %v12460, 6
      %v12585 = vrot.slane %v12461, 2
      %v12586 = vrot.slane %v12462, 2
      %v12587 = vrot.slane %v12462, 4
      %v12588 = vrot.slane %v12462, 6
      %v12589 = vrot.slane %v12463, 2
      %v12590 = vrot.slane %v12463, 4
      %v12591 = vrot.slane %v12463, 6
      %v12592 = vrot.slane %v12465, 2
      %v12593 = vrot.slane %v12465, 4
      %v12594 = vrot.slane %v12465, 6
      %v12595 = vrot.slane %v12466, 2
      %v12596 = vrot.slane %v12466, 4
      %v12597 = vrot.slane %v12466, 6
      %v12598 = vrot.slane %v12467, 6
      %v12599 = vrot.slane %v12468, 2
      %v12600 = vrot.slane %v12468, 4
      %v12601 = vrot.slane %v12468, 6
      %v12602 = vrot.slane %v12469, 2
      %v12603 = vrot.slane %v12469, 4
      %v12604 = vrot.slane %v12470, 4
      %v12605 = vrot.slane %v12470, 6
      %v12606 = vrot.slane %v12471, 2
      %v12607 = vrot.slane %v12471, 4
      %v12608 = vrot.slane %v12471, 6
      %v12609 = vrot.slane %v12472, 2
      %v12610 = vrot.slane %v12473, 2
      %v12611 = vrot.slane %v12473, 4
      %v12612 = vrot.slane %v12473, 6
      %v12613 = vrot.slane %v12474, 2
      %v12614 = vrot.slane %v12474, 4
      %v12615 = vrot.slane %v12474, 6
      %12616 = vst [vmem:[#allocation1] ss:$4 sm:$0xff] %v12432
      %s12617 = scalar_lea.vmem [#allocation1], 1
      %12618 = vst [vmem:[%s12617] ss:$4 sm:$0xff] %v12520
      %s12619 = scalar_lea.vmem [#allocation1], 2
      %12620 = vst [vmem:[%s12619] ss:$4 sm:$0xff] %v12521
      %s12621 = scalar_lea.vmem [#allocation1], 3
      %12622 = vst [vmem:[%s12621] ss:$4 sm:$0xff] %v12522
      %s12623 = scalar_lea.vmem [#allocation1], 32
      %12624 = vst [vmem:[%s12623] ss:$4 sm:$0xff] %v12433
      %s12625 = scalar_lea.vmem [#allocation1], 33
      %12626 = vst [vmem:[%s12625] ss:$4 sm:$0xff] %v12523
      %s12627 = scalar_lea.vmem [#allocation1], 34
      %12628 = vst [vmem:[%s12627] ss:$4 sm:$0xff] %v12524
      %s12629 = scalar_lea.vmem [#allocation1], 35
      %12630 = vst [vmem:[%s12629] ss:$4 sm:$0xff] %v12525
      %v12631 = vld.sshfl [vmem:[#allocation1] sm:$0xff pattern:$0x73625140]
      %v12632 = vld.sshfl [vmem:[#allocation1 + $0x20] sm:$0xff pattern:$0x73625140]
      %12633 = vst [vmem:[#allocation1] ss:$4 sm:$0xff] %v12526
      %12634 = vst [vmem:[%s12617] ss:$4 sm:$0xff] %v12435
      %12635 = vst [vmem:[%s12619] ss:$4 sm:$0xff] %v12527
      %12636 = vst [vmem:[%s12621] ss:$4 sm:$0xff] %v12528
      %12637 = vst [vmem:[%s12623] ss:$4 sm:$0xff] %v12529
      %12638 = vst [vmem:[%s12625] ss:$4 sm:$0xff] %v12436
      %12639 = vst [vmem:[%s12627] ss:$4 sm:$0xff] %v12530
      %12640 = vst [vmem:[%s12629] ss:$4 sm:$0xff] %v12531
      %v12641 = vld.sshfl [vmem:[#allocation1] sm:$0xff pattern:$0x73625140]
      %v12642 = vld.sshfl [vmem:[#allocation1 + $0x20] sm:$0xff pattern:$0x73625140]
      %12643 = vst [vmem:[#allocation1] ss:$4 sm:$0xff] %v12532
      %12644 = vst [vmem:[%s12617] ss:$4 sm:$0xff] %v12533
      %12645 = vst [vmem:[%s12619] ss:$4 sm:$0xff] %v12438
      %12646 = vst [vmem:[%s12621] ss:$4 sm:$0xff] %v12534
      %12647 = vst [vmem:[%s12623] ss:$4 sm:$0xff] %v12535
      %12648 = vst [vmem:[%s12625] ss:$4 sm:$0xff] %v12536
      %12649 = vst [vmem:[%s12627] ss:$4 sm:$0xff] %v12439
      %12650 = vst [vmem:[%s12629] ss:$4 sm:$0xff] %v12537
      %v12651 = vld.sshfl [vmem:[#allocation1] sm:$0xff pattern:$0x73625140]
      %v12652 = vld.sshfl [vmem:[#allocation1 + $0x20] sm:$0xff pattern:$0x73625140]
      %12653 = vst [vmem:[#allocation1] ss:$4 sm:$0xff] %v12538
      %12654 = vst [vmem:[%s12617] ss:$4 sm:$0xff] %v12539
      %12655 = vst [vmem:[%s12619] ss:$4 sm:$0xff] %v12540
      %12656 = vst [vmem:[%s12621] ss:$4 sm:$0xff] %v12441
      %12657 = vst [vmem:[%s12623] ss:$4 sm:$0xff] %v12541
      %12658 = vst [vmem:[%s12625] ss:$4 sm:$0xff] %v12542
      %12659 = vst [vmem:[%s12627] ss:$4 sm:$0xff] %v12543
      %12660 = vst [vmem:[%s12629] ss:$4 sm:$0xff] %v12442
      %v12661 = vld.sshfl [vmem:[#allocation1] sm:$0xff pattern:$0x73625140]
      %v12662 = vld.sshfl [vmem:[#allocation1 + $0x20] sm:$0xff pattern:$0x73625140]
      %12663 = vst [vmem:[#allocation1] ss:$4 sm:$0xff] %v12443
      %12664 = vst [vmem:[%s12617] ss:$4 sm:$0xff] %v12544
      %12665 = vst [vmem:[%s12619] ss:$4 sm:$0xff] %v12545
      %12666 = vst [vmem:[%s12621] ss:$4 sm:$0xff] %v12546
      %12667 = vst [vmem:[%s12623] ss:$4 sm:$0xff] %v12444
      %12668 = vst [vmem:[%s12625] ss:$4 sm:$0xff] %v12547
      %12669 = vst [vmem:[%s12627] ss:$4 sm:$0xff] %v12548
      %12670 = vst [vmem:[%s12629] ss:$4 sm:$0xff] %v12549
      %v12671 = vld.sshfl [vmem:[#allocation1] sm:$0xff pattern:$0x73625140]
      %v12672 = vld.sshfl [vmem:[#allocation1 + $0x20] sm:$0xff pattern:$0x73625140]
      %12673 = vst [vmem:[#allocation1] ss:$4 sm:$0xff] %v12550
      %12674 = vst [vmem:[%s12617] ss:$4 sm:$0xff] %v12446
      %12675 = vst [vmem:[%s12619] ss:$4 sm:$0xff] %v12551
      %12676 = vst [vmem:[%s12621] ss:$4 sm:$0xff] %v12552
      %12677 = vst [vmem:[%s12623] ss:$4 sm:$0xff] %v12553
      %12678 = vst [vmem:[%s12625] ss:$4 sm:$0xff] %v12447
      %12679 = vst [vmem:[%s12627] ss:$4 sm:$0xff] %v12554
      %12680 = vst [vmem:[%s12629] ss:$4 sm:$0xff] %v12555
      %v12681 = vld.sshfl [vmem:[#allocation1] sm:$0xff pattern:$0x73625140]
      %v12682 = vld.sshfl [vmem:[#allocation1 + $0x20] sm:$0xff pattern:$0x73625140]
      %12683 = vst [vmem:[#allocation1] ss:$4 sm:$0xff] %v12556
      %12684 = vst [vmem:[%s12617] ss:$4 sm:$0xff] %v12557
      %12685 = vst [vmem:[%s12619] ss:$4 sm:$0xff] %v12449
      %12686 = vst [vmem:[%s12621] ss:$4 sm:$0xff] %v12558
      %12687 = vst [vmem:[%s12623] ss:$4 sm:$0xff] %v12559
      %12688 = vst [vmem:[%s12625] ss:$4 sm:$0xff] %v12560
      %12689 = vst [vmem:[%s12627] ss:$4 sm:$0xff] %v12450
      %12690 = vst [vmem:[%s12629] ss:$4 sm:$0xff] %v12561
      %v12691 = vld.sshfl [vmem:[#allocation1] sm:$0xff pattern:$0x73625140]
      %v12692 = vld.sshfl [vmem:[#allocation1 + $0x20] sm:$0xff pattern:$0x73625140]
      %12693 = vst [vmem:[#allocation1] ss:$4 sm:$0xff] %v12562
      %12694 = vst [vmem:[%s12617] ss:$4 sm:$0xff] %v12563
      %12695 = vst [vmem:[%s12619] ss:$4 sm:$0xff] %v12564
      %12696 = vst [vmem:[%s12621] ss:$4 sm:$0xff] %v12452
      %12697 = vst [vmem:[%s12623] ss:$4 sm:$0xff] %v12565
      %12698 = vst [vmem:[%s12625] ss:$4 sm:$0xff] %v12566
      %12699 = vst [vmem:[%s12627] ss:$4 sm:$0xff] %v12567
      %12700 = vst [vmem:[%s12629] ss:$4 sm:$0xff] %v12453
      %v12701 = vld.sshfl [vmem:[#allocation1] sm:$0xff pattern:$0x73625140]
      %v12702 = vld.sshfl [vmem:[#allocation1 + $0x20] sm:$0xff pattern:$0x73625140]
      %12703 = vst [vmem:[#allocation1] ss:$4 sm:$0xff] %v12454
      %12704 = vst [vmem:[%s12617] ss:$4 sm:$0xff] %v12568
      %12705 = vst [vmem:[%s12619] ss:$4 sm:$0xff] %v12569
      %12706 = vst [vmem:[%s12621] ss:$4 sm:$0xff] %v12570
      %12707 = vst [vmem:[%s12623] ss:$4 sm:$0xff] %v12455
      %12708 = vst [vmem:[%s12625] ss:$4 sm:$0xff] %v12571
      %12709 = vst [vmem:[%s12627] ss:$4 sm:$0xff] %v12572
      %12710 = vst [vmem:[%s12629] ss:$4 sm:$0xff] %v12573
      %v12711 = vld.sshfl [vmem:[#allocation1] sm:$0xff pattern:$0x73625140]
      %v12712 = vld.sshfl [vmem:[#allocation1 + $0x20] sm:$0xff pattern:$0x73625140]
      %12713 = vst [vmem:[#allocation1] ss:$4 sm:$0xff] %v12574
      %12714 = vst [vmem:[%s12617] ss:$4 sm:$0xff] %v12457
      %12715 = vst [vmem:[%s12619] ss:$4 sm:$0xff] %v12575
      %12716 = vst [vmem:[%s12621] ss:$4 sm:$0xff] %v12576
      %12717 = vst [vmem:[%s12623] ss:$4 sm:$0xff] %v12577
      %12718 = vst [vmem:[%s12625] ss:$4 sm:$0xff] %v12458
      %12719 = vst [vmem:[%s12627] ss:$4 sm:$0xff] %v12578
      %12720 = vst [vmem:[%s12629] ss:$4 sm:$0xff] %v12579
      %v12721 = vld.sshfl [vmem:[#allocation1] sm:$0xff pattern:$0x73625140]
      %v12722 = vld.sshfl [vmem:[#allocation1 + $0x20] sm:$0xff pattern:$0x73625140]
      %12723 = vst [vmem:[#allocation1] ss:$4 sm:$0xff] %v12580
      %12724 = vst [vmem:[%s12617] ss:$4 sm:$0xff] %v12581
      %12725 = vst [vmem:[%s12619] ss:$4 sm:$0xff] %v12460
      %12726 = vst [vmem:[%s12621] ss:$4 sm:$0xff] %v12582
      %12727 = vst [vmem:[%s12623] ss:$4 sm:$0xff] %v12583
      %12728 = vst [vmem:[%s12625] ss:$4 sm:$0xff] %v12584
      %12729 = vst [vmem:[%s12627] ss:$4 sm:$0xff] %v12461
      %12730 = vst [vmem:[%s12629] ss:$4 sm:$0xff] %v12585
      %v12731 = vld.sshfl [vmem:[#allocation1] sm:$0xff pattern:$0x73625140]
      %v12732 = vld.sshfl [vmem:[#allocation1 + $0x20] sm:$0xff pattern:$0x73625140]
      %12733 = vst [vmem:[#allocation1] ss:$4 sm:$0xff] %v12586
      %12734 = vst [vmem:[%s12617] ss:$4 sm:$0xff] %v12587
      %12735 = vst [vmem:[%s12619] ss:$4 sm:$0xff] %v12588
      %12736 = vst [vmem:[%s12621] ss:$4 sm:$0xff] %v12463
      %12737 = vst [vmem:[%s12623] ss:$4 sm:$0xff] %v12589
      %12738 = vst [vmem:[%s12625] ss:$4 sm:$0xff] %v12590
      %12739 = vst [vmem:[%s12627] ss:$4 sm:$0xff] %v12591
      %12740 = vst [vmem:[%s12629] ss:$4 sm:$0xff] %v12464
      %v12741 = vld.sshfl [vmem:[#allocation1] sm:$0xff pattern:$0x73625140]
      %v12742 = vld.sshfl [vmem:[#allocation1 + $0x20] sm:$0xff pattern:$0x73625140]
      %12743 = vst [vmem:[#allocation1] ss:$4 sm:$0xff] %v12465
      %12744 = vst [vmem:[%s12617] ss:$4 sm:$0xff] %v12592
      %12745 = vst [vmem:[%s12619] ss:$4 sm:$0xff] %v12593
      %12746 = vst [vmem:[%s12621] ss:$4 sm:$0xff] %v12594
      %12747 = vst [vmem:[%s12623] ss:$4 sm:$0xff] %v12466
      %12748 = vst [vmem:[%s12625] ss:$4 sm:$0xff] %v12595
      %12749 = vst [vmem:[%s12627] ss:$4 sm:$0xff] %v12596
      %12750 = vst [vmem:[%s12629] ss:$4 sm:$0xff] %v12597
      %v12751 = vld.sshfl [vmem:[#allocation1] sm:$0xff pattern:$0x73625140]
      %v12752 = vld.sshfl [vmem:[#allocation1 + $0x20] sm:$0xff pattern:$0x73625140]
      %12753 = vst [vmem:[#allocation1] ss:$4 sm:$0xff] %v12598
      %12754 = vst [vmem:[%s12617] ss:$4 sm:$0xff] %v12468
      %12755 = vst [vmem:[%s12619] ss:$4 sm:$0xff] %v12599
      %12756 = vst [vmem:[%s12621] ss:$4 sm:$0xff] %v12600
      %12757 = vst [vmem:[%s12623] ss:$4 sm:$0xff] %v12601
      %12758 = vst [vmem:[%s12625] ss:$4 sm:$0xff] %v12469
      %12759 = vst [vmem:[%s12627] ss:$4 sm:$0xff] %v12602
      %12760 = vst [vmem:[%s12629] ss:$4 sm:$0xff] %v12603
      %v12761 = vld.sshfl [vmem:[#allocation1] sm:$0xff pattern:$0x73625140]
      %v12762 = vld.sshfl [vmem:[#allocation1 + $0x20] sm:$0xff pattern:$0x73625140]
      %12763 = vst [vmem:[#allocation1] ss:$4 sm:$0xff] %v12604
      %12764 = vst [vmem:[%s12617] ss:$4 sm:$0xff] %v12605
      %12765 = vst [vmem:[%s12619] ss:$4 sm:$0xff] %v12471
      %12766 = vst [vmem:[%s12621] ss:$4 sm:$0xff] %v12606
      %12767 = vst [vmem:[%s12623] ss:$4 sm:$0xff] %v12607
      %12768 = vst [vmem:[%s12625] ss:$4 sm:$0xff] %v12608
      %12769 = vst [vmem:[%s12627] ss:$4 sm:$0xff] %v12472
      %12770 = vst [vmem:[%s12629] ss:$4 sm:$0xff] %v12609
      %v12771 = vld.sshfl [vmem:[#allocation1] sm:$0xff pattern:$0x73625140]
      %v12772 = vld.sshfl [vmem:[#allocation1 + $0x20] sm:$0xff pattern:$0x73625140]
      %12773 = vst [vmem:[#allocation1] ss:$4 sm:$0xff] %v12610
      %12774 = vst [vmem:[%s12617] ss:$4 sm:$0xff] %v12611
      %12775 = vst [vmem:[%s12619] ss:$4 sm:$0xff] %v12612
      %12776 = vst [vmem:[%s12621] ss:$4 sm:$0xff] %v12474
      %12777 = vst [vmem:[%s12623] ss:$4 sm:$0xff] %v12613
      %12778 = vst [vmem:[%s12625] ss:$4 sm:$0xff] %v12614
      %12779 = vst [vmem:[%s12627] ss:$4 sm:$0xff] %v12615
      %12780 = vst [vmem:[%s12629] ss:$4 sm:$0xff] %v12475
      %v12781 = vld.sshfl [vmem:[#allocation1] sm:$0xff pattern:$0x73625140]
      %v12782 = vld.sshfl [vmem:[#allocation1 + $0x20] sm:$0xff pattern:$0x73625140]
      %vm12815 = vcmask 64512
      %12816 = vst.msk [vmem:[%s319] sm:$0xff] %vm12815, %v12631
      %12817 = vst.msk [vmem:[%s319 + $0x8] sm:$0xff] %vm12815, %v12632
      %12818 = vst.msk [vmem:[%s319 + $0x10] sm:$0xff] %vm12815, %v12641
      %12819 = vst.msk [vmem:[%s319 + $0x18] sm:$0xff] %vm12815, %v12642
      %12820 = vst.msk [vmem:[%s319 + $0x20] sm:$0xff] %vm12815, %v12651
      %12821 = vst.msk [vmem:[%s319 + $0x28] sm:$0xff] %vm12815, %v12652
      %12822 = vst.msk [vmem:[%s319 + $0x30] sm:$0xff] %vm12815, %v12661
      %12823 = vst.msk [vmem:[%s319 + $0x38] sm:$0xff] %vm12815, %v12662
      %12824 = vst.msk [vmem:[%s319 + $0x40] sm:$0xff] %vm12815, %v12671
      %12825 = vst.msk [vmem:[%s319 + $0x48] sm:$0xff] %vm12815, %v12672
      %12826 = vst.msk [vmem:[%s319 + $0x50] sm:$0xff] %vm12815, %v12681
      %12827 = vst.msk [vmem:[%s319 + $0x58] sm:$0xff] %vm12815, %v12682
      %12828 = vst.msk [vmem:[%s319 + $0x60] sm:$0xff] %vm12815, %v12691
      %12829 = vst.msk [vmem:[%s319 + $0x68] sm:$0xff] %vm12815, %v12692
      %12830 = vst.msk [vmem:[%s319 + $0x70] sm:$0xff] %vm12815, %v12701
      %12831 = vst.msk [vmem:[%s319 + $0x78] sm:$0xff] %vm12815, %v12702
      %12832 = vst.msk [vmem:[%s319 + $0x80] sm:$0xff] %vm12815, %v12711
      %12833 = vst.msk [vmem:[%s319 + $0x88] sm:$0xff] %vm12815, %v12712
      %12834 = vst.msk [vmem:[%s319 + $0x90] sm:$0xff] %vm12815, %v12721
      %12835 = vst.msk [vmem:[%s319 + $0x98] sm:$0xff] %vm12815, %v12722
      %12836 = vst.msk [vmem:[%s319 + $0xa0] sm:$0xff] %vm12815, %v12731
      %12837 = vst.msk [vmem:[%s319 + $0xa8] sm:$0xff] %vm12815, %v12732
      %12838 = vst.msk [vmem:[%s319 + $0xb0] sm:$0xff] %vm12815, %v12741
      %12839 = vst.msk [vmem:[%s319 + $0xb8] sm:$0xff] %vm12815, %v12742
      %12840 = vst.msk [vmem:[%s319 + $0xc0] sm:$0xff] %vm12815, %v12751
      %12841 = vst.msk [vmem:[%s319 + $0xc8] sm:$0xff] %vm12815, %v12752
      %12842 = vst.msk [vmem:[%s319 + $0xd0] sm:$0xff] %vm12815, %v12761
      %12843 = vst.msk [vmem:[%s319 + $0xd8] sm:$0xff] %vm12815, %v12762
      %12844 = vst.msk [vmem:[%s319 + $0xe0] sm:$0xff] %vm12815, %v12771
      %12845 = vst.msk [vmem:[%s319 + $0xe8] sm:$0xff] %vm12815, %v12772
      %12846 = vst.msk [vmem:[%s319 + $0xf0] sm:$0xff] %vm12815, %v12781
      %12847 = vst.msk [vmem:[%s319 + $0xf8] sm:$0xff] %vm12815, %v12782
      %p12848 = scmp.lt.s32.totalorder %s19, 1
      %s12849 = scalar_select %p12848, %s19, 1
      %s12850 = smul.addr %s12849, 32
      %s12851 = smul.addr %s12850, 8
      %s12852 = scalar_lea.vmem %s8, %s12851
      // Predicated region
      $region53: #{aspp_apply_nhwc.1} parent=51 // pred_check
        %p12853 = pneg %p215
      $region54: #{aspp_apply_nhwc.1} parent=51 // pred_check_branch
        %12855 = sbr.rel (%p12853) target = $region56
      $region55: #{aspp_apply_nhwc.1} parent=51 // pred_region
        _
      $region56: #{aspp_apply_nhwc.1} parent=51 // pred_fallthru
        _
    $region52: #{aspp_apply_nhwc.1} parent=5 // pred_fallthru
      _
    %p12856 = scmp.le.s32.totalorder 2, %s14
    // Predicated region
    $region57: #{aspp_apply_nhwc.1} parent=5 // pred_check
      %p12857 = pneg %p12856
    $region58: #{aspp_apply_nhwc.1} parent=5 // pred_check_branch
      %12859 = sbr.rel (%p12857) target = $region60
    $region59: #{aspp_apply_nhwc.1} parent=5 // pred_region
      %s12860 = ssub.s32 %s14, 2
      // Predicated region
      $region61: #{aspp_apply_nhwc.1} parent=59 // pred_check
        %p12861 = pneg %p221
      $region62: #{aspp_apply_nhwc.1} parent=59 // pred_check_branch
        %12863 = sbr.rel (%p12861) target = $region64
      $region63: #{aspp_apply_nhwc.1} parent=59 // pred_region
        %p12864 = scmp.lt.s32.totalorder %s20, 1
        %s12865 = scalar_select %p12864, %s20, 1
        %s12866 = smul.addr %s12865, 32
        %s12867 = smul.addr %s12866, 8
        %s12868 = scalar_lea.vmem %s8, %s12867
      $region64: #{aspp_apply_nhwc.1} parent=59 // pred_fallthru
        _
    $region60: #{aspp_apply_nhwc.1} parent=5 // pred_fallthru
      _
  $region6: #{aspp_apply_nhwc.1} parent=0 // loop_footer
    %s18 = sadd.s32 1, %s14
  $region7: #{aspp_apply_nhwc.1} parent=0 // loop_footer_branch
    %13 = sbr.rel target = $region3
  $region8: #{aspp_apply_nhwc.1} parent=0 // loop_exit
    _

</llo_original>
